<compile_context>
chip_gen: v7x
topology: tpu7x:2x2x1
jax: 0.10.0
libtpu: 0.0.40
codegen_flags: <defaults>
</compile_context>

<pallas_src>
import functools

import jax
import jax.numpy as jnp
from jax.experimental import pallas as pl
from jax.experimental.pallas import tpu as pltpu

NUM_CLASSES = 10
HIDDEN_DIMS = [32 * 32 * 3, 250, 250, 250, 250, 250, 50]   # 6 Linear+BN+ReLU blocks
NUM_HIDDEN = len(HIDDEN_DIMS) - 1
BN_EPS = 1e-5
LANE = 128
NEG_INF = -1e30


def _round_up(n, m):
    return ((n + m - 1) // m) * m


PADDED_IN = _round_up(HIDDEN_DIMS[0], LANE)            # 3072
PADDED_HID = 256                                        # one lane-aligned width for every
                                                        # hidden layer -> uniform finalize loop
PADDED_DIMS = [PADDED_IN] + [PADDED_HID] * NUM_HIDDEN
PADDED_CLASSES = _round_up(NUM_CLASSES, LANE)           # 128
N_PARAMS = 3 * NUM_HIDDEN + 2                           # [W, gamma, beta] x 6 + [W_out, b_out]


def fcnn_kernel(*refs, real_batch):
    """refs = (x_tile, [W,gamma,beta]*6, W_out, b_out, out, act, sum, sumsq)."""
    x_ref = refs[0]
    params = refs[1:1 + N_PARAMS]
    out_ref = refs[1 + N_PARAMS]
    act_ref, sum_ref, sq_ref = refs[1 + N_PARAMS + 1:]

    t = pl.program_id(0)
    nt = pl.num_programs(0)
    tb = x_ref.shape[0]                     # batch tile (stream phase + finalize row tile)
    padded_batch = act_ref.shape[0]
    n_row_tiles = padded_batch // tb

    @pl.when(t == 0)
    def _init():
        sum_ref[...] = jnp.zeros_like(sum_ref)
        sq_ref[...] = jnp.zeros_like(sq_ref)

    # ---- Streamed layer 0 (3072 -> 256) on this batch tile -------------------
    # x arrives f32; cast to bf16 on the VPU (hidden under the layer-0 DMA which
    # is the bound).  No bias: it cancels exactly under training-mode BN.
    x_bf = x_ref[...].astype(jnp.bfloat16)
    h0 = jnp.dot(x_bf, params[0][...], preferred_element_type=jnp.float32)

    off0 = pl.multiple_of(t * tb, tb)
    act_ref[pl.ds(off0, tb), :] = h0.astype(act_ref.dtype)

    # Zero-padded batch rows contribute exactly zero here (zero x rows, no bias),
    # so layer-0 statistics need no masking.  Accumulation is free filler under
    # the DMA-bound phase.
    sum_ref[...] += jnp.sum(h0, axis=0, keepdims=True)
    sq_ref[...] += jnp.sum(h0 * h0, axis=0, keepdims=True)

    # ---- Full-batch BN finalize + remaining layers, row-tiled -----------------
    @pl.when(t == nt - 1)
    def _finalize():
        inv_b = jnp.float32(1.0 / real_batch)

        def scale_shift(gamma_ref, beta_ref):
            # Training-mode BatchNorm1d (biased variance) fused to one scale/shift.
            mu = sum_ref[...] * inv_b
            var = jnp.maximum(sq_ref[...] * inv_b - mu * mu, 0.0)
            scale = gamma_ref[...] * jax.lax.rsqrt(var + BN_EPS)
            shift = beta_ref[...] - mu * scale
            return scale, shift

        def row_mask(off):
            # (1, tb) f32 mask of real (non-padded) batch rows for this row tile.
            rows = off + jax.lax.broadcasted_iota(jnp.int32, (1, tb), 1)
            return (rows < real_batch).astype(jnp.float32)

        # Hidden layers 1..5: apply previous layer's BN+ReLU, matmul, accumulate
        # masked BN stats on the MXU, write pre-BN activations back in place.
        for layer in range(1, NUM_HIDDEN):
            scale, shift = scale_shift(params[3 * (layer - 1) + 1],
                                       params[3 * (layer - 1) + 2])
            w = params[3 * layer][...]
            sum_ref[...] = jnp.zeros_like(sum_ref)
            sq_ref[...] = jnp.zeros_like(sq_ref)

            @pl.loop(0, n_row_tiles)
            def _(r):
                off = pl.multiple_of(r * tb, tb)
                z_prev = act_ref[pl.ds(off, tb), :].astype(jnp.float32)
                h = jnp.maximum(z_prev * scale + shift, 0.0).astype(jnp.bfloat16)
                z = jnp.dot(h, w, preferred_element_type=jnp.float32)
                mask = row_mask(off)
                # Axis-0 reductions on the MXU (frees the saturated VALU/XLU in
                # this phase); pad rows masked out of the statistics.
                sum_ref[...] += jnp.dot(mask, z, preferred_element_type=jnp.float32)
                sq_ref[...] += jnp.dot(mask, z * z, preferred_element_type=jnp.float32)
                act_ref[pl.ds(off, tb), :] = z.astype(act_ref.dtype)

        # Output layer: last BN+ReLU, Linear (+bias), softmax(dim=1).  Padded
        # class columns carry a -1e30 bias so they vanish under softmax.
        scale, shift = scale_shift(params[3 * NUM_HIDDEN - 2],
                                   params[3 * NUM_HIDDEN - 1])
        w_out = params[3 * NUM_HIDDEN][...]
        b_out = params[3 * NUM_HIDDEN + 1][...]

        @pl.loop(0, n_row_tiles)
        def _(r):
            off = pl.multiple_of(r * tb, tb)
            z_prev = act_ref[pl.ds(off, tb), :].astype(jnp.float32)
            h = jnp.maximum(z_prev * scale + shift, 0.0).astype(jnp.bfloat16)
            logits = jnp.dot(h, w_out, preferred_element_type=jnp.float32) + b_out
            zc = logits - jnp.max(logits, axis=1, keepdims=True)
            e = jnp.exp(zc)
            # approx reciprocal (EUP): rows sum to 1 within ~1e-3, fine here.
            out_ref[pl.ds(off, tb), :] = e * pl.reciprocal(
                jnp.sum(e, axis=1, keepdims=True), approx=True)


def init_params(key, num_classes=NUM_CLASSES):
    """Deterministic synthetic parameters in PyTorch-like (unpadded, f32) shapes."""
    dims = HIDDEN_DIMS + [num_classes]
    params = []
    for i in range(len(dims) - 1):
        fan_in, fan_out = dims[i], dims[i + 1]
        key, kw, kb = jax.random.split(key, 3)
        bound = 1.0 / (fan_in ** 0.5)
        w = jax.random.uniform(kw, (fan_in, fan_out), jnp.float32, -bound, bound)
        b = jax.random.uniform(kb, (fan_out,), jnp.float32, -bound, bound)
        if i < len(dims) - 2:
            params.extend([w, b, jnp.ones((fan_out,), jnp.float32),
                           jnp.zeros((fan_out,), jnp.float32)])
        else:
            params.extend([w, b])
    return params


def _pad2(a, rows, cols, fill=0.0):
    r, c = a.shape
    return jnp.pad(a, ((0, rows - r), (0, cols - c)), constant_values=fill)


def prepare_params(params):
    """Pad feature dims to lane multiples; weights -> bf16, BN/bias vectors -> f32 (1, P).

    Hidden-layer Linear biases are dropped: a bias feeding training-mode
    BatchNorm cancels exactly in (z - mean), so it is a mathematical no-op.
    """
    flat = []
    idx = 0
    for layer in range(NUM_HIDDEN):
        w, _b, gamma, beta = params[idx:idx + 4]
        idx += 4
        pin, pout = PADDED_DIMS[layer], PADDED_DIMS[layer + 1]
        flat.append(_pad2(w, pin, pout).astype(jnp.bfloat16))
        flat.append(_pad2(gamma[None, :], 1, pout).astype(jnp.float32))   # pad gamma = 0
        flat.append(_pad2(beta[None, :], 1, pout).astype(jnp.float32))
    w, b = params[idx:idx + 2]
    flat.append(_pad2(w, PADDED_DIMS[NUM_HIDDEN], PADDED_CLASSES).astype(jnp.bfloat16))
    flat.append(_pad2(b[None, :], 1, PADDED_CLASSES, fill=NEG_INF).astype(jnp.float32))
    return flat


@functools.partial(jax.jit, static_argnames=("num_classes",))
def fcnn_forward(x_nchw, params, num_classes=NUM_CLASSES):
    batch = x_nchw.shape[0]
    # nn.Flatten on NCHW: channel-major flatten -> (B, 3072).  Stays f32; the
    # bf16 cast happens in-kernel so the input streams once at 4 B/elem instead
    # of a separate wrapper cast pass plus a 2 B/elem stream.
    x2d = x_nchw.reshape(batch, -1).astype(jnp.float32)

    # Pad the batch to a multiple of 128 (zero rows).  Pad rows are masked out
    # of every layer's BN statistics in-kernel and sliced off the output.
    padded_batch = _round_up(batch, LANE)
    if padded_batch != batch:
        x2d = jnp.pad(x2d, ((0, padded_batch - batch), (0, 0)))

    # Batch tile for the streamed layer-0 phase and the row-tiled finalize.
    # tb=512 amortizes the ~0.35 us/step pipeline overhead while keeping the
    # double-buffered f32 x tiles (2 x 6 MiB) well inside v7x's 64 MiB VMEM.
    if padded_batch % 512 == 0:
        tb = 512
    elif padded_batch % 256 == 0:
        tb = 256
    else:
        tb = 128
    num_tiles = padded_batch // tb

    flat = prepare_params(params)
    inputs = [x2d] + flat

    x_spec = pl.BlockSpec((tb, PADDED_DIMS[0]), lambda t: (t, 0))
    # Grid-invariant parameters: single-buffer to free VMEM headroom.
    param_specs = [pl.BlockSpec(p.shape, lambda t: (0, 0),
                                pipeline_mode=pl.Buffered(buffer_count=1))
                   for p in flat]
    out_spec = pl.BlockSpec((padded_batch, PADDED_CLASSES), lambda t: (0, 0))

    probs_padded = pl.pallas_call(
        functools.partial(fcnn_kernel, real_batch=batch),
        out_shape=jax.ShapeDtypeStruct((padded_batch, PADDED_CLASSES), jnp.float32),
        grid_spec=pltpu.PrefetchScalarGridSpec(
            num_scalar_prefetch=0,
            grid=(num_tiles,),
            in_specs=[x_spec] + param_specs,
            out_specs=out_spec,
            scratch_shapes=[
                pltpu.VMEM((padded_batch, PADDED_HID), jnp.bfloat16),  # pre-BN activations
                pltpu.VMEM((1, PADDED_HID), jnp.float32),              # running sum
                pltpu.VMEM((1, PADDED_HID), jnp.float32),              # running sum of squares
            ],
        ),
        compiler_params=pltpu.CompilerParams(
            # BN accumulation + last-step finalize make the batch axis sequential.
            # TODO(synk): on v7x, split the batch axis across both TensorCores
            # with a CMEM + core_barrier reduction of the BN sum/sumsq.
            dimension_semantics=("arbitrary",),
            vmem_limit_bytes=48 << 20,   # fits v7x's 64 MiB; ample for tb=512 f32 tiles
        ),
    )(*inputs)

    return probs_padded[:batch, :num_classes]


if __name__ == "__main__":
    key = jax.random.PRNGKey(0)
    k_x, k_p = jax.random.split(key)

    batch = 8
    x = jax.random.normal(k_x, (batch, 3, 32, 32), jnp.float32)   # NCHW, 3*32*32 = 3072
    params = init_params(k_p, NUM_CLASSES)

    probs = fcnn_forward(x, params, num_classes=NUM_CLASSES)
    jax.block_until_ready(probs)

    assert probs.shape == (batch, NUM_CLASSES)
    assert bool(jnp.all(jnp.isfinite(probs)))
    row_sums = jnp.sum(probs, axis=1)
    assert bool(jnp.all(jnp.abs(row_sums - 1.0) < 5e-3))

    print("KERNEL_OK")
</pallas_src>

<mosaic_0001>
module attributes {stable_mosaic.version = 11 : i64} {
  func.func @fcnn_kernel(%arg0: i32, %arg1: memref<128x3072xf32, #tpu.memory_space<vmem>>, %arg2: memref<3072x256xbf16, #tpu.memory_space<vmem>>, %arg3: memref<1x256xf32, #tpu.memory_space<vmem>>, %arg4: memref<1x256xf32, #tpu.memory_space<vmem>>, %arg5: memref<256x256xbf16, #tpu.memory_space<vmem>>, %arg6: memref<1x256xf32, #tpu.memory_space<vmem>>, %arg7: memref<1x256xf32, #tpu.memory_space<vmem>>, %arg8: memref<256x256xbf16, #tpu.memory_space<vmem>>, %arg9: memref<1x256xf32, #tpu.memory_space<vmem>>, %arg10: memref<1x256xf32, #tpu.memory_space<vmem>>, %arg11: memref<256x256xbf16, #tpu.memory_space<vmem>>, %arg12: memref<1x256xf32, #tpu.memory_space<vmem>>, %arg13: memref<1x256xf32, #tpu.memory_space<vmem>>, %arg14: memref<256x256xbf16, #tpu.memory_space<vmem>>, %arg15: memref<1x256xf32, #tpu.memory_space<vmem>>, %arg16: memref<1x256xf32, #tpu.memory_space<vmem>>, %arg17: memref<256x256xbf16, #tpu.memory_space<vmem>>, %arg18: memref<1x256xf32, #tpu.memory_space<vmem>>, %arg19: memref<1x256xf32, #tpu.memory_space<vmem>>, %arg20: memref<256x128xbf16, #tpu.memory_space<vmem>>, %arg21: memref<1x128xf32, #tpu.memory_space<vmem>>, %arg22: memref<128x128xf32, #tpu.memory_space<vmem>>, %arg23: memref<128x256xbf16, #tpu.memory_space<vmem>>, %arg24: memref<1x256xf32, #tpu.memory_space<vmem>>, %arg25: memref<1x256xf32, #tpu.memory_space<vmem>>) attributes {dimension_semantics = [#tpu.dimension_semantics<arbitrary>], iteration_bounds = array<i64: 1>, scalar_prefetch = 0 : i64, scratch_operands = 3 : i64, tpu.core_type = #tpu.core_type<tc>, window_params = [{transform_indices = @transform_0, window_bounds = array<i64: 128, 3072>}, {pipeline_mode = #tpu.pipeline_mode<synchronous>, transform_indices = @transform_1, window_bounds = array<i64: 3072, 256>}, {pipeline_mode = #tpu.pipeline_mode<synchronous>, transform_indices = @transform_2, window_bounds = array<i64: 1, 256>}, {pipeline_mode = #tpu.pipeline_mode<synchronous>, transform_indices = @transform_3, window_bounds = array<i64: 1, 256>}, {pipeline_mode = #tpu.pipeline_mode<synchronous>, transform_indices = @transform_4, window_bounds = array<i64: 256, 256>}, {pipeline_mode = #tpu.pipeline_mode<synchronous>, transform_indices = @transform_5, window_bounds = array<i64: 1, 256>}, {pipeline_mode = #tpu.pipeline_mode<synchronous>, transform_indices = @transform_6, window_bounds = array<i64: 1, 256>}, {pipeline_mode = #tpu.pipeline_mode<synchronous>, transform_indices = @transform_7, window_bounds = array<i64: 256, 256>}, {pipeline_mode = #tpu.pipeline_mode<synchronous>, transform_indices = @transform_8, window_bounds = array<i64: 1, 256>}, {pipeline_mode = #tpu.pipeline_mode<synchronous>, transform_indices = @transform_9, window_bounds = array<i64: 1, 256>}, {pipeline_mode = #tpu.pipeline_mode<synchronous>, transform_indices = @transform_10, window_bounds = array<i64: 256, 256>}, {pipeline_mode = #tpu.pipeline_mode<synchronous>, transform_indices = @transform_11, window_bounds = array<i64: 1, 256>}, {pipeline_mode = #tpu.pipeline_mode<synchronous>, transform_indices = @transform_12, window_bounds = array<i64: 1, 256>}, {pipeline_mode = #tpu.pipeline_mode<synchronous>, transform_indices = @transform_13, window_bounds = array<i64: 256, 256>}, {pipeline_mode = #tpu.pipeline_mode<synchronous>, transform_indices = @transform_14, window_bounds = array<i64: 1, 256>}, {pipeline_mode = #tpu.pipeline_mode<synchronous>, transform_indices = @transform_15, window_bounds = array<i64: 1, 256>}, {pipeline_mode = #tpu.pipeline_mode<synchronous>, transform_indices = @transform_16, window_bounds = array<i64: 256, 256>}, {pipeline_mode = #tpu.pipeline_mode<synchronous>, transform_indices = @transform_17, window_bounds = array<i64: 1, 256>}, {pipeline_mode = #tpu.pipeline_mode<synchronous>, transform_indices = @transform_18, window_bounds = array<i64: 1, 256>}, {pipeline_mode = #tpu.pipeline_mode<synchronous>, transform_indices = @transform_19, window_bounds = array<i64: 256, 128>}, {pipeline_mode = #tpu.pipeline_mode<synchronous>, transform_indices = @transform_20, window_bounds = array<i64: 1, 128>}, {pipeline_mode = #tpu.pipeline_mode<synchronous>, transform_indices = @transform_21, window_bounds = array<i64: 128, 128>}]} {
    %c0_i32 = arith.constant 0 : i32
    %0 = arith.cmpi eq, %arg0, %c0_i32 : i32
    %1 = arith.extui %0 : i1 to i32
    %c0_i32_0 = arith.constant 0 : i32
    %2 = arith.cmpi ne, %1, %c0_i32_0 : i32
    scf.if %2 {
      %cst_17 = arith.constant 0.000000e+00 : f32
      %26 = vector.broadcast %cst_17 : f32 to vector<1x256xf32>
      %c0_18 = arith.constant 0 : index
      %c0_19 = arith.constant 0 : index
      %27 = vector.load %arg24[%c0_18, %c0_19] : memref<1x256xf32, #tpu.memory_space<vmem>>, vector<1x256xf32>
      tpu.vector_store %arg24[%c0_18, %c0_19], %26 {strides = array<i32>} : memref<1x256xf32, #tpu.memory_space<vmem>>, vector<1x256xf32>,
      %cst_20 = arith.constant 0.000000e+00 : f32
      %28 = vector.broadcast %cst_20 : f32 to vector<1x256xf32>
      %c0_21 = arith.constant 0 : index
      %c0_22 = arith.constant 0 : index
      %29 = vector.load %arg25[%c0_21, %c0_22] : memref<1x256xf32, #tpu.memory_space<vmem>>, vector<1x256xf32>
      tpu.vector_store %arg25[%c0_21, %c0_22], %28 {strides = array<i32>} : memref<1x256xf32, #tpu.memory_space<vmem>>, vector<1x256xf32>,
    } else {
    }
    %c0 = arith.constant 0 : index
    %c0_1 = arith.constant 0 : index
    %3 = vector.load %arg1[%c0, %c0_1] : memref<128x3072xf32, #tpu.memory_space<vmem>>, vector<128x3072xf32>
    %4 = arith.truncf %3 : vector<128x3072xf32> to vector<128x3072xbf16>
    %c0_2 = arith.constant 0 : index
    %c0_3 = arith.constant 0 : index
    %5 = vector.load %arg2[%c0_2, %c0_3] : memref<3072x256xbf16, #tpu.memory_space<vmem>>, vector<3072x256xbf16>
    %cst = arith.constant dense<0.000000e+00> : vector<128x256xf32>
    %6 = tpu.matmul %4, %5, %cst {dimension_numbers = #tpu.dot_dimension_numbers<[1], [0], [0], [1], [0, 0, 1, 1], [], []>} : vector<128x3072xbf16>, vector<3072x256xbf16>, vector<128x256xf32> -> vector<128x256xf32>
    %c128_i32 = arith.constant 128 : i32
    %7 = arith.muli %arg0, %c128_i32 : i32
    %8 = tpu.assume_multiple %7, 128 : i32
    %9 = arith.truncf %6 : vector<128x256xf32> to vector<128x256xbf16>
    %10 = arith.index_cast %8 : i32 to index
    %c0_4 = arith.constant 0 : index
    %11 = vector.load %arg23[%10, %c0_4] : memref<128x256xbf16, #tpu.memory_space<vmem>>, vector<128x256xbf16>
    tpu.vector_store %arg23[%10, %c0_4], %9 {strides = array<i32>} : memref<128x256xbf16, #tpu.memory_space<vmem>>, vector<128x256xbf16>,
    %c0_5 = arith.constant 0 : index
    %c0_6 = arith.constant 0 : index
    %12 = vector.load %arg24[%c0_5, %c0_6] : memref<1x256xf32, #tpu.memory_space<vmem>>, vector<1x256xf32>
    %cst_7 = arith.constant dense<0.000000e+00> : vector<256xf32>
    %13 = vector.multi_reduction <add>, %6, %cst_7 [0] : vector<128x256xf32> to vector<256xf32>
    %14 = vector.shape_cast %13 : vector<256xf32> to vector<1x256xf32>
    %15 = arith.addf %12, %14 : vector<1x256xf32>
    %c0_8 = arith.constant 0 : index
    %c0_9 = arith.constant 0 : index
    %16 = vector.load %arg24[%c0_8, %c0_9] : memref<1x256xf32, #tpu.memory_space<vmem>>, vector<1x256xf32>
    tpu.vector_store %arg24[%c0_8, %c0_9], %15 {strides = array<i32>} : memref<1x256xf32, #tpu.memory_space<vmem>>, vector<1x256xf32>,
    %c0_10 = arith.constant 0 : index
    %c0_11 = arith.constant 0 : index
    %17 = vector.load %arg25[%c0_10, %c0_11] : memref<1x256xf32, #tpu.memory_space<vmem>>, vector<1x256xf32>
    %18 = arith.mulf %6, %6 : vector<128x256xf32>
    %cst_12 = arith.constant dense<0.000000e+00> : vector<256xf32>
    %19 = vector.multi_reduction <add>, %18, %cst_12 [0] : vector<128x256xf32> to vector<256xf32>
    %20 = vector.shape_cast %19 : vector<256xf32> to vector<1x256xf32>
    %21 = arith.addf %17, %20 : vector<1x256xf32>
    %c0_13 = arith.constant 0 : index
    %c0_14 = arith.constant 0 : index
    %22 = vector.load %arg25[%c0_13, %c0_14] : memref<1x256xf32, #tpu.memory_space<vmem>>, vector<1x256xf32>
    tpu.vector_store %arg25[%c0_13, %c0_14], %21 {strides = array<i32>} : memref<1x256xf32, #tpu.memory_space<vmem>>, vector<1x256xf32>,
    %c0_i32_15 = arith.constant 0 : i32
    %23 = arith.cmpi eq, %arg0, %c0_i32_15 : i32
    %24 = arith.extui %23 : i1 to i32
    %c0_i32_16 = arith.constant 0 : i32
    %25 = arith.cmpi ne, %24, %c0_i32_16 : i32
    scf.if %25 {
      %c0_17 = arith.constant 0 : index
      %c0_18 = arith.constant 0 : index
      %26 = vector.load %arg24[%c0_17, %c0_18] : memref<1x256xf32, #tpu.memory_space<vmem>>, vector<1x256xf32>
      %cst_19 = arith.constant 1.250000e-01 : f32
      %27 = vector.broadcast %cst_19 : f32 to vector<1x256xf32>
      %28 = arith.mulf %26, %27 : vector<1x256xf32>
      %c0_20 = arith.constant 0 : index
      %c0_21 = arith.constant 0 : index
      %29 = vector.load %arg25[%c0_20, %c0_21] : memref<1x256xf32, #tpu.memory_space<vmem>>, vector<1x256xf32>
      %cst_22 = arith.constant 1.250000e-01 : f32
      %30 = vector.broadcast %cst_22 : f32 to vector<1x256xf32>
      %31 = arith.mulf %29, %30 : vector<1x256xf32>
      %32 = arith.mulf %28, %28 : vector<1x256xf32>
      %33 = arith.subf %31, %32 : vector<1x256xf32>
      %cst_23 = arith.constant 0.000000e+00 : f32
      %34 = vector.broadcast %cst_23 : f32 to vector<1x256xf32>
      %35 = arith.maximumf %33, %34 : vector<1x256xf32>
      %c0_24 = arith.constant 0 : index
      %c0_25 = arith.constant 0 : index
      %36 = vector.load %arg3[%c0_24, %c0_25] : memref<1x256xf32, #tpu.memory_space<vmem>>, vector<1x256xf32>
      %cst_26 = arith.constant 9.99999974E-6 : f32
      %37 = vector.broadcast %cst_26 : f32 to vector<1x256xf32>
      %38 = arith.addf %35, %37 : vector<1x256xf32>
      %39 = math.rsqrt %38 : vector<1x256xf32>
      %40 = arith.mulf %36, %39 : vector<1x256xf32>
      %c0_27 = arith.constant 0 : index
      %c0_28 = arith.constant 0 : index
      %41 = vector.load %arg4[%c0_27, %c0_28] : memref<1x256xf32, #tpu.memory_space<vmem>>, vector<1x256xf32>
      %42 = arith.mulf %28, %40 : vector<1x256xf32>
      %43 = arith.subf %41, %42 : vector<1x256xf32>
      %c0_29 = arith.constant 0 : index
      %c0_30 = arith.constant 0 : index
      %44 = vector.load %arg5[%c0_29, %c0_30] : memref<256x256xbf16, #tpu.memory_space<vmem>>, vector<256x256xbf16>
      %cst_31 = arith.constant 0.000000e+00 : f32
      %45 = vector.broadcast %cst_31 : f32 to vector<1x256xf32>
      %c0_32 = arith.constant 0 : index
      %c0_33 = arith.constant 0 : index
      %46 = vector.load %arg24[%c0_32, %c0_33] : memref<1x256xf32, #tpu.memory_space<vmem>>, vector<1x256xf32>
      tpu.vector_store %arg24[%c0_32, %c0_33], %45 {strides = array<i32>} : memref<1x256xf32, #tpu.memory_space<vmem>>, vector<1x256xf32>,
      %cst_34 = arith.constant 0.000000e+00 : f32
      %47 = vector.broadcast %cst_34 : f32 to vector<1x256xf32>
      %c0_35 = arith.constant 0 : index
      %c0_36 = arith.constant 0 : index
      %48 = vector.load %arg25[%c0_35, %c0_36] : memref<1x256xf32, #tpu.memory_space<vmem>>, vector<1x256xf32>
      tpu.vector_store %arg25[%c0_35, %c0_36], %47 {strides = array<i32>} : memref<1x256xf32, #tpu.memory_space<vmem>>, vector<1x256xf32>,
      %c0_i32_37 = arith.constant 0 : i32
      %c1_i32 = arith.constant 1 : i32
      %49 = arith.muli %c0_i32_37, %c1_i32 : i32
      %c0_i32_38 = arith.constant 0 : i32
      %50 = arith.addi %c0_i32_38, %49 : i32
      %c128_i32_39 = arith.constant 128 : i32
      %51 = arith.muli %50, %c128_i32_39 : i32
      %52 = tpu.assume_multiple %51, 128 : i32
      %53 = arith.index_cast %52 : i32 to index
      %c0_40 = arith.constant 0 : index
      %54 = vector.load %arg23[%53, %c0_40] : memref<128x256xbf16, #tpu.memory_space<vmem>>, vector<128x256xbf16>
      %55 = arith.extf %54 : vector<128x256xbf16> to vector<128x256xf32>
      %56 = vector.broadcast %40 : vector<1x256xf32> to vector<128x256xf32>
      %57 = arith.mulf %55, %56 : vector<128x256xf32>
      %58 = vector.broadcast %43 : vector<1x256xf32> to vector<128x256xf32>
      %59 = arith.addf %57, %58 : vector<128x256xf32>
      %cst_41 = arith.constant 0.000000e+00 : f32
      %60 = vector.broadcast %cst_41 : f32 to vector<128x256xf32>
      %61 = arith.maximumf %59, %60 : vector<128x256xf32>
      %62 = arith.truncf %61 : vector<128x256xf32> to vector<128x256xbf16>
      %cst_42 = arith.constant dense<0.000000e+00> : vector<128x256xf32>
      %63 = tpu.matmul %62, %44, %cst_42 {dimension_numbers = #tpu.dot_dimension_numbers<[1], [0], [0], [1], [0, 0, 1, 1], [], []>} : vector<128x256xbf16>, vector<256x256xbf16>, vector<128x256xf32> -> vector<128x256xf32>
      %64 = tpu.iota {dimensions = array<i32: 1>} : vector<1x128xi32>
      %65 = vector.broadcast %52 : i32 to vector<1x128xi32>
      %66 = arith.addi %65, %64 : vector<1x128xi32>
      %c8_i32 = arith.constant 8 : i32
      %67 = vector.broadcast %c8_i32 : i32 to vector<1x128xi32>
      %68 = arith.cmpi slt, %66, %67 : vector<1x128xi32>
      %69 = arith.extui %68 : vector<1x128xi1> to vector<1x128xi32>
      %70 = arith.sitofp %69 : vector<1x128xi32> to vector<1x128xf32>
      %c0_43 = arith.constant 0 : index
      %c0_44 = arith.constant 0 : index
      %71 = vector.load %arg24[%c0_43, %c0_44] : memref<1x256xf32, #tpu.memory_space<vmem>>, vector<1x256xf32>
      %cst_45 = arith.constant dense<0.000000e+00> : vector<1x256xf32>
      %72 = tpu.matmul %70, %63, %cst_45 {dimension_numbers = #tpu.dot_dimension_numbers<[1], [0], [0], [1], [0, 0, 1, 1], [], []>} : vector<1x128xf32>, vector<128x256xf32>, vector<1x256xf32> -> vector<1x256xf32>
      %73 = arith.addf %71, %72 : vector<1x256xf32>
      %c0_46 = arith.constant 0 : index
      %c0_47 = arith.constant 0 : index
      %74 = vector.load %arg24[%c0_46, %c0_47] : memref<1x256xf32, #tpu.memory_space<vmem>>, vector<1x256xf32>
      tpu.vector_store %arg24[%c0_46, %c0_47], %73 {strides = array<i32>} : memref<1x256xf32, #tpu.memory_space<vmem>>, vector<1x256xf32>,
      %c0_48 = arith.constant 0 : index
      %c0_49 = arith.constant 0 : index
      %75 = vector.load %arg25[%c0_48, %c0_49] : memref<1x256xf32, #tpu.memory_space<vmem>>, vector<1x256xf32>
      %76 = arith.mulf %63, %63 : vector<128x256xf32>
      %cst_50 = arith.constant dense<0.000000e+00> : vector<1x256xf32>
      %77 = tpu.matmul %70, %76, %cst_50 {dimension_numbers = #tpu.dot_dimension_numbers<[1], [0], [0], [1], [0, 0, 1, 1], [], []>} : vector<1x128xf32>, vector<128x256xf32>, vector<1x256xf32> -> vector<1x256xf32>
      %78 = arith.addf %75, %77 : vector<1x256xf32>
      %c0_51 = arith.constant 0 : index
      %c0_52 = arith.constant 0 : index
      %79 = vector.load %arg25[%c0_51, %c0_52] : memref<1x256xf32, #tpu.memory_space<vmem>>, vector<1x256xf32>
      tpu.vector_store %arg25[%c0_51, %c0_52], %78 {strides = array<i32>} : memref<1x256xf32, #tpu.memory_space<vmem>>, vector<1x256xf32>,
      %80 = arith.truncf %63 : vector<128x256xf32> to vector<128x256xbf16>
      %81 = arith.index_cast %52 : i32 to index
      %c0_53 = arith.constant 0 : index
      %82 = vector.load %arg23[%81, %c0_53] : memref<128x256xbf16, #tpu.memory_space<vmem>>, vector<128x256xbf16>
      tpu.vector_store %arg23[%81, %c0_53], %80 {strides = array<i32>} : memref<128x256xbf16, #tpu.memory_space<vmem>>, vector<128x256xbf16>,
      %c1_i32_54 = arith.constant 1 : i32
      %c0_55 = arith.constant 0 : index
      %c0_56 = arith.constant 0 : index
      %83 = vector.load %arg24[%c0_55, %c0_56] : memref<1x256xf32, #tpu.memory_space<vmem>>, vector<1x256xf32>
      %cst_57 = arith.constant 1.250000e-01 : f32
      %84 = vector.broadcast %cst_57 : f32 to vector<1x256xf32>
      %85 = arith.mulf %83, %84 : vector<1x256xf32>
      %c0_58 = arith.constant 0 : index
      %c0_59 = arith.constant 0 : index
      %86 = vector.load %arg25[%c0_58, %c0_59] : memref<1x256xf32, #tpu.memory_space<vmem>>, vector<1x256xf32>
      %cst_60 = arith.constant 1.250000e-01 : f32
      %87 = vector.broadcast %cst_60 : f32 to vector<1x256xf32>
      %88 = arith.mulf %86, %87 : vector<1x256xf32>
      %89 = arith.mulf %85, %85 : vector<1x256xf32>
      %90 = arith.subf %88, %89 : vector<1x256xf32>
      %cst_61 = arith.constant 0.000000e+00 : f32
      %91 = vector.broadcast %cst_61 : f32 to vector<1x256xf32>
      %92 = arith.maximumf %90, %91 : vector<1x256xf32>
      %c0_62 = arith.constant 0 : index
      %c0_63 = arith.constant 0 : index
      %93 = vector.load %arg6[%c0_62, %c0_63] : memref<1x256xf32, #tpu.memory_space<vmem>>, vector<1x256xf32>
      %cst_64 = arith.constant 9.99999974E-6 : f32
      %94 = vector.broadcast %cst_64 : f32 to vector<1x256xf32>
      %95 = arith.addf %92, %94 : vector<1x256xf32>
      %96 = math.rsqrt %95 : vector<1x256xf32>
      %97 = arith.mulf %93, %96 : vector<1x256xf32>
      %c0_65 = arith.constant 0 : index
      %c0_66 = arith.constant 0 : index
      %98 = vector.load %arg7[%c0_65, %c0_66] : memref<1x256xf32, #tpu.memory_space<vmem>>, vector<1x256xf32>
      %99 = arith.mulf %85, %97 : vector<1x256xf32>
      %100 = arith.subf %98, %99 : vector<1x256xf32>
      %c0_67 = arith.constant 0 : index
      %c0_68 = arith.constant 0 : index
      %101 = vector.load %arg8[%c0_67, %c0_68] : memref<256x256xbf16, #tpu.memory_space<vmem>>, vector<256x256xbf16>
      %cst_69 = arith.constant 0.000000e+00 : f32
      %102 = vector.broadcast %cst_69 : f32 to vector<1x256xf32>
      %c0_70 = arith.constant 0 : index
      %c0_71 = arith.constant 0 : index
      %103 = vector.load %arg24[%c0_70, %c0_71] : memref<1x256xf32, #tpu.memory_space<vmem>>, vector<1x256xf32>
      tpu.vector_store %arg24[%c0_70, %c0_71], %102 {strides = array<i32>} : memref<1x256xf32, #tpu.memory_space<vmem>>, vector<1x256xf32>,
      %cst_72 = arith.constant 0.000000e+00 : f32
      %104 = vector.broadcast %cst_72 : f32 to vector<1x256xf32>
      %c0_73 = arith.constant 0 : index
      %c0_74 = arith.constant 0 : index
      %105 = vector.load %arg25[%c0_73, %c0_74] : memref<1x256xf32, #tpu.memory_space<vmem>>, vector<1x256xf32>
      tpu.vector_store %arg25[%c0_73, %c0_74], %104 {strides = array<i32>} : memref<1x256xf32, #tpu.memory_space<vmem>>, vector<1x256xf32>,
      %c0_i32_75 = arith.constant 0 : i32
      %c1_i32_76 = arith.constant 1 : i32
      %106 = arith.muli %c0_i32_75, %c1_i32_76 : i32
      %c0_i32_77 = arith.constant 0 : i32
      %107 = arith.addi %c0_i32_77, %106 : i32
      %c128_i32_78 = arith.constant 128 : i32
      %108 = arith.muli %107, %c128_i32_78 : i32
      %109 = tpu.assume_multiple %108, 128 : i32
      %110 = arith.index_cast %109 : i32 to index
      %c0_79 = arith.constant 0 : index
      %111 = vector.load %arg23[%110, %c0_79] : memref<128x256xbf16, #tpu.memory_space<vmem>>, vector<128x256xbf16>
      %112 = arith.extf %111 : vector<128x256xbf16> to vector<128x256xf32>
      %113 = vector.broadcast %97 : vector<1x256xf32> to vector<128x256xf32>
      %114 = arith.mulf %112, %113 : vector<128x256xf32>
      %115 = vector.broadcast %100 : vector<1x256xf32> to vector<128x256xf32>
      %116 = arith.addf %114, %115 : vector<128x256xf32>
      %cst_80 = arith.constant 0.000000e+00 : f32
      %117 = vector.broadcast %cst_80 : f32 to vector<128x256xf32>
      %118 = arith.maximumf %116, %117 : vector<128x256xf32>
      %119 = arith.truncf %118 : vector<128x256xf32> to vector<128x256xbf16>
      %cst_81 = arith.constant dense<0.000000e+00> : vector<128x256xf32>
      %120 = tpu.matmul %119, %101, %cst_81 {dimension_numbers = #tpu.dot_dimension_numbers<[1], [0], [0], [1], [0, 0, 1, 1], [], []>} : vector<128x256xbf16>, vector<256x256xbf16>, vector<128x256xf32> -> vector<128x256xf32>
      %121 = tpu.iota {dimensions = array<i32: 1>} : vector<1x128xi32>
      %122 = vector.broadcast %109 : i32 to vector<1x128xi32>
      %123 = arith.addi %122, %121 : vector<1x128xi32>
      %c8_i32_82 = arith.constant 8 : i32
      %124 = vector.broadcast %c8_i32_82 : i32 to vector<1x128xi32>
      %125 = arith.cmpi slt, %123, %124 : vector<1x128xi32>
      %126 = arith.extui %125 : vector<1x128xi1> to vector<1x128xi32>
      %127 = arith.sitofp %126 : vector<1x128xi32> to vector<1x128xf32>
      %c0_83 = arith.constant 0 : index
      %c0_84 = arith.constant 0 : index
      %128 = vector.load %arg24[%c0_83, %c0_84] : memref<1x256xf32, #tpu.memory_space<vmem>>, vector<1x256xf32>
      %cst_85 = arith.constant dense<0.000000e+00> : vector<1x256xf32>
      %129 = tpu.matmul %127, %120, %cst_85 {dimension_numbers = #tpu.dot_dimension_numbers<[1], [0], [0], [1], [0, 0, 1, 1], [], []>} : vector<1x128xf32>, vector<128x256xf32>, vector<1x256xf32> -> vector<1x256xf32>
      %130 = arith.addf %128, %129 : vector<1x256xf32>
      %c0_86 = arith.constant 0 : index
      %c0_87 = arith.constant 0 : index
      %131 = vector.load %arg24[%c0_86, %c0_87] : memref<1x256xf32, #tpu.memory_space<vmem>>, vector<1x256xf32>
      tpu.vector_store %arg24[%c0_86, %c0_87], %130 {strides = array<i32>} : memref<1x256xf32, #tpu.memory_space<vmem>>, vector<1x256xf32>,
      %c0_88 = arith.constant 0 : index
      %c0_89 = arith.constant 0 : index
      %132 = vector.load %arg25[%c0_88, %c0_89] : memref<1x256xf32, #tpu.memory_space<vmem>>, vector<1x256xf32>
      %133 = arith.mulf %120, %120 : vector<128x256xf32>
      %cst_90 = arith.constant dense<0.000000e+00> : vector<1x256xf32>
      %134 = tpu.matmul %127, %133, %cst_90 {dimension_numbers = #tpu.dot_dimension_numbers<[1], [0], [0], [1], [0, 0, 1, 1], [], []>} : vector<1x128xf32>, vector<128x256xf32>, vector<1x256xf32> -> vector<1x256xf32>
      %135 = arith.addf %132, %134 : vector<1x256xf32>
      %c0_91 = arith.constant 0 : index
      %c0_92 = arith.constant 0 : index
      %136 = vector.load %arg25[%c0_91, %c0_92] : memref<1x256xf32, #tpu.memory_space<vmem>>, vector<1x256xf32>
      tpu.vector_store %arg25[%c0_91, %c0_92], %135 {strides = array<i32>} : memref<1x256xf32, #tpu.memory_space<vmem>>, vector<1x256xf32>,
      %137 = arith.truncf %120 : vector<128x256xf32> to vector<128x256xbf16>
      %138 = arith.index_cast %109 : i32 to index
      %c0_93 = arith.constant 0 : index
      %139 = vector.load %arg23[%138, %c0_93] : memref<128x256xbf16, #tpu.memory_space<vmem>>, vector<128x256xbf16>
      tpu.vector_store %arg23[%138, %c0_93], %137 {strides = array<i32>} : memref<128x256xbf16, #tpu.memory_space<vmem>>, vector<128x256xbf16>,
      %c1_i32_94 = arith.constant 1 : i32
      %c0_95 = arith.constant 0 : index
      %c0_96 = arith.constant 0 : index
      %140 = vector.load %arg24[%c0_95, %c0_96] : memref<1x256xf32, #tpu.memory_space<vmem>>, vector<1x256xf32>
      %cst_97 = arith.constant 1.250000e-01 : f32
      %141 = vector.broadcast %cst_97 : f32 to vector<1x256xf32>
      %142 = arith.mulf %140, %141 : vector<1x256xf32>
      %c0_98 = arith.constant 0 : index
      %c0_99 = arith.constant 0 : index
      %143 = vector.load %arg25[%c0_98, %c0_99] : memref<1x256xf32, #tpu.memory_space<vmem>>, vector<1x256xf32>
      %cst_100 = arith.constant 1.250000e-01 : f32
      %144 = vector.broadcast %cst_100 : f32 to vector<1x256xf32>
      %145 = arith.mulf %143, %144 : vector<1x256xf32>
      %146 = arith.mulf %142, %142 : vector<1x256xf32>
      %147 = arith.subf %145, %146 : vector<1x256xf32>
      %cst_101 = arith.constant 0.000000e+00 : f32
      %148 = vector.broadcast %cst_101 : f32 to vector<1x256xf32>
      %149 = arith.maximumf %147, %148 : vector<1x256xf32>
      %c0_102 = arith.constant 0 : index
      %c0_103 = arith.constant 0 : index
      %150 = vector.load %arg9[%c0_102, %c0_103] : memref<1x256xf32, #tpu.memory_space<vmem>>, vector<1x256xf32>
      %cst_104 = arith.constant 9.99999974E-6 : f32
      %151 = vector.broadcast %cst_104 : f32 to vector<1x256xf32>
      %152 = arith.addf %149, %151 : vector<1x256xf32>
      %153 = math.rsqrt %152 : vector<1x256xf32>
      %154 = arith.mulf %150, %153 : vector<1x256xf32>
      %c0_105 = arith.constant 0 : index
      %c0_106 = arith.constant 0 : index
      %155 = vector.load %arg10[%c0_105, %c0_106] : memref<1x256xf32, #tpu.memory_space<vmem>>, vector<1x256xf32>
      %156 = arith.mulf %142, %154 : vector<1x256xf32>
      %157 = arith.subf %155, %156 : vector<1x256xf32>
      %c0_107 = arith.constant 0 : index
      %c0_108 = arith.constant 0 : index
      %158 = vector.load %arg11[%c0_107, %c0_108] : memref<256x256xbf16, #tpu.memory_space<vmem>>, vector<256x256xbf16>
      %cst_109 = arith.constant 0.000000e+00 : f32
      %159 = vector.broadcast %cst_109 : f32 to vector<1x256xf32>
      %c0_110 = arith.constant 0 : index
      %c0_111 = arith.constant 0 : index
      %160 = vector.load %arg24[%c0_110, %c0_111] : memref<1x256xf32, #tpu.memory_space<vmem>>, vector<1x256xf32>
      tpu.vector_store %arg24[%c0_110, %c0_111], %159 {strides = array<i32>} : memref<1x256xf32, #tpu.memory_space<vmem>>, vector<1x256xf32>,
      %cst_112 = arith.constant 0.000000e+00 : f32
      %161 = vector.broadcast %cst_112 : f32 to vector<1x256xf32>
      %c0_113 = arith.constant 0 : index
      %c0_114 = arith.constant 0 : index
      %162 = vector.load %arg25[%c0_113, %c0_114] : memref<1x256xf32, #tpu.memory_space<vmem>>, vector<1x256xf32>
      tpu.vector_store %arg25[%c0_113, %c0_114], %161 {strides = array<i32>} : memref<1x256xf32, #tpu.memory_space<vmem>>, vector<1x256xf32>,
      %c0_i32_115 = arith.constant 0 : i32
      %c1_i32_116 = arith.constant 1 : i32
      %163 = arith.muli %c0_i32_115, %c1_i32_116 : i32
      %c0_i32_117 = arith.constant 0 : i32
      %164 = arith.addi %c0_i32_117, %163 : i32
      %c128_i32_118 = arith.constant 128 : i32
      %165 = arith.muli %164, %c128_i32_118 : i32
      %166 = tpu.assume_multiple %165, 128 : i32
      %167 = arith.index_cast %166 : i32 to index
      %c0_119 = arith.constant 0 : index
      %168 = vector.load %arg23[%167, %c0_119] : memref<128x256xbf16, #tpu.memory_space<vmem>>, vector<128x256xbf16>
      %169 = arith.extf %168 : vector<128x256xbf16> to vector<128x256xf32>
      %170 = vector.broadcast %154 : vector<1x256xf32> to vector<128x256xf32>
      %171 = arith.mulf %169, %170 : vector<128x256xf32>
      %172 = vector.broadcast %157 : vector<1x256xf32> to vector<128x256xf32>
      %173 = arith.addf %171, %172 : vector<128x256xf32>
      %cst_120 = arith.constant 0.000000e+00 : f32
      %174 = vector.broadcast %cst_120 : f32 to vector<128x256xf32>
      %175 = arith.maximumf %173, %174 : vector<128x256xf32>
      %176 = arith.truncf %175 : vector<128x256xf32> to vector<128x256xbf16>
      %cst_121 = arith.constant dense<0.000000e+00> : vector<128x256xf32>
      %177 = tpu.matmul %176, %158, %cst_121 {dimension_numbers = #tpu.dot_dimension_numbers<[1], [0], [0], [1], [0, 0, 1, 1], [], []>} : vector<128x256xbf16>, vector<256x256xbf16>, vector<128x256xf32> -> vector<128x256xf32>
      %178 = tpu.iota {dimensions = array<i32: 1>} : vector<1x128xi32>
      %179 = vector.broadcast %166 : i32 to vector<1x128xi32>
      %180 = arith.addi %179, %178 : vector<1x128xi32>
      %c8_i32_122 = arith.constant 8 : i32
      %181 = vector.broadcast %c8_i32_122 : i32 to vector<1x128xi32>
      %182 = arith.cmpi slt, %180, %181 : vector<1x128xi32>
      %183 = arith.extui %182 : vector<1x128xi1> to vector<1x128xi32>
      %184 = arith.sitofp %183 : vector<1x128xi32> to vector<1x128xf32>
      %c0_123 = arith.constant 0 : index
      %c0_124 = arith.constant 0 : index
      %185 = vector.load %arg24[%c0_123, %c0_124] : memref<1x256xf32, #tpu.memory_space<vmem>>, vector<1x256xf32>
      %cst_125 = arith.constant dense<0.000000e+00> : vector<1x256xf32>
      %186 = tpu.matmul %184, %177, %cst_125 {dimension_numbers = #tpu.dot_dimension_numbers<[1], [0], [0], [1], [0, 0, 1, 1], [], []>} : vector<1x128xf32>, vector<128x256xf32>, vector<1x256xf32> -> vector<1x256xf32>
      %187 = arith.addf %185, %186 : vector<1x256xf32>
      %c0_126 = arith.constant 0 : index
      %c0_127 = arith.constant 0 : index
      %188 = vector.load %arg24[%c0_126, %c0_127] : memref<1x256xf32, #tpu.memory_space<vmem>>, vector<1x256xf32>
      tpu.vector_store %arg24[%c0_126, %c0_127], %187 {strides = array<i32>} : memref<1x256xf32, #tpu.memory_space<vmem>>, vector<1x256xf32>,
      %c0_128 = arith.constant 0 : index
      %c0_129 = arith.constant 0 : index
      %189 = vector.load %arg25[%c0_128, %c0_129] : memref<1x256xf32, #tpu.memory_space<vmem>>, vector<1x256xf32>
      %190 = arith.mulf %177, %177 : vector<128x256xf32>
      %cst_130 = arith.constant dense<0.000000e+00> : vector<1x256xf32>
      %191 = tpu.matmul %184, %190, %cst_130 {dimension_numbers = #tpu.dot_dimension_numbers<[1], [0], [0], [1], [0, 0, 1, 1], [], []>} : vector<1x128xf32>, vector<128x256xf32>, vector<1x256xf32> -> vector<1x256xf32>
      %192 = arith.addf %189, %191 : vector<1x256xf32>
      %c0_131 = arith.constant 0 : index
      %c0_132 = arith.constant 0 : index
      %193 = vector.load %arg25[%c0_131, %c0_132] : memref<1x256xf32, #tpu.memory_space<vmem>>, vector<1x256xf32>
      tpu.vector_store %arg25[%c0_131, %c0_132], %192 {strides = array<i32>} : memref<1x256xf32, #tpu.memory_space<vmem>>, vector<1x256xf32>,
      %194 = arith.truncf %177 : vector<128x256xf32> to vector<128x256xbf16>
      %195 = arith.index_cast %166 : i32 to index
      %c0_133 = arith.constant 0 : index
      %196 = vector.load %arg23[%195, %c0_133] : memref<128x256xbf16, #tpu.memory_space<vmem>>, vector<128x256xbf16>
      tpu.vector_store %arg23[%195, %c0_133], %194 {strides = array<i32>} : memref<128x256xbf16, #tpu.memory_space<vmem>>, vector<128x256xbf16>,
      %c1_i32_134 = arith.constant 1 : i32
      %c0_135 = arith.constant 0 : index
      %c0_136 = arith.constant 0 : index
      %197 = vector.load %arg24[%c0_135, %c0_136] : memref<1x256xf32, #tpu.memory_space<vmem>>, vector<1x256xf32>
      %cst_137 = arith.constant 1.250000e-01 : f32
      %198 = vector.broadcast %cst_137 : f32 to vector<1x256xf32>
      %199 = arith.mulf %197, %198 : vector<1x256xf32>
      %c0_138 = arith.constant 0 : index
      %c0_139 = arith.constant 0 : index
      %200 = vector.load %arg25[%c0_138, %c0_139] : memref<1x256xf32, #tpu.memory_space<vmem>>, vector<1x256xf32>
      %cst_140 = arith.constant 1.250000e-01 : f32
      %201 = vector.broadcast %cst_140 : f32 to vector<1x256xf32>
      %202 = arith.mulf %200, %201 : vector<1x256xf32>
      %203 = arith.mulf %199, %199 : vector<1x256xf32>
      %204 = arith.subf %202, %203 : vector<1x256xf32>
      %cst_141 = arith.constant 0.000000e+00 : f32
      %205 = vector.broadcast %cst_141 : f32 to vector<1x256xf32>
      %206 = arith.maximumf %204, %205 : vector<1x256xf32>
      %c0_142 = arith.constant 0 : index
      %c0_143 = arith.constant 0 : index
      %207 = vector.load %arg12[%c0_142, %c0_143] : memref<1x256xf32, #tpu.memory_space<vmem>>, vector<1x256xf32>
      %cst_144 = arith.constant 9.99999974E-6 : f32
      %208 = vector.broadcast %cst_144 : f32 to vector<1x256xf32>
      %209 = arith.addf %206, %208 : vector<1x256xf32>
      %210 = math.rsqrt %209 : vector<1x256xf32>
      %211 = arith.mulf %207, %210 : vector<1x256xf32>
      %c0_145 = arith.constant 0 : index
      %c0_146 = arith.constant 0 : index
      %212 = vector.load %arg13[%c0_145, %c0_146] : memref<1x256xf32, #tpu.memory_space<vmem>>, vector<1x256xf32>
      %213 = arith.mulf %199, %211 : vector<1x256xf32>
      %214 = arith.subf %212, %213 : vector<1x256xf32>
      %c0_147 = arith.constant 0 : index
      %c0_148 = arith.constant 0 : index
      %215 = vector.load %arg14[%c0_147, %c0_148] : memref<256x256xbf16, #tpu.memory_space<vmem>>, vector<256x256xbf16>
      %cst_149 = arith.constant 0.000000e+00 : f32
      %216 = vector.broadcast %cst_149 : f32 to vector<1x256xf32>
      %c0_150 = arith.constant 0 : index
      %c0_151 = arith.constant 0 : index
      %217 = vector.load %arg24[%c0_150, %c0_151] : memref<1x256xf32, #tpu.memory_space<vmem>>, vector<1x256xf32>
      tpu.vector_store %arg24[%c0_150, %c0_151], %216 {strides = array<i32>} : memref<1x256xf32, #tpu.memory_space<vmem>>, vector<1x256xf32>,
      %cst_152 = arith.constant 0.000000e+00 : f32
      %218 = vector.broadcast %cst_152 : f32 to vector<1x256xf32>
      %c0_153 = arith.constant 0 : index
      %c0_154 = arith.constant 0 : index
      %219 = vector.load %arg25[%c0_153, %c0_154] : memref<1x256xf32, #tpu.memory_space<vmem>>, vector<1x256xf32>
      tpu.vector_store %arg25[%c0_153, %c0_154], %218 {strides = array<i32>} : memref<1x256xf32, #tpu.memory_space<vmem>>, vector<1x256xf32>,
      %c0_i32_155 = arith.constant 0 : i32
      %c1_i32_156 = arith.constant 1 : i32
      %220 = arith.muli %c0_i32_155, %c1_i32_156 : i32
      %c0_i32_157 = arith.constant 0 : i32
      %221 = arith.addi %c0_i32_157, %220 : i32
      %c128_i32_158 = arith.constant 128 : i32
      %222 = arith.muli %221, %c128_i32_158 : i32
      %223 = tpu.assume_multiple %222, 128 : i32
      %224 = arith.index_cast %223 : i32 to index
      %c0_159 = arith.constant 0 : index
      %225 = vector.load %arg23[%224, %c0_159] : memref<128x256xbf16, #tpu.memory_space<vmem>>, vector<128x256xbf16>
      %226 = arith.extf %225 : vector<128x256xbf16> to vector<128x256xf32>
      %227 = vector.broadcast %211 : vector<1x256xf32> to vector<128x256xf32>
      %228 = arith.mulf %226, %227 : vector<128x256xf32>
      %229 = vector.broadcast %214 : vector<1x256xf32> to vector<128x256xf32>
      %230 = arith.addf %228, %229 : vector<128x256xf32>
      %cst_160 = arith.constant 0.000000e+00 : f32
      %231 = vector.broadcast %cst_160 : f32 to vector<128x256xf32>
      %232 = arith.maximumf %230, %231 : vector<128x256xf32>
      %233 = arith.truncf %232 : vector<128x256xf32> to vector<128x256xbf16>
      %cst_161 = arith.constant dense<0.000000e+00> : vector<128x256xf32>
      %234 = tpu.matmul %233, %215, %cst_161 {dimension_numbers = #tpu.dot_dimension_numbers<[1], [0], [0], [1], [0, 0, 1, 1], [], []>} : vector<128x256xbf16>, vector<256x256xbf16>, vector<128x256xf32> -> vector<128x256xf32>
      %235 = tpu.iota {dimensions = array<i32: 1>} : vector<1x128xi32>
      %236 = vector.broadcast %223 : i32 to vector<1x128xi32>
      %237 = arith.addi %236, %235 : vector<1x128xi32>
      %c8_i32_162 = arith.constant 8 : i32
      %238 = vector.broadcast %c8_i32_162 : i32 to vector<1x128xi32>
      %239 = arith.cmpi slt, %237, %238 : vector<1x128xi32>
      %240 = arith.extui %239 : vector<1x128xi1> to vector<1x128xi32>
      %241 = arith.sitofp %240 : vector<1x128xi32> to vector<1x128xf32>
      %c0_163 = arith.constant 0 : index
      %c0_164 = arith.constant 0 : index
      %242 = vector.load %arg24[%c0_163, %c0_164] : memref<1x256xf32, #tpu.memory_space<vmem>>, vector<1x256xf32>
      %cst_165 = arith.constant dense<0.000000e+00> : vector<1x256xf32>
      %243 = tpu.matmul %241, %234, %cst_165 {dimension_numbers = #tpu.dot_dimension_numbers<[1], [0], [0], [1], [0, 0, 1, 1], [], []>} : vector<1x128xf32>, vector<128x256xf32>, vector<1x256xf32> -> vector<1x256xf32>
      %244 = arith.addf %242, %243 : vector<1x256xf32>
      %c0_166 = arith.constant 0 : index
      %c0_167 = arith.constant 0 : index
      %245 = vector.load %arg24[%c0_166, %c0_167] : memref<1x256xf32, #tpu.memory_space<vmem>>, vector<1x256xf32>
      tpu.vector_store %arg24[%c0_166, %c0_167], %244 {strides = array<i32>} : memref<1x256xf32, #tpu.memory_space<vmem>>, vector<1x256xf32>,
      %c0_168 = arith.constant 0 : index
      %c0_169 = arith.constant 0 : index
      %246 = vector.load %arg25[%c0_168, %c0_169] : memref<1x256xf32, #tpu.memory_space<vmem>>, vector<1x256xf32>
      %247 = arith.mulf %234, %234 : vector<128x256xf32>
      %cst_170 = arith.constant dense<0.000000e+00> : vector<1x256xf32>
      %248 = tpu.matmul %241, %247, %cst_170 {dimension_numbers = #tpu.dot_dimension_numbers<[1], [0], [0], [1], [0, 0, 1, 1], [], []>} : vector<1x128xf32>, vector<128x256xf32>, vector<1x256xf32> -> vector<1x256xf32>
      %249 = arith.addf %246, %248 : vector<1x256xf32>
      %c0_171 = arith.constant 0 : index
      %c0_172 = arith.constant 0 : index
      %250 = vector.load %arg25[%c0_171, %c0_172] : memref<1x256xf32, #tpu.memory_space<vmem>>, vector<1x256xf32>
      tpu.vector_store %arg25[%c0_171, %c0_172], %249 {strides = array<i32>} : memref<1x256xf32, #tpu.memory_space<vmem>>, vector<1x256xf32>,
      %251 = arith.truncf %234 : vector<128x256xf32> to vector<128x256xbf16>
      %252 = arith.index_cast %223 : i32 to index
      %c0_173 = arith.constant 0 : index
      %253 = vector.load %arg23[%252, %c0_173] : memref<128x256xbf16, #tpu.memory_space<vmem>>, vector<128x256xbf16>
      tpu.vector_store %arg23[%252, %c0_173], %251 {strides = array<i32>} : memref<128x256xbf16, #tpu.memory_space<vmem>>, vector<128x256xbf16>,
      %c1_i32_174 = arith.constant 1 : i32
      %c0_175 = arith.constant 0 : index
      %c0_176 = arith.constant 0 : index
      %254 = vector.load %arg24[%c0_175, %c0_176] : memref<1x256xf32, #tpu.memory_space<vmem>>, vector<1x256xf32>
      %cst_177 = arith.constant 1.250000e-01 : f32
      %255 = vector.broadcast %cst_177 : f32 to vector<1x256xf32>
      %256 = arith.mulf %254, %255 : vector<1x256xf32>
      %c0_178 = arith.constant 0 : index
      %c0_179 = arith.constant 0 : index
      %257 = vector.load %arg25[%c0_178, %c0_179] : memref<1x256xf32, #tpu.memory_space<vmem>>, vector<1x256xf32>
      %cst_180 = arith.constant 1.250000e-01 : f32
      %258 = vector.broadcast %cst_180 : f32 to vector<1x256xf32>
      %259 = arith.mulf %257, %258 : vector<1x256xf32>
      %260 = arith.mulf %256, %256 : vector<1x256xf32>
      %261 = arith.subf %259, %260 : vector<1x256xf32>
      %cst_181 = arith.constant 0.000000e+00 : f32
      %262 = vector.broadcast %cst_181 : f32 to vector<1x256xf32>
      %263 = arith.maximumf %261, %262 : vector<1x256xf32>
      %c0_182 = arith.constant 0 : index
      %c0_183 = arith.constant 0 : index
      %264 = vector.load %arg15[%c0_182, %c0_183] : memref<1x256xf32, #tpu.memory_space<vmem>>, vector<1x256xf32>
      %cst_184 = arith.constant 9.99999974E-6 : f32
      %265 = vector.broadcast %cst_184 : f32 to vector<1x256xf32>
      %266 = arith.addf %263, %265 : vector<1x256xf32>
      %267 = math.rsqrt %266 : vector<1x256xf32>
      %268 = arith.mulf %264, %267 : vector<1x256xf32>
      %c0_185 = arith.constant 0 : index
      %c0_186 = arith.constant 0 : index
      %269 = vector.load %arg16[%c0_185, %c0_186] : memref<1x256xf32, #tpu.memory_space<vmem>>, vector<1x256xf32>
      %270 = arith.mulf %256, %268 : vector<1x256xf32>
      %271 = arith.subf %269, %270 : vector<1x256xf32>
      %c0_187 = arith.constant 0 : index
      %c0_188 = arith.constant 0 : index
      %272 = vector.load %arg17[%c0_187, %c0_188] : memref<256x256xbf16, #tpu.memory_space<vmem>>, vector<256x256xbf16>
      %cst_189 = arith.constant 0.000000e+00 : f32
      %273 = vector.broadcast %cst_189 : f32 to vector<1x256xf32>
      %c0_190 = arith.constant 0 : index
      %c0_191 = arith.constant 0 : index
      %274 = vector.load %arg24[%c0_190, %c0_191] : memref<1x256xf32, #tpu.memory_space<vmem>>, vector<1x256xf32>
      tpu.vector_store %arg24[%c0_190, %c0_191], %273 {strides = array<i32>} : memref<1x256xf32, #tpu.memory_space<vmem>>, vector<1x256xf32>,
      %cst_192 = arith.constant 0.000000e+00 : f32
      %275 = vector.broadcast %cst_192 : f32 to vector<1x256xf32>
      %c0_193 = arith.constant 0 : index
      %c0_194 = arith.constant 0 : index
      %276 = vector.load %arg25[%c0_193, %c0_194] : memref<1x256xf32, #tpu.memory_space<vmem>>, vector<1x256xf32>
      tpu.vector_store %arg25[%c0_193, %c0_194], %275 {strides = array<i32>} : memref<1x256xf32, #tpu.memory_space<vmem>>, vector<1x256xf32>,
      %c0_i32_195 = arith.constant 0 : i32
      %c1_i32_196 = arith.constant 1 : i32
      %277 = arith.muli %c0_i32_195, %c1_i32_196 : i32
      %c0_i32_197 = arith.constant 0 : i32
      %278 = arith.addi %c0_i32_197, %277 : i32
      %c128_i32_198 = arith.constant 128 : i32
      %279 = arith.muli %278, %c128_i32_198 : i32
      %280 = tpu.assume_multiple %279, 128 : i32
      %281 = arith.index_cast %280 : i32 to index
      %c0_199 = arith.constant 0 : index
      %282 = vector.load %arg23[%281, %c0_199] : memref<128x256xbf16, #tpu.memory_space<vmem>>, vector<128x256xbf16>
      %283 = arith.extf %282 : vector<128x256xbf16> to vector<128x256xf32>
      %284 = vector.broadcast %268 : vector<1x256xf32> to vector<128x256xf32>
      %285 = arith.mulf %283, %284 : vector<128x256xf32>
      %286 = vector.broadcast %271 : vector<1x256xf32> to vector<128x256xf32>
      %287 = arith.addf %285, %286 : vector<128x256xf32>
      %cst_200 = arith.constant 0.000000e+00 : f32
      %288 = vector.broadcast %cst_200 : f32 to vector<128x256xf32>
      %289 = arith.maximumf %287, %288 : vector<128x256xf32>
      %290 = arith.truncf %289 : vector<128x256xf32> to vector<128x256xbf16>
      %cst_201 = arith.constant dense<0.000000e+00> : vector<128x256xf32>
      %291 = tpu.matmul %290, %272, %cst_201 {dimension_numbers = #tpu.dot_dimension_numbers<[1], [0], [0], [1], [0, 0, 1, 1], [], []>} : vector<128x256xbf16>, vector<256x256xbf16>, vector<128x256xf32> -> vector<128x256xf32>
      %292 = tpu.iota {dimensions = array<i32: 1>} : vector<1x128xi32>
      %293 = vector.broadcast %280 : i32 to vector<1x128xi32>
      %294 = arith.addi %293, %292 : vector<1x128xi32>
      %c8_i32_202 = arith.constant 8 : i32
      %295 = vector.broadcast %c8_i32_202 : i32 to vector<1x128xi32>
      %296 = arith.cmpi slt, %294, %295 : vector<1x128xi32>
      %297 = arith.extui %296 : vector<1x128xi1> to vector<1x128xi32>
      %298 = arith.sitofp %297 : vector<1x128xi32> to vector<1x128xf32>
      %c0_203 = arith.constant 0 : index
      %c0_204 = arith.constant 0 : index
      %299 = vector.load %arg24[%c0_203, %c0_204] : memref<1x256xf32, #tpu.memory_space<vmem>>, vector<1x256xf32>
      %cst_205 = arith.constant dense<0.000000e+00> : vector<1x256xf32>
      %300 = tpu.matmul %298, %291, %cst_205 {dimension_numbers = #tpu.dot_dimension_numbers<[1], [0], [0], [1], [0, 0, 1, 1], [], []>} : vector<1x128xf32>, vector<128x256xf32>, vector<1x256xf32> -> vector<1x256xf32>
      %301 = arith.addf %299, %300 : vector<1x256xf32>
      %c0_206 = arith.constant 0 : index
      %c0_207 = arith.constant 0 : index
      %302 = vector.load %arg24[%c0_206, %c0_207] : memref<1x256xf32, #tpu.memory_space<vmem>>, vector<1x256xf32>
      tpu.vector_store %arg24[%c0_206, %c0_207], %301 {strides = array<i32>} : memref<1x256xf32, #tpu.memory_space<vmem>>, vector<1x256xf32>,
      %c0_208 = arith.constant 0 : index
      %c0_209 = arith.constant 0 : index
      %303 = vector.load %arg25[%c0_208, %c0_209] : memref<1x256xf32, #tpu.memory_space<vmem>>, vector<1x256xf32>
      %304 = arith.mulf %291, %291 : vector<128x256xf32>
      %cst_210 = arith.constant dense<0.000000e+00> : vector<1x256xf32>
      %305 = tpu.matmul %298, %304, %cst_210 {dimension_numbers = #tpu.dot_dimension_numbers<[1], [0], [0], [1], [0, 0, 1, 1], [], []>} : vector<1x128xf32>, vector<128x256xf32>, vector<1x256xf32> -> vector<1x256xf32>
      %306 = arith.addf %303, %305 : vector<1x256xf32>
      %c0_211 = arith.constant 0 : index
      %c0_212 = arith.constant 0 : index
      %307 = vector.load %arg25[%c0_211, %c0_212] : memref<1x256xf32, #tpu.memory_space<vmem>>, vector<1x256xf32>
      tpu.vector_store %arg25[%c0_211, %c0_212], %306 {strides = array<i32>} : memref<1x256xf32, #tpu.memory_space<vmem>>, vector<1x256xf32>,
      %308 = arith.truncf %291 : vector<128x256xf32> to vector<128x256xbf16>
      %309 = arith.index_cast %280 : i32 to index
      %c0_213 = arith.constant 0 : index
      %310 = vector.load %arg23[%309, %c0_213] : memref<128x256xbf16, #tpu.memory_space<vmem>>, vector<128x256xbf16>
      tpu.vector_store %arg23[%309, %c0_213], %308 {strides = array<i32>} : memref<128x256xbf16, #tpu.memory_space<vmem>>, vector<128x256xbf16>,
      %c1_i32_214 = arith.constant 1 : i32
      %c0_215 = arith.constant 0 : index
      %c0_216 = arith.constant 0 : index
      %311 = vector.load %arg24[%c0_215, %c0_216] : memref<1x256xf32, #tpu.memory_space<vmem>>, vector<1x256xf32>
      %cst_217 = arith.constant 1.250000e-01 : f32
      %312 = vector.broadcast %cst_217 : f32 to vector<1x256xf32>
      %313 = arith.mulf %311, %312 : vector<1x256xf32>
      %c0_218 = arith.constant 0 : index
      %c0_219 = arith.constant 0 : index
      %314 = vector.load %arg25[%c0_218, %c0_219] : memref<1x256xf32, #tpu.memory_space<vmem>>, vector<1x256xf32>
      %cst_220 = arith.constant 1.250000e-01 : f32
      %315 = vector.broadcast %cst_220 : f32 to vector<1x256xf32>
      %316 = arith.mulf %314, %315 : vector<1x256xf32>
      %317 = arith.mulf %313, %313 : vector<1x256xf32>
      %318 = arith.subf %316, %317 : vector<1x256xf32>
      %cst_221 = arith.constant 0.000000e+00 : f32
      %319 = vector.broadcast %cst_221 : f32 to vector<1x256xf32>
      %320 = arith.maximumf %318, %319 : vector<1x256xf32>
      %c0_222 = arith.constant 0 : index
      %c0_223 = arith.constant 0 : index
      %321 = vector.load %arg18[%c0_222, %c0_223] : memref<1x256xf32, #tpu.memory_space<vmem>>, vector<1x256xf32>
      %cst_224 = arith.constant 9.99999974E-6 : f32
      %322 = vector.broadcast %cst_224 : f32 to vector<1x256xf32>
      %323 = arith.addf %320, %322 : vector<1x256xf32>
      %324 = math.rsqrt %323 : vector<1x256xf32>
      %325 = arith.mulf %321, %324 : vector<1x256xf32>
      %c0_225 = arith.constant 0 : index
      %c0_226 = arith.constant 0 : index
      %326 = vector.load %arg19[%c0_225, %c0_226] : memref<1x256xf32, #tpu.memory_space<vmem>>, vector<1x256xf32>
      %327 = arith.mulf %313, %325 : vector<1x256xf32>
      %328 = arith.subf %326, %327 : vector<1x256xf32>
      %c0_227 = arith.constant 0 : index
      %c0_228 = arith.constant 0 : index
      %329 = vector.load %arg20[%c0_227, %c0_228] : memref<256x128xbf16, #tpu.memory_space<vmem>>, vector<256x128xbf16>
      %c0_229 = arith.constant 0 : index
      %c0_230 = arith.constant 0 : index
      %330 = vector.load %arg21[%c0_229, %c0_230] : memref<1x128xf32, #tpu.memory_space<vmem>>, vector<1x128xf32>
      %c0_i32_231 = arith.constant 0 : i32
      %c1_i32_232 = arith.constant 1 : i32
      %331 = arith.muli %c0_i32_231, %c1_i32_232 : i32
      %c0_i32_233 = arith.constant 0 : i32
      %332 = arith.addi %c0_i32_233, %331 : i32
      %c128_i32_234 = arith.constant 128 : i32
      %333 = arith.muli %332, %c128_i32_234 : i32
      %334 = tpu.assume_multiple %333, 128 : i32
      %335 = arith.index_cast %334 : i32 to index
      %c0_235 = arith.constant 0 : index
      %336 = vector.load %arg23[%335, %c0_235] : memref<128x256xbf16, #tpu.memory_space<vmem>>, vector<128x256xbf16>
      %337 = arith.extf %336 : vector<128x256xbf16> to vector<128x256xf32>
      %338 = vector.broadcast %325 : vector<1x256xf32> to vector<128x256xf32>
      %339 = arith.mulf %337, %338 : vector<128x256xf32>
      %340 = vector.broadcast %328 : vector<1x256xf32> to vector<128x256xf32>
      %341 = arith.addf %339, %340 : vector<128x256xf32>
      %cst_236 = arith.constant 0.000000e+00 : f32
      %342 = vector.broadcast %cst_236 : f32 to vector<128x256xf32>
      %343 = arith.maximumf %341, %342 : vector<128x256xf32>
      %344 = arith.truncf %343 : vector<128x256xf32> to vector<128x256xbf16>
      %cst_237 = arith.constant dense<0.000000e+00> : vector<128x128xf32>
      %345 = tpu.matmul %344, %329, %cst_237 {dimension_numbers = #tpu.dot_dimension_numbers<[1], [0], [0], [1], [0, 0, 1, 1], [], []>} : vector<128x256xbf16>, vector<256x128xbf16>, vector<128x128xf32> -> vector<128x128xf32>
      %346 = vector.broadcast %330 : vector<1x128xf32> to vector<128x128xf32>
      %347 = arith.addf %345, %346 : vector<128x128xf32>
      %cst_238 = arith.constant dense<0xFF800000> : vector<128xf32>
      %348 = vector.multi_reduction <maximumf>, %347, %cst_238 [1] : vector<128x128xf32> to vector<128xf32>
      %349 = vector.shape_cast %348 : vector<128xf32> to vector<128x1xf32>
      %350 = vector.broadcast %349 : vector<128x1xf32> to vector<128x128xf32>
      %351 = arith.subf %347, %350 : vector<128x128xf32>
      %352 = math.exp %351 : vector<128x128xf32>
      %cst_239 = arith.constant dense<0.000000e+00> : vector<128xf32>
      %353 = vector.multi_reduction <add>, %352, %cst_239 [1] : vector<128x128xf32> to vector<128xf32>
      %354 = vector.shape_cast %353 : vector<128xf32> to vector<128x1xf32>
      %355 = tpu.reciprocal %354 {approx = true} : vector<128x1xf32> -> vector<128x1xf32>
      %356 = vector.broadcast %355 : vector<128x1xf32> to vector<128x128xf32>
      %357 = arith.mulf %352, %356 : vector<128x128xf32>
      %358 = arith.index_cast %334 : i32 to index
      %c0_240 = arith.constant 0 : index
      %359 = vector.load %arg22[%358, %c0_240] : memref<128x128xf32, #tpu.memory_space<vmem>>, vector<128x128xf32>
      tpu.vector_store %arg22[%358, %c0_240], %357 {strides = array<i32>} : memref<128x128xf32, #tpu.memory_space<vmem>>, vector<128x128xf32>,
      %c1_i32_241 = arith.constant 1 : i32
    } else {
    }
    return
  }
  func.func @transform_0(%arg0: i32) -> (i32, i32) {
    %c0_i32 = arith.constant 0 : i32
    %c0_i32_0 = arith.constant 0 : i32
    return %arg0, %c0_i32 : i32, i32
  }
  func.func @transform_1(%arg0: i32) -> (i32, i32) {
    %c0_i32 = arith.constant 0 : i32
    %c0_i32_0 = arith.constant 0 : i32
    %c0_i32_1 = arith.constant 0 : i32
    return %c0_i32, %c0_i32_0 : i32, i32
  }
  func.func @transform_2(%arg0: i32) -> (i32, i32) {
    %c0_i32 = arith.constant 0 : i32
    %c0_i32_0 = arith.constant 0 : i32
    %c0_i32_1 = arith.constant 0 : i32
    return %c0_i32, %c0_i32_0 : i32, i32
  }
  func.func @transform_3(%arg0: i32) -> (i32, i32) {
    %c0_i32 = arith.constant 0 : i32
    %c0_i32_0 = arith.constant 0 : i32
    %c0_i32_1 = arith.constant 0 : i32
    return %c0_i32, %c0_i32_0 : i32, i32
  }
  func.func @transform_4(%arg0: i32) -> (i32, i32) {
    %c0_i32 = arith.constant 0 : i32
    %c0_i32_0 = arith.constant 0 : i32
    %c0_i32_1 = arith.constant 0 : i32
    return %c0_i32, %c0_i32_0 : i32, i32
  }
  func.func @transform_5(%arg0: i32) -> (i32, i32) {
    %c0_i32 = arith.constant 0 : i32
    %c0_i32_0 = arith.constant 0 : i32
    %c0_i32_1 = arith.constant 0 : i32
    return %c0_i32, %c0_i32_0 : i32, i32
  }
  func.func @transform_6(%arg0: i32) -> (i32, i32) {
    %c0_i32 = arith.constant 0 : i32
    %c0_i32_0 = arith.constant 0 : i32
    %c0_i32_1 = arith.constant 0 : i32
    return %c0_i32, %c0_i32_0 : i32, i32
  }
  func.func @transform_7(%arg0: i32) -> (i32, i32) {
    %c0_i32 = arith.constant 0 : i32
    %c0_i32_0 = arith.constant 0 : i32
    %c0_i32_1 = arith.constant 0 : i32
    return %c0_i32, %c0_i32_0 : i32, i32
  }
  func.func @transform_8(%arg0: i32) -> (i32, i32) {
    %c0_i32 = arith.constant 0 : i32
    %c0_i32_0 = arith.constant 0 : i32
    %c0_i32_1 = arith.constant 0 : i32
    return %c0_i32, %c0_i32_0 : i32, i32
  }
  func.func @transform_9(%arg0: i32) -> (i32, i32) {
    %c0_i32 = arith.constant 0 : i32
    %c0_i32_0 = arith.constant 0 : i32
    %c0_i32_1 = arith.constant 0 : i32
    return %c0_i32, %c0_i32_0 : i32, i32
  }
  func.func @transform_10(%arg0: i32) -> (i32, i32) {
    %c0_i32 = arith.constant 0 : i32
    %c0_i32_0 = arith.constant 0 : i32
    %c0_i32_1 = arith.constant 0 : i32
    return %c0_i32, %c0_i32_0 : i32, i32
  }
  func.func @transform_11(%arg0: i32) -> (i32, i32) {
    %c0_i32 = arith.constant 0 : i32
    %c0_i32_0 = arith.constant 0 : i32
    %c0_i32_1 = arith.constant 0 : i32
    return %c0_i32, %c0_i32_0 : i32, i32
  }
  func.func @transform_12(%arg0: i32) -> (i32, i32) {
    %c0_i32 = arith.constant 0 : i32
    %c0_i32_0 = arith.constant 0 : i32
    %c0_i32_1 = arith.constant 0 : i32
    return %c0_i32, %c0_i32_0 : i32, i32
  }
  func.func @transform_13(%arg0: i32) -> (i32, i32) {
    %c0_i32 = arith.constant 0 : i32
    %c0_i32_0 = arith.constant 0 : i32
    %c0_i32_1 = arith.constant 0 : i32
    return %c0_i32, %c0_i32_0 : i32, i32
  }
  func.func @transform_14(%arg0: i32) -> (i32, i32) {
    %c0_i32 = arith.constant 0 : i32
    %c0_i32_0 = arith.constant 0 : i32
    %c0_i32_1 = arith.constant 0 : i32
    return %c0_i32, %c0_i32_0 : i32, i32
  }
  func.func @transform_15(%arg0: i32) -> (i32, i32) {
    %c0_i32 = arith.constant 0 : i32
    %c0_i32_0 = arith.constant 0 : i32
    %c0_i32_1 = arith.constant 0 : i32
    return %c0_i32, %c0_i32_0 : i32, i32
  }
  func.func @transform_16(%arg0: i32) -> (i32, i32) {
    %c0_i32 = arith.constant 0 : i32
    %c0_i32_0 = arith.constant 0 : i32
    %c0_i32_1 = arith.constant 0 : i32
    return %c0_i32, %c0_i32_0 : i32, i32
  }
  func.func @transform_17(%arg0: i32) -> (i32, i32) {
    %c0_i32 = arith.constant 0 : i32
    %c0_i32_0 = arith.constant 0 : i32
    %c0_i32_1 = arith.constant 0 : i32
    return %c0_i32, %c0_i32_0 : i32, i32
  }
  func.func @transform_18(%arg0: i32) -> (i32, i32) {
    %c0_i32 = arith.constant 0 : i32
    %c0_i32_0 = arith.constant 0 : i32
    %c0_i32_1 = arith.constant 0 : i32
    return %c0_i32, %c0_i32_0 : i32, i32
  }
  func.func @transform_19(%arg0: i32) -> (i32, i32) {
    %c0_i32 = arith.constant 0 : i32
    %c0_i32_0 = arith.constant 0 : i32
    %c0_i32_1 = arith.constant 0 : i32
    return %c0_i32, %c0_i32_0 : i32, i32
  }
  func.func @transform_20(%arg0: i32) -> (i32, i32) {
    %c0_i32 = arith.constant 0 : i32
    %c0_i32_0 = arith.constant 0 : i32
    %c0_i32_1 = arith.constant 0 : i32
    return %c0_i32, %c0_i32_0 : i32, i32
  }
  func.func @transform_21(%arg0: i32) -> (i32, i32) {
    %c0_i32 = arith.constant 0 : i32
    %c0_i32_0 = arith.constant 0 : i32
    %c0_i32_1 = arith.constant 0 : i32
    return %c0_i32, %c0_i32_0 : i32, i32
  }
}

</mosaic_0001>

<llo_original>
// kernel: fcnn_forward.1
$region0: #{fcnn_forward.1}
  #allocation0 [shape = 'u32[]', space=smem, size = 0x4, offset = 0x4, fixed_abs, tag = 'smem constant byte address 0x4 - core index']
  #allocation1 [shape = 'u32[144,128]{1,0:T(1,128)}', space=vmem, size = 0x12000, scoped, tag = 'internal scratch']
  #allocation2 [shape = 'bf16[128,256]{1,0:T(16,128)(2,1)}', space=vmem, size = 0x10000, scoped, tag = 'scratch operand']
  #allocation3 [shape = 'f32[1,256]{1,0:T(1,128)}', space=vmem, size = 0x400, scoped, tag = 'scratch operand']
  #allocation4 [shape = 'f32[1,256]{1,0:T(1,128)}', space=vmem, size = 0x400, scoped, tag = 'scratch operand']
  %s0 = inlined_call_operand.vmem [shape: f32[128,3072], index: 0, kind: input, shape index: {}]
  %s1 = inlined_call_operand.vmem [shape: bf16[3072,256], index: 1, kind: input, shape index: {}]
  %s2 = inlined_call_operand.vmem [shape: f32[1,256], index: 2, kind: input, shape index: {}]
  %s3 = inlined_call_operand.vmem [shape: f32[1,256], index: 3, kind: input, shape index: {}]
  %s4 = inlined_call_operand.vmem [shape: bf16[256,256], index: 4, kind: input, shape index: {}]
  %s5 = inlined_call_operand.vmem [shape: f32[1,256], index: 5, kind: input, shape index: {}]
  %s6 = inlined_call_operand.vmem [shape: f32[1,256], index: 6, kind: input, shape index: {}]
  %s7 = inlined_call_operand.vmem [shape: bf16[256,256], index: 7, kind: input, shape index: {}]
  %s8 = inlined_call_operand.vmem [shape: f32[1,256], index: 8, kind: input, shape index: {}]
  %s9 = inlined_call_operand.vmem [shape: f32[1,256], index: 9, kind: input, shape index: {}]
  %s10 = inlined_call_operand.vmem [shape: bf16[256,256], index: 10, kind: input, shape index: {}]
  %s11 = inlined_call_operand.vmem [shape: f32[1,256], index: 11, kind: input, shape index: {}]
  %s12 = inlined_call_operand.vmem [shape: f32[1,256], index: 12, kind: input, shape index: {}]
  %s13 = inlined_call_operand.vmem [shape: bf16[256,256], index: 13, kind: input, shape index: {}]
  %s14 = inlined_call_operand.vmem [shape: f32[1,256], index: 14, kind: input, shape index: {}]
  %s15 = inlined_call_operand.vmem [shape: f32[1,256], index: 15, kind: input, shape index: {}]
  %s16 = inlined_call_operand.vmem [shape: bf16[256,256], index: 16, kind: input, shape index: {}]
  %s17 = inlined_call_operand.vmem [shape: f32[1,256], index: 17, kind: input, shape index: {}]
  %s18 = inlined_call_operand.vmem [shape: f32[1,256], index: 18, kind: input, shape index: {}]
  %s19 = inlined_call_operand.vmem [shape: bf16[256,128], index: 19, kind: input, shape index: {}]
  %s20 = inlined_call_operand.vmem [shape: f32[1,128], index: 20, kind: input, shape index: {}]
  %s21 = inlined_call_operand.vmem [shape: f32[128,128], index: 21, kind: output, shape index: {}]
  %s22 = sld [smem:[#allocation0]]
  $region102: #{fcnn_forward.1} parent=0
    _
  %s24 = ssub.s32 1, %s22
  %s25 = scalar_select 0, %s24, %s22
  // Predicated region
  $region2: #{fcnn_forward.1} parent=0 // pred_check
    _
  $region3: #{fcnn_forward.1} parent=0 // pred_check_branch
    %27 = sbr.rel (0) target = $region5
  $region4: #{fcnn_forward.1} parent=0 // pred_region
    _
  $region5: #{fcnn_forward.1} parent=0 // pred_fallthru
    _
  // Predicated region
  $region6: #{fcnn_forward.1} parent=0 // pred_check
    _
  $region7: #{fcnn_forward.1} parent=0 // pred_check_branch
    %29 = sbr.rel (0) target = $region9
  $region8: #{fcnn_forward.1} parent=0 // pred_region
    _
  $region9: #{fcnn_forward.1} parent=0 // pred_fallthru
    _
  // Predicated region
  $region10: #{fcnn_forward.1} parent=0 // pred_check
    _
  $region11: #{fcnn_forward.1} parent=0 // pred_check_branch
    %31 = sbr.rel (0) target = $region13
  $region12: #{fcnn_forward.1} parent=0 // pred_region
    _
  $region13: #{fcnn_forward.1} parent=0 // pred_fallthru
    _
  // Predicated region
  $region14: #{fcnn_forward.1} parent=0 // pred_check
    _
  $region15: #{fcnn_forward.1} parent=0 // pred_check_branch
    %33 = sbr.rel (0) target = $region17
  $region16: #{fcnn_forward.1} parent=0 // pred_region
    _
  $region17: #{fcnn_forward.1} parent=0 // pred_fallthru
    _
  // Predicated region
  $region18: #{fcnn_forward.1} parent=0 // pred_check
    _
  $region19: #{fcnn_forward.1} parent=0 // pred_check_branch
    %35 = sbr.rel (0) target = $region21
  $region20: #{fcnn_forward.1} parent=0 // pred_region
    _
  $region21: #{fcnn_forward.1} parent=0 // pred_fallthru
    _
  // Predicated region
  $region22: #{fcnn_forward.1} parent=0 // pred_check
    _
  $region23: #{fcnn_forward.1} parent=0 // pred_check_branch
    %37 = sbr.rel (0) target = $region25
  $region24: #{fcnn_forward.1} parent=0 // pred_region
    _
  $region25: #{fcnn_forward.1} parent=0 // pred_fallthru
    _
  // Predicated region
  $region26: #{fcnn_forward.1} parent=0 // pred_check
    _
  $region27: #{fcnn_forward.1} parent=0 // pred_check_branch
    %39 = sbr.rel (0) target = $region29
  $region28: #{fcnn_forward.1} parent=0 // pred_region
    _
  $region29: #{fcnn_forward.1} parent=0 // pred_fallthru
    _
  // Predicated region
  $region30: #{fcnn_forward.1} parent=0 // pred_check
    _
  $region31: #{fcnn_forward.1} parent=0 // pred_check_branch
    %41 = sbr.rel (0) target = $region33
  $region32: #{fcnn_forward.1} parent=0 // pred_region
    _
  $region33: #{fcnn_forward.1} parent=0 // pred_fallthru
    _
  // Predicated region
  $region34: #{fcnn_forward.1} parent=0 // pred_check
    _
  $region35: #{fcnn_forward.1} parent=0 // pred_check_branch
    %43 = sbr.rel (0) target = $region37
  $region36: #{fcnn_forward.1} parent=0 // pred_region
    _
  $region37: #{fcnn_forward.1} parent=0 // pred_fallthru
    _
  // Predicated region
  $region38: #{fcnn_forward.1} parent=0 // pred_check
    _
  $region39: #{fcnn_forward.1} parent=0 // pred_check_branch
    %45 = sbr.rel (0) target = $region41
  $region40: #{fcnn_forward.1} parent=0 // pred_region
    _
  $region41: #{fcnn_forward.1} parent=0 // pred_fallthru
    _
  // Predicated region
  $region42: #{fcnn_forward.1} parent=0 // pred_check
    _
  $region43: #{fcnn_forward.1} parent=0 // pred_check_branch
    %47 = sbr.rel (0) target = $region45
  $region44: #{fcnn_forward.1} parent=0 // pred_region
    _
  $region45: #{fcnn_forward.1} parent=0 // pred_fallthru
    _
  // Predicated region
  $region46: #{fcnn_forward.1} parent=0 // pred_check
    _
  $region47: #{fcnn_forward.1} parent=0 // pred_check_branch
    %49 = sbr.rel (0) target = $region49
  $region48: #{fcnn_forward.1} parent=0 // pred_region
    _
  $region49: #{fcnn_forward.1} parent=0 // pred_fallthru
    _
  // Predicated region
  $region50: #{fcnn_forward.1} parent=0 // pred_check
    _
  $region51: #{fcnn_forward.1} parent=0 // pred_check_branch
    %51 = sbr.rel (0) target = $region53
  $region52: #{fcnn_forward.1} parent=0 // pred_region
    _
  $region53: #{fcnn_forward.1} parent=0 // pred_fallthru
    _
  // Predicated region
  $region54: #{fcnn_forward.1} parent=0 // pred_check
    _
  $region55: #{fcnn_forward.1} parent=0 // pred_check_branch
    %53 = sbr.rel (0) target = $region57
  $region56: #{fcnn_forward.1} parent=0 // pred_region
    _
  $region57: #{fcnn_forward.1} parent=0 // pred_fallthru
    _
  // Predicated region
  $region58: #{fcnn_forward.1} parent=0 // pred_check
    _
  $region59: #{fcnn_forward.1} parent=0 // pred_check_branch
    %55 = sbr.rel (0) target = $region61
  $region60: #{fcnn_forward.1} parent=0 // pred_region
    _
  $region61: #{fcnn_forward.1} parent=0 // pred_fallthru
    _
  // Predicated region
  $region62: #{fcnn_forward.1} parent=0 // pred_check
    _
  $region63: #{fcnn_forward.1} parent=0 // pred_check_branch
    %57 = sbr.rel (0) target = $region65
  $region64: #{fcnn_forward.1} parent=0 // pred_region
    _
  $region65: #{fcnn_forward.1} parent=0 // pred_fallthru
    _
  // Predicated region
  $region66: #{fcnn_forward.1} parent=0 // pred_check
    _
  $region67: #{fcnn_forward.1} parent=0 // pred_check_branch
    %59 = sbr.rel (0) target = $region69
  $region68: #{fcnn_forward.1} parent=0 // pred_region
    _
  $region69: #{fcnn_forward.1} parent=0 // pred_fallthru
    _
  // Predicated region
  $region70: #{fcnn_forward.1} parent=0 // pred_check
    _
  $region71: #{fcnn_forward.1} parent=0 // pred_check_branch
    %61 = sbr.rel (0) target = $region73
  $region72: #{fcnn_forward.1} parent=0 // pred_region
    _
  $region73: #{fcnn_forward.1} parent=0 // pred_fallthru
    _
  // Predicated region
  $region74: #{fcnn_forward.1} parent=0 // pred_check
    _
  $region75: #{fcnn_forward.1} parent=0 // pred_check_branch
    %63 = sbr.rel (0) target = $region77
  $region76: #{fcnn_forward.1} parent=0 // pred_region
    _
  $region77: #{fcnn_forward.1} parent=0 // pred_fallthru
    _
  // Predicated region
  $region78: #{fcnn_forward.1} parent=0 // pred_check
    _
  $region79: #{fcnn_forward.1} parent=0 // pred_check_branch
    %65 = sbr.rel (0) target = $region81
  $region80: #{fcnn_forward.1} parent=0 // pred_region
    _
  $region81: #{fcnn_forward.1} parent=0 // pred_fallthru
    _
  // Predicated region
  $region82: #{fcnn_forward.1} parent=0 // pred_check
    _
  $region83: #{fcnn_forward.1} parent=0 // pred_check_branch
    %67 = sbr.rel (0) target = $region85
  $region84: #{fcnn_forward.1} parent=0 // pred_region
    _
  $region85: #{fcnn_forward.1} parent=0 // pred_fallthru
    _
  %p69 = scmp.eq.s32.totalorder 0, 0
  // Predicated region
  $region86: #{fcnn_forward.1} parent=0 // pred_check
    %p70 = pneg %p69
  $region87: #{fcnn_forward.1} parent=0 // pred_check_branch
    %72 = sbr.rel (%p70) target = $region89
  $region88: #{fcnn_forward.1} parent=0 // pred_region
    %v73 = vlaneseq
    %vm74 = vcmp.ge.s32.totalorder %v73, 0
    %vm75 = vcmp.lt.s32.totalorder %v73, 256
    %vm76 = vmand %vm74, %vm75
    %77 = vst.msk [vmem:[#allocation3] sm:$0x3] %vm76, 0.0
    %78 = vst.msk [vmem:[#allocation4] sm:$0x3] %vm76, 0.0
  $region89: #{fcnn_forward.1} parent=0 // pred_fallthru
    _
  %v79 = vld [vmem:[%s0] sm:$0xff]
  %v80 = vld [vmem:[%s0 + $0x8] sm:$0xff]
  %v81 = vld [vmem:[%s0 + $0x10] sm:$0xff]
  %v82 = vld [vmem:[%s0 + $0x18] sm:$0xff]
  %v83 = vld [vmem:[%s0 + $0x20] sm:$0xff]
  %v84 = vld [vmem:[%s0 + $0x28] sm:$0xff]
  %v85 = vld [vmem:[%s0 + $0x30] sm:$0xff]
  %v86 = vld [vmem:[%s0 + $0x38] sm:$0xff]
  %v87 = vld [vmem:[%s0 + $0x40] sm:$0xff]
  %v88 = vld [vmem:[%s0 + $0x48] sm:$0xff]
  %v89 = vld [vmem:[%s0 + $0x50] sm:$0xff]
  %v90 = vld [vmem:[%s0 + $0x58] sm:$0xff]
  %v91 = vld [vmem:[%s0 + $0x60] sm:$0xff]
  %v92 = vld [vmem:[%s0 + $0x68] sm:$0xff]
  %v93 = vld [vmem:[%s0 + $0x70] sm:$0xff]
  %v94 = vld [vmem:[%s0 + $0x78] sm:$0xff]
  %v95 = vld [vmem:[%s0 + $0x80] sm:$0xff]
  %v96 = vld [vmem:[%s0 + $0x88] sm:$0xff]
  %v97 = vld [vmem:[%s0 + $0x90] sm:$0xff]
  %v98 = vld [vmem:[%s0 + $0x98] sm:$0xff]
  %v99 = vld [vmem:[%s0 + $0xa0] sm:$0xff]
  %v100 = vld [vmem:[%s0 + $0xa8] sm:$0xff]
  %v101 = vld [vmem:[%s0 + $0xb0] sm:$0xff]
  %v102 = vld [vmem:[%s0 + $0xb8] sm:$0xff]
  %v103 = vld [vmem:[%s0 + $0xc0] sm:$0xff]
  %v104 = vld [vmem:[%s0 + $0xc8] sm:$0xff]
  %v105 = vld [vmem:[%s0 + $0xd0] sm:$0xff]
  %v106 = vld [vmem:[%s0 + $0xd8] sm:$0xff]
  %v107 = vld [vmem:[%s0 + $0xe0] sm:$0xff]
  %v108 = vld [vmem:[%s0 + $0xe8] sm:$0xff]
  %v109 = vld [vmem:[%s0 + $0xf0] sm:$0xff]
  %v110 = vld [vmem:[%s0 + $0xf8] sm:$0xff]
  %v111 = vld [vmem:[%s0 + $0x100] sm:$0xff]
  %v112 = vld [vmem:[%s0 + $0x108] sm:$0xff]
  %v113 = vld [vmem:[%s0 + $0x110] sm:$0xff]
  %v114 = vld [vmem:[%s0 + $0x118] sm:$0xff]
  %v115 = vld [vmem:[%s0 + $0x120] sm:$0xff]
  %v116 = vld [vmem:[%s0 + $0x128] sm:$0xff]
  %v117 = vld [vmem:[%s0 + $0x130] sm:$0xff]
  %v118 = vld [vmem:[%s0 + $0x138] sm:$0xff]
  %v119 = vld [vmem:[%s0 + $0x140] sm:$0xff]
  %v120 = vld [vmem:[%s0 + $0x148] sm:$0xff]
  %v121 = vld [vmem:[%s0 + $0x150] sm:$0xff]
  %v122 = vld [vmem:[%s0 + $0x158] sm:$0xff]
  %v123 = vld [vmem:[%s0 + $0x160] sm:$0xff]
  %v124 = vld [vmem:[%s0 + $0x168] sm:$0xff]
  %v125 = vld [vmem:[%s0 + $0x170] sm:$0xff]
  %v126 = vld [vmem:[%s0 + $0x178] sm:$0xff]
  %v127 = vld [vmem:[%s0 + $0x180] sm:$0xff]
  %v128 = vld [vmem:[%s0 + $0x188] sm:$0xff]
  %v129 = vld [vmem:[%s0 + $0x190] sm:$0xff]
  %v130 = vld [vmem:[%s0 + $0x198] sm:$0xff]
  %v131 = vld [vmem:[%s0 + $0x1a0] sm:$0xff]
  %v132 = vld [vmem:[%s0 + $0x1a8] sm:$0xff]
  %v133 = vld [vmem:[%s0 + $0x1b0] sm:$0xff]
  %v134 = vld [vmem:[%s0 + $0x1b8] sm:$0xff]
  %v135 = vld [vmem:[%s0 + $0x1c0] sm:$0xff]
  %v136 = vld [vmem:[%s0 + $0x1c8] sm:$0xff]
  %v137 = vld [vmem:[%s0 + $0x1d0] sm:$0xff]
  %v138 = vld [vmem:[%s0 + $0x1d8] sm:$0xff]
  %v139 = vld [vmem:[%s0 + $0x1e0] sm:$0xff]
  %v140 = vld [vmem:[%s0 + $0x1e8] sm:$0xff]
  %v141 = vld [vmem:[%s0 + $0x1f0] sm:$0xff]
  %v142 = vld [vmem:[%s0 + $0x1f8] sm:$0xff]
  %v143 = vld [vmem:[%s0 + $0x200] sm:$0xff]
  %v144 = vld [vmem:[%s0 + $0x208] sm:$0xff]
  %v145 = vld [vmem:[%s0 + $0x210] sm:$0xff]
  %v146 = vld [vmem:[%s0 + $0x218] sm:$0xff]
  %v147 = vld [vmem:[%s0 + $0x220] sm:$0xff]
  %v148 = vld [vmem:[%s0 + $0x228] sm:$0xff]
  %v149 = vld [vmem:[%s0 + $0x230] sm:$0xff]
  %v150 = vld [vmem:[%s0 + $0x238] sm:$0xff]
  %v151 = vld [vmem:[%s0 + $0x240] sm:$0xff]
  %v152 = vld [vmem:[%s0 + $0x248] sm:$0xff]
  %v153 = vld [vmem:[%s0 + $0x250] sm:$0xff]
  %v154 = vld [vmem:[%s0 + $0x258] sm:$0xff]
  %v155 = vld [vmem:[%s0 + $0x260] sm:$0xff]
  %v156 = vld [vmem:[%s0 + $0x268] sm:$0xff]
  %v157 = vld [vmem:[%s0 + $0x270] sm:$0xff]
  %v158 = vld [vmem:[%s0 + $0x278] sm:$0xff]
  %v159 = vld [vmem:[%s0 + $0x280] sm:$0xff]
  %v160 = vld [vmem:[%s0 + $0x288] sm:$0xff]
  %v161 = vld [vmem:[%s0 + $0x290] sm:$0xff]
  %v162 = vld [vmem:[%s0 + $0x298] sm:$0xff]
  %v163 = vld [vmem:[%s0 + $0x2a0] sm:$0xff]
  %v164 = vld [vmem:[%s0 + $0x2a8] sm:$0xff]
  %v165 = vld [vmem:[%s0 + $0x2b0] sm:$0xff]
  %v166 = vld [vmem:[%s0 + $0x2b8] sm:$0xff]
  %v167 = vld [vmem:[%s0 + $0x2c0] sm:$0xff]
  %v168 = vld [vmem:[%s0 + $0x2c8] sm:$0xff]
  %v169 = vld [vmem:[%s0 + $0x2d0] sm:$0xff]
  %v170 = vld [vmem:[%s0 + $0x2d8] sm:$0xff]
  %v171 = vld [vmem:[%s0 + $0x2e0] sm:$0xff]
  %v172 = vld [vmem:[%s0 + $0x2e8] sm:$0xff]
  %v173 = vld [vmem:[%s0 + $0x2f0] sm:$0xff]
  %v174 = vld [vmem:[%s0 + $0x2f8] sm:$0xff]
  %v175 = vld [vmem:[%s0 + $0x300] sm:$0xff]
  %v176 = vld [vmem:[%s0 + $0x308] sm:$0xff]
  %v177 = vld [vmem:[%s0 + $0x310] sm:$0xff]
  %v178 = vld [vmem:[%s0 + $0x318] sm:$0xff]
  %v179 = vld [vmem:[%s0 + $0x320] sm:$0xff]
  %v180 = vld [vmem:[%s0 + $0x328] sm:$0xff]
  %v181 = vld [vmem:[%s0 + $0x330] sm:$0xff]
  %v182 = vld [vmem:[%s0 + $0x338] sm:$0xff]
  %v183 = vld [vmem:[%s0 + $0x340] sm:$0xff]
  %v184 = vld [vmem:[%s0 + $0x348] sm:$0xff]
  %v185 = vld [vmem:[%s0 + $0x350] sm:$0xff]
  %v186 = vld [vmem:[%s0 + $0x358] sm:$0xff]
  %v187 = vld [vmem:[%s0 + $0x360] sm:$0xff]
  %v188 = vld [vmem:[%s0 + $0x368] sm:$0xff]
  %v189 = vld [vmem:[%s0 + $0x370] sm:$0xff]
  %v190 = vld [vmem:[%s0 + $0x378] sm:$0xff]
  %v191 = vld [vmem:[%s0 + $0x380] sm:$0xff]
  %v192 = vld [vmem:[%s0 + $0x388] sm:$0xff]
  %v193 = vld [vmem:[%s0 + $0x390] sm:$0xff]
  %v194 = vld [vmem:[%s0 + $0x398] sm:$0xff]
  %v195 = vld [vmem:[%s0 + $0x3a0] sm:$0xff]
  %v196 = vld [vmem:[%s0 + $0x3a8] sm:$0xff]
  %v197 = vld [vmem:[%s0 + $0x3b0] sm:$0xff]
  %v198 = vld [vmem:[%s0 + $0x3b8] sm:$0xff]
  %v199 = vld [vmem:[%s0 + $0x3c0] sm:$0xff]
  %v200 = vld [vmem:[%s0 + $0x3c8] sm:$0xff]
  %v201 = vld [vmem:[%s0 + $0x3d0] sm:$0xff]
  %v202 = vld [vmem:[%s0 + $0x3d8] sm:$0xff]
  %v203 = vld [vmem:[%s0 + $0x3e0] sm:$0xff]
  %v204 = vld [vmem:[%s0 + $0x3e8] sm:$0xff]
  %v205 = vld [vmem:[%s0 + $0x3f0] sm:$0xff]
  %v206 = vld [vmem:[%s0 + $0x3f8] sm:$0xff]
  %v207 = vld [vmem:[%s0 + $0x400] sm:$0xff]
  %v208 = vld [vmem:[%s0 + $0x408] sm:$0xff]
  %v209 = vld [vmem:[%s0 + $0x410] sm:$0xff]
  %v210 = vld [vmem:[%s0 + $0x418] sm:$0xff]
  %v211 = vld [vmem:[%s0 + $0x420] sm:$0xff]
  %v212 = vld [vmem:[%s0 + $0x428] sm:$0xff]
  %v213 = vld [vmem:[%s0 + $0x430] sm:$0xff]
  %v214 = vld [vmem:[%s0 + $0x438] sm:$0xff]
  %v215 = vld [vmem:[%s0 + $0x440] sm:$0xff]
  %v216 = vld [vmem:[%s0 + $0x448] sm:$0xff]
  %v217 = vld [vmem:[%s0 + $0x450] sm:$0xff]
  %v218 = vld [vmem:[%s0 + $0x458] sm:$0xff]
  %v219 = vld [vmem:[%s0 + $0x460] sm:$0xff]
  %v220 = vld [vmem:[%s0 + $0x468] sm:$0xff]
  %v221 = vld [vmem:[%s0 + $0x470] sm:$0xff]
  %v222 = vld [vmem:[%s0 + $0x478] sm:$0xff]
  %v223 = vld [vmem:[%s0 + $0x480] sm:$0xff]
  %v224 = vld [vmem:[%s0 + $0x488] sm:$0xff]
  %v225 = vld [vmem:[%s0 + $0x490] sm:$0xff]
  %v226 = vld [vmem:[%s0 + $0x498] sm:$0xff]
  %v227 = vld [vmem:[%s0 + $0x4a0] sm:$0xff]
  %v228 = vld [vmem:[%s0 + $0x4a8] sm:$0xff]
  %v229 = vld [vmem:[%s0 + $0x4b0] sm:$0xff]
  %v230 = vld [vmem:[%s0 + $0x4b8] sm:$0xff]
  %v231 = vld [vmem:[%s0 + $0x4c0] sm:$0xff]
  %v232 = vld [vmem:[%s0 + $0x4c8] sm:$0xff]
  %v233 = vld [vmem:[%s0 + $0x4d0] sm:$0xff]
  %v234 = vld [vmem:[%s0 + $0x4d8] sm:$0xff]
  %v235 = vld [vmem:[%s0 + $0x4e0] sm:$0xff]
  %v236 = vld [vmem:[%s0 + $0x4e8] sm:$0xff]
  %v237 = vld [vmem:[%s0 + $0x4f0] sm:$0xff]
  %v238 = vld [vmem:[%s0 + $0x4f8] sm:$0xff]
  %v239 = vld [vmem:[%s0 + $0x500] sm:$0xff]
  %v240 = vld [vmem:[%s0 + $0x508] sm:$0xff]
  %v241 = vld [vmem:[%s0 + $0x510] sm:$0xff]
  %v242 = vld [vmem:[%s0 + $0x518] sm:$0xff]
  %v243 = vld [vmem:[%s0 + $0x520] sm:$0xff]
  %v244 = vld [vmem:[%s0 + $0x528] sm:$0xff]
  %v245 = vld [vmem:[%s0 + $0x530] sm:$0xff]
  %v246 = vld [vmem:[%s0 + $0x538] sm:$0xff]
  %v247 = vld [vmem:[%s0 + $0x540] sm:$0xff]
  %v248 = vld [vmem:[%s0 + $0x548] sm:$0xff]
  %v249 = vld [vmem:[%s0 + $0x550] sm:$0xff]
  %v250 = vld [vmem:[%s0 + $0x558] sm:$0xff]
  %v251 = vld [vmem:[%s0 + $0x560] sm:$0xff]
  %v252 = vld [vmem:[%s0 + $0x568] sm:$0xff]
  %v253 = vld [vmem:[%s0 + $0x570] sm:$0xff]
  %v254 = vld [vmem:[%s0 + $0x578] sm:$0xff]
  %v255 = vld [vmem:[%s0 + $0x580] sm:$0xff]
  %v256 = vld [vmem:[%s0 + $0x588] sm:$0xff]
  %v257 = vld [vmem:[%s0 + $0x590] sm:$0xff]
  %v258 = vld [vmem:[%s0 + $0x598] sm:$0xff]
  %v259 = vld [vmem:[%s0 + $0x5a0] sm:$0xff]
  %v260 = vld [vmem:[%s0 + $0x5a8] sm:$0xff]
  %v261 = vld [vmem:[%s0 + $0x5b0] sm:$0xff]
  %v262 = vld [vmem:[%s0 + $0x5b8] sm:$0xff]
  %v263 = vld [vmem:[%s0 + $0x5c0] sm:$0xff]
  %v264 = vld [vmem:[%s0 + $0x5c8] sm:$0xff]
  %v265 = vld [vmem:[%s0 + $0x5d0] sm:$0xff]
  %v266 = vld [vmem:[%s0 + $0x5d8] sm:$0xff]
  %v267 = vld [vmem:[%s0 + $0x5e0] sm:$0xff]
  %v268 = vld [vmem:[%s0 + $0x5e8] sm:$0xff]
  %v269 = vld [vmem:[%s0 + $0x5f0] sm:$0xff]
  %v270 = vld [vmem:[%s0 + $0x5f8] sm:$0xff]
  %v271 = vld [vmem:[%s0 + $0x600] sm:$0xff]
  %v272 = vld [vmem:[%s0 + $0x608] sm:$0xff]
  %v273 = vld [vmem:[%s0 + $0x610] sm:$0xff]
  %v274 = vld [vmem:[%s0 + $0x618] sm:$0xff]
  %v275 = vld [vmem:[%s0 + $0x620] sm:$0xff]
  %v276 = vld [vmem:[%s0 + $0x628] sm:$0xff]
  %v277 = vld [vmem:[%s0 + $0x630] sm:$0xff]
  %v278 = vld [vmem:[%s0 + $0x638] sm:$0xff]
  %v279 = vld [vmem:[%s0 + $0x640] sm:$0xff]
  %v280 = vld [vmem:[%s0 + $0x648] sm:$0xff]
  %v281 = vld [vmem:[%s0 + $0x650] sm:$0xff]
  %v282 = vld [vmem:[%s0 + $0x658] sm:$0xff]
  %v283 = vld [vmem:[%s0 + $0x660] sm:$0xff]
  %v284 = vld [vmem:[%s0 + $0x668] sm:$0xff]
  %v285 = vld [vmem:[%s0 + $0x670] sm:$0xff]
  %v286 = vld [vmem:[%s0 + $0x678] sm:$0xff]
  %v287 = vld [vmem:[%s0 + $0x680] sm:$0xff]
  %v288 = vld [vmem:[%s0 + $0x688] sm:$0xff]
  %v289 = vld [vmem:[%s0 + $0x690] sm:$0xff]
  %v290 = vld [vmem:[%s0 + $0x698] sm:$0xff]
  %v291 = vld [vmem:[%s0 + $0x6a0] sm:$0xff]
  %v292 = vld [vmem:[%s0 + $0x6a8] sm:$0xff]
  %v293 = vld [vmem:[%s0 + $0x6b0] sm:$0xff]
  %v294 = vld [vmem:[%s0 + $0x6b8] sm:$0xff]
  %v295 = vld [vmem:[%s0 + $0x6c0] sm:$0xff]
  %v296 = vld [vmem:[%s0 + $0x6c8] sm:$0xff]
  %v297 = vld [vmem:[%s0 + $0x6d0] sm:$0xff]
  %v298 = vld [vmem:[%s0 + $0x6d8] sm:$0xff]
  %v299 = vld [vmem:[%s0 + $0x6e0] sm:$0xff]
  %v300 = vld [vmem:[%s0 + $0x6e8] sm:$0xff]
  %v301 = vld [vmem:[%s0 + $0x6f0] sm:$0xff]
  %v302 = vld [vmem:[%s0 + $0x6f8] sm:$0xff]
  %v303 = vld [vmem:[%s0 + $0x700] sm:$0xff]
  %v304 = vld [vmem:[%s0 + $0x708] sm:$0xff]
  %v305 = vld [vmem:[%s0 + $0x710] sm:$0xff]
  %v306 = vld [vmem:[%s0 + $0x718] sm:$0xff]
  %v307 = vld [vmem:[%s0 + $0x720] sm:$0xff]
  %v308 = vld [vmem:[%s0 + $0x728] sm:$0xff]
  %v309 = vld [vmem:[%s0 + $0x730] sm:$0xff]
  %v310 = vld [vmem:[%s0 + $0x738] sm:$0xff]
  %v311 = vld [vmem:[%s0 + $0x740] sm:$0xff]
  %v312 = vld [vmem:[%s0 + $0x748] sm:$0xff]
  %v313 = vld [vmem:[%s0 + $0x750] sm:$0xff]
  %v314 = vld [vmem:[%s0 + $0x758] sm:$0xff]
  %v315 = vld [vmem:[%s0 + $0x760] sm:$0xff]
  %v316 = vld [vmem:[%s0 + $0x768] sm:$0xff]
  %v317 = vld [vmem:[%s0 + $0x770] sm:$0xff]
  %v318 = vld [vmem:[%s0 + $0x778] sm:$0xff]
  %v319 = vld [vmem:[%s0 + $0x780] sm:$0xff]
  %v320 = vld [vmem:[%s0 + $0x788] sm:$0xff]
  %v321 = vld [vmem:[%s0 + $0x790] sm:$0xff]
  %v322 = vld [vmem:[%s0 + $0x798] sm:$0xff]
  %v323 = vld [vmem:[%s0 + $0x7a0] sm:$0xff]
  %v324 = vld [vmem:[%s0 + $0x7a8] sm:$0xff]
  %v325 = vld [vmem:[%s0 + $0x7b0] sm:$0xff]
  %v326 = vld [vmem:[%s0 + $0x7b8] sm:$0xff]
  %v327 = vld [vmem:[%s0 + $0x7c0] sm:$0xff]
  %v328 = vld [vmem:[%s0 + $0x7c8] sm:$0xff]
  %v329 = vld [vmem:[%s0 + $0x7d0] sm:$0xff]
  %v330 = vld [vmem:[%s0 + $0x7d8] sm:$0xff]
  %v331 = vld [vmem:[%s0 + $0x7e0] sm:$0xff]
  %v332 = vld [vmem:[%s0 + $0x7e8] sm:$0xff]
  %v333 = vld [vmem:[%s0 + $0x7f0] sm:$0xff]
  %v334 = vld [vmem:[%s0 + $0x7f8] sm:$0xff]
  %v335 = vld [vmem:[%s0 + $0x800] sm:$0xff]
  %v336 = vld [vmem:[%s0 + $0x808] sm:$0xff]
  %v337 = vld [vmem:[%s0 + $0x810] sm:$0xff]
  %v338 = vld [vmem:[%s0 + $0x818] sm:$0xff]
  %v339 = vld [vmem:[%s0 + $0x820] sm:$0xff]
  %v340 = vld [vmem:[%s0 + $0x828] sm:$0xff]
  %v341 = vld [vmem:[%s0 + $0x830] sm:$0xff]
  %v342 = vld [vmem:[%s0 + $0x838] sm:$0xff]
  %v343 = vld [vmem:[%s0 + $0x840] sm:$0xff]
  %v344 = vld [vmem:[%s0 + $0x848] sm:$0xff]
  %v345 = vld [vmem:[%s0 + $0x850] sm:$0xff]
  %v346 = vld [vmem:[%s0 + $0x858] sm:$0xff]
  %v347 = vld [vmem:[%s0 + $0x860] sm:$0xff]
  %v348 = vld [vmem:[%s0 + $0x868] sm:$0xff]
  %v349 = vld [vmem:[%s0 + $0x870] sm:$0xff]
  %v350 = vld [vmem:[%s0 + $0x878] sm:$0xff]
  %v351 = vld [vmem:[%s0 + $0x880] sm:$0xff]
  %v352 = vld [vmem:[%s0 + $0x888] sm:$0xff]
  %v353 = vld [vmem:[%s0 + $0x890] sm:$0xff]
  %v354 = vld [vmem:[%s0 + $0x898] sm:$0xff]
  %v355 = vld [vmem:[%s0 + $0x8a0] sm:$0xff]
  %v356 = vld [vmem:[%s0 + $0x8a8] sm:$0xff]
  %v357 = vld [vmem:[%s0 + $0x8b0] sm:$0xff]
  %v358 = vld [vmem:[%s0 + $0x8b8] sm:$0xff]
  %v359 = vld [vmem:[%s0 + $0x8c0] sm:$0xff]
  %v360 = vld [vmem:[%s0 + $0x8c8] sm:$0xff]
  %v361 = vld [vmem:[%s0 + $0x8d0] sm:$0xff]
  %v362 = vld [vmem:[%s0 + $0x8d8] sm:$0xff]
  %v363 = vld [vmem:[%s0 + $0x8e0] sm:$0xff]
  %v364 = vld [vmem:[%s0 + $0x8e8] sm:$0xff]
  %v365 = vld [vmem:[%s0 + $0x8f0] sm:$0xff]
  %v366 = vld [vmem:[%s0 + $0x8f8] sm:$0xff]
  %v367 = vld [vmem:[%s0 + $0x900] sm:$0xff]
  %v368 = vld [vmem:[%s0 + $0x908] sm:$0xff]
  %v369 = vld [vmem:[%s0 + $0x910] sm:$0xff]
  %v370 = vld [vmem:[%s0 + $0x918] sm:$0xff]
  %v371 = vld [vmem:[%s0 + $0x920] sm:$0xff]
  %v372 = vld [vmem:[%s0 + $0x928] sm:$0xff]
  %v373 = vld [vmem:[%s0 + $0x930] sm:$0xff]
  %v374 = vld [vmem:[%s0 + $0x938] sm:$0xff]
  %v375 = vld [vmem:[%s0 + $0x940] sm:$0xff]
  %v376 = vld [vmem:[%s0 + $0x948] sm:$0xff]
  %v377 = vld [vmem:[%s0 + $0x950] sm:$0xff]
  %v378 = vld [vmem:[%s0 + $0x958] sm:$0xff]
  %v379 = vld [vmem:[%s0 + $0x960] sm:$0xff]
  %v380 = vld [vmem:[%s0 + $0x968] sm:$0xff]
  %v381 = vld [vmem:[%s0 + $0x970] sm:$0xff]
  %v382 = vld [vmem:[%s0 + $0x978] sm:$0xff]
  %v383 = vld [vmem:[%s0 + $0x980] sm:$0xff]
  %v384 = vld [vmem:[%s0 + $0x988] sm:$0xff]
  %v385 = vld [vmem:[%s0 + $0x990] sm:$0xff]
  %v386 = vld [vmem:[%s0 + $0x998] sm:$0xff]
  %v387 = vld [vmem:[%s0 + $0x9a0] sm:$0xff]
  %v388 = vld [vmem:[%s0 + $0x9a8] sm:$0xff]
  %v389 = vld [vmem:[%s0 + $0x9b0] sm:$0xff]
  %v390 = vld [vmem:[%s0 + $0x9b8] sm:$0xff]
  %v391 = vld [vmem:[%s0 + $0x9c0] sm:$0xff]
  %v392 = vld [vmem:[%s0 + $0x9c8] sm:$0xff]
  %v393 = vld [vmem:[%s0 + $0x9d0] sm:$0xff]
  %v394 = vld [vmem:[%s0 + $0x9d8] sm:$0xff]
  %v395 = vld [vmem:[%s0 + $0x9e0] sm:$0xff]
  %v396 = vld [vmem:[%s0 + $0x9e8] sm:$0xff]
  %v397 = vld [vmem:[%s0 + $0x9f0] sm:$0xff]
  %v398 = vld [vmem:[%s0 + $0x9f8] sm:$0xff]
  %v399 = vld [vmem:[%s0 + $0xa00] sm:$0xff]
  %v400 = vld [vmem:[%s0 + $0xa08] sm:$0xff]
  %v401 = vld [vmem:[%s0 + $0xa10] sm:$0xff]
  %v402 = vld [vmem:[%s0 + $0xa18] sm:$0xff]
  %v403 = vld [vmem:[%s0 + $0xa20] sm:$0xff]
  %v404 = vld [vmem:[%s0 + $0xa28] sm:$0xff]
  %v405 = vld [vmem:[%s0 + $0xa30] sm:$0xff]
  %v406 = vld [vmem:[%s0 + $0xa38] sm:$0xff]
  %v407 = vld [vmem:[%s0 + $0xa40] sm:$0xff]
  %v408 = vld [vmem:[%s0 + $0xa48] sm:$0xff]
  %v409 = vld [vmem:[%s0 + $0xa50] sm:$0xff]
  %v410 = vld [vmem:[%s0 + $0xa58] sm:$0xff]
  %v411 = vld [vmem:[%s0 + $0xa60] sm:$0xff]
  %v412 = vld [vmem:[%s0 + $0xa68] sm:$0xff]
  %v413 = vld [vmem:[%s0 + $0xa70] sm:$0xff]
  %v414 = vld [vmem:[%s0 + $0xa78] sm:$0xff]
  %v415 = vld [vmem:[%s0 + $0xa80] sm:$0xff]
  %v416 = vld [vmem:[%s0 + $0xa88] sm:$0xff]
  %v417 = vld [vmem:[%s0 + $0xa90] sm:$0xff]
  %v418 = vld [vmem:[%s0 + $0xa98] sm:$0xff]
  %v419 = vld [vmem:[%s0 + $0xaa0] sm:$0xff]
  %v420 = vld [vmem:[%s0 + $0xaa8] sm:$0xff]
  %v421 = vld [vmem:[%s0 + $0xab0] sm:$0xff]
  %v422 = vld [vmem:[%s0 + $0xab8] sm:$0xff]
  %v423 = vld [vmem:[%s0 + $0xac0] sm:$0xff]
  %v424 = vld [vmem:[%s0 + $0xac8] sm:$0xff]
  %v425 = vld [vmem:[%s0 + $0xad0] sm:$0xff]
  %v426 = vld [vmem:[%s0 + $0xad8] sm:$0xff]
  %v427 = vld [vmem:[%s0 + $0xae0] sm:$0xff]
  %v428 = vld [vmem:[%s0 + $0xae8] sm:$0xff]
  %v429 = vld [vmem:[%s0 + $0xaf0] sm:$0xff]
  %v430 = vld [vmem:[%s0 + $0xaf8] sm:$0xff]
  %v431 = vld [vmem:[%s0 + $0xb00] sm:$0xff]
  %v432 = vld [vmem:[%s0 + $0xb08] sm:$0xff]
  %v433 = vld [vmem:[%s0 + $0xb10] sm:$0xff]
  %v434 = vld [vmem:[%s0 + $0xb18] sm:$0xff]
  %v435 = vld [vmem:[%s0 + $0xb20] sm:$0xff]
  %v436 = vld [vmem:[%s0 + $0xb28] sm:$0xff]
  %v437 = vld [vmem:[%s0 + $0xb30] sm:$0xff]
  %v438 = vld [vmem:[%s0 + $0xb38] sm:$0xff]
  %v439 = vld [vmem:[%s0 + $0xb40] sm:$0xff]
  %v440 = vld [vmem:[%s0 + $0xb48] sm:$0xff]
  %v441 = vld [vmem:[%s0 + $0xb50] sm:$0xff]
  %v442 = vld [vmem:[%s0 + $0xb58] sm:$0xff]
  %v443 = vld [vmem:[%s0 + $0xb60] sm:$0xff]
  %v444 = vld [vmem:[%s0 + $0xb68] sm:$0xff]
  %v445 = vld [vmem:[%s0 + $0xb70] sm:$0xff]
  %v446 = vld [vmem:[%s0 + $0xb78] sm:$0xff]
  %v447 = vld [vmem:[%s0 + $0xb80] sm:$0xff]
  %v448 = vld [vmem:[%s0 + $0xb88] sm:$0xff]
  %v449 = vld [vmem:[%s0 + $0xb90] sm:$0xff]
  %v450 = vld [vmem:[%s0 + $0xb98] sm:$0xff]
  %v451 = vld [vmem:[%s0 + $0xba0] sm:$0xff]
  %v452 = vld [vmem:[%s0 + $0xba8] sm:$0xff]
  %v453 = vld [vmem:[%s0 + $0xbb0] sm:$0xff]
  %v454 = vld [vmem:[%s0 + $0xbb8] sm:$0xff]
  %v455 = vld [vmem:[%s0 + $0xbc0] sm:$0xff]
  %v456 = vld [vmem:[%s0 + $0xbc8] sm:$0xff]
  %v457 = vld [vmem:[%s0 + $0xbd0] sm:$0xff]
  %v458 = vld [vmem:[%s0 + $0xbd8] sm:$0xff]
  %v459 = vld [vmem:[%s0 + $0xbe0] sm:$0xff]
  %v460 = vld [vmem:[%s0 + $0xbe8] sm:$0xff]
  %v461 = vld [vmem:[%s0 + $0xbf0] sm:$0xff]
  %v462 = vld [vmem:[%s0 + $0xbf8] sm:$0xff]
  %v463 = vpack.c.bf16 %v103, %v79
  %v464 = vpack.c.bf16 %v104, %v80
  %v465 = vpack.c.bf16 %v105, %v81
  %v466 = vpack.c.bf16 %v106, %v82
  %v467 = vpack.c.bf16 %v107, %v83
  %v468 = vpack.c.bf16 %v108, %v84
  %v469 = vpack.c.bf16 %v109, %v85
  %v470 = vpack.c.bf16 %v110, %v86
  %v471 = vpack.c.bf16 %v111, %v87
  %v472 = vpack.c.bf16 %v112, %v88
  %v473 = vpack.c.bf16 %v113, %v89
  %v474 = vpack.c.bf16 %v114, %v90
  %v475 = vpack.c.bf16 %v115, %v91
  %v476 = vpack.c.bf16 %v116, %v92
  %v477 = vpack.c.bf16 %v117, %v93
  %v478 = vpack.c.bf16 %v118, %v94
  %v479 = vpack.c.bf16 %v119, %v95
  %v480 = vpack.c.bf16 %v120, %v96
  %v481 = vpack.c.bf16 %v121, %v97
  %v482 = vpack.c.bf16 %v122, %v98
  %v483 = vpack.c.bf16 %v123, %v99
  %v484 = vpack.c.bf16 %v124, %v100
  %v485 = vpack.c.bf16 %v125, %v101
  %v486 = vpack.c.bf16 %v126, %v102
  %v487 = vpack.c.bf16 %v151, %v127
  %v488 = vpack.c.bf16 %v152, %v128
  %v489 = vpack.c.bf16 %v153, %v129
  %v490 = vpack.c.bf16 %v154, %v130
  %v491 = vpack.c.bf16 %v155, %v131
  %v492 = vpack.c.bf16 %v156, %v132
  %v493 = vpack.c.bf16 %v157, %v133
  %v494 = vpack.c.bf16 %v158, %v134
  %v495 = vpack.c.bf16 %v159, %v135
  %v496 = vpack.c.bf16 %v160, %v136
  %v497 = vpack.c.bf16 %v161, %v137
  %v498 = vpack.c.bf16 %v162, %v138
  %v499 = vpack.c.bf16 %v163, %v139
  %v500 = vpack.c.bf16 %v164, %v140
  %v501 = vpack.c.bf16 %v165, %v141
  %v502 = vpack.c.bf16 %v166, %v142
  %v503 = vpack.c.bf16 %v167, %v143
  %v504 = vpack.c.bf16 %v168, %v144
  %v505 = vpack.c.bf16 %v169, %v145
  %v506 = vpack.c.bf16 %v170, %v146
  %v507 = vpack.c.bf16 %v171, %v147
  %v508 = vpack.c.bf16 %v172, %v148
  %v509 = vpack.c.bf16 %v173, %v149
  %v510 = vpack.c.bf16 %v174, %v150
  %v511 = vpack.c.bf16 %v199, %v175
  %v512 = vpack.c.bf16 %v200, %v176
  %v513 = vpack.c.bf16 %v201, %v177
  %v514 = vpack.c.bf16 %v202, %v178
  %v515 = vpack.c.bf16 %v203, %v179
  %v516 = vpack.c.bf16 %v204, %v180
  %v517 = vpack.c.bf16 %v205, %v181
  %v518 = vpack.c.bf16 %v206, %v182
  %v519 = vpack.c.bf16 %v207, %v183
  %v520 = vpack.c.bf16 %v208, %v184
  %v521 = vpack.c.bf16 %v209, %v185
  %v522 = vpack.c.bf16 %v210, %v186
  %v523 = vpack.c.bf16 %v211, %v187
  %v524 = vpack.c.bf16 %v212, %v188
  %v525 = vpack.c.bf16 %v213, %v189
  %v526 = vpack.c.bf16 %v214, %v190
  %v527 = vpack.c.bf16 %v215, %v191
  %v528 = vpack.c.bf16 %v216, %v192
  %v529 = vpack.c.bf16 %v217, %v193
  %v530 = vpack.c.bf16 %v218, %v194
  %v531 = vpack.c.bf16 %v219, %v195
  %v532 = vpack.c.bf16 %v220, %v196
  %v533 = vpack.c.bf16 %v221, %v197
  %v534 = vpack.c.bf16 %v222, %v198
  %v535 = vpack.c.bf16 %v247, %v223
  %v536 = vpack.c.bf16 %v248, %v224
  %v537 = vpack.c.bf16 %v249, %v225
  %v538 = vpack.c.bf16 %v250, %v226
  %v539 = vpack.c.bf16 %v251, %v227
  %v540 = vpack.c.bf16 %v252, %v228
  %v541 = vpack.c.bf16 %v253, %v229
  %v542 = vpack.c.bf16 %v254, %v230
  %v543 = vpack.c.bf16 %v255, %v231
  %v544 = vpack.c.bf16 %v256, %v232
  %v545 = vpack.c.bf16 %v257, %v233
  %v546 = vpack.c.bf16 %v258, %v234
  %v547 = vpack.c.bf16 %v259, %v235
  %v548 = vpack.c.bf16 %v260, %v236
  %v549 = vpack.c.bf16 %v261, %v237
  %v550 = vpack.c.bf16 %v262, %v238
  %v551 = vpack.c.bf16 %v263, %v239
  %v552 = vpack.c.bf16 %v264, %v240
  %v553 = vpack.c.bf16 %v265, %v241
  %v554 = vpack.c.bf16 %v266, %v242
  %v555 = vpack.c.bf16 %v267, %v243
  %v556 = vpack.c.bf16 %v268, %v244
  %v557 = vpack.c.bf16 %v269, %v245
  %v558 = vpack.c.bf16 %v270, %v246
  %v559 = vpack.c.bf16 %v295, %v271
  %v560 = vpack.c.bf16 %v296, %v272
  %v561 = vpack.c.bf16 %v297, %v273
  %v562 = vpack.c.bf16 %v298, %v274
  %v563 = vpack.c.bf16 %v299, %v275
  %v564 = vpack.c.bf16 %v300, %v276
  %v565 = vpack.c.bf16 %v301, %v277
  %v566 = vpack.c.bf16 %v302, %v278
  %v567 = vpack.c.bf16 %v303, %v279
  %v568 = vpack.c.bf16 %v304, %v280
  %v569 = vpack.c.bf16 %v305, %v281
  %v570 = vpack.c.bf16 %v306, %v282
  %v571 = vpack.c.bf16 %v307, %v283
  %v572 = vpack.c.bf16 %v308, %v284
  %v573 = vpack.c.bf16 %v309, %v285
  %v574 = vpack.c.bf16 %v310, %v286
  %v575 = vpack.c.bf16 %v311, %v287
  %v576 = vpack.c.bf16 %v312, %v288
  %v577 = vpack.c.bf16 %v313, %v289
  %v578 = vpack.c.bf16 %v314, %v290
  %v579 = vpack.c.bf16 %v315, %v291
  %v580 = vpack.c.bf16 %v316, %v292
  %v581 = vpack.c.bf16 %v317, %v293
  %v582 = vpack.c.bf16 %v318, %v294
  %v583 = vpack.c.bf16 %v343, %v319
  %v584 = vpack.c.bf16 %v344, %v320
  %v585 = vpack.c.bf16 %v345, %v321
  %v586 = vpack.c.bf16 %v346, %v322
  %v587 = vpack.c.bf16 %v347, %v323
  %v588 = vpack.c.bf16 %v348, %v324
  %v589 = vpack.c.bf16 %v349, %v325
  %v590 = vpack.c.bf16 %v350, %v326
  %v591 = vpack.c.bf16 %v351, %v327
  %v592 = vpack.c.bf16 %v352, %v328
  %v593 = vpack.c.bf16 %v353, %v329
  %v594 = vpack.c.bf16 %v354, %v330
  %v595 = vpack.c.bf16 %v355, %v331
  %v596 = vpack.c.bf16 %v356, %v332
  %v597 = vpack.c.bf16 %v357, %v333
  %v598 = vpack.c.bf16 %v358, %v334
  %v599 = vpack.c.bf16 %v359, %v335
  %v600 = vpack.c.bf16 %v360, %v336
  %v601 = vpack.c.bf16 %v361, %v337
  %v602 = vpack.c.bf16 %v362, %v338
  %v603 = vpack.c.bf16 %v363, %v339
  %v604 = vpack.c.bf16 %v364, %v340
  %v605 = vpack.c.bf16 %v365, %v341
  %v606 = vpack.c.bf16 %v366, %v342
  %v607 = vpack.c.bf16 %v391, %v367
  %v608 = vpack.c.bf16 %v392, %v368
  %v609 = vpack.c.bf16 %v393, %v369
  %v610 = vpack.c.bf16 %v394, %v370
  %v611 = vpack.c.bf16 %v395, %v371
  %v612 = vpack.c.bf16 %v396, %v372
  %v613 = vpack.c.bf16 %v397, %v373
  %v614 = vpack.c.bf16 %v398, %v374
  %v615 = vpack.c.bf16 %v399, %v375
  %v616 = vpack.c.bf16 %v400, %v376
  %v617 = vpack.c.bf16 %v401, %v377
  %v618 = vpack.c.bf16 %v402, %v378
  %v619 = vpack.c.bf16 %v403, %v379
  %v620 = vpack.c.bf16 %v404, %v380
  %v621 = vpack.c.bf16 %v405, %v381
  %v622 = vpack.c.bf16 %v406, %v382
  %v623 = vpack.c.bf16 %v407, %v383
  %v624 = vpack.c.bf16 %v408, %v384
  %v625 = vpack.c.bf16 %v409, %v385
  %v626 = vpack.c.bf16 %v410, %v386
  %v627 = vpack.c.bf16 %v411, %v387
  %v628 = vpack.c.bf16 %v412, %v388
  %v629 = vpack.c.bf16 %v413, %v389
  %v630 = vpack.c.bf16 %v414, %v390
  %v631 = vpack.c.bf16 %v439, %v415
  %v632 = vpack.c.bf16 %v440, %v416
  %v633 = vpack.c.bf16 %v441, %v417
  %v634 = vpack.c.bf16 %v442, %v418
  %v635 = vpack.c.bf16 %v443, %v419
  %v636 = vpack.c.bf16 %v444, %v420
  %v637 = vpack.c.bf16 %v445, %v421
  %v638 = vpack.c.bf16 %v446, %v422
  %v639 = vpack.c.bf16 %v447, %v423
  %v640 = vpack.c.bf16 %v448, %v424
  %v641 = vpack.c.bf16 %v449, %v425
  %v642 = vpack.c.bf16 %v450, %v426
  %v643 = vpack.c.bf16 %v451, %v427
  %v644 = vpack.c.bf16 %v452, %v428
  %v645 = vpack.c.bf16 %v453, %v429
  %v646 = vpack.c.bf16 %v454, %v430
  %v647 = vpack.c.bf16 %v455, %v431
  %v648 = vpack.c.bf16 %v456, %v432
  %v649 = vpack.c.bf16 %v457, %v433
  %v650 = vpack.c.bf16 %v458, %v434
  %v651 = vpack.c.bf16 %v459, %v435
  %v652 = vpack.c.bf16 %v460, %v436
  %v653 = vpack.c.bf16 %v461, %v437
  %v654 = vpack.c.bf16 %v462, %v438
  %v655 = vld [vmem:[%s1] sm:$0xff]
  %v656 = vld [vmem:[%s1 + $0x8] sm:$0xff]
  %v657 = vld [vmem:[%s1 + $0x10] sm:$0xff]
  %v658 = vld [vmem:[%s1 + $0x18] sm:$0xff]
  %v659 = vld [vmem:[%s1 + $0x20] sm:$0xff]
  %v660 = vld [vmem:[%s1 + $0x28] sm:$0xff]
  %v661 = vld [vmem:[%s1 + $0x30] sm:$0xff]
  %v662 = vld [vmem:[%s1 + $0x38] sm:$0xff]
  %v663 = vld [vmem:[%s1 + $0x40] sm:$0xff]
  %v664 = vld [vmem:[%s1 + $0x48] sm:$0xff]
  %v665 = vld [vmem:[%s1 + $0x50] sm:$0xff]
  %v666 = vld [vmem:[%s1 + $0x58] sm:$0xff]
  %v667 = vld [vmem:[%s1 + $0x60] sm:$0xff]
  %v668 = vld [vmem:[%s1 + $0x68] sm:$0xff]
  %v669 = vld [vmem:[%s1 + $0x70] sm:$0xff]
  %v670 = vld [vmem:[%s1 + $0x78] sm:$0xff]
  %v671 = vld [vmem:[%s1 + $0x80] sm:$0xff]
  %v672 = vld [vmem:[%s1 + $0x88] sm:$0xff]
  %v673 = vld [vmem:[%s1 + $0x90] sm:$0xff]
  %v674 = vld [vmem:[%s1 + $0x98] sm:$0xff]
  %v675 = vld [vmem:[%s1 + $0xa0] sm:$0xff]
  %v676 = vld [vmem:[%s1 + $0xa8] sm:$0xff]
  %v677 = vld [vmem:[%s1 + $0xb0] sm:$0xff]
  %v678 = vld [vmem:[%s1 + $0xb8] sm:$0xff]
  %v679 = vld [vmem:[%s1 + $0xc0] sm:$0xff]
  %v680 = vld [vmem:[%s1 + $0xc8] sm:$0xff]
  %v681 = vld [vmem:[%s1 + $0xd0] sm:$0xff]
  %v682 = vld [vmem:[%s1 + $0xd8] sm:$0xff]
  %v683 = vld [vmem:[%s1 + $0xe0] sm:$0xff]
  %v684 = vld [vmem:[%s1 + $0xe8] sm:$0xff]
  %v685 = vld [vmem:[%s1 + $0xf0] sm:$0xff]
  %v686 = vld [vmem:[%s1 + $0xf8] sm:$0xff]
  %v687 = vld [vmem:[%s1 + $0x100] sm:$0xff]
  %v688 = vld [vmem:[%s1 + $0x108] sm:$0xff]
  %v689 = vld [vmem:[%s1 + $0x110] sm:$0xff]
  %v690 = vld [vmem:[%s1 + $0x118] sm:$0xff]
  %v691 = vld [vmem:[%s1 + $0x120] sm:$0xff]
  %v692 = vld [vmem:[%s1 + $0x128] sm:$0xff]
  %v693 = vld [vmem:[%s1 + $0x130] sm:$0xff]
  %v694 = vld [vmem:[%s1 + $0x138] sm:$0xff]
  %v695 = vld [vmem:[%s1 + $0x140] sm:$0xff]
  %v696 = vld [vmem:[%s1 + $0x148] sm:$0xff]
  %v697 = vld [vmem:[%s1 + $0x150] sm:$0xff]
  %v698 = vld [vmem:[%s1 + $0x158] sm:$0xff]
  %v699 = vld [vmem:[%s1 + $0x160] sm:$0xff]
  %v700 = vld [vmem:[%s1 + $0x168] sm:$0xff]
  %v701 = vld [vmem:[%s1 + $0x170] sm:$0xff]
  %v702 = vld [vmem:[%s1 + $0x178] sm:$0xff]
  %v703 = vld [vmem:[%s1 + $0x180] sm:$0xff]
  %v704 = vld [vmem:[%s1 + $0x188] sm:$0xff]
  %v705 = vld [vmem:[%s1 + $0x190] sm:$0xff]
  %v706 = vld [vmem:[%s1 + $0x198] sm:$0xff]
  %v707 = vld [vmem:[%s1 + $0x1a0] sm:$0xff]
  %v708 = vld [vmem:[%s1 + $0x1a8] sm:$0xff]
  %v709 = vld [vmem:[%s1 + $0x1b0] sm:$0xff]
  %v710 = vld [vmem:[%s1 + $0x1b8] sm:$0xff]
  %v711 = vld [vmem:[%s1 + $0x1c0] sm:$0xff]
  %v712 = vld [vmem:[%s1 + $0x1c8] sm:$0xff]
  %v713 = vld [vmem:[%s1 + $0x1d0] sm:$0xff]
  %v714 = vld [vmem:[%s1 + $0x1d8] sm:$0xff]
  %v715 = vld [vmem:[%s1 + $0x1e0] sm:$0xff]
  %v716 = vld [vmem:[%s1 + $0x1e8] sm:$0xff]
  %v717 = vld [vmem:[%s1 + $0x1f0] sm:$0xff]
  %v718 = vld [vmem:[%s1 + $0x1f8] sm:$0xff]
  %v719 = vld [vmem:[%s1 + $0x200] sm:$0xff]
  %v720 = vld [vmem:[%s1 + $0x208] sm:$0xff]
  %v721 = vld [vmem:[%s1 + $0x210] sm:$0xff]
  %v722 = vld [vmem:[%s1 + $0x218] sm:$0xff]
  %v723 = vld [vmem:[%s1 + $0x220] sm:$0xff]
  %v724 = vld [vmem:[%s1 + $0x228] sm:$0xff]
  %v725 = vld [vmem:[%s1 + $0x230] sm:$0xff]
  %v726 = vld [vmem:[%s1 + $0x238] sm:$0xff]
  %v727 = vld [vmem:[%s1 + $0x240] sm:$0xff]
  %v728 = vld [vmem:[%s1 + $0x248] sm:$0xff]
  %v729 = vld [vmem:[%s1 + $0x250] sm:$0xff]
  %v730 = vld [vmem:[%s1 + $0x258] sm:$0xff]
  %v731 = vld [vmem:[%s1 + $0x260] sm:$0xff]
  %v732 = vld [vmem:[%s1 + $0x268] sm:$0xff]
  %v733 = vld [vmem:[%s1 + $0x270] sm:$0xff]
  %v734 = vld [vmem:[%s1 + $0x278] sm:$0xff]
  %v735 = vld [vmem:[%s1 + $0x280] sm:$0xff]
  %v736 = vld [vmem:[%s1 + $0x288] sm:$0xff]
  %v737 = vld [vmem:[%s1 + $0x290] sm:$0xff]
  %v738 = vld [vmem:[%s1 + $0x298] sm:$0xff]
  %v739 = vld [vmem:[%s1 + $0x2a0] sm:$0xff]
  %v740 = vld [vmem:[%s1 + $0x2a8] sm:$0xff]
  %v741 = vld [vmem:[%s1 + $0x2b0] sm:$0xff]
  %v742 = vld [vmem:[%s1 + $0x2b8] sm:$0xff]
  %v743 = vld [vmem:[%s1 + $0x2c0] sm:$0xff]
  %v744 = vld [vmem:[%s1 + $0x2c8] sm:$0xff]
  %v745 = vld [vmem:[%s1 + $0x2d0] sm:$0xff]
  %v746 = vld [vmem:[%s1 + $0x2d8] sm:$0xff]
  %v747 = vld [vmem:[%s1 + $0x2e0] sm:$0xff]
  %v748 = vld [vmem:[%s1 + $0x2e8] sm:$0xff]
  %v749 = vld [vmem:[%s1 + $0x2f0] sm:$0xff]
  %v750 = vld [vmem:[%s1 + $0x2f8] sm:$0xff]
  %v751 = vld [vmem:[%s1 + $0x300] sm:$0xff]
  %v752 = vld [vmem:[%s1 + $0x308] sm:$0xff]
  %v753 = vld [vmem:[%s1 + $0x310] sm:$0xff]
  %v754 = vld [vmem:[%s1 + $0x318] sm:$0xff]
  %v755 = vld [vmem:[%s1 + $0x320] sm:$0xff]
  %v756 = vld [vmem:[%s1 + $0x328] sm:$0xff]
  %v757 = vld [vmem:[%s1 + $0x330] sm:$0xff]
  %v758 = vld [vmem:[%s1 + $0x338] sm:$0xff]
  %v759 = vld [vmem:[%s1 + $0x340] sm:$0xff]
  %v760 = vld [vmem:[%s1 + $0x348] sm:$0xff]
  %v761 = vld [vmem:[%s1 + $0x350] sm:$0xff]
  %v762 = vld [vmem:[%s1 + $0x358] sm:$0xff]
  %v763 = vld [vmem:[%s1 + $0x360] sm:$0xff]
  %v764 = vld [vmem:[%s1 + $0x368] sm:$0xff]
  %v765 = vld [vmem:[%s1 + $0x370] sm:$0xff]
  %v766 = vld [vmem:[%s1 + $0x378] sm:$0xff]
  %v767 = vld [vmem:[%s1 + $0x380] sm:$0xff]
  %v768 = vld [vmem:[%s1 + $0x388] sm:$0xff]
  %v769 = vld [vmem:[%s1 + $0x390] sm:$0xff]
  %v770 = vld [vmem:[%s1 + $0x398] sm:$0xff]
  %v771 = vld [vmem:[%s1 + $0x3a0] sm:$0xff]
  %v772 = vld [vmem:[%s1 + $0x3a8] sm:$0xff]
  %v773 = vld [vmem:[%s1 + $0x3b0] sm:$0xff]
  %v774 = vld [vmem:[%s1 + $0x3b8] sm:$0xff]
  %v775 = vld [vmem:[%s1 + $0x3c0] sm:$0xff]
  %v776 = vld [vmem:[%s1 + $0x3c8] sm:$0xff]
  %v777 = vld [vmem:[%s1 + $0x3d0] sm:$0xff]
  %v778 = vld [vmem:[%s1 + $0x3d8] sm:$0xff]
  %v779 = vld [vmem:[%s1 + $0x3e0] sm:$0xff]
  %v780 = vld [vmem:[%s1 + $0x3e8] sm:$0xff]
  %v781 = vld [vmem:[%s1 + $0x3f0] sm:$0xff]
  %v782 = vld [vmem:[%s1 + $0x3f8] sm:$0xff]
  %v783 = vld [vmem:[%s1 + $0x400] sm:$0xff]
  %v784 = vld [vmem:[%s1 + $0x408] sm:$0xff]
  %v785 = vld [vmem:[%s1 + $0x410] sm:$0xff]
  %v786 = vld [vmem:[%s1 + $0x418] sm:$0xff]
  %v787 = vld [vmem:[%s1 + $0x420] sm:$0xff]
  %v788 = vld [vmem:[%s1 + $0x428] sm:$0xff]
  %v789 = vld [vmem:[%s1 + $0x430] sm:$0xff]
  %v790 = vld [vmem:[%s1 + $0x438] sm:$0xff]
  %v791 = vld [vmem:[%s1 + $0x440] sm:$0xff]
  %v792 = vld [vmem:[%s1 + $0x448] sm:$0xff]
  %v793 = vld [vmem:[%s1 + $0x450] sm:$0xff]
  %v794 = vld [vmem:[%s1 + $0x458] sm:$0xff]
  %v795 = vld [vmem:[%s1 + $0x460] sm:$0xff]
  %v796 = vld [vmem:[%s1 + $0x468] sm:$0xff]
  %v797 = vld [vmem:[%s1 + $0x470] sm:$0xff]
  %v798 = vld [vmem:[%s1 + $0x478] sm:$0xff]
  %v799 = vld [vmem:[%s1 + $0x480] sm:$0xff]
  %v800 = vld [vmem:[%s1 + $0x488] sm:$0xff]
  %v801 = vld [vmem:[%s1 + $0x490] sm:$0xff]
  %v802 = vld [vmem:[%s1 + $0x498] sm:$0xff]
  %v803 = vld [vmem:[%s1 + $0x4a0] sm:$0xff]
  %v804 = vld [vmem:[%s1 + $0x4a8] sm:$0xff]
  %v805 = vld [vmem:[%s1 + $0x4b0] sm:$0xff]
  %v806 = vld [vmem:[%s1 + $0x4b8] sm:$0xff]
  %v807 = vld [vmem:[%s1 + $0x4c0] sm:$0xff]
  %v808 = vld [vmem:[%s1 + $0x4c8] sm:$0xff]
  %v809 = vld [vmem:[%s1 + $0x4d0] sm:$0xff]
  %v810 = vld [vmem:[%s1 + $0x4d8] sm:$0xff]
  %v811 = vld [vmem:[%s1 + $0x4e0] sm:$0xff]
  %v812 = vld [vmem:[%s1 + $0x4e8] sm:$0xff]
  %v813 = vld [vmem:[%s1 + $0x4f0] sm:$0xff]
  %v814 = vld [vmem:[%s1 + $0x4f8] sm:$0xff]
  %v815 = vld [vmem:[%s1 + $0x500] sm:$0xff]
  %v816 = vld [vmem:[%s1 + $0x508] sm:$0xff]
  %v817 = vld [vmem:[%s1 + $0x510] sm:$0xff]
  %v818 = vld [vmem:[%s1 + $0x518] sm:$0xff]
  %v819 = vld [vmem:[%s1 + $0x520] sm:$0xff]
  %v820 = vld [vmem:[%s1 + $0x528] sm:$0xff]
  %v821 = vld [vmem:[%s1 + $0x530] sm:$0xff]
  %v822 = vld [vmem:[%s1 + $0x538] sm:$0xff]
  %v823 = vld [vmem:[%s1 + $0x540] sm:$0xff]
  %v824 = vld [vmem:[%s1 + $0x548] sm:$0xff]
  %v825 = vld [vmem:[%s1 + $0x550] sm:$0xff]
  %v826 = vld [vmem:[%s1 + $0x558] sm:$0xff]
  %v827 = vld [vmem:[%s1 + $0x560] sm:$0xff]
  %v828 = vld [vmem:[%s1 + $0x568] sm:$0xff]
  %v829 = vld [vmem:[%s1 + $0x570] sm:$0xff]
  %v830 = vld [vmem:[%s1 + $0x578] sm:$0xff]
  %v831 = vld [vmem:[%s1 + $0x580] sm:$0xff]
  %v832 = vld [vmem:[%s1 + $0x588] sm:$0xff]
  %v833 = vld [vmem:[%s1 + $0x590] sm:$0xff]
  %v834 = vld [vmem:[%s1 + $0x598] sm:$0xff]
  %v835 = vld [vmem:[%s1 + $0x5a0] sm:$0xff]
  %v836 = vld [vmem:[%s1 + $0x5a8] sm:$0xff]
  %v837 = vld [vmem:[%s1 + $0x5b0] sm:$0xff]
  %v838 = vld [vmem:[%s1 + $0x5b8] sm:$0xff]
  %v839 = vld [vmem:[%s1 + $0x5c0] sm:$0xff]
  %v840 = vld [vmem:[%s1 + $0x5c8] sm:$0xff]
  %v841 = vld [vmem:[%s1 + $0x5d0] sm:$0xff]
  %v842 = vld [vmem:[%s1 + $0x5d8] sm:$0xff]
  %v843 = vld [vmem:[%s1 + $0x5e0] sm:$0xff]
  %v844 = vld [vmem:[%s1 + $0x5e8] sm:$0xff]
  %v845 = vld [vmem:[%s1 + $0x5f0] sm:$0xff]
  %v846 = vld [vmem:[%s1 + $0x5f8] sm:$0xff]
  %v847 = vld [vmem:[%s1 + $0x600] sm:$0xff]
  %v848 = vld [vmem:[%s1 + $0x608] sm:$0xff]
  %v849 = vld [vmem:[%s1 + $0x610] sm:$0xff]
  %v850 = vld [vmem:[%s1 + $0x618] sm:$0xff]
  %v851 = vld [vmem:[%s1 + $0x620] sm:$0xff]
  %v852 = vld [vmem:[%s1 + $0x628] sm:$0xff]
  %v853 = vld [vmem:[%s1 + $0x630] sm:$0xff]
  %v854 = vld [vmem:[%s1 + $0x638] sm:$0xff]
  %v855 = vld [vmem:[%s1 + $0x640] sm:$0xff]
  %v856 = vld [vmem:[%s1 + $0x648] sm:$0xff]
  %v857 = vld [vmem:[%s1 + $0x650] sm:$0xff]
  %v858 = vld [vmem:[%s1 + $0x658] sm:$0xff]
  %v859 = vld [vmem:[%s1 + $0x660] sm:$0xff]
  %v860 = vld [vmem:[%s1 + $0x668] sm:$0xff]
  %v861 = vld [vmem:[%s1 + $0x670] sm:$0xff]
  %v862 = vld [vmem:[%s1 + $0x678] sm:$0xff]
  %v863 = vld [vmem:[%s1 + $0x680] sm:$0xff]
  %v864 = vld [vmem:[%s1 + $0x688] sm:$0xff]
  %v865 = vld [vmem:[%s1 + $0x690] sm:$0xff]
  %v866 = vld [vmem:[%s1 + $0x698] sm:$0xff]
  %v867 = vld [vmem:[%s1 + $0x6a0] sm:$0xff]
  %v868 = vld [vmem:[%s1 + $0x6a8] sm:$0xff]
  %v869 = vld [vmem:[%s1 + $0x6b0] sm:$0xff]
  %v870 = vld [vmem:[%s1 + $0x6b8] sm:$0xff]
  %v871 = vld [vmem:[%s1 + $0x6c0] sm:$0xff]
  %v872 = vld [vmem:[%s1 + $0x6c8] sm:$0xff]
  %v873 = vld [vmem:[%s1 + $0x6d0] sm:$0xff]
  %v874 = vld [vmem:[%s1 + $0x6d8] sm:$0xff]
  %v875 = vld [vmem:[%s1 + $0x6e0] sm:$0xff]
  %v876 = vld [vmem:[%s1 + $0x6e8] sm:$0xff]
  %v877 = vld [vmem:[%s1 + $0x6f0] sm:$0xff]
  %v878 = vld [vmem:[%s1 + $0x6f8] sm:$0xff]
  %v879 = vld [vmem:[%s1 + $0x700] sm:$0xff]
  %v880 = vld [vmem:[%s1 + $0x708] sm:$0xff]
  %v881 = vld [vmem:[%s1 + $0x710] sm:$0xff]
  %v882 = vld [vmem:[%s1 + $0x718] sm:$0xff]
  %v883 = vld [vmem:[%s1 + $0x720] sm:$0xff]
  %v884 = vld [vmem:[%s1 + $0x728] sm:$0xff]
  %v885 = vld [vmem:[%s1 + $0x730] sm:$0xff]
  %v886 = vld [vmem:[%s1 + $0x738] sm:$0xff]
  %v887 = vld [vmem:[%s1 + $0x740] sm:$0xff]
  %v888 = vld [vmem:[%s1 + $0x748] sm:$0xff]
  %v889 = vld [vmem:[%s1 + $0x750] sm:$0xff]
  %v890 = vld [vmem:[%s1 + $0x758] sm:$0xff]
  %v891 = vld [vmem:[%s1 + $0x760] sm:$0xff]
  %v892 = vld [vmem:[%s1 + $0x768] sm:$0xff]
  %v893 = vld [vmem:[%s1 + $0x770] sm:$0xff]
  %v894 = vld [vmem:[%s1 + $0x778] sm:$0xff]
  %v895 = vld [vmem:[%s1 + $0x780] sm:$0xff]
  %v896 = vld [vmem:[%s1 + $0x788] sm:$0xff]
  %v897 = vld [vmem:[%s1 + $0x790] sm:$0xff]
  %v898 = vld [vmem:[%s1 + $0x798] sm:$0xff]
  %v899 = vld [vmem:[%s1 + $0x7a0] sm:$0xff]
  %v900 = vld [vmem:[%s1 + $0x7a8] sm:$0xff]
  %v901 = vld [vmem:[%s1 + $0x7b0] sm:$0xff]
  %v902 = vld [vmem:[%s1 + $0x7b8] sm:$0xff]
  %v903 = vld [vmem:[%s1 + $0x7c0] sm:$0xff]
  %v904 = vld [vmem:[%s1 + $0x7c8] sm:$0xff]
  %v905 = vld [vmem:[%s1 + $0x7d0] sm:$0xff]
  %v906 = vld [vmem:[%s1 + $0x7d8] sm:$0xff]
  %v907 = vld [vmem:[%s1 + $0x7e0] sm:$0xff]
  %v908 = vld [vmem:[%s1 + $0x7e8] sm:$0xff]
  %v909 = vld [vmem:[%s1 + $0x7f0] sm:$0xff]
  %v910 = vld [vmem:[%s1 + $0x7f8] sm:$0xff]
  %v911 = vld [vmem:[%s1 + $0x800] sm:$0xff]
  %v912 = vld [vmem:[%s1 + $0x808] sm:$0xff]
  %v913 = vld [vmem:[%s1 + $0x810] sm:$0xff]
  %v914 = vld [vmem:[%s1 + $0x818] sm:$0xff]
  %v915 = vld [vmem:[%s1 + $0x820] sm:$0xff]
  %v916 = vld [vmem:[%s1 + $0x828] sm:$0xff]
  %v917 = vld [vmem:[%s1 + $0x830] sm:$0xff]
  %v918 = vld [vmem:[%s1 + $0x838] sm:$0xff]
  %v919 = vld [vmem:[%s1 + $0x840] sm:$0xff]
  %v920 = vld [vmem:[%s1 + $0x848] sm:$0xff]
  %v921 = vld [vmem:[%s1 + $0x850] sm:$0xff]
  %v922 = vld [vmem:[%s1 + $0x858] sm:$0xff]
  %v923 = vld [vmem:[%s1 + $0x860] sm:$0xff]
  %v924 = vld [vmem:[%s1 + $0x868] sm:$0xff]
  %v925 = vld [vmem:[%s1 + $0x870] sm:$0xff]
  %v926 = vld [vmem:[%s1 + $0x878] sm:$0xff]
  %v927 = vld [vmem:[%s1 + $0x880] sm:$0xff]
  %v928 = vld [vmem:[%s1 + $0x888] sm:$0xff]
  %v929 = vld [vmem:[%s1 + $0x890] sm:$0xff]
  %v930 = vld [vmem:[%s1 + $0x898] sm:$0xff]
  %v931 = vld [vmem:[%s1 + $0x8a0] sm:$0xff]
  %v932 = vld [vmem:[%s1 + $0x8a8] sm:$0xff]
  %v933 = vld [vmem:[%s1 + $0x8b0] sm:$0xff]
  %v934 = vld [vmem:[%s1 + $0x8b8] sm:$0xff]
  %v935 = vld [vmem:[%s1 + $0x8c0] sm:$0xff]
  %v936 = vld [vmem:[%s1 + $0x8c8] sm:$0xff]
  %v937 = vld [vmem:[%s1 + $0x8d0] sm:$0xff]
  %v938 = vld [vmem:[%s1 + $0x8d8] sm:$0xff]
  %v939 = vld [vmem:[%s1 + $0x8e0] sm:$0xff]
  %v940 = vld [vmem:[%s1 + $0x8e8] sm:$0xff]
  %v941 = vld [vmem:[%s1 + $0x8f0] sm:$0xff]
  %v942 = vld [vmem:[%s1 + $0x8f8] sm:$0xff]
  %v943 = vld [vmem:[%s1 + $0x900] sm:$0xff]
  %v944 = vld [vmem:[%s1 + $0x908] sm:$0xff]
  %v945 = vld [vmem:[%s1 + $0x910] sm:$0xff]
  %v946 = vld [vmem:[%s1 + $0x918] sm:$0xff]
  %v947 = vld [vmem:[%s1 + $0x920] sm:$0xff]
  %v948 = vld [vmem:[%s1 + $0x928] sm:$0xff]
  %v949 = vld [vmem:[%s1 + $0x930] sm:$0xff]
  %v950 = vld [vmem:[%s1 + $0x938] sm:$0xff]
  %v951 = vld [vmem:[%s1 + $0x940] sm:$0xff]
  %v952 = vld [vmem:[%s1 + $0x948] sm:$0xff]
  %v953 = vld [vmem:[%s1 + $0x950] sm:$0xff]
  %v954 = vld [vmem:[%s1 + $0x958] sm:$0xff]
  %v955 = vld [vmem:[%s1 + $0x960] sm:$0xff]
  %v956 = vld [vmem:[%s1 + $0x968] sm:$0xff]
  %v957 = vld [vmem:[%s1 + $0x970] sm:$0xff]
  %v958 = vld [vmem:[%s1 + $0x978] sm:$0xff]
  %v959 = vld [vmem:[%s1 + $0x980] sm:$0xff]
  %v960 = vld [vmem:[%s1 + $0x988] sm:$0xff]
  %v961 = vld [vmem:[%s1 + $0x990] sm:$0xff]
  %v962 = vld [vmem:[%s1 + $0x998] sm:$0xff]
  %v963 = vld [vmem:[%s1 + $0x9a0] sm:$0xff]
  %v964 = vld [vmem:[%s1 + $0x9a8] sm:$0xff]
  %v965 = vld [vmem:[%s1 + $0x9b0] sm:$0xff]
  %v966 = vld [vmem:[%s1 + $0x9b8] sm:$0xff]
  %v967 = vld [vmem:[%s1 + $0x9c0] sm:$0xff]
  %v968 = vld [vmem:[%s1 + $0x9c8] sm:$0xff]
  %v969 = vld [vmem:[%s1 + $0x9d0] sm:$0xff]
  %v970 = vld [vmem:[%s1 + $0x9d8] sm:$0xff]
  %v971 = vld [vmem:[%s1 + $0x9e0] sm:$0xff]
  %v972 = vld [vmem:[%s1 + $0x9e8] sm:$0xff]
  %v973 = vld [vmem:[%s1 + $0x9f0] sm:$0xff]
  %v974 = vld [vmem:[%s1 + $0x9f8] sm:$0xff]
  %v975 = vld [vmem:[%s1 + $0xa00] sm:$0xff]
  %v976 = vld [vmem:[%s1 + $0xa08] sm:$0xff]
  %v977 = vld [vmem:[%s1 + $0xa10] sm:$0xff]
  %v978 = vld [vmem:[%s1 + $0xa18] sm:$0xff]
  %v979 = vld [vmem:[%s1 + $0xa20] sm:$0xff]
  %v980 = vld [vmem:[%s1 + $0xa28] sm:$0xff]
  %v981 = vld [vmem:[%s1 + $0xa30] sm:$0xff]
  %v982 = vld [vmem:[%s1 + $0xa38] sm:$0xff]
  %v983 = vld [vmem:[%s1 + $0xa40] sm:$0xff]
  %v984 = vld [vmem:[%s1 + $0xa48] sm:$0xff]
  %v985 = vld [vmem:[%s1 + $0xa50] sm:$0xff]
  %v986 = vld [vmem:[%s1 + $0xa58] sm:$0xff]
  %v987 = vld [vmem:[%s1 + $0xa60] sm:$0xff]
  %v988 = vld [vmem:[%s1 + $0xa68] sm:$0xff]
  %v989 = vld [vmem:[%s1 + $0xa70] sm:$0xff]
  %v990 = vld [vmem:[%s1 + $0xa78] sm:$0xff]
  %v991 = vld [vmem:[%s1 + $0xa80] sm:$0xff]
  %v992 = vld [vmem:[%s1 + $0xa88] sm:$0xff]
  %v993 = vld [vmem:[%s1 + $0xa90] sm:$0xff]
  %v994 = vld [vmem:[%s1 + $0xa98] sm:$0xff]
  %v995 = vld [vmem:[%s1 + $0xaa0] sm:$0xff]
  %v996 = vld [vmem:[%s1 + $0xaa8] sm:$0xff]
  %v997 = vld [vmem:[%s1 + $0xab0] sm:$0xff]
  %v998 = vld [vmem:[%s1 + $0xab8] sm:$0xff]
  %v999 = vld [vmem:[%s1 + $0xac0] sm:$0xff]
  %v1000 = vld [vmem:[%s1 + $0xac8] sm:$0xff]
  %v1001 = vld [vmem:[%s1 + $0xad0] sm:$0xff]
  %v1002 = vld [vmem:[%s1 + $0xad8] sm:$0xff]
  %v1003 = vld [vmem:[%s1 + $0xae0] sm:$0xff]
  %v1004 = vld [vmem:[%s1 + $0xae8] sm:$0xff]
  %v1005 = vld [vmem:[%s1 + $0xaf0] sm:$0xff]
  %v1006 = vld [vmem:[%s1 + $0xaf8] sm:$0xff]
  %v1007 = vld [vmem:[%s1 + $0xb00] sm:$0xff]
  %v1008 = vld [vmem:[%s1 + $0xb08] sm:$0xff]
  %v1009 = vld [vmem:[%s1 + $0xb10] sm:$0xff]
  %v1010 = vld [vmem:[%s1 + $0xb18] sm:$0xff]
  %v1011 = vld [vmem:[%s1 + $0xb20] sm:$0xff]
  %v1012 = vld [vmem:[%s1 + $0xb28] sm:$0xff]
  %v1013 = vld [vmem:[%s1 + $0xb30] sm:$0xff]
  %v1014 = vld [vmem:[%s1 + $0xb38] sm:$0xff]
  %v1015 = vld [vmem:[%s1 + $0xb40] sm:$0xff]
  %v1016 = vld [vmem:[%s1 + $0xb48] sm:$0xff]
  %v1017 = vld [vmem:[%s1 + $0xb50] sm:$0xff]
  %v1018 = vld [vmem:[%s1 + $0xb58] sm:$0xff]
  %v1019 = vld [vmem:[%s1 + $0xb60] sm:$0xff]
  %v1020 = vld [vmem:[%s1 + $0xb68] sm:$0xff]
  %v1021 = vld [vmem:[%s1 + $0xb70] sm:$0xff]
  %v1022 = vld [vmem:[%s1 + $0xb78] sm:$0xff]
  %v1023 = vld [vmem:[%s1 + $0xb80] sm:$0xff]
  %v1024 = vld [vmem:[%s1 + $0xb88] sm:$0xff]
  %v1025 = vld [vmem:[%s1 + $0xb90] sm:$0xff]
  %v1026 = vld [vmem:[%s1 + $0xb98] sm:$0xff]
  %v1027 = vld [vmem:[%s1 + $0xba0] sm:$0xff]
  %v1028 = vld [vmem:[%s1 + $0xba8] sm:$0xff]
  %v1029 = vld [vmem:[%s1 + $0xbb0] sm:$0xff]
  %v1030 = vld [vmem:[%s1 + $0xbb8] sm:$0xff]
  %v1031 = vld [vmem:[%s1 + $0xbc0] sm:$0xff]
  %v1032 = vld [vmem:[%s1 + $0xbc8] sm:$0xff]
  %v1033 = vld [vmem:[%s1 + $0xbd0] sm:$0xff]
  %v1034 = vld [vmem:[%s1 + $0xbd8] sm:$0xff]
  %v1035 = vld [vmem:[%s1 + $0xbe0] sm:$0xff]
  %v1036 = vld [vmem:[%s1 + $0xbe8] sm:$0xff]
  %v1037 = vld [vmem:[%s1 + $0xbf0] sm:$0xff]
  %v1038 = vld [vmem:[%s1 + $0xbf8] sm:$0xff]
  %v1423 = vunpack.c.l.b16 %v655
  %v1424 = vunpack.c.h.b16 %v655
  %v1425 = vunpack.c.l.b16 %v656
  %v1426 = vunpack.c.h.b16 %v656
  %v1427 = vunpack.c.l.b16 %v657
  %v1428 = vunpack.c.h.b16 %v657
  %v1429 = vunpack.c.l.b16 %v658
  %v1430 = vunpack.c.h.b16 %v658
  %v1431 = vunpack.c.l.b16 %v659
  %v1432 = vunpack.c.h.b16 %v659
  %v1433 = vunpack.c.l.b16 %v660
  %v1434 = vunpack.c.h.b16 %v660
  %v1435 = vunpack.c.l.b16 %v661
  %v1436 = vunpack.c.h.b16 %v661
  %v1437 = vunpack.c.l.b16 %v662
  %v1438 = vunpack.c.h.b16 %v662
  %v1439 = vunpack.c.l.b16 %v663
  %v1440 = vunpack.c.h.b16 %v663
  %v1441 = vunpack.c.l.b16 %v664
  %v1442 = vunpack.c.h.b16 %v664
  %v1443 = vunpack.c.l.b16 %v665
  %v1444 = vunpack.c.h.b16 %v665
  %v1445 = vunpack.c.l.b16 %v666
  %v1446 = vunpack.c.h.b16 %v666
  %v1447 = vunpack.c.l.b16 %v667
  %v1448 = vunpack.c.h.b16 %v667
  %v1449 = vunpack.c.l.b16 %v668
  %v1450 = vunpack.c.h.b16 %v668
  %v1451 = vunpack.c.l.b16 %v669
  %v1452 = vunpack.c.h.b16 %v669
  %v1453 = vunpack.c.l.b16 %v670
  %v1454 = vunpack.c.h.b16 %v670
  %v1455 = vunpack.c.l.b16 %v671
  %v1456 = vunpack.c.h.b16 %v671
  %v1457 = vunpack.c.l.b16 %v672
  %v1458 = vunpack.c.h.b16 %v672
  %v1459 = vunpack.c.l.b16 %v673
  %v1460 = vunpack.c.h.b16 %v673
  %v1461 = vunpack.c.l.b16 %v674
  %v1462 = vunpack.c.h.b16 %v674
  %v1463 = vunpack.c.l.b16 %v675
  %v1464 = vunpack.c.h.b16 %v675
  %v1465 = vunpack.c.l.b16 %v676
  %v1466 = vunpack.c.h.b16 %v676
  %v1467 = vunpack.c.l.b16 %v677
  %v1468 = vunpack.c.h.b16 %v677
  %v1469 = vunpack.c.l.b16 %v678
  %v1470 = vunpack.c.h.b16 %v678
  %v1471 = vunpack.c.l.b16 %v679
  %v1472 = vunpack.c.h.b16 %v679
  %v1473 = vunpack.c.l.b16 %v680
  %v1474 = vunpack.c.h.b16 %v680
  %v1475 = vunpack.c.l.b16 %v681
  %v1476 = vunpack.c.h.b16 %v681
  %v1477 = vunpack.c.l.b16 %v682
  %v1478 = vunpack.c.h.b16 %v682
  %v1479 = vunpack.c.l.b16 %v683
  %v1480 = vunpack.c.h.b16 %v683
  %v1481 = vunpack.c.l.b16 %v684
  %v1482 = vunpack.c.h.b16 %v684
  %v1483 = vunpack.c.l.b16 %v685
  %v1484 = vunpack.c.h.b16 %v685
  %v1485 = vunpack.c.l.b16 %v686
  %v1486 = vunpack.c.h.b16 %v686
  %v1487 = vunpack.c.l.b16 %v687
  %v1488 = vunpack.c.h.b16 %v687
  %v1489 = vunpack.c.l.b16 %v688
  %v1490 = vunpack.c.h.b16 %v688
  %v1491 = vunpack.c.l.b16 %v689
  %v1492 = vunpack.c.h.b16 %v689
  %v1493 = vunpack.c.l.b16 %v690
  %v1494 = vunpack.c.h.b16 %v690
  %v1495 = vunpack.c.l.b16 %v691
  %v1496 = vunpack.c.h.b16 %v691
  %v1497 = vunpack.c.l.b16 %v692
  %v1498 = vunpack.c.h.b16 %v692
  %v1499 = vunpack.c.l.b16 %v693
  %v1500 = vunpack.c.h.b16 %v693
  %v1501 = vunpack.c.l.b16 %v694
  %v1502 = vunpack.c.h.b16 %v694
  %v1503 = vunpack.c.l.b16 %v695
  %v1504 = vunpack.c.h.b16 %v695
  %v1505 = vunpack.c.l.b16 %v696
  %v1506 = vunpack.c.h.b16 %v696
  %v1507 = vunpack.c.l.b16 %v697
  %v1508 = vunpack.c.h.b16 %v697
  %v1509 = vunpack.c.l.b16 %v698
  %v1510 = vunpack.c.h.b16 %v698
  %v1511 = vunpack.c.l.b16 %v699
  %v1512 = vunpack.c.h.b16 %v699
  %v1513 = vunpack.c.l.b16 %v700
  %v1514 = vunpack.c.h.b16 %v700
  %v1515 = vunpack.c.l.b16 %v701
  %v1516 = vunpack.c.h.b16 %v701
  %v1517 = vunpack.c.l.b16 %v702
  %v1518 = vunpack.c.h.b16 %v702
  %v1519 = vunpack.c.l.b16 %v703
  %v1520 = vunpack.c.h.b16 %v703
  %v1521 = vunpack.c.l.b16 %v704
  %v1522 = vunpack.c.h.b16 %v704
  %v1523 = vunpack.c.l.b16 %v705
  %v1524 = vunpack.c.h.b16 %v705
  %v1525 = vunpack.c.l.b16 %v706
  %v1526 = vunpack.c.h.b16 %v706
  %v1527 = vunpack.c.l.b16 %v707
  %v1528 = vunpack.c.h.b16 %v707
  %v1529 = vunpack.c.l.b16 %v708
  %v1530 = vunpack.c.h.b16 %v708
  %v1531 = vunpack.c.l.b16 %v709
  %v1532 = vunpack.c.h.b16 %v709
  %v1533 = vunpack.c.l.b16 %v710
  %v1534 = vunpack.c.h.b16 %v710
  %v1535 = vunpack.c.l.b16 %v711
  %v1536 = vunpack.c.h.b16 %v711
  %v1537 = vunpack.c.l.b16 %v712
  %v1538 = vunpack.c.h.b16 %v712
  %v1539 = vunpack.c.l.b16 %v713
  %v1540 = vunpack.c.h.b16 %v713
  %v1541 = vunpack.c.l.b16 %v714
  %v1542 = vunpack.c.h.b16 %v714
  %v1543 = vunpack.c.l.b16 %v715
  %v1544 = vunpack.c.h.b16 %v715
  %v1545 = vunpack.c.l.b16 %v716
  %v1546 = vunpack.c.h.b16 %v716
  %v1547 = vunpack.c.l.b16 %v717
  %v1548 = vunpack.c.h.b16 %v717
  %v1549 = vunpack.c.l.b16 %v718
  %v1550 = vunpack.c.h.b16 %v718
  %v1551 = vunpack.c.l.b16 %v719
  %v1552 = vunpack.c.h.b16 %v719
  %v1553 = vunpack.c.l.b16 %v720
  %v1554 = vunpack.c.h.b16 %v720
  %v1555 = vunpack.c.l.b16 %v721
  %v1556 = vunpack.c.h.b16 %v721
  %v1557 = vunpack.c.l.b16 %v722
  %v1558 = vunpack.c.h.b16 %v722
  %v1559 = vunpack.c.l.b16 %v723
  %v1560 = vunpack.c.h.b16 %v723
  %v1561 = vunpack.c.l.b16 %v724
  %v1562 = vunpack.c.h.b16 %v724
  %v1563 = vunpack.c.l.b16 %v725
  %v1564 = vunpack.c.h.b16 %v725
  %v1565 = vunpack.c.l.b16 %v726
  %v1566 = vunpack.c.h.b16 %v726
  %v1567 = vunpack.c.l.b16 %v727
  %v1568 = vunpack.c.h.b16 %v727
  %v1569 = vunpack.c.l.b16 %v728
  %v1570 = vunpack.c.h.b16 %v728
  %v1571 = vunpack.c.l.b16 %v729
  %v1572 = vunpack.c.h.b16 %v729
  %v1573 = vunpack.c.l.b16 %v730
  %v1574 = vunpack.c.h.b16 %v730
  %v1575 = vunpack.c.l.b16 %v731
  %v1576 = vunpack.c.h.b16 %v731
  %v1577 = vunpack.c.l.b16 %v732
  %v1578 = vunpack.c.h.b16 %v732
  %v1579 = vunpack.c.l.b16 %v733
  %v1580 = vunpack.c.h.b16 %v733
  %v1581 = vunpack.c.l.b16 %v734
  %v1582 = vunpack.c.h.b16 %v734
  %v1583 = vunpack.c.l.b16 %v735
  %v1584 = vunpack.c.h.b16 %v735
  %v1585 = vunpack.c.l.b16 %v736
  %v1586 = vunpack.c.h.b16 %v736
  %v1587 = vunpack.c.l.b16 %v737
  %v1588 = vunpack.c.h.b16 %v737
  %v1589 = vunpack.c.l.b16 %v738
  %v1590 = vunpack.c.h.b16 %v738
  %v1591 = vunpack.c.l.b16 %v739
  %v1592 = vunpack.c.h.b16 %v739
  %v1593 = vunpack.c.l.b16 %v740
  %v1594 = vunpack.c.h.b16 %v740
  %v1595 = vunpack.c.l.b16 %v741
  %v1596 = vunpack.c.h.b16 %v741
  %v1597 = vunpack.c.l.b16 %v742
  %v1598 = vunpack.c.h.b16 %v742
  %v1599 = vunpack.c.l.b16 %v743
  %v1600 = vunpack.c.h.b16 %v743
  %v1601 = vunpack.c.l.b16 %v744
  %v1602 = vunpack.c.h.b16 %v744
  %v1603 = vunpack.c.l.b16 %v745
  %v1604 = vunpack.c.h.b16 %v745
  %v1605 = vunpack.c.l.b16 %v746
  %v1606 = vunpack.c.h.b16 %v746
  %v1607 = vunpack.c.l.b16 %v747
  %v1608 = vunpack.c.h.b16 %v747
  %v1609 = vunpack.c.l.b16 %v748
  %v1610 = vunpack.c.h.b16 %v748
  %v1611 = vunpack.c.l.b16 %v749
  %v1612 = vunpack.c.h.b16 %v749
  %v1613 = vunpack.c.l.b16 %v750
  %v1614 = vunpack.c.h.b16 %v750
  %v1615 = vunpack.c.l.b16 %v751
  %v1616 = vunpack.c.h.b16 %v751
  %v1617 = vunpack.c.l.b16 %v752
  %v1618 = vunpack.c.h.b16 %v752
  %v1619 = vunpack.c.l.b16 %v753
  %v1620 = vunpack.c.h.b16 %v753
  %v1621 = vunpack.c.l.b16 %v754
  %v1622 = vunpack.c.h.b16 %v754
  %v1623 = vunpack.c.l.b16 %v755
  %v1624 = vunpack.c.h.b16 %v755
  %v1625 = vunpack.c.l.b16 %v756
  %v1626 = vunpack.c.h.b16 %v756
  %v1627 = vunpack.c.l.b16 %v757
  %v1628 = vunpack.c.h.b16 %v757
  %v1629 = vunpack.c.l.b16 %v758
  %v1630 = vunpack.c.h.b16 %v758
  %v1631 = vunpack.c.l.b16 %v759
  %v1632 = vunpack.c.h.b16 %v759
  %v1633 = vunpack.c.l.b16 %v760
  %v1634 = vunpack.c.h.b16 %v760
  %v1635 = vunpack.c.l.b16 %v761
  %v1636 = vunpack.c.h.b16 %v761
  %v1637 = vunpack.c.l.b16 %v762
  %v1638 = vunpack.c.h.b16 %v762
  %v1639 = vunpack.c.l.b16 %v763
  %v1640 = vunpack.c.h.b16 %v763
  %v1641 = vunpack.c.l.b16 %v764
  %v1642 = vunpack.c.h.b16 %v764
  %v1643 = vunpack.c.l.b16 %v765
  %v1644 = vunpack.c.h.b16 %v765
  %v1645 = vunpack.c.l.b16 %v766
  %v1646 = vunpack.c.h.b16 %v766
  %v1647 = vunpack.c.l.b16 %v767
  %v1648 = vunpack.c.h.b16 %v767
  %v1649 = vunpack.c.l.b16 %v768
  %v1650 = vunpack.c.h.b16 %v768
  %v1651 = vunpack.c.l.b16 %v769
  %v1652 = vunpack.c.h.b16 %v769
  %v1653 = vunpack.c.l.b16 %v770
  %v1654 = vunpack.c.h.b16 %v770
  %v1655 = vunpack.c.l.b16 %v771
  %v1656 = vunpack.c.h.b16 %v771
  %v1657 = vunpack.c.l.b16 %v772
  %v1658 = vunpack.c.h.b16 %v772
  %v1659 = vunpack.c.l.b16 %v773
  %v1660 = vunpack.c.h.b16 %v773
  %v1661 = vunpack.c.l.b16 %v774
  %v1662 = vunpack.c.h.b16 %v774
  %v1663 = vunpack.c.l.b16 %v775
  %v1664 = vunpack.c.h.b16 %v775
  %v1665 = vunpack.c.l.b16 %v776
  %v1666 = vunpack.c.h.b16 %v776
  %v1667 = vunpack.c.l.b16 %v777
  %v1668 = vunpack.c.h.b16 %v777
  %v1669 = vunpack.c.l.b16 %v778
  %v1670 = vunpack.c.h.b16 %v778
  %v1671 = vunpack.c.l.b16 %v779
  %v1672 = vunpack.c.h.b16 %v779
  %v1673 = vunpack.c.l.b16 %v780
  %v1674 = vunpack.c.h.b16 %v780
  %v1675 = vunpack.c.l.b16 %v781
  %v1676 = vunpack.c.h.b16 %v781
  %v1677 = vunpack.c.l.b16 %v782
  %v1678 = vunpack.c.h.b16 %v782
  %v1679 = vunpack.c.l.b16 %v783
  %v1680 = vunpack.c.h.b16 %v783
  %v1681 = vunpack.c.l.b16 %v784
  %v1682 = vunpack.c.h.b16 %v784
  %v1683 = vunpack.c.l.b16 %v785
  %v1684 = vunpack.c.h.b16 %v785
  %v1685 = vunpack.c.l.b16 %v786
  %v1686 = vunpack.c.h.b16 %v786
  %v1687 = vunpack.c.l.b16 %v787
  %v1688 = vunpack.c.h.b16 %v787
  %v1689 = vunpack.c.l.b16 %v788
  %v1690 = vunpack.c.h.b16 %v788
  %v1691 = vunpack.c.l.b16 %v789
  %v1692 = vunpack.c.h.b16 %v789
  %v1693 = vunpack.c.l.b16 %v790
  %v1694 = vunpack.c.h.b16 %v790
  %v1695 = vunpack.c.l.b16 %v791
  %v1696 = vunpack.c.h.b16 %v791
  %v1697 = vunpack.c.l.b16 %v792
  %v1698 = vunpack.c.h.b16 %v792
  %v1699 = vunpack.c.l.b16 %v793
  %v1700 = vunpack.c.h.b16 %v793
  %v1701 = vunpack.c.l.b16 %v794
  %v1702 = vunpack.c.h.b16 %v794
  %v1703 = vunpack.c.l.b16 %v795
  %v1704 = vunpack.c.h.b16 %v795
  %v1705 = vunpack.c.l.b16 %v796
  %v1706 = vunpack.c.h.b16 %v796
  %v1707 = vunpack.c.l.b16 %v797
  %v1708 = vunpack.c.h.b16 %v797
  %v1709 = vunpack.c.l.b16 %v798
  %v1710 = vunpack.c.h.b16 %v798
  %v1711 = vunpack.c.l.b16 %v799
  %v1712 = vunpack.c.h.b16 %v799
  %v1713 = vunpack.c.l.b16 %v800
  %v1714 = vunpack.c.h.b16 %v800
  %v1715 = vunpack.c.l.b16 %v801
  %v1716 = vunpack.c.h.b16 %v801
  %v1717 = vunpack.c.l.b16 %v802
  %v1718 = vunpack.c.h.b16 %v802
  %v1719 = vunpack.c.l.b16 %v803
  %v1720 = vunpack.c.h.b16 %v803
  %v1721 = vunpack.c.l.b16 %v804
  %v1722 = vunpack.c.h.b16 %v804
  %v1723 = vunpack.c.l.b16 %v805
  %v1724 = vunpack.c.h.b16 %v805
  %v1725 = vunpack.c.l.b16 %v806
  %v1726 = vunpack.c.h.b16 %v806
  %v1727 = vunpack.c.l.b16 %v807
  %v1728 = vunpack.c.h.b16 %v807
  %v1729 = vunpack.c.l.b16 %v808
  %v1730 = vunpack.c.h.b16 %v808
  %v1731 = vunpack.c.l.b16 %v809
  %v1732 = vunpack.c.h.b16 %v809
  %v1733 = vunpack.c.l.b16 %v810
  %v1734 = vunpack.c.h.b16 %v810
  %v1735 = vunpack.c.l.b16 %v811
  %v1736 = vunpack.c.h.b16 %v811
  %v1737 = vunpack.c.l.b16 %v812
  %v1738 = vunpack.c.h.b16 %v812
  %v1739 = vunpack.c.l.b16 %v813
  %v1740 = vunpack.c.h.b16 %v813
  %v1741 = vunpack.c.l.b16 %v814
  %v1742 = vunpack.c.h.b16 %v814
  %v1743 = vunpack.c.l.b16 %v815
  %v1744 = vunpack.c.h.b16 %v815
  %v1745 = vunpack.c.l.b16 %v816
  %v1746 = vunpack.c.h.b16 %v816
  %v1747 = vunpack.c.l.b16 %v817
  %v1748 = vunpack.c.h.b16 %v817
  %v1749 = vunpack.c.l.b16 %v818
  %v1750 = vunpack.c.h.b16 %v818
  %v1751 = vunpack.c.l.b16 %v819
  %v1752 = vunpack.c.h.b16 %v819
  %v1753 = vunpack.c.l.b16 %v820
  %v1754 = vunpack.c.h.b16 %v820
  %v1755 = vunpack.c.l.b16 %v821
  %v1756 = vunpack.c.h.b16 %v821
  %v1757 = vunpack.c.l.b16 %v822
  %v1758 = vunpack.c.h.b16 %v822
  %v1759 = vunpack.c.l.b16 %v823
  %v1760 = vunpack.c.h.b16 %v823
  %v1761 = vunpack.c.l.b16 %v824
  %v1762 = vunpack.c.h.b16 %v824
  %v1763 = vunpack.c.l.b16 %v825
  %v1764 = vunpack.c.h.b16 %v825
  %v1765 = vunpack.c.l.b16 %v826
  %v1766 = vunpack.c.h.b16 %v826
  %v1767 = vunpack.c.l.b16 %v827
  %v1768 = vunpack.c.h.b16 %v827
  %v1769 = vunpack.c.l.b16 %v828
  %v1770 = vunpack.c.h.b16 %v828
  %v1771 = vunpack.c.l.b16 %v829
  %v1772 = vunpack.c.h.b16 %v829
  %v1773 = vunpack.c.l.b16 %v830
  %v1774 = vunpack.c.h.b16 %v830
  %v1775 = vunpack.c.l.b16 %v831
  %v1776 = vunpack.c.h.b16 %v831
  %v1777 = vunpack.c.l.b16 %v832
  %v1778 = vunpack.c.h.b16 %v832
  %v1779 = vunpack.c.l.b16 %v833
  %v1780 = vunpack.c.h.b16 %v833
  %v1781 = vunpack.c.l.b16 %v834
  %v1782 = vunpack.c.h.b16 %v834
  %v1783 = vunpack.c.l.b16 %v835
  %v1784 = vunpack.c.h.b16 %v835
  %v1785 = vunpack.c.l.b16 %v836
  %v1786 = vunpack.c.h.b16 %v836
  %v1787 = vunpack.c.l.b16 %v837
  %v1788 = vunpack.c.h.b16 %v837
  %v1789 = vunpack.c.l.b16 %v838
  %v1790 = vunpack.c.h.b16 %v838
  %v1791 = vunpack.c.l.b16 %v839
  %v1792 = vunpack.c.h.b16 %v839
  %v1793 = vunpack.c.l.b16 %v840
  %v1794 = vunpack.c.h.b16 %v840
  %v1795 = vunpack.c.l.b16 %v841
  %v1796 = vunpack.c.h.b16 %v841
  %v1797 = vunpack.c.l.b16 %v842
  %v1798 = vunpack.c.h.b16 %v842
  %v1799 = vunpack.c.l.b16 %v843
  %v1800 = vunpack.c.h.b16 %v843
  %v1801 = vunpack.c.l.b16 %v844
  %v1802 = vunpack.c.h.b16 %v844
  %v1803 = vunpack.c.l.b16 %v845
  %v1804 = vunpack.c.h.b16 %v845
  %v1805 = vunpack.c.l.b16 %v846
  %v1806 = vunpack.c.h.b16 %v846
  %v1807 = vunpack.c.l.b16 %v847
  %v1808 = vunpack.c.h.b16 %v847
  %v1809 = vunpack.c.l.b16 %v848
  %v1810 = vunpack.c.h.b16 %v848
  %v1811 = vunpack.c.l.b16 %v849
  %v1812 = vunpack.c.h.b16 %v849
  %v1813 = vunpack.c.l.b16 %v850
  %v1814 = vunpack.c.h.b16 %v850
  %v1815 = vunpack.c.l.b16 %v851
  %v1816 = vunpack.c.h.b16 %v851
  %v1817 = vunpack.c.l.b16 %v852
  %v1818 = vunpack.c.h.b16 %v852
  %v1819 = vunpack.c.l.b16 %v853
  %v1820 = vunpack.c.h.b16 %v853
  %v1821 = vunpack.c.l.b16 %v854
  %v1822 = vunpack.c.h.b16 %v854
  %v1823 = vunpack.c.l.b16 %v855
  %v1824 = vunpack.c.h.b16 %v855
  %v1825 = vunpack.c.l.b16 %v856
  %v1826 = vunpack.c.h.b16 %v856
  %v1827 = vunpack.c.l.b16 %v857
  %v1828 = vunpack.c.h.b16 %v857
  %v1829 = vunpack.c.l.b16 %v858
  %v1830 = vunpack.c.h.b16 %v858
  %v1831 = vunpack.c.l.b16 %v859
  %v1832 = vunpack.c.h.b16 %v859
  %v1833 = vunpack.c.l.b16 %v860
  %v1834 = vunpack.c.h.b16 %v860
  %v1835 = vunpack.c.l.b16 %v861
  %v1836 = vunpack.c.h.b16 %v861
  %v1837 = vunpack.c.l.b16 %v862
  %v1838 = vunpack.c.h.b16 %v862
  %v1839 = vunpack.c.l.b16 %v863
  %v1840 = vunpack.c.h.b16 %v863
  %v1841 = vunpack.c.l.b16 %v864
  %v1842 = vunpack.c.h.b16 %v864
  %v1843 = vunpack.c.l.b16 %v865
  %v1844 = vunpack.c.h.b16 %v865
  %v1845 = vunpack.c.l.b16 %v866
  %v1846 = vunpack.c.h.b16 %v866
  %v1847 = vunpack.c.l.b16 %v867
  %v1848 = vunpack.c.h.b16 %v867
  %v1849 = vunpack.c.l.b16 %v868
  %v1850 = vunpack.c.h.b16 %v868
  %v1851 = vunpack.c.l.b16 %v869
  %v1852 = vunpack.c.h.b16 %v869
  %v1853 = vunpack.c.l.b16 %v870
  %v1854 = vunpack.c.h.b16 %v870
  %v1855 = vunpack.c.l.b16 %v871
  %v1856 = vunpack.c.h.b16 %v871
  %v1857 = vunpack.c.l.b16 %v872
  %v1858 = vunpack.c.h.b16 %v872
  %v1859 = vunpack.c.l.b16 %v873
  %v1860 = vunpack.c.h.b16 %v873
  %v1861 = vunpack.c.l.b16 %v874
  %v1862 = vunpack.c.h.b16 %v874
  %v1863 = vunpack.c.l.b16 %v875
  %v1864 = vunpack.c.h.b16 %v875
  %v1865 = vunpack.c.l.b16 %v876
  %v1866 = vunpack.c.h.b16 %v876
  %v1867 = vunpack.c.l.b16 %v877
  %v1868 = vunpack.c.h.b16 %v877
  %v1869 = vunpack.c.l.b16 %v878
  %v1870 = vunpack.c.h.b16 %v878
  %v1871 = vunpack.c.l.b16 %v879
  %v1872 = vunpack.c.h.b16 %v879
  %v1873 = vunpack.c.l.b16 %v880
  %v1874 = vunpack.c.h.b16 %v880
  %v1875 = vunpack.c.l.b16 %v881
  %v1876 = vunpack.c.h.b16 %v881
  %v1877 = vunpack.c.l.b16 %v882
  %v1878 = vunpack.c.h.b16 %v882
  %v1879 = vunpack.c.l.b16 %v883
  %v1880 = vunpack.c.h.b16 %v883
  %v1881 = vunpack.c.l.b16 %v884
  %v1882 = vunpack.c.h.b16 %v884
  %v1883 = vunpack.c.l.b16 %v885
  %v1884 = vunpack.c.h.b16 %v885
  %v1885 = vunpack.c.l.b16 %v886
  %v1886 = vunpack.c.h.b16 %v886
  %v1887 = vunpack.c.l.b16 %v887
  %v1888 = vunpack.c.h.b16 %v887
  %v1889 = vunpack.c.l.b16 %v888
  %v1890 = vunpack.c.h.b16 %v888
  %v1891 = vunpack.c.l.b16 %v889
  %v1892 = vunpack.c.h.b16 %v889
  %v1893 = vunpack.c.l.b16 %v890
  %v1894 = vunpack.c.h.b16 %v890
  %v1895 = vunpack.c.l.b16 %v891
  %v1896 = vunpack.c.h.b16 %v891
  %v1897 = vunpack.c.l.b16 %v892
  %v1898 = vunpack.c.h.b16 %v892
  %v1899 = vunpack.c.l.b16 %v893
  %v1900 = vunpack.c.h.b16 %v893
  %v1901 = vunpack.c.l.b16 %v894
  %v1902 = vunpack.c.h.b16 %v894
  %v1903 = vunpack.c.l.b16 %v895
  %v1904 = vunpack.c.h.b16 %v895
  %v1905 = vunpack.c.l.b16 %v896
  %v1906 = vunpack.c.h.b16 %v896
  %v1907 = vunpack.c.l.b16 %v897
  %v1908 = vunpack.c.h.b16 %v897
  %v1909 = vunpack.c.l.b16 %v898
  %v1910 = vunpack.c.h.b16 %v898
  %v1911 = vunpack.c.l.b16 %v899
  %v1912 = vunpack.c.h.b16 %v899
  %v1913 = vunpack.c.l.b16 %v900
  %v1914 = vunpack.c.h.b16 %v900
  %v1915 = vunpack.c.l.b16 %v901
  %v1916 = vunpack.c.h.b16 %v901
  %v1917 = vunpack.c.l.b16 %v902
  %v1918 = vunpack.c.h.b16 %v902
  %v1919 = vunpack.c.l.b16 %v903
  %v1920 = vunpack.c.h.b16 %v903
  %v1921 = vunpack.c.l.b16 %v904
  %v1922 = vunpack.c.h.b16 %v904
  %v1923 = vunpack.c.l.b16 %v905
  %v1924 = vunpack.c.h.b16 %v905
  %v1925 = vunpack.c.l.b16 %v906
  %v1926 = vunpack.c.h.b16 %v906
  %v1927 = vunpack.c.l.b16 %v907
  %v1928 = vunpack.c.h.b16 %v907
  %v1929 = vunpack.c.l.b16 %v908
  %v1930 = vunpack.c.h.b16 %v908
  %v1931 = vunpack.c.l.b16 %v909
  %v1932 = vunpack.c.h.b16 %v909
  %v1933 = vunpack.c.l.b16 %v910
  %v1934 = vunpack.c.h.b16 %v910
  %v1935 = vunpack.c.l.b16 %v911
  %v1936 = vunpack.c.h.b16 %v911
  %v1937 = vunpack.c.l.b16 %v912
  %v1938 = vunpack.c.h.b16 %v912
  %v1939 = vunpack.c.l.b16 %v913
  %v1940 = vunpack.c.h.b16 %v913
  %v1941 = vunpack.c.l.b16 %v914
  %v1942 = vunpack.c.h.b16 %v914
  %v1943 = vunpack.c.l.b16 %v915
  %v1944 = vunpack.c.h.b16 %v915
  %v1945 = vunpack.c.l.b16 %v916
  %v1946 = vunpack.c.h.b16 %v916
  %v1947 = vunpack.c.l.b16 %v917
  %v1948 = vunpack.c.h.b16 %v917
  %v1949 = vunpack.c.l.b16 %v918
  %v1950 = vunpack.c.h.b16 %v918
  %v1951 = vunpack.c.l.b16 %v919
  %v1952 = vunpack.c.h.b16 %v919
  %v1953 = vunpack.c.l.b16 %v920
  %v1954 = vunpack.c.h.b16 %v920
  %v1955 = vunpack.c.l.b16 %v921
  %v1956 = vunpack.c.h.b16 %v921
  %v1957 = vunpack.c.l.b16 %v922
  %v1958 = vunpack.c.h.b16 %v922
  %v1959 = vunpack.c.l.b16 %v923
  %v1960 = vunpack.c.h.b16 %v923
  %v1961 = vunpack.c.l.b16 %v924
  %v1962 = vunpack.c.h.b16 %v924
  %v1963 = vunpack.c.l.b16 %v925
  %v1964 = vunpack.c.h.b16 %v925
  %v1965 = vunpack.c.l.b16 %v926
  %v1966 = vunpack.c.h.b16 %v926
  %v1967 = vunpack.c.l.b16 %v927
  %v1968 = vunpack.c.h.b16 %v927
  %v1969 = vunpack.c.l.b16 %v928
  %v1970 = vunpack.c.h.b16 %v928
  %v1971 = vunpack.c.l.b16 %v929
  %v1972 = vunpack.c.h.b16 %v929
  %v1973 = vunpack.c.l.b16 %v930
  %v1974 = vunpack.c.h.b16 %v930
  %v1975 = vunpack.c.l.b16 %v931
  %v1976 = vunpack.c.h.b16 %v931
  %v1977 = vunpack.c.l.b16 %v932
  %v1978 = vunpack.c.h.b16 %v932
  %v1979 = vunpack.c.l.b16 %v933
  %v1980 = vunpack.c.h.b16 %v933
  %v1981 = vunpack.c.l.b16 %v934
  %v1982 = vunpack.c.h.b16 %v934
  %v1983 = vunpack.c.l.b16 %v935
  %v1984 = vunpack.c.h.b16 %v935
  %v1985 = vunpack.c.l.b16 %v936
  %v1986 = vunpack.c.h.b16 %v936
  %v1987 = vunpack.c.l.b16 %v937
  %v1988 = vunpack.c.h.b16 %v937
  %v1989 = vunpack.c.l.b16 %v938
  %v1990 = vunpack.c.h.b16 %v938
  %v1991 = vunpack.c.l.b16 %v939
  %v1992 = vunpack.c.h.b16 %v939
  %v1993 = vunpack.c.l.b16 %v940
  %v1994 = vunpack.c.h.b16 %v940
  %v1995 = vunpack.c.l.b16 %v941
  %v1996 = vunpack.c.h.b16 %v941
  %v1997 = vunpack.c.l.b16 %v942
  %v1998 = vunpack.c.h.b16 %v942
  %v1999 = vunpack.c.l.b16 %v943
  %v2000 = vunpack.c.h.b16 %v943
  %v2001 = vunpack.c.l.b16 %v944
  %v2002 = vunpack.c.h.b16 %v944
  %v2003 = vunpack.c.l.b16 %v945
  %v2004 = vunpack.c.h.b16 %v945
  %v2005 = vunpack.c.l.b16 %v946
  %v2006 = vunpack.c.h.b16 %v946
  %v2007 = vunpack.c.l.b16 %v947
  %v2008 = vunpack.c.h.b16 %v947
  %v2009 = vunpack.c.l.b16 %v948
  %v2010 = vunpack.c.h.b16 %v948
  %v2011 = vunpack.c.l.b16 %v949
  %v2012 = vunpack.c.h.b16 %v949
  %v2013 = vunpack.c.l.b16 %v950
  %v2014 = vunpack.c.h.b16 %v950
  %v2015 = vunpack.c.l.b16 %v951
  %v2016 = vunpack.c.h.b16 %v951
  %v2017 = vunpack.c.l.b16 %v952
  %v2018 = vunpack.c.h.b16 %v952
  %v2019 = vunpack.c.l.b16 %v953
  %v2020 = vunpack.c.h.b16 %v953
  %v2021 = vunpack.c.l.b16 %v954
  %v2022 = vunpack.c.h.b16 %v954
  %v2023 = vunpack.c.l.b16 %v955
  %v2024 = vunpack.c.h.b16 %v955
  %v2025 = vunpack.c.l.b16 %v956
  %v2026 = vunpack.c.h.b16 %v956
  %v2027 = vunpack.c.l.b16 %v957
  %v2028 = vunpack.c.h.b16 %v957
  %v2029 = vunpack.c.l.b16 %v958
  %v2030 = vunpack.c.h.b16 %v958
  %v2031 = vunpack.c.l.b16 %v959
  %v2032 = vunpack.c.h.b16 %v959
  %v2033 = vunpack.c.l.b16 %v960
  %v2034 = vunpack.c.h.b16 %v960
  %v2035 = vunpack.c.l.b16 %v961
  %v2036 = vunpack.c.h.b16 %v961
  %v2037 = vunpack.c.l.b16 %v962
  %v2038 = vunpack.c.h.b16 %v962
  %v2039 = vunpack.c.l.b16 %v963
  %v2040 = vunpack.c.h.b16 %v963
  %v2041 = vunpack.c.l.b16 %v964
  %v2042 = vunpack.c.h.b16 %v964
  %v2043 = vunpack.c.l.b16 %v965
  %v2044 = vunpack.c.h.b16 %v965
  %v2045 = vunpack.c.l.b16 %v966
  %v2046 = vunpack.c.h.b16 %v966
  %v2047 = vunpack.c.l.b16 %v967
  %v2048 = vunpack.c.h.b16 %v967
  %v2049 = vunpack.c.l.b16 %v968
  %v2050 = vunpack.c.h.b16 %v968
  %v2051 = vunpack.c.l.b16 %v969
  %v2052 = vunpack.c.h.b16 %v969
  %v2053 = vunpack.c.l.b16 %v970
  %v2054 = vunpack.c.h.b16 %v970
  %v2055 = vunpack.c.l.b16 %v971
  %v2056 = vunpack.c.h.b16 %v971
  %v2057 = vunpack.c.l.b16 %v972
  %v2058 = vunpack.c.h.b16 %v972
  %v2059 = vunpack.c.l.b16 %v973
  %v2060 = vunpack.c.h.b16 %v973
  %v2061 = vunpack.c.l.b16 %v974
  %v2062 = vunpack.c.h.b16 %v974
  %v2063 = vunpack.c.l.b16 %v975
  %v2064 = vunpack.c.h.b16 %v975
  %v2065 = vunpack.c.l.b16 %v976
  %v2066 = vunpack.c.h.b16 %v976
  %v2067 = vunpack.c.l.b16 %v977
  %v2068 = vunpack.c.h.b16 %v977
  %v2069 = vunpack.c.l.b16 %v978
  %v2070 = vunpack.c.h.b16 %v978
  %v2071 = vunpack.c.l.b16 %v979
  %v2072 = vunpack.c.h.b16 %v979
  %v2073 = vunpack.c.l.b16 %v980
  %v2074 = vunpack.c.h.b16 %v980
  %v2075 = vunpack.c.l.b16 %v981
  %v2076 = vunpack.c.h.b16 %v981
  %v2077 = vunpack.c.l.b16 %v982
  %v2078 = vunpack.c.h.b16 %v982
  %v2079 = vunpack.c.l.b16 %v983
  %v2080 = vunpack.c.h.b16 %v983
  %v2081 = vunpack.c.l.b16 %v984
  %v2082 = vunpack.c.h.b16 %v984
  %v2083 = vunpack.c.l.b16 %v985
  %v2084 = vunpack.c.h.b16 %v985
  %v2085 = vunpack.c.l.b16 %v986
  %v2086 = vunpack.c.h.b16 %v986
  %v2087 = vunpack.c.l.b16 %v987
  %v2088 = vunpack.c.h.b16 %v987
  %v2089 = vunpack.c.l.b16 %v988
  %v2090 = vunpack.c.h.b16 %v988
  %v2091 = vunpack.c.l.b16 %v989
  %v2092 = vunpack.c.h.b16 %v989
  %v2093 = vunpack.c.l.b16 %v990
  %v2094 = vunpack.c.h.b16 %v990
  %v2095 = vunpack.c.l.b16 %v991
  %v2096 = vunpack.c.h.b16 %v991
  %v2097 = vunpack.c.l.b16 %v992
  %v2098 = vunpack.c.h.b16 %v992
  %v2099 = vunpack.c.l.b16 %v993
  %v2100 = vunpack.c.h.b16 %v993
  %v2101 = vunpack.c.l.b16 %v994
  %v2102 = vunpack.c.h.b16 %v994
  %v2103 = vunpack.c.l.b16 %v995
  %v2104 = vunpack.c.h.b16 %v995
  %v2105 = vunpack.c.l.b16 %v996
  %v2106 = vunpack.c.h.b16 %v996
  %v2107 = vunpack.c.l.b16 %v997
  %v2108 = vunpack.c.h.b16 %v997
  %v2109 = vunpack.c.l.b16 %v998
  %v2110 = vunpack.c.h.b16 %v998
  %v2111 = vunpack.c.l.b16 %v999
  %v2112 = vunpack.c.h.b16 %v999
  %v2113 = vunpack.c.l.b16 %v1000
  %v2114 = vunpack.c.h.b16 %v1000
  %v2115 = vunpack.c.l.b16 %v1001
  %v2116 = vunpack.c.h.b16 %v1001
  %v2117 = vunpack.c.l.b16 %v1002
  %v2118 = vunpack.c.h.b16 %v1002
  %v2119 = vunpack.c.l.b16 %v1003
  %v2120 = vunpack.c.h.b16 %v1003
  %v2121 = vunpack.c.l.b16 %v1004
  %v2122 = vunpack.c.h.b16 %v1004
  %v2123 = vunpack.c.l.b16 %v1005
  %v2124 = vunpack.c.h.b16 %v1005
  %v2125 = vunpack.c.l.b16 %v1006
  %v2126 = vunpack.c.h.b16 %v1006
  %v2127 = vunpack.c.l.b16 %v1007
  %v2128 = vunpack.c.h.b16 %v1007
  %v2129 = vunpack.c.l.b16 %v1008
  %v2130 = vunpack.c.h.b16 %v1008
  %v2131 = vunpack.c.l.b16 %v1009
  %v2132 = vunpack.c.h.b16 %v1009
  %v2133 = vunpack.c.l.b16 %v1010
  %v2134 = vunpack.c.h.b16 %v1010
  %v2135 = vunpack.c.l.b16 %v1011
  %v2136 = vunpack.c.h.b16 %v1011
  %v2137 = vunpack.c.l.b16 %v1012
  %v2138 = vunpack.c.h.b16 %v1012
  %v2139 = vunpack.c.l.b16 %v1013
  %v2140 = vunpack.c.h.b16 %v1013
  %v2141 = vunpack.c.l.b16 %v1014
  %v2142 = vunpack.c.h.b16 %v1014
  %v2143 = vunpack.c.l.b16 %v1015
  %v2144 = vunpack.c.h.b16 %v1015
  %v2145 = vunpack.c.l.b16 %v1016
  %v2146 = vunpack.c.h.b16 %v1016
  %v2147 = vunpack.c.l.b16 %v1017
  %v2148 = vunpack.c.h.b16 %v1017
  %v2149 = vunpack.c.l.b16 %v1018
  %v2150 = vunpack.c.h.b16 %v1018
  %v2151 = vunpack.c.l.b16 %v1019
  %v2152 = vunpack.c.h.b16 %v1019
  %v2153 = vunpack.c.l.b16 %v1020
  %v2154 = vunpack.c.h.b16 %v1020
  %v2155 = vunpack.c.l.b16 %v1021
  %v2156 = vunpack.c.h.b16 %v1021
  %v2157 = vunpack.c.l.b16 %v1022
  %v2158 = vunpack.c.h.b16 %v1022
  %v2159 = vunpack.c.l.b16 %v1023
  %v2160 = vunpack.c.h.b16 %v1023
  %v2161 = vunpack.c.l.b16 %v1024
  %v2162 = vunpack.c.h.b16 %v1024
  %v2163 = vunpack.c.l.b16 %v1025
  %v2164 = vunpack.c.h.b16 %v1025
  %v2165 = vunpack.c.l.b16 %v1026
  %v2166 = vunpack.c.h.b16 %v1026
  %v2167 = vunpack.c.l.b16 %v1027
  %v2168 = vunpack.c.h.b16 %v1027
  %v2169 = vunpack.c.l.b16 %v1028
  %v2170 = vunpack.c.h.b16 %v1028
  %v2171 = vunpack.c.l.b16 %v1029
  %v2172 = vunpack.c.h.b16 %v1029
  %v2173 = vunpack.c.l.b16 %v1030
  %v2174 = vunpack.c.h.b16 %v1030
  %v2175 = vunpack.c.l.b16 %v1031
  %v2176 = vunpack.c.h.b16 %v1031
  %v2177 = vunpack.c.l.b16 %v1032
  %v2178 = vunpack.c.h.b16 %v1032
  %v2179 = vunpack.c.l.b16 %v1033
  %v2180 = vunpack.c.h.b16 %v1033
  %v2181 = vunpack.c.l.b16 %v1034
  %v2182 = vunpack.c.h.b16 %v1034
  %v2183 = vunpack.c.l.b16 %v1035
  %v2184 = vunpack.c.h.b16 %v1035
  %v2185 = vunpack.c.l.b16 %v1036
  %v2186 = vunpack.c.h.b16 %v1036
  %v2187 = vunpack.c.l.b16 %v1037
  %v2188 = vunpack.c.h.b16 %v1037
  %v2189 = vunpack.c.l.b16 %v1038
  %v2190 = vunpack.c.h.b16 %v1038
  %v2191 = vpack.c.b16 %v1425, %v1423
  %v2192 = vpack.c.b16 %v1426, %v1424
  %v2193 = vpack.c.b16 %v1429, %v1427
  %v2194 = vpack.c.b16 %v1430, %v1428
  %v2195 = vpack.c.b16 %v1433, %v1431
  %v2196 = vpack.c.b16 %v1434, %v1432
  %v2197 = vpack.c.b16 %v1437, %v1435
  %v2198 = vpack.c.b16 %v1438, %v1436
  %v2199 = vpack.c.b16 %v1441, %v1439
  %v2200 = vpack.c.b16 %v1442, %v1440
  %v2201 = vpack.c.b16 %v1445, %v1443
  %v2202 = vpack.c.b16 %v1446, %v1444
  %v2203 = vpack.c.b16 %v1449, %v1447
  %v2204 = vpack.c.b16 %v1450, %v1448
  %v2205 = vpack.c.b16 %v1453, %v1451
  %v2206 = vpack.c.b16 %v1454, %v1452
  %v2207 = vpack.c.b16 %v1457, %v1455
  %v2208 = vpack.c.b16 %v1458, %v1456
  %v2209 = vpack.c.b16 %v1461, %v1459
  %v2210 = vpack.c.b16 %v1462, %v1460
  %v2211 = vpack.c.b16 %v1465, %v1463
  %v2212 = vpack.c.b16 %v1466, %v1464
  %v2213 = vpack.c.b16 %v1469, %v1467
  %v2214 = vpack.c.b16 %v1470, %v1468
  %v2215 = vpack.c.b16 %v1473, %v1471
  %v2216 = vpack.c.b16 %v1474, %v1472
  %v2217 = vpack.c.b16 %v1477, %v1475
  %v2218 = vpack.c.b16 %v1478, %v1476
  %v2219 = vpack.c.b16 %v1481, %v1479
  %v2220 = vpack.c.b16 %v1482, %v1480
  %v2221 = vpack.c.b16 %v1485, %v1483
  %v2222 = vpack.c.b16 %v1486, %v1484
  %v2223 = vpack.c.b16 %v1489, %v1487
  %v2224 = vpack.c.b16 %v1490, %v1488
  %v2225 = vpack.c.b16 %v1493, %v1491
  %v2226 = vpack.c.b16 %v1494, %v1492
  %v2227 = vpack.c.b16 %v1497, %v1495
  %v2228 = vpack.c.b16 %v1498, %v1496
  %v2229 = vpack.c.b16 %v1501, %v1499
  %v2230 = vpack.c.b16 %v1502, %v1500
  %v2231 = vpack.c.b16 %v1505, %v1503
  %v2232 = vpack.c.b16 %v1506, %v1504
  %v2233 = vpack.c.b16 %v1509, %v1507
  %v2234 = vpack.c.b16 %v1510, %v1508
  %v2235 = vpack.c.b16 %v1513, %v1511
  %v2236 = vpack.c.b16 %v1514, %v1512
  %v2237 = vpack.c.b16 %v1517, %v1515
  %v2238 = vpack.c.b16 %v1518, %v1516
  %v2239 = vpack.c.b16 %v1521, %v1519
  %v2240 = vpack.c.b16 %v1522, %v1520
  %v2241 = vpack.c.b16 %v1525, %v1523
  %v2242 = vpack.c.b16 %v1526, %v1524
  %v2243 = vpack.c.b16 %v1529, %v1527
  %v2244 = vpack.c.b16 %v1530, %v1528
  %v2245 = vpack.c.b16 %v1533, %v1531
  %v2246 = vpack.c.b16 %v1534, %v1532
  %v2247 = vpack.c.b16 %v1537, %v1535
  %v2248 = vpack.c.b16 %v1538, %v1536
  %v2249 = vpack.c.b16 %v1541, %v1539
  %v2250 = vpack.c.b16 %v1542, %v1540
  %v2251 = vpack.c.b16 %v1545, %v1543
  %v2252 = vpack.c.b16 %v1546, %v1544
  %v2253 = vpack.c.b16 %v1549, %v1547
  %v2254 = vpack.c.b16 %v1550, %v1548
  %v2255 = vpack.c.b16 %v1553, %v1551
  %v2256 = vpack.c.b16 %v1554, %v1552
  %v2257 = vpack.c.b16 %v1557, %v1555
  %v2258 = vpack.c.b16 %v1558, %v1556
  %v2259 = vpack.c.b16 %v1561, %v1559
  %v2260 = vpack.c.b16 %v1562, %v1560
  %v2261 = vpack.c.b16 %v1565, %v1563
  %v2262 = vpack.c.b16 %v1566, %v1564
  %v2263 = vpack.c.b16 %v1569, %v1567
  %v2264 = vpack.c.b16 %v1570, %v1568
  %v2265 = vpack.c.b16 %v1573, %v1571
  %v2266 = vpack.c.b16 %v1574, %v1572
  %v2267 = vpack.c.b16 %v1577, %v1575
  %v2268 = vpack.c.b16 %v1578, %v1576
  %v2269 = vpack.c.b16 %v1581, %v1579
  %v2270 = vpack.c.b16 %v1582, %v1580
  %v2271 = vpack.c.b16 %v1585, %v1583
  %v2272 = vpack.c.b16 %v1586, %v1584
  %v2273 = vpack.c.b16 %v1589, %v1587
  %v2274 = vpack.c.b16 %v1590, %v1588
  %v2275 = vpack.c.b16 %v1593, %v1591
  %v2276 = vpack.c.b16 %v1594, %v1592
  %v2277 = vpack.c.b16 %v1597, %v1595
  %v2278 = vpack.c.b16 %v1598, %v1596
  %v2279 = vpack.c.b16 %v1601, %v1599
  %v2280 = vpack.c.b16 %v1602, %v1600
  %v2281 = vpack.c.b16 %v1605, %v1603
  %v2282 = vpack.c.b16 %v1606, %v1604
  %v2283 = vpack.c.b16 %v1609, %v1607
  %v2284 = vpack.c.b16 %v1610, %v1608
  %v2285 = vpack.c.b16 %v1613, %v1611
  %v2286 = vpack.c.b16 %v1614, %v1612
  %v2287 = vpack.c.b16 %v1617, %v1615
  %v2288 = vpack.c.b16 %v1618, %v1616
  %v2289 = vpack.c.b16 %v1621, %v1619
  %v2290 = vpack.c.b16 %v1622, %v1620
  %v2291 = vpack.c.b16 %v1625, %v1623
  %v2292 = vpack.c.b16 %v1626, %v1624
  %v2293 = vpack.c.b16 %v1629, %v1627
  %v2294 = vpack.c.b16 %v1630, %v1628
  %v2295 = vpack.c.b16 %v1633, %v1631
  %v2296 = vpack.c.b16 %v1634, %v1632
  %v2297 = vpack.c.b16 %v1637, %v1635
  %v2298 = vpack.c.b16 %v1638, %v1636
  %v2299 = vpack.c.b16 %v1641, %v1639
  %v2300 = vpack.c.b16 %v1642, %v1640
  %v2301 = vpack.c.b16 %v1645, %v1643
  %v2302 = vpack.c.b16 %v1646, %v1644
  %v2303 = vpack.c.b16 %v1649, %v1647
  %v2304 = vpack.c.b16 %v1650, %v1648
  %v2305 = vpack.c.b16 %v1653, %v1651
  %v2306 = vpack.c.b16 %v1654, %v1652
  %v2307 = vpack.c.b16 %v1657, %v1655
  %v2308 = vpack.c.b16 %v1658, %v1656
  %v2309 = vpack.c.b16 %v1661, %v1659
  %v2310 = vpack.c.b16 %v1662, %v1660
  %v2311 = vpack.c.b16 %v1665, %v1663
  %v2312 = vpack.c.b16 %v1666, %v1664
  %v2313 = vpack.c.b16 %v1669, %v1667
  %v2314 = vpack.c.b16 %v1670, %v1668
  %v2315 = vpack.c.b16 %v1673, %v1671
  %v2316 = vpack.c.b16 %v1674, %v1672
  %v2317 = vpack.c.b16 %v1677, %v1675
  %v2318 = vpack.c.b16 %v1678, %v1676
  %v2319 = vpack.c.b16 %v1681, %v1679
  %v2320 = vpack.c.b16 %v1682, %v1680
  %v2321 = vpack.c.b16 %v1685, %v1683
  %v2322 = vpack.c.b16 %v1686, %v1684
  %v2323 = vpack.c.b16 %v1689, %v1687
  %v2324 = vpack.c.b16 %v1690, %v1688
  %v2325 = vpack.c.b16 %v1693, %v1691
  %v2326 = vpack.c.b16 %v1694, %v1692
  %v2327 = vpack.c.b16 %v1697, %v1695
  %v2328 = vpack.c.b16 %v1698, %v1696
  %v2329 = vpack.c.b16 %v1701, %v1699
  %v2330 = vpack.c.b16 %v1702, %v1700
  %v2331 = vpack.c.b16 %v1705, %v1703
  %v2332 = vpack.c.b16 %v1706, %v1704
  %v2333 = vpack.c.b16 %v1709, %v1707
  %v2334 = vpack.c.b16 %v1710, %v1708
  %v2335 = vpack.c.b16 %v1713, %v1711
  %v2336 = vpack.c.b16 %v1714, %v1712
  %v2337 = vpack.c.b16 %v1717, %v1715
  %v2338 = vpack.c.b16 %v1718, %v1716
  %v2339 = vpack.c.b16 %v1721, %v1719
  %v2340 = vpack.c.b16 %v1722, %v1720
  %v2341 = vpack.c.b16 %v1725, %v1723
  %v2342 = vpack.c.b16 %v1726, %v1724
  %v2343 = vpack.c.b16 %v1729, %v1727
  %v2344 = vpack.c.b16 %v1730, %v1728
  %v2345 = vpack.c.b16 %v1733, %v1731
  %v2346 = vpack.c.b16 %v1734, %v1732
  %v2347 = vpack.c.b16 %v1737, %v1735
  %v2348 = vpack.c.b16 %v1738, %v1736
  %v2349 = vpack.c.b16 %v1741, %v1739
  %v2350 = vpack.c.b16 %v1742, %v1740
  %v2351 = vpack.c.b16 %v1745, %v1743
  %v2352 = vpack.c.b16 %v1746, %v1744
  %v2353 = vpack.c.b16 %v1749, %v1747
  %v2354 = vpack.c.b16 %v1750, %v1748
  %v2355 = vpack.c.b16 %v1753, %v1751
  %v2356 = vpack.c.b16 %v1754, %v1752
  %v2357 = vpack.c.b16 %v1757, %v1755
  %v2358 = vpack.c.b16 %v1758, %v1756
  %v2359 = vpack.c.b16 %v1761, %v1759
  %v2360 = vpack.c.b16 %v1762, %v1760
  %v2361 = vpack.c.b16 %v1765, %v1763
  %v2362 = vpack.c.b16 %v1766, %v1764
  %v2363 = vpack.c.b16 %v1769, %v1767
  %v2364 = vpack.c.b16 %v1770, %v1768
  %v2365 = vpack.c.b16 %v1773, %v1771
  %v2366 = vpack.c.b16 %v1774, %v1772
  %v2367 = vpack.c.b16 %v1777, %v1775
  %v2368 = vpack.c.b16 %v1778, %v1776
  %v2369 = vpack.c.b16 %v1781, %v1779
  %v2370 = vpack.c.b16 %v1782, %v1780
  %v2371 = vpack.c.b16 %v1785, %v1783
  %v2372 = vpack.c.b16 %v1786, %v1784
  %v2373 = vpack.c.b16 %v1789, %v1787
  %v2374 = vpack.c.b16 %v1790, %v1788
  %v2375 = vpack.c.b16 %v1793, %v1791
  %v2376 = vpack.c.b16 %v1794, %v1792
  %v2377 = vpack.c.b16 %v1797, %v1795
  %v2378 = vpack.c.b16 %v1798, %v1796
  %v2379 = vpack.c.b16 %v1801, %v1799
  %v2380 = vpack.c.b16 %v1802, %v1800
  %v2381 = vpack.c.b16 %v1805, %v1803
  %v2382 = vpack.c.b16 %v1806, %v1804
  %v2383 = vpack.c.b16 %v1809, %v1807
  %v2384 = vpack.c.b16 %v1810, %v1808
  %v2385 = vpack.c.b16 %v1813, %v1811
  %v2386 = vpack.c.b16 %v1814, %v1812
  %v2387 = vpack.c.b16 %v1817, %v1815
  %v2388 = vpack.c.b16 %v1818, %v1816
  %v2389 = vpack.c.b16 %v1821, %v1819
  %v2390 = vpack.c.b16 %v1822, %v1820
  %v2391 = vpack.c.b16 %v1825, %v1823
  %v2392 = vpack.c.b16 %v1826, %v1824
  %v2393 = vpack.c.b16 %v1829, %v1827
  %v2394 = vpack.c.b16 %v1830, %v1828
  %v2395 = vpack.c.b16 %v1833, %v1831
  %v2396 = vpack.c.b16 %v1834, %v1832
  %v2397 = vpack.c.b16 %v1837, %v1835
  %v2398 = vpack.c.b16 %v1838, %v1836
  %v2399 = vpack.c.b16 %v1841, %v1839
  %v2400 = vpack.c.b16 %v1842, %v1840
  %v2401 = vpack.c.b16 %v1845, %v1843
  %v2402 = vpack.c.b16 %v1846, %v1844
  %v2403 = vpack.c.b16 %v1849, %v1847
  %v2404 = vpack.c.b16 %v1850, %v1848
  %v2405 = vpack.c.b16 %v1853, %v1851
  %v2406 = vpack.c.b16 %v1854, %v1852
  %v2407 = vpack.c.b16 %v1857, %v1855
  %v2408 = vpack.c.b16 %v1858, %v1856
  %v2409 = vpack.c.b16 %v1861, %v1859
  %v2410 = vpack.c.b16 %v1862, %v1860
  %v2411 = vpack.c.b16 %v1865, %v1863
  %v2412 = vpack.c.b16 %v1866, %v1864
  %v2413 = vpack.c.b16 %v1869, %v1867
  %v2414 = vpack.c.b16 %v1870, %v1868
  %v2415 = vpack.c.b16 %v1873, %v1871
  %v2416 = vpack.c.b16 %v1874, %v1872
  %v2417 = vpack.c.b16 %v1877, %v1875
  %v2418 = vpack.c.b16 %v1878, %v1876
  %v2419 = vpack.c.b16 %v1881, %v1879
  %v2420 = vpack.c.b16 %v1882, %v1880
  %v2421 = vpack.c.b16 %v1885, %v1883
  %v2422 = vpack.c.b16 %v1886, %v1884
  %v2423 = vpack.c.b16 %v1889, %v1887
  %v2424 = vpack.c.b16 %v1890, %v1888
  %v2425 = vpack.c.b16 %v1893, %v1891
  %v2426 = vpack.c.b16 %v1894, %v1892
  %v2427 = vpack.c.b16 %v1897, %v1895
  %v2428 = vpack.c.b16 %v1898, %v1896
  %v2429 = vpack.c.b16 %v1901, %v1899
  %v2430 = vpack.c.b16 %v1902, %v1900
  %v2431 = vpack.c.b16 %v1905, %v1903
  %v2432 = vpack.c.b16 %v1906, %v1904
  %v2433 = vpack.c.b16 %v1909, %v1907
  %v2434 = vpack.c.b16 %v1910, %v1908
  %v2435 = vpack.c.b16 %v1913, %v1911
  %v2436 = vpack.c.b16 %v1914, %v1912
  %v2437 = vpack.c.b16 %v1917, %v1915
  %v2438 = vpack.c.b16 %v1918, %v1916
  %v2439 = vpack.c.b16 %v1921, %v1919
  %v2440 = vpack.c.b16 %v1922, %v1920
  %v2441 = vpack.c.b16 %v1925, %v1923
  %v2442 = vpack.c.b16 %v1926, %v1924
  %v2443 = vpack.c.b16 %v1929, %v1927
  %v2444 = vpack.c.b16 %v1930, %v1928
  %v2445 = vpack.c.b16 %v1933, %v1931
  %v2446 = vpack.c.b16 %v1934, %v1932
  %v2447 = vpack.c.b16 %v1937, %v1935
  %v2448 = vpack.c.b16 %v1938, %v1936
  %v2449 = vpack.c.b16 %v1941, %v1939
  %v2450 = vpack.c.b16 %v1942, %v1940
  %v2451 = vpack.c.b16 %v1945, %v1943
  %v2452 = vpack.c.b16 %v1946, %v1944
  %v2453 = vpack.c.b16 %v1949, %v1947
  %v2454 = vpack.c.b16 %v1950, %v1948
  %v2455 = vpack.c.b16 %v1953, %v1951
  %v2456 = vpack.c.b16 %v1954, %v1952
  %v2457 = vpack.c.b16 %v1957, %v1955
  %v2458 = vpack.c.b16 %v1958, %v1956
  %v2459 = vpack.c.b16 %v1961, %v1959
  %v2460 = vpack.c.b16 %v1962, %v1960
  %v2461 = vpack.c.b16 %v1965, %v1963
  %v2462 = vpack.c.b16 %v1966, %v1964
  %v2463 = vpack.c.b16 %v1969, %v1967
  %v2464 = vpack.c.b16 %v1970, %v1968
  %v2465 = vpack.c.b16 %v1973, %v1971
  %v2466 = vpack.c.b16 %v1974, %v1972
  %v2467 = vpack.c.b16 %v1977, %v1975
  %v2468 = vpack.c.b16 %v1978, %v1976
  %v2469 = vpack.c.b16 %v1981, %v1979
  %v2470 = vpack.c.b16 %v1982, %v1980
  %v2471 = vpack.c.b16 %v1985, %v1983
  %v2472 = vpack.c.b16 %v1986, %v1984
  %v2473 = vpack.c.b16 %v1989, %v1987
  %v2474 = vpack.c.b16 %v1990, %v1988
  %v2475 = vpack.c.b16 %v1993, %v1991
  %v2476 = vpack.c.b16 %v1994, %v1992
  %v2477 = vpack.c.b16 %v1997, %v1995
  %v2478 = vpack.c.b16 %v1998, %v1996
  %v2479 = vpack.c.b16 %v2001, %v1999
  %v2480 = vpack.c.b16 %v2002, %v2000
  %v2481 = vpack.c.b16 %v2005, %v2003
  %v2482 = vpack.c.b16 %v2006, %v2004
  %v2483 = vpack.c.b16 %v2009, %v2007
  %v2484 = vpack.c.b16 %v2010, %v2008
  %v2485 = vpack.c.b16 %v2013, %v2011
  %v2486 = vpack.c.b16 %v2014, %v2012
  %v2487 = vpack.c.b16 %v2017, %v2015
  %v2488 = vpack.c.b16 %v2018, %v2016
  %v2489 = vpack.c.b16 %v2021, %v2019
  %v2490 = vpack.c.b16 %v2022, %v2020
  %v2491 = vpack.c.b16 %v2025, %v2023
  %v2492 = vpack.c.b16 %v2026, %v2024
  %v2493 = vpack.c.b16 %v2029, %v2027
  %v2494 = vpack.c.b16 %v2030, %v2028
  %v2495 = vpack.c.b16 %v2033, %v2031
  %v2496 = vpack.c.b16 %v2034, %v2032
  %v2497 = vpack.c.b16 %v2037, %v2035
  %v2498 = vpack.c.b16 %v2038, %v2036
  %v2499 = vpack.c.b16 %v2041, %v2039
  %v2500 = vpack.c.b16 %v2042, %v2040
  %v2501 = vpack.c.b16 %v2045, %v2043
  %v2502 = vpack.c.b16 %v2046, %v2044
  %v2503 = vpack.c.b16 %v2049, %v2047
  %v2504 = vpack.c.b16 %v2050, %v2048
  %v2505 = vpack.c.b16 %v2053, %v2051
  %v2506 = vpack.c.b16 %v2054, %v2052
  %v2507 = vpack.c.b16 %v2057, %v2055
  %v2508 = vpack.c.b16 %v2058, %v2056
  %v2509 = vpack.c.b16 %v2061, %v2059
  %v2510 = vpack.c.b16 %v2062, %v2060
  %v2511 = vpack.c.b16 %v2065, %v2063
  %v2512 = vpack.c.b16 %v2066, %v2064
  %v2513 = vpack.c.b16 %v2069, %v2067
  %v2514 = vpack.c.b16 %v2070, %v2068
  %v2515 = vpack.c.b16 %v2073, %v2071
  %v2516 = vpack.c.b16 %v2074, %v2072
  %v2517 = vpack.c.b16 %v2077, %v2075
  %v2518 = vpack.c.b16 %v2078, %v2076
  %v2519 = vpack.c.b16 %v2081, %v2079
  %v2520 = vpack.c.b16 %v2082, %v2080
  %v2521 = vpack.c.b16 %v2085, %v2083
  %v2522 = vpack.c.b16 %v2086, %v2084
  %v2523 = vpack.c.b16 %v2089, %v2087
  %v2524 = vpack.c.b16 %v2090, %v2088
  %v2525 = vpack.c.b16 %v2093, %v2091
  %v2526 = vpack.c.b16 %v2094, %v2092
  %v2527 = vpack.c.b16 %v2097, %v2095
  %v2528 = vpack.c.b16 %v2098, %v2096
  %v2529 = vpack.c.b16 %v2101, %v2099
  %v2530 = vpack.c.b16 %v2102, %v2100
  %v2531 = vpack.c.b16 %v2105, %v2103
  %v2532 = vpack.c.b16 %v2106, %v2104
  %v2533 = vpack.c.b16 %v2109, %v2107
  %v2534 = vpack.c.b16 %v2110, %v2108
  %v2535 = vpack.c.b16 %v2113, %v2111
  %v2536 = vpack.c.b16 %v2114, %v2112
  %v2537 = vpack.c.b16 %v2117, %v2115
  %v2538 = vpack.c.b16 %v2118, %v2116
  %v2539 = vpack.c.b16 %v2121, %v2119
  %v2540 = vpack.c.b16 %v2122, %v2120
  %v2541 = vpack.c.b16 %v2125, %v2123
  %v2542 = vpack.c.b16 %v2126, %v2124
  %v2543 = vpack.c.b16 %v2129, %v2127
  %v2544 = vpack.c.b16 %v2130, %v2128
  %v2545 = vpack.c.b16 %v2133, %v2131
  %v2546 = vpack.c.b16 %v2134, %v2132
  %v2547 = vpack.c.b16 %v2137, %v2135
  %v2548 = vpack.c.b16 %v2138, %v2136
  %v2549 = vpack.c.b16 %v2141, %v2139
  %v2550 = vpack.c.b16 %v2142, %v2140
  %v2551 = vpack.c.b16 %v2145, %v2143
  %v2552 = vpack.c.b16 %v2146, %v2144
  %v2553 = vpack.c.b16 %v2149, %v2147
  %v2554 = vpack.c.b16 %v2150, %v2148
  %v2555 = vpack.c.b16 %v2153, %v2151
  %v2556 = vpack.c.b16 %v2154, %v2152
  %v2557 = vpack.c.b16 %v2157, %v2155
  %v2558 = vpack.c.b16 %v2158, %v2156
  %v2559 = vpack.c.b16 %v2161, %v2159
  %v2560 = vpack.c.b16 %v2162, %v2160
  %v2561 = vpack.c.b16 %v2165, %v2163
  %v2562 = vpack.c.b16 %v2166, %v2164
  %v2563 = vpack.c.b16 %v2169, %v2167
  %v2564 = vpack.c.b16 %v2170, %v2168
  %v2565 = vpack.c.b16 %v2173, %v2171
  %v2566 = vpack.c.b16 %v2174, %v2172
  %v2567 = vpack.c.b16 %v2177, %v2175
  %v2568 = vpack.c.b16 %v2178, %v2176
  %v2569 = vpack.c.b16 %v2181, %v2179
  %v2570 = vpack.c.b16 %v2182, %v2180
  %v2571 = vpack.c.b16 %v2185, %v2183
  %v2572 = vpack.c.b16 %v2186, %v2184
  %v2573 = vpack.c.b16 %v2189, %v2187
  %v2574 = vpack.c.b16 %v2190, %v2188
  %2959 = vmatprep.subr.bf16.mxu0 %v2192
  %2960 = vmatpush1.bf16.msra.mxu0 %v2191
  %2961 = vmatprep.subr.bf16.mxu0 %v2194
  %2962 = vmatpush1.bf16.msra.mxu0 %v2193
  %2963 = vmatprep.subr.bf16.mxu0 %v2196
  %2964 = vmatpush1.bf16.msra.mxu0 %v2195
  %2965 = vmatprep.subr.bf16.mxu0 %v2198
  %2966 = vmatpush1.bf16.msra.mxu0 %v2197
  %2967 = vmatprep.subr.bf16.mxu0 %v2200
  %2968 = vmatpush1.bf16.msra.mxu0 %v2199
  %2969 = vmatprep.subr.bf16.mxu0 %v2202
  %2970 = vmatpush1.bf16.msra.mxu0 %v2201
  %2971 = vmatprep.subr.bf16.mxu0 %v2204
  %2972 = vmatpush1.bf16.msra.mxu0 %v2203
  %2973 = vmatprep.subr.bf16.mxu0 %v2206
  %2974 = vmatpush1.bf16.msra.mxu0 %v2205
  %2975 = vmatprep.subr.bf16.mxu0 %v2208
  %2976 = vmatpush1.bf16.msra.mxu0 %v2207
  %2977 = vmatprep.subr.bf16.mxu0 %v2210
  %2978 = vmatpush1.bf16.msra.mxu0 %v2209
  %2979 = vmatprep.subr.bf16.mxu0 %v2212
  %2980 = vmatpush1.bf16.msra.mxu0 %v2211
  %2981 = vmatprep.subr.bf16.mxu0 %v2214
  %2982 = vmatpush1.bf16.msra.mxu0 %v2213
  %2983 = vmatprep.subr.bf16.mxu0 %v2216
  %2984 = vmatpush1.bf16.msra.mxu0 %v2215
  %2985 = vmatprep.subr.bf16.mxu0 %v2218
  %2986 = vmatpush1.bf16.msra.mxu0 %v2217
  %2987 = vmatprep.subr.bf16.mxu0 %v2220
  %2988 = vmatpush1.bf16.msra.mxu0 %v2219
  %2989 = vmatprep.subr.bf16.mxu0 %v2222
  %2990 = vmatpush1.bf16.msra.mxu0 %v2221
  %2991 = vmatprep.mubr.bf16.mxu0 %v464
  %2992 = vmatmul.mubr.bf16.gmra.mrb[0].mxu0 %v463
  %v2993 = vpop.f32.mrb[0].mxu0
  %v2994 = vadd.f32 0.0, %v2993
  %v2995 = vpop.f32.mrb[0].mxu0
  %v2996 = vadd.f32 0.0, %v2995
  %v2997 = vpop.f32.mrb[0].mxu0
  %v2998 = vadd.f32 0.0, %v2997
  %v2999 = vpop.f32.mrb[0].mxu0
  %v3000 = vadd.f32 0.0, %v2999
  %3001 = vmatprep.mubr.bf16.mxu0 %v488
  %3002 = vmatmul.mubr.bf16.gmra.mrb[0].mxu0 %v487
  %v3003 = vpop.f32.mrb[0].mxu0
  %v3004 = vadd.f32 0.0, %v3003
  %v3005 = vpop.f32.mrb[0].mxu0
  %v3006 = vadd.f32 0.0, %v3005
  %v3007 = vpop.f32.mrb[0].mxu0
  %v3008 = vadd.f32 0.0, %v3007
  %v3009 = vpop.f32.mrb[0].mxu0
  %v3010 = vadd.f32 0.0, %v3009
  %3011 = vmatprep.mubr.bf16.mxu0 %v512
  %3012 = vmatmul.mubr.bf16.gmra.mrb[0].mxu0 %v511
  %v3013 = vpop.f32.mrb[0].mxu0
  %v3014 = vadd.f32 0.0, %v3013
  %v3015 = vpop.f32.mrb[0].mxu0
  %v3016 = vadd.f32 0.0, %v3015
  %v3017 = vpop.f32.mrb[0].mxu0
  %v3018 = vadd.f32 0.0, %v3017
  %v3019 = vpop.f32.mrb[0].mxu0
  %v3020 = vadd.f32 0.0, %v3019
  %3021 = vmatprep.mubr.bf16.mxu0 %v536
  %3022 = vmatmul.mubr.bf16.gmra.mrb[0].mxu0 %v535
  %v3023 = vpop.f32.mrb[0].mxu0
  %v3024 = vadd.f32 0.0, %v3023
  %v3025 = vpop.f32.mrb[0].mxu0
  %v3026 = vadd.f32 0.0, %v3025
  %v3027 = vpop.f32.mrb[0].mxu0
  %v3028 = vadd.f32 0.0, %v3027
  %v3029 = vpop.f32.mrb[0].mxu0
  %v3030 = vadd.f32 0.0, %v3029
  %3031 = vmatprep.mubr.bf16.mxu0 %v560
  %3032 = vmatmul.mubr.bf16.gmra.mrb[0].mxu0 %v559
  %v3033 = vpop.f32.mrb[0].mxu0
  %v3034 = vadd.f32 0.0, %v3033
  %v3035 = vpop.f32.mrb[0].mxu0
  %v3036 = vadd.f32 0.0, %v3035
  %v3037 = vpop.f32.mrb[0].mxu0
  %v3038 = vadd.f32 0.0, %v3037
  %v3039 = vpop.f32.mrb[0].mxu0
  %v3040 = vadd.f32 0.0, %v3039
  %3041 = vmatprep.mubr.bf16.mxu0 %v584
  %3042 = vmatmul.mubr.bf16.gmra.mrb[0].mxu0 %v583
  %v3043 = vpop.f32.mrb[0].mxu0
  %v3044 = vadd.f32 0.0, %v3043
  %v3045 = vpop.f32.mrb[0].mxu0
  %v3046 = vadd.f32 0.0, %v3045
  %v3047 = vpop.f32.mrb[0].mxu0
  %v3048 = vadd.f32 0.0, %v3047
  %v3049 = vpop.f32.mrb[0].mxu0
  %v3050 = vadd.f32 0.0, %v3049
  %3051 = vmatprep.mubr.bf16.mxu0 %v608
  %3052 = vmatmul.mubr.bf16.gmra.mrb[0].mxu0 %v607
  %v3053 = vpop.f32.mrb[0].mxu0
  %v3054 = vadd.f32 0.0, %v3053
  %v3055 = vpop.f32.mrb[0].mxu0
  %v3056 = vadd.f32 0.0, %v3055
  %v3057 = vpop.f32.mrb[0].mxu0
  %v3058 = vadd.f32 0.0, %v3057
  %v3059 = vpop.f32.mrb[0].mxu0
  %v3060 = vadd.f32 0.0, %v3059
  %3061 = vmatprep.mubr.bf16.mxu0 %v632
  %3062 = vmatmul.mubr.bf16.gmra.mrb[0].mxu0 %v631
  %v3063 = vpop.f32.mrb[0].mxu0
  %v3064 = vadd.f32 0.0, %v3063
  %v3065 = vpop.f32.mrb[0].mxu0
  %v3066 = vadd.f32 0.0, %v3065
  %v3067 = vpop.f32.mrb[0].mxu0
  %v3068 = vadd.f32 0.0, %v3067
  %v3069 = vpop.f32.mrb[0].mxu0
  %v3070 = vadd.f32 0.0, %v3069
  %3071 = vdwg.mxu0
  %3072 = vmatprep.subr.bf16.mxu0 %v2224
  %3073 = vmatpush1.bf16.msra.mxu0 %v2223
  %3074 = vmatprep.subr.bf16.mxu0 %v2226
  %3075 = vmatpush1.bf16.msra.mxu0 %v2225
  %3076 = vmatprep.subr.bf16.mxu0 %v2228
  %3077 = vmatpush1.bf16.msra.mxu0 %v2227
  %3078 = vmatprep.subr.bf16.mxu0 %v2230
  %3079 = vmatpush1.bf16.msra.mxu0 %v2229
  %3080 = vmatprep.subr.bf16.mxu0 %v2232
  %3081 = vmatpush1.bf16.msra.mxu0 %v2231
  %3082 = vmatprep.subr.bf16.mxu0 %v2234
  %3083 = vmatpush1.bf16.msra.mxu0 %v2233
  %3084 = vmatprep.subr.bf16.mxu0 %v2236
  %3085 = vmatpush1.bf16.msra.mxu0 %v2235
  %3086 = vmatprep.subr.bf16.mxu0 %v2238
  %3087 = vmatpush1.bf16.msra.mxu0 %v2237
  %3088 = vmatprep.subr.bf16.mxu0 %v2240
  %3089 = vmatpush1.bf16.msra.mxu0 %v2239
  %3090 = vmatprep.subr.bf16.mxu0 %v2242
  %3091 = vmatpush1.bf16.msra.mxu0 %v2241
  %3092 = vmatprep.subr.bf16.mxu0 %v2244
  %3093 = vmatpush1.bf16.msra.mxu0 %v2243
  %3094 = vmatprep.subr.bf16.mxu0 %v2246
  %3095 = vmatpush1.bf16.msra.mxu0 %v2245
  %3096 = vmatprep.subr.bf16.mxu0 %v2248
  %3097 = vmatpush1.bf16.msra.mxu0 %v2247
  %3098 = vmatprep.subr.bf16.mxu0 %v2250
  %3099 = vmatpush1.bf16.msra.mxu0 %v2249
  %3100 = vmatprep.subr.bf16.mxu0 %v2252
  %3101 = vmatpush1.bf16.msra.mxu0 %v2251
  %3102 = vmatprep.subr.bf16.mxu0 %v2254
  %3103 = vmatpush1.bf16.msra.mxu0 %v2253
  %3104 = vmatprep.mubr.bf16.mxu0 %v466
  %3105 = vmatmul.mubr.bf16.gmra.mrb[0].mxu0 %v465
  %v3106 = vpop.f32.mrb[0].mxu0
  %v3107 = vadd.f32 %v2994, %v3106
  %v3108 = vpop.f32.mrb[0].mxu0
  %v3109 = vadd.f32 %v2996, %v3108
  %v3110 = vpop.f32.mrb[0].mxu0
  %v3111 = vadd.f32 %v2998, %v3110
  %v3112 = vpop.f32.mrb[0].mxu0
  %v3113 = vadd.f32 %v3000, %v3112
  %3114 = vmatprep.mubr.bf16.mxu0 %v490
  %3115 = vmatmul.mubr.bf16.gmra.mrb[0].mxu0 %v489
  %v3116 = vpop.f32.mrb[0].mxu0
  %v3117 = vadd.f32 %v3004, %v3116
  %v3118 = vpop.f32.mrb[0].mxu0
  %v3119 = vadd.f32 %v3006, %v3118
  %v3120 = vpop.f32.mrb[0].mxu0
  %v3121 = vadd.f32 %v3008, %v3120
  %v3122 = vpop.f32.mrb[0].mxu0
  %v3123 = vadd.f32 %v3010, %v3122
  %3124 = vmatprep.mubr.bf16.mxu0 %v514
  %3125 = vmatmul.mubr.bf16.gmra.mrb[0].mxu0 %v513
  %v3126 = vpop.f32.mrb[0].mxu0
  %v3127 = vadd.f32 %v3014, %v3126
  %v3128 = vpop.f32.mrb[0].mxu0
  %v3129 = vadd.f32 %v3016, %v3128
  %v3130 = vpop.f32.mrb[0].mxu0
  %v3131 = vadd.f32 %v3018, %v3130
  %v3132 = vpop.f32.mrb[0].mxu0
  %v3133 = vadd.f32 %v3020, %v3132
  %3134 = vmatprep.mubr.bf16.mxu0 %v538
  %3135 = vmatmul.mubr.bf16.gmra.mrb[0].mxu0 %v537
  %v3136 = vpop.f32.mrb[0].mxu0
  %v3137 = vadd.f32 %v3024, %v3136
  %v3138 = vpop.f32.mrb[0].mxu0
  %v3139 = vadd.f32 %v3026, %v3138
  %v3140 = vpop.f32.mrb[0].mxu0
  %v3141 = vadd.f32 %v3028, %v3140
  %v3142 = vpop.f32.mrb[0].mxu0
  %v3143 = vadd.f32 %v3030, %v3142
  %3144 = vmatprep.mubr.bf16.mxu0 %v562
  %3145 = vmatmul.mubr.bf16.gmra.mrb[0].mxu0 %v561
  %v3146 = vpop.f32.mrb[0].mxu0
  %v3147 = vadd.f32 %v3034, %v3146
  %v3148 = vpop.f32.mrb[0].mxu0
  %v3149 = vadd.f32 %v3036, %v3148
  %v3150 = vpop.f32.mrb[0].mxu0
  %v3151 = vadd.f32 %v3038, %v3150
  %v3152 = vpop.f32.mrb[0].mxu0
  %v3153 = vadd.f32 %v3040, %v3152
  %3154 = vmatprep.mubr.bf16.mxu0 %v586
  %3155 = vmatmul.mubr.bf16.gmra.mrb[0].mxu0 %v585
  %v3156 = vpop.f32.mrb[0].mxu0
  %v3157 = vadd.f32 %v3044, %v3156
  %v3158 = vpop.f32.mrb[0].mxu0
  %v3159 = vadd.f32 %v3046, %v3158
  %v3160 = vpop.f32.mrb[0].mxu0
  %v3161 = vadd.f32 %v3048, %v3160
  %v3162 = vpop.f32.mrb[0].mxu0
  %v3163 = vadd.f32 %v3050, %v3162
  %3164 = vmatprep.mubr.bf16.mxu0 %v610
  %3165 = vmatmul.mubr.bf16.gmra.mrb[0].mxu0 %v609
  %v3166 = vpop.f32.mrb[0].mxu0
  %v3167 = vadd.f32 %v3054, %v3166
  %v3168 = vpop.f32.mrb[0].mxu0
  %v3169 = vadd.f32 %v3056, %v3168
  %v3170 = vpop.f32.mrb[0].mxu0
  %v3171 = vadd.f32 %v3058, %v3170
  %v3172 = vpop.f32.mrb[0].mxu0
  %v3173 = vadd.f32 %v3060, %v3172
  %3174 = vmatprep.mubr.bf16.mxu0 %v634
  %3175 = vmatmul.mubr.bf16.gmra.mrb[0].mxu0 %v633
  %v3176 = vpop.f32.mrb[0].mxu0
  %v3177 = vadd.f32 %v3064, %v3176
  %v3178 = vpop.f32.mrb[0].mxu0
  %v3179 = vadd.f32 %v3066, %v3178
  %v3180 = vpop.f32.mrb[0].mxu0
  %v3181 = vadd.f32 %v3068, %v3180
  %v3182 = vpop.f32.mrb[0].mxu0
  %v3183 = vadd.f32 %v3070, %v3182
  %3184 = vdwg.mxu0
  %3185 = vmatprep.subr.bf16.mxu0 %v2256
  %3186 = vmatpush1.bf16.msra.mxu0 %v2255
  %3187 = vmatprep.subr.bf16.mxu0 %v2258
  %3188 = vmatpush1.bf16.msra.mxu0 %v2257
  %3189 = vmatprep.subr.bf16.mxu0 %v2260
  %3190 = vmatpush1.bf16.msra.mxu0 %v2259
  %3191 = vmatprep.subr.bf16.mxu0 %v2262
  %3192 = vmatpush1.bf16.msra.mxu0 %v2261
  %3193 = vmatprep.subr.bf16.mxu0 %v2264
  %3194 = vmatpush1.bf16.msra.mxu0 %v2263
  %3195 = vmatprep.subr.bf16.mxu0 %v2266
  %3196 = vmatpush1.bf16.msra.mxu0 %v2265
  %3197 = vmatprep.subr.bf16.mxu0 %v2268
  %3198 = vmatpush1.bf16.msra.mxu0 %v2267
  %3199 = vmatprep.subr.bf16.mxu0 %v2270
  %3200 = vmatpush1.bf16.msra.mxu0 %v2269
  %3201 = vmatprep.subr.bf16.mxu0 %v2272
  %3202 = vmatpush1.bf16.msra.mxu0 %v2271
  %3203 = vmatprep.subr.bf16.mxu0 %v2274
  %3204 = vmatpush1.bf16.msra.mxu0 %v2273
  %3205 = vmatprep.subr.bf16.mxu0 %v2276
  %3206 = vmatpush1.bf16.msra.mxu0 %v2275
  %3207 = vmatprep.subr.bf16.mxu0 %v2278
  %3208 = vmatpush1.bf16.msra.mxu0 %v2277
  %3209 = vmatprep.subr.bf16.mxu0 %v2280
  %3210 = vmatpush1.bf16.msra.mxu0 %v2279
  %3211 = vmatprep.subr.bf16.mxu0 %v2282
  %3212 = vmatpush1.bf16.msra.mxu0 %v2281
  %3213 = vmatprep.subr.bf16.mxu0 %v2284
  %3214 = vmatpush1.bf16.msra.mxu0 %v2283
  %3215 = vmatprep.subr.bf16.mxu0 %v2286
  %3216 = vmatpush1.bf16.msra.mxu0 %v2285
  %3217 = vmatprep.mubr.bf16.mxu0 %v468
  %3218 = vmatmul.mubr.bf16.gmra.mrb[0].mxu0 %v467
  %v3219 = vpop.f32.mrb[0].mxu0
  %v3220 = vadd.f32 %v3107, %v3219
  %v3221 = vpop.f32.mrb[0].mxu0
  %v3222 = vadd.f32 %v3109, %v3221
  %v3223 = vpop.f32.mrb[0].mxu0
  %v3224 = vadd.f32 %v3111, %v3223
  %v3225 = vpop.f32.mrb[0].mxu0
  %v3226 = vadd.f32 %v3113, %v3225
  %3227 = vmatprep.mubr.bf16.mxu0 %v492
  %3228 = vmatmul.mubr.bf16.gmra.mrb[0].mxu0 %v491
  %v3229 = vpop.f32.mrb[0].mxu0
  %v3230 = vadd.f32 %v3117, %v3229
  %v3231 = vpop.f32.mrb[0].mxu0
  %v3232 = vadd.f32 %v3119, %v3231
  %v3233 = vpop.f32.mrb[0].mxu0
  %v3234 = vadd.f32 %v3121, %v3233
  %v3235 = vpop.f32.mrb[0].mxu0
  %v3236 = vadd.f32 %v3123, %v3235
  %3237 = vmatprep.mubr.bf16.mxu0 %v516
  %3238 = vmatmul.mubr.bf16.gmra.mrb[0].mxu0 %v515
  %v3239 = vpop.f32.mrb[0].mxu0
  %v3240 = vadd.f32 %v3127, %v3239
  %v3241 = vpop.f32.mrb[0].mxu0
  %v3242 = vadd.f32 %v3129, %v3241
  %v3243 = vpop.f32.mrb[0].mxu0
  %v3244 = vadd.f32 %v3131, %v3243
  %v3245 = vpop.f32.mrb[0].mxu0
  %v3246 = vadd.f32 %v3133, %v3245
  %3247 = vmatprep.mubr.bf16.mxu0 %v540
  %3248 = vmatmul.mubr.bf16.gmra.mrb[0].mxu0 %v539
  %v3249 = vpop.f32.mrb[0].mxu0
  %v3250 = vadd.f32 %v3137, %v3249
  %v3251 = vpop.f32.mrb[0].mxu0
  %v3252 = vadd.f32 %v3139, %v3251
  %v3253 = vpop.f32.mrb[0].mxu0
  %v3254 = vadd.f32 %v3141, %v3253
  %v3255 = vpop.f32.mrb[0].mxu0
  %v3256 = vadd.f32 %v3143, %v3255
  %3257 = vmatprep.mubr.bf16.mxu0 %v564
  %3258 = vmatmul.mubr.bf16.gmra.mrb[0].mxu0 %v563
  %v3259 = vpop.f32.mrb[0].mxu0
  %v3260 = vadd.f32 %v3147, %v3259
  %v3261 = vpop.f32.mrb[0].mxu0
  %v3262 = vadd.f32 %v3149, %v3261
  %v3263 = vpop.f32.mrb[0].mxu0
  %v3264 = vadd.f32 %v3151, %v3263
  %v3265 = vpop.f32.mrb[0].mxu0
  %v3266 = vadd.f32 %v3153, %v3265
  %3267 = vmatprep.mubr.bf16.mxu0 %v588
  %3268 = vmatmul.mubr.bf16.gmra.mrb[0].mxu0 %v587
  %v3269 = vpop.f32.mrb[0].mxu0
  %v3270 = vadd.f32 %v3157, %v3269
  %v3271 = vpop.f32.mrb[0].mxu0
  %v3272 = vadd.f32 %v3159, %v3271
  %v3273 = vpop.f32.mrb[0].mxu0
  %v3274 = vadd.f32 %v3161, %v3273
  %v3275 = vpop.f32.mrb[0].mxu0
  %v3276 = vadd.f32 %v3163, %v3275
  %3277 = vmatprep.mubr.bf16.mxu0 %v612
  %3278 = vmatmul.mubr.bf16.gmra.mrb[0].mxu0 %v611
  %v3279 = vpop.f32.mrb[0].mxu0
  %v3280 = vadd.f32 %v3167, %v3279
  %v3281 = vpop.f32.mrb[0].mxu0
  %v3282 = vadd.f32 %v3169, %v3281
  %v3283 = vpop.f32.mrb[0].mxu0
  %v3284 = vadd.f32 %v3171, %v3283
  %v3285 = vpop.f32.mrb[0].mxu0
  %v3286 = vadd.f32 %v3173, %v3285
  %3287 = vmatprep.mubr.bf16.mxu0 %v636
  %3288 = vmatmul.mubr.bf16.gmra.mrb[0].mxu0 %v635
  %v3289 = vpop.f32.mrb[0].mxu0
  %v3290 = vadd.f32 %v3177, %v3289
  %v3291 = vpop.f32.mrb[0].mxu0
  %v3292 = vadd.f32 %v3179, %v3291
  %v3293 = vpop.f32.mrb[0].mxu0
  %v3294 = vadd.f32 %v3181, %v3293
  %v3295 = vpop.f32.mrb[0].mxu0
  %v3296 = vadd.f32 %v3183, %v3295
  %3297 = vdwg.mxu0
  %3298 = vmatprep.subr.bf16.mxu0 %v2288
  %3299 = vmatpush1.bf16.msra.mxu0 %v2287
  %3300 = vmatprep.subr.bf16.mxu0 %v2290
  %3301 = vmatpush1.bf16.msra.mxu0 %v2289
  %3302 = vmatprep.subr.bf16.mxu0 %v2292
  %3303 = vmatpush1.bf16.msra.mxu0 %v2291
  %3304 = vmatprep.subr.bf16.mxu0 %v2294
  %3305 = vmatpush1.bf16.msra.mxu0 %v2293
  %3306 = vmatprep.subr.bf16.mxu0 %v2296
  %3307 = vmatpush1.bf16.msra.mxu0 %v2295
  %3308 = vmatprep.subr.bf16.mxu0 %v2298
  %3309 = vmatpush1.bf16.msra.mxu0 %v2297
  %3310 = vmatprep.subr.bf16.mxu0 %v2300
  %3311 = vmatpush1.bf16.msra.mxu0 %v2299
  %3312 = vmatprep.subr.bf16.mxu0 %v2302
  %3313 = vmatpush1.bf16.msra.mxu0 %v2301
  %3314 = vmatprep.subr.bf16.mxu0 %v2304
  %3315 = vmatpush1.bf16.msra.mxu0 %v2303
  %3316 = vmatprep.subr.bf16.mxu0 %v2306
  %3317 = vmatpush1.bf16.msra.mxu0 %v2305
  %3318 = vmatprep.subr.bf16.mxu0 %v2308
  %3319 = vmatpush1.bf16.msra.mxu0 %v2307
  %3320 = vmatprep.subr.bf16.mxu0 %v2310
  %3321 = vmatpush1.bf16.msra.mxu0 %v2309
  %3322 = vmatprep.subr.bf16.mxu0 %v2312
  %3323 = vmatpush1.bf16.msra.mxu0 %v2311
  %3324 = vmatprep.subr.bf16.mxu0 %v2314
  %3325 = vmatpush1.bf16.msra.mxu0 %v2313
  %3326 = vmatprep.subr.bf16.mxu0 %v2316
  %3327 = vmatpush1.bf16.msra.mxu0 %v2315
  %3328 = vmatprep.subr.bf16.mxu0 %v2318
  %3329 = vmatpush1.bf16.msra.mxu0 %v2317
  %3330 = vmatprep.mubr.bf16.mxu0 %v470
  %3331 = vmatmul.mubr.bf16.gmra.mrb[0].mxu0 %v469
  %v3332 = vpop.f32.mrb[0].mxu0
  %v3333 = vadd.f32 %v3220, %v3332
  %v3334 = vpop.f32.mrb[0].mxu0
  %v3335 = vadd.f32 %v3222, %v3334
  %v3336 = vpop.f32.mrb[0].mxu0
  %v3337 = vadd.f32 %v3224, %v3336
  %v3338 = vpop.f32.mrb[0].mxu0
  %v3339 = vadd.f32 %v3226, %v3338
  %3340 = vmatprep.mubr.bf16.mxu0 %v494
  %3341 = vmatmul.mubr.bf16.gmra.mrb[0].mxu0 %v493
  %v3342 = vpop.f32.mrb[0].mxu0
  %v3343 = vadd.f32 %v3230, %v3342
  %v3344 = vpop.f32.mrb[0].mxu0
  %v3345 = vadd.f32 %v3232, %v3344
  %v3346 = vpop.f32.mrb[0].mxu0
  %v3347 = vadd.f32 %v3234, %v3346
  %v3348 = vpop.f32.mrb[0].mxu0
  %v3349 = vadd.f32 %v3236, %v3348
  %3350 = vmatprep.mubr.bf16.mxu0 %v518
  %3351 = vmatmul.mubr.bf16.gmra.mrb[0].mxu0 %v517
  %v3352 = vpop.f32.mrb[0].mxu0
  %v3353 = vadd.f32 %v3240, %v3352
  %v3354 = vpop.f32.mrb[0].mxu0
  %v3355 = vadd.f32 %v3242, %v3354
  %v3356 = vpop.f32.mrb[0].mxu0
  %v3357 = vadd.f32 %v3244, %v3356
  %v3358 = vpop.f32.mrb[0].mxu0
  %v3359 = vadd.f32 %v3246, %v3358
  %3360 = vmatprep.mubr.bf16.mxu0 %v542
  %3361 = vmatmul.mubr.bf16.gmra.mrb[0].mxu0 %v541
  %v3362 = vpop.f32.mrb[0].mxu0
  %v3363 = vadd.f32 %v3250, %v3362
  %v3364 = vpop.f32.mrb[0].mxu0
  %v3365 = vadd.f32 %v3252, %v3364
  %v3366 = vpop.f32.mrb[0].mxu0
  %v3367 = vadd.f32 %v3254, %v3366
  %v3368 = vpop.f32.mrb[0].mxu0
  %v3369 = vadd.f32 %v3256, %v3368
  %3370 = vmatprep.mubr.bf16.mxu0 %v566
  %3371 = vmatmul.mubr.bf16.gmra.mrb[0].mxu0 %v565
  %v3372 = vpop.f32.mrb[0].mxu0
  %v3373 = vadd.f32 %v3260, %v3372
  %v3374 = vpop.f32.mrb[0].mxu0
  %v3375 = vadd.f32 %v3262, %v3374
  %v3376 = vpop.f32.mrb[0].mxu0
  %v3377 = vadd.f32 %v3264, %v3376
  %v3378 = vpop.f32.mrb[0].mxu0
  %v3379 = vadd.f32 %v3266, %v3378
  %3380 = vmatprep.mubr.bf16.mxu0 %v590
  %3381 = vmatmul.mubr.bf16.gmra.mrb[0].mxu0 %v589
  %v3382 = vpop.f32.mrb[0].mxu0
  %v3383 = vadd.f32 %v3270, %v3382
  %v3384 = vpop.f32.mrb[0].mxu0
  %v3385 = vadd.f32 %v3272, %v3384
  %v3386 = vpop.f32.mrb[0].mxu0
  %v3387 = vadd.f32 %v3274, %v3386
  %v3388 = vpop.f32.mrb[0].mxu0
  %v3389 = vadd.f32 %v3276, %v3388
  %3390 = vmatprep.mubr.bf16.mxu0 %v614
  %3391 = vmatmul.mubr.bf16.gmra.mrb[0].mxu0 %v613
  %v3392 = vpop.f32.mrb[0].mxu0
  %v3393 = vadd.f32 %v3280, %v3392
  %v3394 = vpop.f32.mrb[0].mxu0
  %v3395 = vadd.f32 %v3282, %v3394
  %v3396 = vpop.f32.mrb[0].mxu0
  %v3397 = vadd.f32 %v3284, %v3396
  %v3398 = vpop.f32.mrb[0].mxu0
  %v3399 = vadd.f32 %v3286, %v3398
  %3400 = vmatprep.mubr.bf16.mxu0 %v638
  %3401 = vmatmul.mubr.bf16.gmra.mrb[0].mxu0 %v637
  %v3402 = vpop.f32.mrb[0].mxu0
  %v3403 = vadd.f32 %v3290, %v3402
  %v3404 = vpop.f32.mrb[0].mxu0
  %v3405 = vadd.f32 %v3292, %v3404
  %v3406 = vpop.f32.mrb[0].mxu0
  %v3407 = vadd.f32 %v3294, %v3406
  %v3408 = vpop.f32.mrb[0].mxu0
  %v3409 = vadd.f32 %v3296, %v3408
  %3410 = vdwg.mxu0
  %3411 = vmatprep.subr.bf16.mxu0 %v2320
  %3412 = vmatpush1.bf16.msra.mxu0 %v2319
  %3413 = vmatprep.subr.bf16.mxu0 %v2322
  %3414 = vmatpush1.bf16.msra.mxu0 %v2321
  %3415 = vmatprep.subr.bf16.mxu0 %v2324
  %3416 = vmatpush1.bf16.msra.mxu0 %v2323
  %3417 = vmatprep.subr.bf16.mxu0 %v2326
  %3418 = vmatpush1.bf16.msra.mxu0 %v2325
  %3419 = vmatprep.subr.bf16.mxu0 %v2328
  %3420 = vmatpush1.bf16.msra.mxu0 %v2327
  %3421 = vmatprep.subr.bf16.mxu0 %v2330
  %3422 = vmatpush1.bf16.msra.mxu0 %v2329
  %3423 = vmatprep.subr.bf16.mxu0 %v2332
  %3424 = vmatpush1.bf16.msra.mxu0 %v2331
  %3425 = vmatprep.subr.bf16.mxu0 %v2334
  %3426 = vmatpush1.bf16.msra.mxu0 %v2333
  %3427 = vmatprep.subr.bf16.mxu0 %v2336
  %3428 = vmatpush1.bf16.msra.mxu0 %v2335
  %3429 = vmatprep.subr.bf16.mxu0 %v2338
  %3430 = vmatpush1.bf16.msra.mxu0 %v2337
  %3431 = vmatprep.subr.bf16.mxu0 %v2340
  %3432 = vmatpush1.bf16.msra.mxu0 %v2339
  %3433 = vmatprep.subr.bf16.mxu0 %v2342
  %3434 = vmatpush1.bf16.msra.mxu0 %v2341
  %3435 = vmatprep.subr.bf16.mxu0 %v2344
  %3436 = vmatpush1.bf16.msra.mxu0 %v2343
  %3437 = vmatprep.subr.bf16.mxu0 %v2346
  %3438 = vmatpush1.bf16.msra.mxu0 %v2345
  %3439 = vmatprep.subr.bf16.mxu0 %v2348
  %3440 = vmatpush1.bf16.msra.mxu0 %v2347
  %3441 = vmatprep.subr.bf16.mxu0 %v2350
  %3442 = vmatpush1.bf16.msra.mxu0 %v2349
  %3443 = vmatprep.mubr.bf16.mxu0 %v472
  %3444 = vmatmul.mubr.bf16.gmra.mrb[0].mxu0 %v471
  %v3445 = vpop.f32.mrb[0].mxu0
  %v3446 = vadd.f32 %v3333, %v3445
  %v3447 = vpop.f32.mrb[0].mxu0
  %v3448 = vadd.f32 %v3335, %v3447
  %v3449 = vpop.f32.mrb[0].mxu0
  %v3450 = vadd.f32 %v3337, %v3449
  %v3451 = vpop.f32.mrb[0].mxu0
  %v3452 = vadd.f32 %v3339, %v3451
  %3453 = vmatprep.mubr.bf16.mxu0 %v496
  %3454 = vmatmul.mubr.bf16.gmra.mrb[0].mxu0 %v495
  %v3455 = vpop.f32.mrb[0].mxu0
  %v3456 = vadd.f32 %v3343, %v3455
  %v3457 = vpop.f32.mrb[0].mxu0
  %v3458 = vadd.f32 %v3345, %v3457
  %v3459 = vpop.f32.mrb[0].mxu0
  %v3460 = vadd.f32 %v3347, %v3459
  %v3461 = vpop.f32.mrb[0].mxu0
  %v3462 = vadd.f32 %v3349, %v3461
  %3463 = vmatprep.mubr.bf16.mxu0 %v520
  %3464 = vmatmul.mubr.bf16.gmra.mrb[0].mxu0 %v519
  %v3465 = vpop.f32.mrb[0].mxu0
  %v3466 = vadd.f32 %v3353, %v3465
  %v3467 = vpop.f32.mrb[0].mxu0
  %v3468 = vadd.f32 %v3355, %v3467
  %v3469 = vpop.f32.mrb[0].mxu0
  %v3470 = vadd.f32 %v3357, %v3469
  %v3471 = vpop.f32.mrb[0].mxu0
  %v3472 = vadd.f32 %v3359, %v3471
  %3473 = vmatprep.mubr.bf16.mxu0 %v544
  %3474 = vmatmul.mubr.bf16.gmra.mrb[0].mxu0 %v543
  %v3475 = vpop.f32.mrb[0].mxu0
  %v3476 = vadd.f32 %v3363, %v3475
  %v3477 = vpop.f32.mrb[0].mxu0
  %v3478 = vadd.f32 %v3365, %v3477
  %v3479 = vpop.f32.mrb[0].mxu0
  %v3480 = vadd.f32 %v3367, %v3479
  %v3481 = vpop.f32.mrb[0].mxu0
  %v3482 = vadd.f32 %v3369, %v3481
  %3483 = vmatprep.mubr.bf16.mxu0 %v568
  %3484 = vmatmul.mubr.bf16.gmra.mrb[0].mxu0 %v567
  %v3485 = vpop.f32.mrb[0].mxu0
  %v3486 = vadd.f32 %v3373, %v3485
  %v3487 = vpop.f32.mrb[0].mxu0
  %v3488 = vadd.f32 %v3375, %v3487
  %v3489 = vpop.f32.mrb[0].mxu0
  %v3490 = vadd.f32 %v3377, %v3489
  %v3491 = vpop.f32.mrb[0].mxu0
  %v3492 = vadd.f32 %v3379, %v3491
  %3493 = vmatprep.mubr.bf16.mxu0 %v592
  %3494 = vmatmul.mubr.bf16.gmra.mrb[0].mxu0 %v591
  %v3495 = vpop.f32.mrb[0].mxu0
  %v3496 = vadd.f32 %v3383, %v3495
  %v3497 = vpop.f32.mrb[0].mxu0
  %v3498 = vadd.f32 %v3385, %v3497
  %v3499 = vpop.f32.mrb[0].mxu0
  %v3500 = vadd.f32 %v3387, %v3499
  %v3501 = vpop.f32.mrb[0].mxu0
  %v3502 = vadd.f32 %v3389, %v3501
  %3503 = vmatprep.mubr.bf16.mxu0 %v616
  %3504 = vmatmul.mubr.bf16.gmra.mrb[0].mxu0 %v615
  %v3505 = vpop.f32.mrb[0].mxu0
  %v3506 = vadd.f32 %v3393, %v3505
  %v3507 = vpop.f32.mrb[0].mxu0
  %v3508 = vadd.f32 %v3395, %v3507
  %v3509 = vpop.f32.mrb[0].mxu0
  %v3510 = vadd.f32 %v3397, %v3509
  %v3511 = vpop.f32.mrb[0].mxu0
  %v3512 = vadd.f32 %v3399, %v3511
  %3513 = vmatprep.mubr.bf16.mxu0 %v640
  %3514 = vmatmul.mubr.bf16.gmra.mrb[0].mxu0 %v639
  %v3515 = vpop.f32.mrb[0].mxu0
  %v3516 = vadd.f32 %v3403, %v3515
  %v3517 = vpop.f32.mrb[0].mxu0
  %v3518 = vadd.f32 %v3405, %v3517
  %v3519 = vpop.f32.mrb[0].mxu0
  %v3520 = vadd.f32 %v3407, %v3519
  %v3521 = vpop.f32.mrb[0].mxu0
  %v3522 = vadd.f32 %v3409, %v3521
  %3523 = vdwg.mxu0
  %3524 = vmatprep.subr.bf16.mxu0 %v2352
  %3525 = vmatpush1.bf16.msra.mxu0 %v2351
  %3526 = vmatprep.subr.bf16.mxu0 %v2354
  %3527 = vmatpush1.bf16.msra.mxu0 %v2353
  %3528 = vmatprep.subr.bf16.mxu0 %v2356
  %3529 = vmatpush1.bf16.msra.mxu0 %v2355
  %3530 = vmatprep.subr.bf16.mxu0 %v2358
  %3531 = vmatpush1.bf16.msra.mxu0 %v2357
  %3532 = vmatprep.subr.bf16.mxu0 %v2360
  %3533 = vmatpush1.bf16.msra.mxu0 %v2359
  %3534 = vmatprep.subr.bf16.mxu0 %v2362
  %3535 = vmatpush1.bf16.msra.mxu0 %v2361
  %3536 = vmatprep.subr.bf16.mxu0 %v2364
  %3537 = vmatpush1.bf16.msra.mxu0 %v2363
  %3538 = vmatprep.subr.bf16.mxu0 %v2366
  %3539 = vmatpush1.bf16.msra.mxu0 %v2365
  %3540 = vmatprep.subr.bf16.mxu0 %v2368
  %3541 = vmatpush1.bf16.msra.mxu0 %v2367
  %3542 = vmatprep.subr.bf16.mxu0 %v2370
  %3543 = vmatpush1.bf16.msra.mxu0 %v2369
  %3544 = vmatprep.subr.bf16.mxu0 %v2372
  %3545 = vmatpush1.bf16.msra.mxu0 %v2371
  %3546 = vmatprep.subr.bf16.mxu0 %v2374
  %3547 = vmatpush1.bf16.msra.mxu0 %v2373
  %3548 = vmatprep.subr.bf16.mxu0 %v2376
  %3549 = vmatpush1.bf16.msra.mxu0 %v2375
  %3550 = vmatprep.subr.bf16.mxu0 %v2378
  %3551 = vmatpush1.bf16.msra.mxu0 %v2377
  %3552 = vmatprep.subr.bf16.mxu0 %v2380
  %3553 = vmatpush1.bf16.msra.mxu0 %v2379
  %3554 = vmatprep.subr.bf16.mxu0 %v2382
  %3555 = vmatpush1.bf16.msra.mxu0 %v2381
  %3556 = vmatprep.mubr.bf16.mxu0 %v474
  %3557 = vmatmul.mubr.bf16.gmra.mrb[0].mxu0 %v473
  %v3558 = vpop.f32.mrb[0].mxu0
  %v3559 = vadd.f32 %v3446, %v3558
  %v3560 = vpop.f32.mrb[0].mxu0
  %v3561 = vadd.f32 %v3448, %v3560
  %v3562 = vpop.f32.mrb[0].mxu0
  %v3563 = vadd.f32 %v3450, %v3562
  %v3564 = vpop.f32.mrb[0].mxu0
  %v3565 = vadd.f32 %v3452, %v3564
  %3566 = vmatprep.mubr.bf16.mxu0 %v498
  %3567 = vmatmul.mubr.bf16.gmra.mrb[0].mxu0 %v497
  %v3568 = vpop.f32.mrb[0].mxu0
  %v3569 = vadd.f32 %v3456, %v3568
  %v3570 = vpop.f32.mrb[0].mxu0
  %v3571 = vadd.f32 %v3458, %v3570
  %v3572 = vpop.f32.mrb[0].mxu0
  %v3573 = vadd.f32 %v3460, %v3572
  %v3574 = vpop.f32.mrb[0].mxu0
  %v3575 = vadd.f32 %v3462, %v3574
  %3576 = vmatprep.mubr.bf16.mxu0 %v522
  %3577 = vmatmul.mubr.bf16.gmra.mrb[0].mxu0 %v521
  %v3578 = vpop.f32.mrb[0].mxu0
  %v3579 = vadd.f32 %v3466, %v3578
  %v3580 = vpop.f32.mrb[0].mxu0
  %v3581 = vadd.f32 %v3468, %v3580
  %v3582 = vpop.f32.mrb[0].mxu0
  %v3583 = vadd.f32 %v3470, %v3582
  %v3584 = vpop.f32.mrb[0].mxu0
  %v3585 = vadd.f32 %v3472, %v3584
  %3586 = vmatprep.mubr.bf16.mxu0 %v546
  %3587 = vmatmul.mubr.bf16.gmra.mrb[0].mxu0 %v545
  %v3588 = vpop.f32.mrb[0].mxu0
  %v3589 = vadd.f32 %v3476, %v3588
  %v3590 = vpop.f32.mrb[0].mxu0
  %v3591 = vadd.f32 %v3478, %v3590
  %v3592 = vpop.f32.mrb[0].mxu0
  %v3593 = vadd.f32 %v3480, %v3592
  %v3594 = vpop.f32.mrb[0].mxu0
  %v3595 = vadd.f32 %v3482, %v3594
  %3596 = vmatprep.mubr.bf16.mxu0 %v570
  %3597 = vmatmul.mubr.bf16.gmra.mrb[0].mxu0 %v569
  %v3598 = vpop.f32.mrb[0].mxu0
  %v3599 = vadd.f32 %v3486, %v3598
  %v3600 = vpop.f32.mrb[0].mxu0
  %v3601 = vadd.f32 %v3488, %v3600
  %v3602 = vpop.f32.mrb[0].mxu0
  %v3603 = vadd.f32 %v3490, %v3602
  %v3604 = vpop.f32.mrb[0].mxu0
  %v3605 = vadd.f32 %v3492, %v3604
  %3606 = vmatprep.mubr.bf16.mxu0 %v594
  %3607 = vmatmul.mubr.bf16.gmra.mrb[0].mxu0 %v593
  %v3608 = vpop.f32.mrb[0].mxu0
  %v3609 = vadd.f32 %v3496, %v3608
  %v3610 = vpop.f32.mrb[0].mxu0
  %v3611 = vadd.f32 %v3498, %v3610
  %v3612 = vpop.f32.mrb[0].mxu0
  %v3613 = vadd.f32 %v3500, %v3612
  %v3614 = vpop.f32.mrb[0].mxu0
  %v3615 = vadd.f32 %v3502, %v3614
  %3616 = vmatprep.mubr.bf16.mxu0 %v618
  %3617 = vmatmul.mubr.bf16.gmra.mrb[0].mxu0 %v617
  %v3618 = vpop.f32.mrb[0].mxu0
  %v3619 = vadd.f32 %v3506, %v3618
  %v3620 = vpop.f32.mrb[0].mxu0
  %v3621 = vadd.f32 %v3508, %v3620
  %v3622 = vpop.f32.mrb[0].mxu0
  %v3623 = vadd.f32 %v3510, %v3622
  %v3624 = vpop.f32.mrb[0].mxu0
  %v3625 = vadd.f32 %v3512, %v3624
  %3626 = vmatprep.mubr.bf16.mxu0 %v642
  %3627 = vmatmul.mubr.bf16.gmra.mrb[0].mxu0 %v641
  %v3628 = vpop.f32.mrb[0].mxu0
  %v3629 = vadd.f32 %v3516, %v3628
  %v3630 = vpop.f32.mrb[0].mxu0
  %v3631 = vadd.f32 %v3518, %v3630
  %v3632 = vpop.f32.mrb[0].mxu0
  %v3633 = vadd.f32 %v3520, %v3632
  %v3634 = vpop.f32.mrb[0].mxu0
  %v3635 = vadd.f32 %v3522, %v3634
  %3636 = vdwg.mxu0
  %3637 = vmatprep.subr.bf16.mxu0 %v2384
  %3638 = vmatpush1.bf16.msra.mxu0 %v2383
  %3639 = vmatprep.subr.bf16.mxu0 %v2386
  %3640 = vmatpush1.bf16.msra.mxu0 %v2385
  %3641 = vmatprep.subr.bf16.mxu0 %v2388
  %3642 = vmatpush1.bf16.msra.mxu0 %v2387
  %3643 = vmatprep.subr.bf16.mxu0 %v2390
  %3644 = vmatpush1.bf16.msra.mxu0 %v2389
  %3645 = vmatprep.subr.bf16.mxu0 %v2392
  %3646 = vmatpush1.bf16.msra.mxu0 %v2391
  %3647 = vmatprep.subr.bf16.mxu0 %v2394
  %3648 = vmatpush1.bf16.msra.mxu0 %v2393
  %3649 = vmatprep.subr.bf16.mxu0 %v2396
  %3650 = vmatpush1.bf16.msra.mxu0 %v2395
  %3651 = vmatprep.subr.bf16.mxu0 %v2398
  %3652 = vmatpush1.bf16.msra.mxu0 %v2397
  %3653 = vmatprep.subr.bf16.mxu0 %v2400
  %3654 = vmatpush1.bf16.msra.mxu0 %v2399
  %3655 = vmatprep.subr.bf16.mxu0 %v2402
  %3656 = vmatpush1.bf16.msra.mxu0 %v2401
  %3657 = vmatprep.subr.bf16.mxu0 %v2404
  %3658 = vmatpush1.bf16.msra.mxu0 %v2403
  %3659 = vmatprep.subr.bf16.mxu0 %v2406
  %3660 = vmatpush1.bf16.msra.mxu0 %v2405
  %3661 = vmatprep.subr.bf16.mxu0 %v2408
  %3662 = vmatpush1.bf16.msra.mxu0 %v2407
  %3663 = vmatprep.subr.bf16.mxu0 %v2410
  %3664 = vmatpush1.bf16.msra.mxu0 %v2409
  %3665 = vmatprep.subr.bf16.mxu0 %v2412
  %3666 = vmatpush1.bf16.msra.mxu0 %v2411
  %3667 = vmatprep.subr.bf16.mxu0 %v2414
  %3668 = vmatpush1.bf16.msra.mxu0 %v2413
  %3669 = vmatprep.mubr.bf16.mxu0 %v476
  %3670 = vmatmul.mubr.bf16.gmra.mrb[0].mxu0 %v475
  %v3671 = vpop.f32.mrb[0].mxu0
  %v3672 = vadd.f32 %v3559, %v3671
  %v3673 = vpop.f32.mrb[0].mxu0
  %v3674 = vadd.f32 %v3561, %v3673
  %v3675 = vpop.f32.mrb[0].mxu0
  %v3676 = vadd.f32 %v3563, %v3675
  %v3677 = vpop.f32.mrb[0].mxu0
  %v3678 = vadd.f32 %v3565, %v3677
  %3679 = vmatprep.mubr.bf16.mxu0 %v500
  %3680 = vmatmul.mubr.bf16.gmra.mrb[0].mxu0 %v499
  %v3681 = vpop.f32.mrb[0].mxu0
  %v3682 = vadd.f32 %v3569, %v3681
  %v3683 = vpop.f32.mrb[0].mxu0
  %v3684 = vadd.f32 %v3571, %v3683
  %v3685 = vpop.f32.mrb[0].mxu0
  %v3686 = vadd.f32 %v3573, %v3685
  %v3687 = vpop.f32.mrb[0].mxu0
  %v3688 = vadd.f32 %v3575, %v3687
  %3689 = vmatprep.mubr.bf16.mxu0 %v524
  %3690 = vmatmul.mubr.bf16.gmra.mrb[0].mxu0 %v523
  %v3691 = vpop.f32.mrb[0].mxu0
  %v3692 = vadd.f32 %v3579, %v3691
  %v3693 = vpop.f32.mrb[0].mxu0
  %v3694 = vadd.f32 %v3581, %v3693
  %v3695 = vpop.f32.mrb[0].mxu0
  %v3696 = vadd.f32 %v3583, %v3695
  %v3697 = vpop.f32.mrb[0].mxu0
  %v3698 = vadd.f32 %v3585, %v3697
  %3699 = vmatprep.mubr.bf16.mxu0 %v548
  %3700 = vmatmul.mubr.bf16.gmra.mrb[0].mxu0 %v547
  %v3701 = vpop.f32.mrb[0].mxu0
  %v3702 = vadd.f32 %v3589, %v3701
  %v3703 = vpop.f32.mrb[0].mxu0
  %v3704 = vadd.f32 %v3591, %v3703
  %v3705 = vpop.f32.mrb[0].mxu0
  %v3706 = vadd.f32 %v3593, %v3705
  %v3707 = vpop.f32.mrb[0].mxu0
  %v3708 = vadd.f32 %v3595, %v3707
  %3709 = vmatprep.mubr.bf16.mxu0 %v572
  %3710 = vmatmul.mubr.bf16.gmra.mrb[0].mxu0 %v571
  %v3711 = vpop.f32.mrb[0].mxu0
  %v3712 = vadd.f32 %v3599, %v3711
  %v3713 = vpop.f32.mrb[0].mxu0
  %v3714 = vadd.f32 %v3601, %v3713
  %v3715 = vpop.f32.mrb[0].mxu0
  %v3716 = vadd.f32 %v3603, %v3715
  %v3717 = vpop.f32.mrb[0].mxu0
  %v3718 = vadd.f32 %v3605, %v3717
  %3719 = vmatprep.mubr.bf16.mxu0 %v596
  %3720 = vmatmul.mubr.bf16.gmra.mrb[0].mxu0 %v595
  %v3721 = vpop.f32.mrb[0].mxu0
  %v3722 = vadd.f32 %v3609, %v3721
  %v3723 = vpop.f32.mrb[0].mxu0
  %v3724 = vadd.f32 %v3611, %v3723
  %v3725 = vpop.f32.mrb[0].mxu0
  %v3726 = vadd.f32 %v3613, %v3725
  %v3727 = vpop.f32.mrb[0].mxu0
  %v3728 = vadd.f32 %v3615, %v3727
  %3729 = vmatprep.mubr.bf16.mxu0 %v620
  %3730 = vmatmul.mubr.bf16.gmra.mrb[0].mxu0 %v619
  %v3731 = vpop.f32.mrb[0].mxu0
  %v3732 = vadd.f32 %v3619, %v3731
  %v3733 = vpop.f32.mrb[0].mxu0
  %v3734 = vadd.f32 %v3621, %v3733
  %v3735 = vpop.f32.mrb[0].mxu0
  %v3736 = vadd.f32 %v3623, %v3735
  %v3737 = vpop.f32.mrb[0].mxu0
  %v3738 = vadd.f32 %v3625, %v3737
  %3739 = vmatprep.mubr.bf16.mxu0 %v644
  %3740 = vmatmul.mubr.bf16.gmra.mrb[0].mxu0 %v643
  %v3741 = vpop.f32.mrb[0].mxu0
  %v3742 = vadd.f32 %v3629, %v3741
  %v3743 = vpop.f32.mrb[0].mxu0
  %v3744 = vadd.f32 %v3631, %v3743
  %v3745 = vpop.f32.mrb[0].mxu0
  %v3746 = vadd.f32 %v3633, %v3745
  %v3747 = vpop.f32.mrb[0].mxu0
  %v3748 = vadd.f32 %v3635, %v3747
  %3749 = vdwg.mxu0
  %3750 = vmatprep.subr.bf16.mxu0 %v2416
  %3751 = vmatpush1.bf16.msra.mxu0 %v2415
  %3752 = vmatprep.subr.bf16.mxu0 %v2418
  %3753 = vmatpush1.bf16.msra.mxu0 %v2417
  %3754 = vmatprep.subr.bf16.mxu0 %v2420
  %3755 = vmatpush1.bf16.msra.mxu0 %v2419
  %3756 = vmatprep.subr.bf16.mxu0 %v2422
  %3757 = vmatpush1.bf16.msra.mxu0 %v2421
  %3758 = vmatprep.subr.bf16.mxu0 %v2424
  %3759 = vmatpush1.bf16.msra.mxu0 %v2423
  %3760 = vmatprep.subr.bf16.mxu0 %v2426
  %3761 = vmatpush1.bf16.msra.mxu0 %v2425
  %3762 = vmatprep.subr.bf16.mxu0 %v2428
  %3763 = vmatpush1.bf16.msra.mxu0 %v2427
  %3764 = vmatprep.subr.bf16.mxu0 %v2430
  %3765 = vmatpush1.bf16.msra.mxu0 %v2429
  %3766 = vmatprep.subr.bf16.mxu0 %v2432
  %3767 = vmatpush1.bf16.msra.mxu0 %v2431
  %3768 = vmatprep.subr.bf16.mxu0 %v2434
  %3769 = vmatpush1.bf16.msra.mxu0 %v2433
  %3770 = vmatprep.subr.bf16.mxu0 %v2436
  %3771 = vmatpush1.bf16.msra.mxu0 %v2435
  %3772 = vmatprep.subr.bf16.mxu0 %v2438
  %3773 = vmatpush1.bf16.msra.mxu0 %v2437
  %3774 = vmatprep.subr.bf16.mxu0 %v2440
  %3775 = vmatpush1.bf16.msra.mxu0 %v2439
  %3776 = vmatprep.subr.bf16.mxu0 %v2442
  %3777 = vmatpush1.bf16.msra.mxu0 %v2441
  %3778 = vmatprep.subr.bf16.mxu0 %v2444
  %3779 = vmatpush1.bf16.msra.mxu0 %v2443
  %3780 = vmatprep.subr.bf16.mxu0 %v2446
  %3781 = vmatpush1.bf16.msra.mxu0 %v2445
  %3782 = vmatprep.mubr.bf16.mxu0 %v478
  %3783 = vmatmul.mubr.bf16.gmra.mrb[0].mxu0 %v477
  %v3784 = vpop.f32.mrb[0].mxu0
  %v3785 = vadd.f32 %v3672, %v3784
  %v3786 = vpop.f32.mrb[0].mxu0
  %v3787 = vadd.f32 %v3674, %v3786
  %v3788 = vpop.f32.mrb[0].mxu0
  %v3789 = vadd.f32 %v3676, %v3788
  %v3790 = vpop.f32.mrb[0].mxu0
  %v3791 = vadd.f32 %v3678, %v3790
  %3792 = vmatprep.mubr.bf16.mxu0 %v502
  %3793 = vmatmul.mubr.bf16.gmra.mrb[0].mxu0 %v501
  %v3794 = vpop.f32.mrb[0].mxu0
  %v3795 = vadd.f32 %v3682, %v3794
  %v3796 = vpop.f32.mrb[0].mxu0
  %v3797 = vadd.f32 %v3684, %v3796
  %v3798 = vpop.f32.mrb[0].mxu0
  %v3799 = vadd.f32 %v3686, %v3798
  %v3800 = vpop.f32.mrb[0].mxu0
  %v3801 = vadd.f32 %v3688, %v3800
  %3802 = vmatprep.mubr.bf16.mxu0 %v526
  %3803 = vmatmul.mubr.bf16.gmra.mrb[0].mxu0 %v525
  %v3804 = vpop.f32.mrb[0].mxu0
  %v3805 = vadd.f32 %v3692, %v3804
  %v3806 = vpop.f32.mrb[0].mxu0
  %v3807 = vadd.f32 %v3694, %v3806
  %v3808 = vpop.f32.mrb[0].mxu0
  %v3809 = vadd.f32 %v3696, %v3808
  %v3810 = vpop.f32.mrb[0].mxu0
  %v3811 = vadd.f32 %v3698, %v3810
  %3812 = vmatprep.mubr.bf16.mxu0 %v550
  %3813 = vmatmul.mubr.bf16.gmra.mrb[0].mxu0 %v549
  %v3814 = vpop.f32.mrb[0].mxu0
  %v3815 = vadd.f32 %v3702, %v3814
  %v3816 = vpop.f32.mrb[0].mxu0
  %v3817 = vadd.f32 %v3704, %v3816
  %v3818 = vpop.f32.mrb[0].mxu0
  %v3819 = vadd.f32 %v3706, %v3818
  %v3820 = vpop.f32.mrb[0].mxu0
  %v3821 = vadd.f32 %v3708, %v3820
  %3822 = vmatprep.mubr.bf16.mxu0 %v574
  %3823 = vmatmul.mubr.bf16.gmra.mrb[0].mxu0 %v573
  %v3824 = vpop.f32.mrb[0].mxu0
  %v3825 = vadd.f32 %v3712, %v3824
  %v3826 = vpop.f32.mrb[0].mxu0
  %v3827 = vadd.f32 %v3714, %v3826
  %v3828 = vpop.f32.mrb[0].mxu0
  %v3829 = vadd.f32 %v3716, %v3828
  %v3830 = vpop.f32.mrb[0].mxu0
  %v3831 = vadd.f32 %v3718, %v3830
  %3832 = vmatprep.mubr.bf16.mxu0 %v598
  %3833 = vmatmul.mubr.bf16.gmra.mrb[0].mxu0 %v597
  %v3834 = vpop.f32.mrb[0].mxu0
  %v3835 = vadd.f32 %v3722, %v3834
  %v3836 = vpop.f32.mrb[0].mxu0
  %v3837 = vadd.f32 %v3724, %v3836
  %v3838 = vpop.f32.mrb[0].mxu0
  %v3839 = vadd.f32 %v3726, %v3838
  %v3840 = vpop.f32.mrb[0].mxu0
  %v3841 = vadd.f32 %v3728, %v3840
  %3842 = vmatprep.mubr.bf16.mxu0 %v622
  %3843 = vmatmul.mubr.bf16.gmra.mrb[0].mxu0 %v621
  %v3844 = vpop.f32.mrb[0].mxu0
  %v3845 = vadd.f32 %v3732, %v3844
  %v3846 = vpop.f32.mrb[0].mxu0
  %v3847 = vadd.f32 %v3734, %v3846
  %v3848 = vpop.f32.mrb[0].mxu0
  %v3849 = vadd.f32 %v3736, %v3848
  %v3850 = vpop.f32.mrb[0].mxu0
  %v3851 = vadd.f32 %v3738, %v3850
  %3852 = vmatprep.mubr.bf16.mxu0 %v646
  %3853 = vmatmul.mubr.bf16.gmra.mrb[0].mxu0 %v645
  %v3854 = vpop.f32.mrb[0].mxu0
  %v3855 = vadd.f32 %v3742, %v3854
  %v3856 = vpop.f32.mrb[0].mxu0
  %v3857 = vadd.f32 %v3744, %v3856
  %v3858 = vpop.f32.mrb[0].mxu0
  %v3859 = vadd.f32 %v3746, %v3858
  %v3860 = vpop.f32.mrb[0].mxu0
  %v3861 = vadd.f32 %v3748, %v3860
  %3862 = vdwg.mxu0
  %3863 = vmatprep.subr.bf16.mxu0 %v2448
  %3864 = vmatpush1.bf16.msra.mxu0 %v2447
  %3865 = vmatprep.subr.bf16.mxu0 %v2450
  %3866 = vmatpush1.bf16.msra.mxu0 %v2449
  %3867 = vmatprep.subr.bf16.mxu0 %v2452
  %3868 = vmatpush1.bf16.msra.mxu0 %v2451
  %3869 = vmatprep.subr.bf16.mxu0 %v2454
  %3870 = vmatpush1.bf16.msra.mxu0 %v2453
  %3871 = vmatprep.subr.bf16.mxu0 %v2456
  %3872 = vmatpush1.bf16.msra.mxu0 %v2455
  %3873 = vmatprep.subr.bf16.mxu0 %v2458
  %3874 = vmatpush1.bf16.msra.mxu0 %v2457
  %3875 = vmatprep.subr.bf16.mxu0 %v2460
  %3876 = vmatpush1.bf16.msra.mxu0 %v2459
  %3877 = vmatprep.subr.bf16.mxu0 %v2462
  %3878 = vmatpush1.bf16.msra.mxu0 %v2461
  %3879 = vmatprep.subr.bf16.mxu0 %v2464
  %3880 = vmatpush1.bf16.msra.mxu0 %v2463
  %3881 = vmatprep.subr.bf16.mxu0 %v2466
  %3882 = vmatpush1.bf16.msra.mxu0 %v2465
  %3883 = vmatprep.subr.bf16.mxu0 %v2468
  %3884 = vmatpush1.bf16.msra.mxu0 %v2467
  %3885 = vmatprep.subr.bf16.mxu0 %v2470
  %3886 = vmatpush1.bf16.msra.mxu0 %v2469
  %3887 = vmatprep.subr.bf16.mxu0 %v2472
  %3888 = vmatpush1.bf16.msra.mxu0 %v2471
  %3889 = vmatprep.subr.bf16.mxu0 %v2474
  %3890 = vmatpush1.bf16.msra.mxu0 %v2473
  %3891 = vmatprep.subr.bf16.mxu0 %v2476
  %3892 = vmatpush1.bf16.msra.mxu0 %v2475
  %3893 = vmatprep.subr.bf16.mxu0 %v2478
  %3894 = vmatpush1.bf16.msra.mxu0 %v2477
  %3895 = vmatprep.mubr.bf16.mxu0 %v480
  %3896 = vmatmul.mubr.bf16.gmra.mrb[0].mxu0 %v479
  %v3897 = vpop.f32.mrb[0].mxu0
  %v3898 = vadd.f32 %v3785, %v3897
  %v3899 = vpop.f32.mrb[0].mxu0
  %v3900 = vadd.f32 %v3787, %v3899
  %v3901 = vpop.f32.mrb[0].mxu0
  %v3902 = vadd.f32 %v3789, %v3901
  %v3903 = vpop.f32.mrb[0].mxu0
  %v3904 = vadd.f32 %v3791, %v3903
  %3905 = vmatprep.mubr.bf16.mxu0 %v504
  %3906 = vmatmul.mubr.bf16.gmra.mrb[0].mxu0 %v503
  %v3907 = vpop.f32.mrb[0].mxu0
  %v3908 = vadd.f32 %v3795, %v3907
  %v3909 = vpop.f32.mrb[0].mxu0
  %v3910 = vadd.f32 %v3797, %v3909
  %v3911 = vpop.f32.mrb[0].mxu0
  %v3912 = vadd.f32 %v3799, %v3911
  %v3913 = vpop.f32.mrb[0].mxu0
  %v3914 = vadd.f32 %v3801, %v3913
  %3915 = vmatprep.mubr.bf16.mxu0 %v528
  %3916 = vmatmul.mubr.bf16.gmra.mrb[0].mxu0 %v527
  %v3917 = vpop.f32.mrb[0].mxu0
  %v3918 = vadd.f32 %v3805, %v3917
  %v3919 = vpop.f32.mrb[0].mxu0
  %v3920 = vadd.f32 %v3807, %v3919
  %v3921 = vpop.f32.mrb[0].mxu0
  %v3922 = vadd.f32 %v3809, %v3921
  %v3923 = vpop.f32.mrb[0].mxu0
  %v3924 = vadd.f32 %v3811, %v3923
  %3925 = vmatprep.mubr.bf16.mxu0 %v552
  %3926 = vmatmul.mubr.bf16.gmra.mrb[0].mxu0 %v551
  %v3927 = vpop.f32.mrb[0].mxu0
  %v3928 = vadd.f32 %v3815, %v3927
  %v3929 = vpop.f32.mrb[0].mxu0
  %v3930 = vadd.f32 %v3817, %v3929
  %v3931 = vpop.f32.mrb[0].mxu0
  %v3932 = vadd.f32 %v3819, %v3931
  %v3933 = vpop.f32.mrb[0].mxu0
  %v3934 = vadd.f32 %v3821, %v3933
  %3935 = vmatprep.mubr.bf16.mxu0 %v576
  %3936 = vmatmul.mubr.bf16.gmra.mrb[0].mxu0 %v575
  %v3937 = vpop.f32.mrb[0].mxu0
  %v3938 = vadd.f32 %v3825, %v3937
  %v3939 = vpop.f32.mrb[0].mxu0
  %v3940 = vadd.f32 %v3827, %v3939
  %v3941 = vpop.f32.mrb[0].mxu0
  %v3942 = vadd.f32 %v3829, %v3941
  %v3943 = vpop.f32.mrb[0].mxu0
  %v3944 = vadd.f32 %v3831, %v3943
  %3945 = vmatprep.mubr.bf16.mxu0 %v600
  %3946 = vmatmul.mubr.bf16.gmra.mrb[0].mxu0 %v599
  %v3947 = vpop.f32.mrb[0].mxu0
  %v3948 = vadd.f32 %v3835, %v3947
  %v3949 = vpop.f32.mrb[0].mxu0
  %v3950 = vadd.f32 %v3837, %v3949
  %v3951 = vpop.f32.mrb[0].mxu0
  %v3952 = vadd.f32 %v3839, %v3951
  %v3953 = vpop.f32.mrb[0].mxu0
  %v3954 = vadd.f32 %v3841, %v3953
  %3955 = vmatprep.mubr.bf16.mxu0 %v624
  %3956 = vmatmul.mubr.bf16.gmra.mrb[0].mxu0 %v623
  %v3957 = vpop.f32.mrb[0].mxu0
  %v3958 = vadd.f32 %v3845, %v3957
  %v3959 = vpop.f32.mrb[0].mxu0
  %v3960 = vadd.f32 %v3847, %v3959
  %v3961 = vpop.f32.mrb[0].mxu0
  %v3962 = vadd.f32 %v3849, %v3961
  %v3963 = vpop.f32.mrb[0].mxu0
  %v3964 = vadd.f32 %v3851, %v3963
  %3965 = vmatprep.mubr.bf16.mxu0 %v648
  %3966 = vmatmul.mubr.bf16.gmra.mrb[0].mxu0 %v647
  %v3967 = vpop.f32.mrb[0].mxu0
  %v3968 = vadd.f32 %v3855, %v3967
  %v3969 = vpop.f32.mrb[0].mxu0
  %v3970 = vadd.f32 %v3857, %v3969
  %v3971 = vpop.f32.mrb[0].mxu0
  %v3972 = vadd.f32 %v3859, %v3971
  %v3973 = vpop.f32.mrb[0].mxu0
  %v3974 = vadd.f32 %v3861, %v3973
  %3975 = vdwg.mxu0
  %3976 = vmatprep.subr.bf16.mxu0 %v2480
  %3977 = vmatpush1.bf16.msra.mxu0 %v2479
  %3978 = vmatprep.subr.bf16.mxu0 %v2482
  %3979 = vmatpush1.bf16.msra.mxu0 %v2481
  %3980 = vmatprep.subr.bf16.mxu0 %v2484
  %3981 = vmatpush1.bf16.msra.mxu0 %v2483
  %3982 = vmatprep.subr.bf16.mxu0 %v2486
  %3983 = vmatpush1.bf16.msra.mxu0 %v2485
  %3984 = vmatprep.subr.bf16.mxu0 %v2488
  %3985 = vmatpush1.bf16.msra.mxu0 %v2487
  %3986 = vmatprep.subr.bf16.mxu0 %v2490
  %3987 = vmatpush1.bf16.msra.mxu0 %v2489
  %3988 = vmatprep.subr.bf16.mxu0 %v2492
  %3989 = vmatpush1.bf16.msra.mxu0 %v2491
  %3990 = vmatprep.subr.bf16.mxu0 %v2494
  %3991 = vmatpush1.bf16.msra.mxu0 %v2493
  %3992 = vmatprep.subr.bf16.mxu0 %v2496
  %3993 = vmatpush1.bf16.msra.mxu0 %v2495
  %3994 = vmatprep.subr.bf16.mxu0 %v2498
  %3995 = vmatpush1.bf16.msra.mxu0 %v2497
  %3996 = vmatprep.subr.bf16.mxu0 %v2500
  %3997 = vmatpush1.bf16.msra.mxu0 %v2499
  %3998 = vmatprep.subr.bf16.mxu0 %v2502
  %3999 = vmatpush1.bf16.msra.mxu0 %v2501
  %4000 = vmatprep.subr.bf16.mxu0 %v2504
  %4001 = vmatpush1.bf16.msra.mxu0 %v2503
  %4002 = vmatprep.subr.bf16.mxu0 %v2506
  %4003 = vmatpush1.bf16.msra.mxu0 %v2505
  %4004 = vmatprep.subr.bf16.mxu0 %v2508
  %4005 = vmatpush1.bf16.msra.mxu0 %v2507
  %4006 = vmatprep.subr.bf16.mxu0 %v2510
  %4007 = vmatpush1.bf16.msra.mxu0 %v2509
  %4008 = vmatprep.mubr.bf16.mxu0 %v482
  %4009 = vmatmul.mubr.bf16.gmra.mrb[0].mxu0 %v481
  %v4010 = vpop.f32.mrb[0].mxu0
  %v4011 = vadd.f32 %v3898, %v4010
  %v4012 = vpop.f32.mrb[0].mxu0
  %v4013 = vadd.f32 %v3900, %v4012
  %v4014 = vpop.f32.mrb[0].mxu0
  %v4015 = vadd.f32 %v3902, %v4014
  %v4016 = vpop.f32.mrb[0].mxu0
  %v4017 = vadd.f32 %v3904, %v4016
  %4018 = vmatprep.mubr.bf16.mxu0 %v506
  %4019 = vmatmul.mubr.bf16.gmra.mrb[0].mxu0 %v505
  %v4020 = vpop.f32.mrb[0].mxu0
  %v4021 = vadd.f32 %v3908, %v4020
  %v4022 = vpop.f32.mrb[0].mxu0
  %v4023 = vadd.f32 %v3910, %v4022
  %v4024 = vpop.f32.mrb[0].mxu0
  %v4025 = vadd.f32 %v3912, %v4024
  %v4026 = vpop.f32.mrb[0].mxu0
  %v4027 = vadd.f32 %v3914, %v4026
  %4028 = vmatprep.mubr.bf16.mxu0 %v530
  %4029 = vmatmul.mubr.bf16.gmra.mrb[0].mxu0 %v529
  %v4030 = vpop.f32.mrb[0].mxu0
  %v4031 = vadd.f32 %v3918, %v4030
  %v4032 = vpop.f32.mrb[0].mxu0
  %v4033 = vadd.f32 %v3920, %v4032
  %v4034 = vpop.f32.mrb[0].mxu0
  %v4035 = vadd.f32 %v3922, %v4034
  %v4036 = vpop.f32.mrb[0].mxu0
  %v4037 = vadd.f32 %v3924, %v4036
  %4038 = vmatprep.mubr.bf16.mxu0 %v554
  %4039 = vmatmul.mubr.bf16.gmra.mrb[0].mxu0 %v553
  %v4040 = vpop.f32.mrb[0].mxu0
  %v4041 = vadd.f32 %v3928, %v4040
  %v4042 = vpop.f32.mrb[0].mxu0
  %v4043 = vadd.f32 %v3930, %v4042
  %v4044 = vpop.f32.mrb[0].mxu0
  %v4045 = vadd.f32 %v3932, %v4044
  %v4046 = vpop.f32.mrb[0].mxu0
  %v4047 = vadd.f32 %v3934, %v4046
  %4048 = vmatprep.mubr.bf16.mxu0 %v578
  %4049 = vmatmul.mubr.bf16.gmra.mrb[0].mxu0 %v577
  %v4050 = vpop.f32.mrb[0].mxu0
  %v4051 = vadd.f32 %v3938, %v4050
  %v4052 = vpop.f32.mrb[0].mxu0
  %v4053 = vadd.f32 %v3940, %v4052
  %v4054 = vpop.f32.mrb[0].mxu0
  %v4055 = vadd.f32 %v3942, %v4054
  %v4056 = vpop.f32.mrb[0].mxu0
  %v4057 = vadd.f32 %v3944, %v4056
  %4058 = vmatprep.mubr.bf16.mxu0 %v602
  %4059 = vmatmul.mubr.bf16.gmra.mrb[0].mxu0 %v601
  %v4060 = vpop.f32.mrb[0].mxu0
  %v4061 = vadd.f32 %v3948, %v4060
  %v4062 = vpop.f32.mrb[0].mxu0
  %v4063 = vadd.f32 %v3950, %v4062
  %v4064 = vpop.f32.mrb[0].mxu0
  %v4065 = vadd.f32 %v3952, %v4064
  %v4066 = vpop.f32.mrb[0].mxu0
  %v4067 = vadd.f32 %v3954, %v4066
  %4068 = vmatprep.mubr.bf16.mxu0 %v626
  %4069 = vmatmul.mubr.bf16.gmra.mrb[0].mxu0 %v625
  %v4070 = vpop.f32.mrb[0].mxu0
  %v4071 = vadd.f32 %v3958, %v4070
  %v4072 = vpop.f32.mrb[0].mxu0
  %v4073 = vadd.f32 %v3960, %v4072
  %v4074 = vpop.f32.mrb[0].mxu0
  %v4075 = vadd.f32 %v3962, %v4074
  %v4076 = vpop.f32.mrb[0].mxu0
  %v4077 = vadd.f32 %v3964, %v4076
  %4078 = vmatprep.mubr.bf16.mxu0 %v650
  %4079 = vmatmul.mubr.bf16.gmra.mrb[0].mxu0 %v649
  %v4080 = vpop.f32.mrb[0].mxu0
  %v4081 = vadd.f32 %v3968, %v4080
  %v4082 = vpop.f32.mrb[0].mxu0
  %v4083 = vadd.f32 %v3970, %v4082
  %v4084 = vpop.f32.mrb[0].mxu0
  %v4085 = vadd.f32 %v3972, %v4084
  %v4086 = vpop.f32.mrb[0].mxu0
  %v4087 = vadd.f32 %v3974, %v4086
  %4088 = vdwg.mxu0
  %4089 = vmatprep.subr.bf16.mxu0 %v2512
  %4090 = vmatpush1.bf16.msra.mxu0 %v2511
  %4091 = vmatprep.subr.bf16.mxu0 %v2514
  %4092 = vmatpush1.bf16.msra.mxu0 %v2513
  %4093 = vmatprep.subr.bf16.mxu0 %v2516
  %4094 = vmatpush1.bf16.msra.mxu0 %v2515
  %4095 = vmatprep.subr.bf16.mxu0 %v2518
  %4096 = vmatpush1.bf16.msra.mxu0 %v2517
  %4097 = vmatprep.subr.bf16.mxu0 %v2520
  %4098 = vmatpush1.bf16.msra.mxu0 %v2519
  %4099 = vmatprep.subr.bf16.mxu0 %v2522
  %4100 = vmatpush1.bf16.msra.mxu0 %v2521
  %4101 = vmatprep.subr.bf16.mxu0 %v2524
  %4102 = vmatpush1.bf16.msra.mxu0 %v2523
  %4103 = vmatprep.subr.bf16.mxu0 %v2526
  %4104 = vmatpush1.bf16.msra.mxu0 %v2525
  %4105 = vmatprep.subr.bf16.mxu0 %v2528
  %4106 = vmatpush1.bf16.msra.mxu0 %v2527
  %4107 = vmatprep.subr.bf16.mxu0 %v2530
  %4108 = vmatpush1.bf16.msra.mxu0 %v2529
  %4109 = vmatprep.subr.bf16.mxu0 %v2532
  %4110 = vmatpush1.bf16.msra.mxu0 %v2531
  %4111 = vmatprep.subr.bf16.mxu0 %v2534
  %4112 = vmatpush1.bf16.msra.mxu0 %v2533
  %4113 = vmatprep.subr.bf16.mxu0 %v2536
  %4114 = vmatpush1.bf16.msra.mxu0 %v2535
  %4115 = vmatprep.subr.bf16.mxu0 %v2538
  %4116 = vmatpush1.bf16.msra.mxu0 %v2537
  %4117 = vmatprep.subr.bf16.mxu0 %v2540
  %4118 = vmatpush1.bf16.msra.mxu0 %v2539
  %4119 = vmatprep.subr.bf16.mxu0 %v2542
  %4120 = vmatpush1.bf16.msra.mxu0 %v2541
  %4121 = vmatprep.mubr.bf16.mxu0 %v484
  %4122 = vmatmul.mubr.bf16.gmra.mrb[0].mxu0 %v483
  %v4123 = vpop.f32.mrb[0].mxu0
  %v4124 = vadd.f32 %v4011, %v4123
  %v4125 = vpop.f32.mrb[0].mxu0
  %v4126 = vadd.f32 %v4013, %v4125
  %v4127 = vpop.f32.mrb[0].mxu0
  %v4128 = vadd.f32 %v4015, %v4127
  %v4129 = vpop.f32.mrb[0].mxu0
  %v4130 = vadd.f32 %v4017, %v4129
  %4131 = vmatprep.mubr.bf16.mxu0 %v508
  %4132 = vmatmul.mubr.bf16.gmra.mrb[0].mxu0 %v507
  %v4133 = vpop.f32.mrb[0].mxu0
  %v4134 = vadd.f32 %v4021, %v4133
  %v4135 = vpop.f32.mrb[0].mxu0
  %v4136 = vadd.f32 %v4023, %v4135
  %v4137 = vpop.f32.mrb[0].mxu0
  %v4138 = vadd.f32 %v4025, %v4137
  %v4139 = vpop.f32.mrb[0].mxu0
  %v4140 = vadd.f32 %v4027, %v4139
  %4141 = vmatprep.mubr.bf16.mxu0 %v532
  %4142 = vmatmul.mubr.bf16.gmra.mrb[0].mxu0 %v531
  %v4143 = vpop.f32.mrb[0].mxu0
  %v4144 = vadd.f32 %v4031, %v4143
  %v4145 = vpop.f32.mrb[0].mxu0
  %v4146 = vadd.f32 %v4033, %v4145
  %v4147 = vpop.f32.mrb[0].mxu0
  %v4148 = vadd.f32 %v4035, %v4147
  %v4149 = vpop.f32.mrb[0].mxu0
  %v4150 = vadd.f32 %v4037, %v4149
  %4151 = vmatprep.mubr.bf16.mxu0 %v556
  %4152 = vmatmul.mubr.bf16.gmra.mrb[0].mxu0 %v555
  %v4153 = vpop.f32.mrb[0].mxu0
  %v4154 = vadd.f32 %v4041, %v4153
  %v4155 = vpop.f32.mrb[0].mxu0
  %v4156 = vadd.f32 %v4043, %v4155
  %v4157 = vpop.f32.mrb[0].mxu0
  %v4158 = vadd.f32 %v4045, %v4157
  %v4159 = vpop.f32.mrb[0].mxu0
  %v4160 = vadd.f32 %v4047, %v4159
  %4161 = vmatprep.mubr.bf16.mxu0 %v580
  %4162 = vmatmul.mubr.bf16.gmra.mrb[0].mxu0 %v579
  %v4163 = vpop.f32.mrb[0].mxu0
  %v4164 = vadd.f32 %v4051, %v4163
  %v4165 = vpop.f32.mrb[0].mxu0
  %v4166 = vadd.f32 %v4053, %v4165
  %v4167 = vpop.f32.mrb[0].mxu0
  %v4168 = vadd.f32 %v4055, %v4167
  %v4169 = vpop.f32.mrb[0].mxu0
  %v4170 = vadd.f32 %v4057, %v4169
  %4171 = vmatprep.mubr.bf16.mxu0 %v604
  %4172 = vmatmul.mubr.bf16.gmra.mrb[0].mxu0 %v603
  %v4173 = vpop.f32.mrb[0].mxu0
  %v4174 = vadd.f32 %v4061, %v4173
  %v4175 = vpop.f32.mrb[0].mxu0
  %v4176 = vadd.f32 %v4063, %v4175
  %v4177 = vpop.f32.mrb[0].mxu0
  %v4178 = vadd.f32 %v4065, %v4177
  %v4179 = vpop.f32.mrb[0].mxu0
  %v4180 = vadd.f32 %v4067, %v4179
  %4181 = vmatprep.mubr.bf16.mxu0 %v628
  %4182 = vmatmul.mubr.bf16.gmra.mrb[0].mxu0 %v627
  %v4183 = vpop.f32.mrb[0].mxu0
  %v4184 = vadd.f32 %v4071, %v4183
  %v4185 = vpop.f32.mrb[0].mxu0
  %v4186 = vadd.f32 %v4073, %v4185
  %v4187 = vpop.f32.mrb[0].mxu0
  %v4188 = vadd.f32 %v4075, %v4187
  %v4189 = vpop.f32.mrb[0].mxu0
  %v4190 = vadd.f32 %v4077, %v4189
  %4191 = vmatprep.mubr.bf16.mxu0 %v652
  %4192 = vmatmul.mubr.bf16.gmra.mrb[0].mxu0 %v651
  %v4193 = vpop.f32.mrb[0].mxu0
  %v4194 = vadd.f32 %v4081, %v4193
  %v4195 = vpop.f32.mrb[0].mxu0
  %v4196 = vadd.f32 %v4083, %v4195
  %v4197 = vpop.f32.mrb[0].mxu0
  %v4198 = vadd.f32 %v4085, %v4197
  %v4199 = vpop.f32.mrb[0].mxu0
  %v4200 = vadd.f32 %v4087, %v4199
  %4201 = vdwg.mxu0
  %4202 = vmatprep.subr.bf16.mxu0 %v2544
  %4203 = vmatpush1.bf16.msra.mxu0 %v2543
  %4204 = vmatprep.subr.bf16.mxu0 %v2546
  %4205 = vmatpush1.bf16.msra.mxu0 %v2545
  %4206 = vmatprep.subr.bf16.mxu0 %v2548
  %4207 = vmatpush1.bf16.msra.mxu0 %v2547
  %4208 = vmatprep.subr.bf16.mxu0 %v2550
  %4209 = vmatpush1.bf16.msra.mxu0 %v2549
  %4210 = vmatprep.subr.bf16.mxu0 %v2552
  %4211 = vmatpush1.bf16.msra.mxu0 %v2551
  %4212 = vmatprep.subr.bf16.mxu0 %v2554
  %4213 = vmatpush1.bf16.msra.mxu0 %v2553
  %4214 = vmatprep.subr.bf16.mxu0 %v2556
  %4215 = vmatpush1.bf16.msra.mxu0 %v2555
  %4216 = vmatprep.subr.bf16.mxu0 %v2558
  %4217 = vmatpush1.bf16.msra.mxu0 %v2557
  %4218 = vmatprep.subr.bf16.mxu0 %v2560
  %4219 = vmatpush1.bf16.msra.mxu0 %v2559
  %4220 = vmatprep.subr.bf16.mxu0 %v2562
  %4221 = vmatpush1.bf16.msra.mxu0 %v2561
  %4222 = vmatprep.subr.bf16.mxu0 %v2564
  %4223 = vmatpush1.bf16.msra.mxu0 %v2563
  %4224 = vmatprep.subr.bf16.mxu0 %v2566
  %4225 = vmatpush1.bf16.msra.mxu0 %v2565
  %4226 = vmatprep.subr.bf16.mxu0 %v2568
  %4227 = vmatpush1.bf16.msra.mxu0 %v2567
  %4228 = vmatprep.subr.bf16.mxu0 %v2570
  %4229 = vmatpush1.bf16.msra.mxu0 %v2569
  %4230 = vmatprep.subr.bf16.mxu0 %v2572
  %4231 = vmatpush1.bf16.msra.mxu0 %v2571
  %4232 = vmatprep.subr.bf16.mxu0 %v2574
  %4233 = vmatpush1.bf16.msra.mxu0 %v2573
  %4234 = vmatprep.mubr.bf16.mxu0 %v486
  %4235 = vmatmul.mubr.bf16.gmra.mrb[0].mxu0 %v485
  %v4236 = vpop.f32.mrb[0].mxu0
  %v4237 = vadd.f32 %v4124, %v4236
  %v4238 = vpop.f32.mrb[0].mxu0
  %v4239 = vadd.f32 %v4126, %v4238
  %v4240 = vpop.f32.mrb[0].mxu0
  %v4241 = vadd.f32 %v4128, %v4240
  %v4242 = vpop.f32.mrb[0].mxu0
  %v4243 = vadd.f32 %v4130, %v4242
  %4244 = vmatprep.mubr.bf16.mxu0 %v510
  %4245 = vmatmul.mubr.bf16.gmra.mrb[0].mxu0 %v509
  %v4246 = vpop.f32.mrb[0].mxu0
  %v4247 = vadd.f32 %v4134, %v4246
  %v4248 = vpop.f32.mrb[0].mxu0
  %v4249 = vadd.f32 %v4136, %v4248
  %v4250 = vpop.f32.mrb[0].mxu0
  %v4251 = vadd.f32 %v4138, %v4250
  %v4252 = vpop.f32.mrb[0].mxu0
  %v4253 = vadd.f32 %v4140, %v4252
  %4254 = vmatprep.mubr.bf16.mxu0 %v534
  %4255 = vmatmul.mubr.bf16.gmra.mrb[0].mxu0 %v533
  %v4256 = vpop.f32.mrb[0].mxu0
  %v4257 = vadd.f32 %v4144, %v4256
  %v4258 = vpop.f32.mrb[0].mxu0
  %v4259 = vadd.f32 %v4146, %v4258
  %v4260 = vpop.f32.mrb[0].mxu0
  %v4261 = vadd.f32 %v4148, %v4260
  %v4262 = vpop.f32.mrb[0].mxu0
  %v4263 = vadd.f32 %v4150, %v4262
  %4264 = vmatprep.mubr.bf16.mxu0 %v558
  %4265 = vmatmul.mubr.bf16.gmra.mrb[0].mxu0 %v557
  %v4266 = vpop.f32.mrb[0].mxu0
  %v4267 = vadd.f32 %v4154, %v4266
  %v4268 = vpop.f32.mrb[0].mxu0
  %v4269 = vadd.f32 %v4156, %v4268
  %v4270 = vpop.f32.mrb[0].mxu0
  %v4271 = vadd.f32 %v4158, %v4270
  %v4272 = vpop.f32.mrb[0].mxu0
  %v4273 = vadd.f32 %v4160, %v4272
  %4274 = vmatprep.mubr.bf16.mxu0 %v582
  %4275 = vmatmul.mubr.bf16.gmra.mrb[0].mxu0 %v581
  %v4276 = vpop.f32.mrb[0].mxu0
  %v4277 = vadd.f32 %v4164, %v4276
  %v4278 = vpop.f32.mrb[0].mxu0
  %v4279 = vadd.f32 %v4166, %v4278
  %v4280 = vpop.f32.mrb[0].mxu0
  %v4281 = vadd.f32 %v4168, %v4280
  %v4282 = vpop.f32.mrb[0].mxu0
  %v4283 = vadd.f32 %v4170, %v4282
  %4284 = vmatprep.mubr.bf16.mxu0 %v606
  %4285 = vmatmul.mubr.bf16.gmra.mrb[0].mxu0 %v605
  %v4286 = vpop.f32.mrb[0].mxu0
  %v4287 = vadd.f32 %v4174, %v4286
  %v4288 = vpop.f32.mrb[0].mxu0
  %v4289 = vadd.f32 %v4176, %v4288
  %v4290 = vpop.f32.mrb[0].mxu0
  %v4291 = vadd.f32 %v4178, %v4290
  %v4292 = vpop.f32.mrb[0].mxu0
  %v4293 = vadd.f32 %v4180, %v4292
  %4294 = vmatprep.mubr.bf16.mxu0 %v630
  %4295 = vmatmul.mubr.bf16.gmra.mrb[0].mxu0 %v629
  %v4296 = vpop.f32.mrb[0].mxu0
  %v4297 = vadd.f32 %v4184, %v4296
  %v4298 = vpop.f32.mrb[0].mxu0
  %v4299 = vadd.f32 %v4186, %v4298
  %v4300 = vpop.f32.mrb[0].mxu0
  %v4301 = vadd.f32 %v4188, %v4300
  %v4302 = vpop.f32.mrb[0].mxu0
  %v4303 = vadd.f32 %v4190, %v4302
  %4304 = vmatprep.mubr.bf16.mxu0 %v654
  %4305 = vmatmul.mubr.bf16.gmra.mrb[0].mxu0 %v653
  %v4306 = vpop.f32.mrb[0].mxu0
  %v4307 = vadd.f32 %v4194, %v4306
  %v4308 = vpop.f32.mrb[0].mxu0
  %v4309 = vadd.f32 %v4196, %v4308
  %v4310 = vpop.f32.mrb[0].mxu0
  %v4311 = vadd.f32 %v4198, %v4310
  %v4312 = vpop.f32.mrb[0].mxu0
  %v4313 = vadd.f32 %v4200, %v4312
  %4314 = vdwg.mxu0
  %s4315 = smul.u32 0, 128
  %v4316 = vpack.c.bf16 %v4241, %v4237
  %v4317 = vpack.c.bf16 %v4243, %v4239
  %v4318 = vpack.c.bf16 %v4251, %v4247
  %v4319 = vpack.c.bf16 %v4253, %v4249
  %v4320 = vpack.c.bf16 %v4261, %v4257
  %v4321 = vpack.c.bf16 %v4263, %v4259
  %v4322 = vpack.c.bf16 %v4271, %v4267
  %v4323 = vpack.c.bf16 %v4273, %v4269
  %v4324 = vpack.c.bf16 %v4281, %v4277
  %v4325 = vpack.c.bf16 %v4283, %v4279
  %v4326 = vpack.c.bf16 %v4291, %v4287
  %v4327 = vpack.c.bf16 %v4293, %v4289
  %v4328 = vpack.c.bf16 %v4301, %v4297
  %v4329 = vpack.c.bf16 %v4303, %v4299
  %v4330 = vpack.c.bf16 %v4311, %v4307
  %v4331 = vpack.c.bf16 %v4313, %v4309
  %s4332 = sshra.s32 %s4315, 4
  %s4333 = sand.u32 %s4315, 15
  %s4334 = smul.u32 %s4332, 2
  %s4335 = smul.addr %s4334, 8
  %s4336 = scalar_lea.vmem [#allocation2], %s4335
  %4337 = vst [vmem:[%s4336] sm:$0xff] %v4316
  %4338 = vst [vmem:[%s4336 + $0x8] sm:$0xff] %v4317
  %4339 = vst [vmem:[%s4336 + $0x10] sm:$0xff] %v4318
  %4340 = vst [vmem:[%s4336 + $0x18] sm:$0xff] %v4319
  %4341 = vst [vmem:[%s4336 + $0x20] sm:$0xff] %v4320
  %4342 = vst [vmem:[%s4336 + $0x28] sm:$0xff] %v4321
  %4343 = vst [vmem:[%s4336 + $0x30] sm:$0xff] %v4322
  %4344 = vst [vmem:[%s4336 + $0x38] sm:$0xff] %v4323
  %4345 = vst [vmem:[%s4336 + $0x40] sm:$0xff] %v4324
  %4346 = vst [vmem:[%s4336 + $0x48] sm:$0xff] %v4325
  %4347 = vst [vmem:[%s4336 + $0x50] sm:$0xff] %v4326
  %4348 = vst [vmem:[%s4336 + $0x58] sm:$0xff] %v4327
  %4349 = vst [vmem:[%s4336 + $0x60] sm:$0xff] %v4328
  %4350 = vst [vmem:[%s4336 + $0x68] sm:$0xff] %v4329
  %4351 = vst [vmem:[%s4336 + $0x70] sm:$0xff] %v4330
  %4352 = vst [vmem:[%s4336 + $0x78] sm:$0xff] %v4331
  %v4353 = vld [vmem:[#allocation3] sm:$0x3]
  %v4354 = vadd.f32 %v4237, %v4241
  %v4355 = vadd.f32 %v4354, %v4247
  %v4356 = vadd.f32 %v4355, %v4251
  %v4357 = vadd.f32 %v4356, %v4257
  %v4358 = vadd.f32 %v4357, %v4261
  %v4359 = vadd.f32 %v4358, %v4267
  %v4360 = vadd.f32 %v4359, %v4271
  %v4361 = vadd.f32 %v4360, %v4277
  %v4362 = vadd.f32 %v4361, %v4281
  %v4363 = vadd.f32 %v4362, %v4287
  %v4364 = vadd.f32 %v4363, %v4291
  %v4365 = vadd.f32 %v4364, %v4297
  %v4366 = vadd.f32 %v4365, %v4301
  %v4367 = vadd.f32 %v4366, %v4307
  %v4368 = vadd.f32 %v4367, %v4311
  %v4369 = vrot.slane %v4368, 4
  %v4370 = vadd.f32 %v4368, %v4369
  %v4371 = vrot.slane %v4370, 2
  %v4372 = vadd.f32 %v4370, %v4371
  %v4373 = vrot.slane %v4372, 1
  %v4374 = vadd.f32 %v4372, %v4373
  %v4375 = vadd.f32 %v4239, %v4243
  %v4376 = vadd.f32 %v4375, %v4249
  %v4377 = vadd.f32 %v4376, %v4253
  %v4378 = vadd.f32 %v4377, %v4259
  %v4379 = vadd.f32 %v4378, %v4263
  %v4380 = vadd.f32 %v4379, %v4269
  %v4381 = vadd.f32 %v4380, %v4273
  %v4382 = vadd.f32 %v4381, %v4279
  %v4383 = vadd.f32 %v4382, %v4283
  %v4384 = vadd.f32 %v4383, %v4289
  %v4385 = vadd.f32 %v4384, %v4293
  %v4386 = vadd.f32 %v4385, %v4299
  %v4387 = vadd.f32 %v4386, %v4303
  %v4388 = vadd.f32 %v4387, %v4309
  %v4389 = vadd.f32 %v4388, %v4313
  %v4390 = vrot.slane %v4389, 4
  %v4391 = vadd.f32 %v4389, %v4390
  %v4392 = vrot.slane %v4391, 2
  %v4393 = vadd.f32 %v4391, %v4392
  %v4394 = vrot.slane %v4393, 1
  %v4395 = vadd.f32 %v4393, %v4394
  %v4398 = vcombine.low %v4374, %v4395
  %v4400 = vunpack.c.l.s4 1966171168
  %v4401 = vunpack.c.0.s8 %v4400
  %v4402 = vlaneseq
  %v4403 = vshrl.u32 %v4402, 7
  %v4404 = vsub.s32 %v4401, %v4403
  %v4405 = vrot.slane %v4398, %v4404
  %v4407 = vunpack.c.l.s4 1966171168
  %v4408 = vunpack.c.0.s8 %v4407
  %v4409 = vlaneseq
  %v4410 = vshrl.u32 %v4409, 7
  %v4411 = vsub.s32 %v4408, %v4410
  %v4412 = vrot.slane %v4405, %v4411
  %v4414 = vadd.f32 %v4353, %v4412
  %v4415 = vlaneseq
  %vm4416 = vcmp.ge.s32.totalorder %v4415, 0
  %vm4417 = vcmp.lt.s32.totalorder %v4415, 256
  %vm4418 = vmand %vm4416, %vm4417
  %4419 = vst.msk [vmem:[#allocation3] sm:$0x3] %vm4418, %v4414
  %v4420 = vld [vmem:[#allocation4] sm:$0x3]
  %v4421 = vmul.f32 %v4237, %v4237
  %v4422 = vmul.f32 %v4239, %v4239
  %v4423 = vmul.f32 %v4241, %v4241
  %v4424 = vmul.f32 %v4243, %v4243
  %v4425 = vmul.f32 %v4247, %v4247
  %v4426 = vmul.f32 %v4249, %v4249
  %v4427 = vmul.f32 %v4251, %v4251
  %v4428 = vmul.f32 %v4253, %v4253
  %v4429 = vmul.f32 %v4257, %v4257
  %v4430 = vmul.f32 %v4259, %v4259
  %v4431 = vmul.f32 %v4261, %v4261
  %v4432 = vmul.f32 %v4263, %v4263
  %v4433 = vmul.f32 %v4267, %v4267
  %v4434 = vmul.f32 %v4269, %v4269
  %v4435 = vmul.f32 %v4271, %v4271
  %v4436 = vmul.f32 %v4273, %v4273
  %v4437 = vmul.f32 %v4277, %v4277
  %v4438 = vmul.f32 %v4279, %v4279
  %v4439 = vmul.f32 %v4281, %v4281
  %v4440 = vmul.f32 %v4283, %v4283
  %v4441 = vmul.f32 %v4287, %v4287
  %v4442 = vmul.f32 %v4289, %v4289
  %v4443 = vmul.f32 %v4291, %v4291
  %v4444 = vmul.f32 %v4293, %v4293
  %v4445 = vmul.f32 %v4297, %v4297
  %v4446 = vmul.f32 %v4299, %v4299
  %v4447 = vmul.f32 %v4301, %v4301
  %v4448 = vmul.f32 %v4303, %v4303
  %v4449 = vmul.f32 %v4307, %v4307
  %v4450 = vmul.f32 %v4309, %v4309
  %v4451 = vmul.f32 %v4311, %v4311
  %v4452 = vmul.f32 %v4313, %v4313
  %v4453 = vadd.f32 %v4421, %v4423
  %v4454 = vadd.f32 %v4453, %v4425
  %v4455 = vadd.f32 %v4454, %v4427
  %v4456 = vadd.f32 %v4455, %v4429
  %v4457 = vadd.f32 %v4456, %v4431
  %v4458 = vadd.f32 %v4457, %v4433
  %v4459 = vadd.f32 %v4458, %v4435
  %v4460 = vadd.f32 %v4459, %v4437
  %v4461 = vadd.f32 %v4460, %v4439
  %v4462 = vadd.f32 %v4461, %v4441
  %v4463 = vadd.f32 %v4462, %v4443
  %v4464 = vadd.f32 %v4463, %v4445
  %v4465 = vadd.f32 %v4464, %v4447
  %v4466 = vadd.f32 %v4465, %v4449
  %v4467 = vadd.f32 %v4466, %v4451
  %v4468 = vrot.slane %v4467, 4
  %v4469 = vadd.f32 %v4467, %v4468
  %v4470 = vrot.slane %v4469, 2
  %v4471 = vadd.f32 %v4469, %v4470
  %v4472 = vrot.slane %v4471, 1
  %v4473 = vadd.f32 %v4471, %v4472
  %v4474 = vadd.f32 %v4422, %v4424
  %v4475 = vadd.f32 %v4474, %v4426
  %v4476 = vadd.f32 %v4475, %v4428
  %v4477 = vadd.f32 %v4476, %v4430
  %v4478 = vadd.f32 %v4477, %v4432
  %v4479 = vadd.f32 %v4478, %v4434
  %v4480 = vadd.f32 %v4479, %v4436
  %v4481 = vadd.f32 %v4480, %v4438
  %v4482 = vadd.f32 %v4481, %v4440
  %v4483 = vadd.f32 %v4482, %v4442
  %v4484 = vadd.f32 %v4483, %v4444
  %v4485 = vadd.f32 %v4484, %v4446
  %v4486 = vadd.f32 %v4485, %v4448
  %v4487 = vadd.f32 %v4486, %v4450
  %v4488 = vadd.f32 %v4487, %v4452
  %v4489 = vrot.slane %v4488, 4
  %v4490 = vadd.f32 %v4488, %v4489
  %v4491 = vrot.slane %v4490, 2
  %v4492 = vadd.f32 %v4490, %v4491
  %v4493 = vrot.slane %v4492, 1
  %v4494 = vadd.f32 %v4492, %v4493
  %v4497 = vcombine.low %v4473, %v4494
  %v4499 = vunpack.c.l.s4 1966171168
  %v4500 = vunpack.c.0.s8 %v4499
  %v4501 = vlaneseq
  %v4502 = vshrl.u32 %v4501, 7
  %v4503 = vsub.s32 %v4500, %v4502
  %v4504 = vrot.slane %v4497, %v4503
  %v4506 = vunpack.c.l.s4 1966171168
  %v4507 = vunpack.c.0.s8 %v4506
  %v4508 = vlaneseq
  %v4509 = vshrl.u32 %v4508, 7
  %v4510 = vsub.s32 %v4507, %v4509
  %v4511 = vrot.slane %v4504, %v4510
  %v4513 = vadd.f32 %v4420, %v4511
  %4514 = vst.msk [vmem:[#allocation4] sm:$0x3] %vm4418, %v4513
  // Predicated region
  $region90: #{fcnn_forward.1} parent=0 // pred_check
    %p4515 = pneg %p69
  $region91: #{fcnn_forward.1} parent=0 // pred_check_branch
    %4517 = sbr.rel (%p4515) target = $region93
  $region92: #{fcnn_forward.1} parent=0 // pred_region
    %v4518 = vld [vmem:[#allocation3] sm:$0x3]
    %v4519 = vmul.f32 %v4518, 0.125
    %v4520 = vld [vmem:[#allocation4] sm:$0x3]
    %v4521 = vmul.f32 %v4520, 0.125
    %v4522 = vmul.f32 %v4519, %v4519
    %v4523 = vsub.f32 %v4521, %v4522
    %v4524 = vmax.f32 %v4523, 0.0
    %v4525 = vld [vmem:[%s2] sm:$0x3]
    %v4526 = vadd.f32 %v4524, 1e-05
    %v4527 = vrsqrt.pop %v4526
    %v4528 = vmul.f32 %v4525, %v4527
    %v4529 = vld [vmem:[%s3] sm:$0x3]
    %v4530 = vmul.f32 %v4519, %v4528
    %v4531 = vsub.f32 %v4529, %v4530
    %v4532 = vld [vmem:[%s4] sm:$0xff]
    %v4533 = vld [vmem:[%s4 + $0x8] sm:$0xff]
    %v4534 = vld [vmem:[%s4 + $0x10] sm:$0xff]
    %v4535 = vld [vmem:[%s4 + $0x18] sm:$0xff]
    %v4536 = vld [vmem:[%s4 + $0x20] sm:$0xff]
    %v4537 = vld [vmem:[%s4 + $0x28] sm:$0xff]
    %v4538 = vld [vmem:[%s4 + $0x30] sm:$0xff]
    %v4539 = vld [vmem:[%s4 + $0x38] sm:$0xff]
    %v4540 = vld [vmem:[%s4 + $0x40] sm:$0xff]
    %v4541 = vld [vmem:[%s4 + $0x48] sm:$0xff]
    %v4542 = vld [vmem:[%s4 + $0x50] sm:$0xff]
    %v4543 = vld [vmem:[%s4 + $0x58] sm:$0xff]
    %v4544 = vld [vmem:[%s4 + $0x60] sm:$0xff]
    %v4545 = vld [vmem:[%s4 + $0x68] sm:$0xff]
    %v4546 = vld [vmem:[%s4 + $0x70] sm:$0xff]
    %v4547 = vld [vmem:[%s4 + $0x78] sm:$0xff]
    %v4548 = vld [vmem:[%s4 + $0x80] sm:$0xff]
    %v4549 = vld [vmem:[%s4 + $0x88] sm:$0xff]
    %v4550 = vld [vmem:[%s4 + $0x90] sm:$0xff]
    %v4551 = vld [vmem:[%s4 + $0x98] sm:$0xff]
    %v4552 = vld [vmem:[%s4 + $0xa0] sm:$0xff]
    %v4553 = vld [vmem:[%s4 + $0xa8] sm:$0xff]
    %v4554 = vld [vmem:[%s4 + $0xb0] sm:$0xff]
    %v4555 = vld [vmem:[%s4 + $0xb8] sm:$0xff]
    %v4556 = vld [vmem:[%s4 + $0xc0] sm:$0xff]
    %v4557 = vld [vmem:[%s4 + $0xc8] sm:$0xff]
    %v4558 = vld [vmem:[%s4 + $0xd0] sm:$0xff]
    %v4559 = vld [vmem:[%s4 + $0xd8] sm:$0xff]
    %v4560 = vld [vmem:[%s4 + $0xe0] sm:$0xff]
    %v4561 = vld [vmem:[%s4 + $0xe8] sm:$0xff]
    %v4562 = vld [vmem:[%s4 + $0xf0] sm:$0xff]
    %v4563 = vld [vmem:[%s4 + $0xf8] sm:$0xff]
    %4564 = vst.msk [vmem:[#allocation3] sm:$0x3] %vm4418, 0.0
    %4565 = vst.msk [vmem:[#allocation4] sm:$0x3] %vm4418, 0.0
    %s4566 = smul.u32 0, 2
    %s4567 = smul.addr %s4566, 8
    %s4568 = scalar_lea.vmem [#allocation2], %s4567
    %v4569 = vld [vmem:[%s4568] sm:$0xff]
    %v4570 = vld [vmem:[%s4568 + $0x8] sm:$0xff]
    %v4571 = vld [vmem:[%s4568 + $0x10] sm:$0xff]
    %v4572 = vld [vmem:[%s4568 + $0x18] sm:$0xff]
    %v4573 = vld [vmem:[%s4568 + $0x20] sm:$0xff]
    %v4574 = vld [vmem:[%s4568 + $0x28] sm:$0xff]
    %v4575 = vld [vmem:[%s4568 + $0x30] sm:$0xff]
    %v4576 = vld [vmem:[%s4568 + $0x38] sm:$0xff]
    %v4577 = vld [vmem:[%s4568 + $0x40] sm:$0xff]
    %v4578 = vld [vmem:[%s4568 + $0x48] sm:$0xff]
    %v4579 = vld [vmem:[%s4568 + $0x50] sm:$0xff]
    %v4580 = vld [vmem:[%s4568 + $0x58] sm:$0xff]
    %v4581 = vld [vmem:[%s4568 + $0x60] sm:$0xff]
    %v4582 = vld [vmem:[%s4568 + $0x68] sm:$0xff]
    %v4583 = vld [vmem:[%s4568 + $0x70] sm:$0xff]
    %v4584 = vld [vmem:[%s4568 + $0x78] sm:$0xff]
    %v4585 = vunpack.c.l.bf16 %v4569
    %v4586 = vunpack.c.l.bf16 %v4570
    %v4587 = vunpack.c.h.bf16 %v4569
    %v4588 = vunpack.c.h.bf16 %v4570
    %v4589 = vunpack.c.l.bf16 %v4571
    %v4590 = vunpack.c.l.bf16 %v4572
    %v4591 = vunpack.c.h.bf16 %v4571
    %v4592 = vunpack.c.h.bf16 %v4572
    %v4593 = vunpack.c.l.bf16 %v4573
    %v4594 = vunpack.c.l.bf16 %v4574
    %v4595 = vunpack.c.h.bf16 %v4573
    %v4596 = vunpack.c.h.bf16 %v4574
    %v4597 = vunpack.c.l.bf16 %v4575
    %v4598 = vunpack.c.l.bf16 %v4576
    %v4599 = vunpack.c.h.bf16 %v4575
    %v4600 = vunpack.c.h.bf16 %v4576
    %v4601 = vunpack.c.l.bf16 %v4577
    %v4602 = vunpack.c.l.bf16 %v4578
    %v4603 = vunpack.c.h.bf16 %v4577
    %v4604 = vunpack.c.h.bf16 %v4578
    %v4605 = vunpack.c.l.bf16 %v4579
    %v4606 = vunpack.c.l.bf16 %v4580
    %v4607 = vunpack.c.h.bf16 %v4579
    %v4608 = vunpack.c.h.bf16 %v4580
    %v4609 = vunpack.c.l.bf16 %v4581
    %v4610 = vunpack.c.l.bf16 %v4582
    %v4611 = vunpack.c.h.bf16 %v4581
    %v4612 = vunpack.c.h.bf16 %v4582
    %v4613 = vunpack.c.l.bf16 %v4583
    %v4614 = vunpack.c.l.bf16 %v4584
    %v4615 = vunpack.c.h.bf16 %v4583
    %v4616 = vunpack.c.h.bf16 %v4584
    %v4618 = vlaneseq
    %v4619 = vshrl.u32 %v4618, 7
    %v4620 = vsub.s32 0, %v4619
    %v4621 = vrot.slane %v4528, %v4620
    %v4622 = vlaneseq
    %v4623 = vshrl.u32 %v4622, 7
    %v4624 = vsub.s32 1, %v4623
    %v4625 = vrot.slane %v4528, %v4624
    %v4628 = vmul.f32 %v4585, %v4621
    %v4629 = vmul.f32 %v4586, %v4625
    %v4630 = vmul.f32 %v4587, %v4621
    %v4631 = vmul.f32 %v4588, %v4625
    %v4632 = vmul.f32 %v4589, %v4621
    %v4633 = vmul.f32 %v4590, %v4625
    %v4634 = vmul.f32 %v4591, %v4621
    %v4635 = vmul.f32 %v4592, %v4625
    %v4636 = vmul.f32 %v4593, %v4621
    %v4637 = vmul.f32 %v4594, %v4625
    %v4638 = vmul.f32 %v4595, %v4621
    %v4639 = vmul.f32 %v4596, %v4625
    %v4640 = vmul.f32 %v4597, %v4621
    %v4641 = vmul.f32 %v4598, %v4625
    %v4642 = vmul.f32 %v4599, %v4621
    %v4643 = vmul.f32 %v4600, %v4625
    %v4644 = vmul.f32 %v4601, %v4621
    %v4645 = vmul.f32 %v4602, %v4625
    %v4646 = vmul.f32 %v4603, %v4621
    %v4647 = vmul.f32 %v4604, %v4625
    %v4648 = vmul.f32 %v4605, %v4621
    %v4649 = vmul.f32 %v4606, %v4625
    %v4650 = vmul.f32 %v4607, %v4621
    %v4651 = vmul.f32 %v4608, %v4625
    %v4652 = vmul.f32 %v4609, %v4621
    %v4653 = vmul.f32 %v4610, %v4625
    %v4654 = vmul.f32 %v4611, %v4621
    %v4655 = vmul.f32 %v4612, %v4625
    %v4656 = vmul.f32 %v4613, %v4621
    %v4657 = vmul.f32 %v4614, %v4625
    %v4658 = vmul.f32 %v4615, %v4621
    %v4659 = vmul.f32 %v4616, %v4625
    %v4661 = vlaneseq
    %v4662 = vshrl.u32 %v4661, 7
    %v4663 = vsub.s32 0, %v4662
    %v4664 = vrot.slane %v4531, %v4663
    %v4665 = vlaneseq
    %v4666 = vshrl.u32 %v4665, 7
    %v4667 = vsub.s32 1, %v4666
    %v4668 = vrot.slane %v4531, %v4667
    %v4671 = vadd.f32 %v4628, %v4664
    %v4672 = vadd.f32 %v4629, %v4668
    %v4673 = vadd.f32 %v4630, %v4664
    %v4674 = vadd.f32 %v4631, %v4668
    %v4675 = vadd.f32 %v4632, %v4664
    %v4676 = vadd.f32 %v4633, %v4668
    %v4677 = vadd.f32 %v4634, %v4664
    %v4678 = vadd.f32 %v4635, %v4668
    %v4679 = vadd.f32 %v4636, %v4664
    %v4680 = vadd.f32 %v4637, %v4668
    %v4681 = vadd.f32 %v4638, %v4664
    %v4682 = vadd.f32 %v4639, %v4668
    %v4683 = vadd.f32 %v4640, %v4664
    %v4684 = vadd.f32 %v4641, %v4668
    %v4685 = vadd.f32 %v4642, %v4664
    %v4686 = vadd.f32 %v4643, %v4668
    %v4687 = vadd.f32 %v4644, %v4664
    %v4688 = vadd.f32 %v4645, %v4668
    %v4689 = vadd.f32 %v4646, %v4664
    %v4690 = vadd.f32 %v4647, %v4668
    %v4691 = vadd.f32 %v4648, %v4664
    %v4692 = vadd.f32 %v4649, %v4668
    %v4693 = vadd.f32 %v4650, %v4664
    %v4694 = vadd.f32 %v4651, %v4668
    %v4695 = vadd.f32 %v4652, %v4664
    %v4696 = vadd.f32 %v4653, %v4668
    %v4697 = vadd.f32 %v4654, %v4664
    %v4698 = vadd.f32 %v4655, %v4668
    %v4699 = vadd.f32 %v4656, %v4664
    %v4700 = vadd.f32 %v4657, %v4668
    %v4701 = vadd.f32 %v4658, %v4664
    %v4702 = vadd.f32 %v4659, %v4668
    %v4703 = vmax.f32 %v4671, 0.0
    %v4704 = vmax.f32 %v4672, 0.0
    %v4705 = vmax.f32 %v4673, 0.0
    %v4706 = vmax.f32 %v4674, 0.0
    %v4707 = vmax.f32 %v4675, 0.0
    %v4708 = vmax.f32 %v4676, 0.0
    %v4709 = vmax.f32 %v4677, 0.0
    %v4710 = vmax.f32 %v4678, 0.0
    %v4711 = vmax.f32 %v4679, 0.0
    %v4712 = vmax.f32 %v4680, 0.0
    %v4713 = vmax.f32 %v4681, 0.0
    %v4714 = vmax.f32 %v4682, 0.0
    %v4715 = vmax.f32 %v4683, 0.0
    %v4716 = vmax.f32 %v4684, 0.0
    %v4717 = vmax.f32 %v4685, 0.0
    %v4718 = vmax.f32 %v4686, 0.0
    %v4719 = vmax.f32 %v4687, 0.0
    %v4720 = vmax.f32 %v4688, 0.0
    %v4721 = vmax.f32 %v4689, 0.0
    %v4722 = vmax.f32 %v4690, 0.0
    %v4723 = vmax.f32 %v4691, 0.0
    %v4724 = vmax.f32 %v4692, 0.0
    %v4725 = vmax.f32 %v4693, 0.0
    %v4726 = vmax.f32 %v4694, 0.0
    %v4727 = vmax.f32 %v4695, 0.0
    %v4728 = vmax.f32 %v4696, 0.0
    %v4729 = vmax.f32 %v4697, 0.0
    %v4730 = vmax.f32 %v4698, 0.0
    %v4731 = vmax.f32 %v4699, 0.0
    %v4732 = vmax.f32 %v4700, 0.0
    %v4733 = vmax.f32 %v4701, 0.0
    %v4734 = vmax.f32 %v4702, 0.0
    %v4735 = vpack.c.bf16 %v4705, %v4703
    %v4736 = vpack.c.bf16 %v4706, %v4704
    %v4737 = vpack.c.bf16 %v4709, %v4707
    %v4738 = vpack.c.bf16 %v4710, %v4708
    %v4739 = vpack.c.bf16 %v4713, %v4711
    %v4740 = vpack.c.bf16 %v4714, %v4712
    %v4741 = vpack.c.bf16 %v4717, %v4715
    %v4742 = vpack.c.bf16 %v4718, %v4716
    %v4743 = vpack.c.bf16 %v4721, %v4719
    %v4744 = vpack.c.bf16 %v4722, %v4720
    %v4745 = vpack.c.bf16 %v4725, %v4723
    %v4746 = vpack.c.bf16 %v4726, %v4724
    %v4747 = vpack.c.bf16 %v4729, %v4727
    %v4748 = vpack.c.bf16 %v4730, %v4728
    %v4749 = vpack.c.bf16 %v4733, %v4731
    %v4750 = vpack.c.bf16 %v4734, %v4732
    %v4783 = vunpack.c.l.b16 %v4532
    %v4784 = vunpack.c.h.b16 %v4532
    %v4785 = vunpack.c.l.b16 %v4533
    %v4786 = vunpack.c.h.b16 %v4533
    %v4787 = vunpack.c.l.b16 %v4534
    %v4788 = vunpack.c.h.b16 %v4534
    %v4789 = vunpack.c.l.b16 %v4535
    %v4790 = vunpack.c.h.b16 %v4535
    %v4791 = vunpack.c.l.b16 %v4536
    %v4792 = vunpack.c.h.b16 %v4536
    %v4793 = vunpack.c.l.b16 %v4537
    %v4794 = vunpack.c.h.b16 %v4537
    %v4795 = vunpack.c.l.b16 %v4538
    %v4796 = vunpack.c.h.b16 %v4538
    %v4797 = vunpack.c.l.b16 %v4539
    %v4798 = vunpack.c.h.b16 %v4539
    %v4799 = vunpack.c.l.b16 %v4540
    %v4800 = vunpack.c.h.b16 %v4540
    %v4801 = vunpack.c.l.b16 %v4541
    %v4802 = vunpack.c.h.b16 %v4541
    %v4803 = vunpack.c.l.b16 %v4542
    %v4804 = vunpack.c.h.b16 %v4542
    %v4805 = vunpack.c.l.b16 %v4543
    %v4806 = vunpack.c.h.b16 %v4543
    %v4807 = vunpack.c.l.b16 %v4544
    %v4808 = vunpack.c.h.b16 %v4544
    %v4809 = vunpack.c.l.b16 %v4545
    %v4810 = vunpack.c.h.b16 %v4545
    %v4811 = vunpack.c.l.b16 %v4546
    %v4812 = vunpack.c.h.b16 %v4546
    %v4813 = vunpack.c.l.b16 %v4547
    %v4814 = vunpack.c.h.b16 %v4547
    %v4815 = vunpack.c.l.b16 %v4548
    %v4816 = vunpack.c.h.b16 %v4548
    %v4817 = vunpack.c.l.b16 %v4549
    %v4818 = vunpack.c.h.b16 %v4549
    %v4819 = vunpack.c.l.b16 %v4550
    %v4820 = vunpack.c.h.b16 %v4550
    %v4821 = vunpack.c.l.b16 %v4551
    %v4822 = vunpack.c.h.b16 %v4551
    %v4823 = vunpack.c.l.b16 %v4552
    %v4824 = vunpack.c.h.b16 %v4552
    %v4825 = vunpack.c.l.b16 %v4553
    %v4826 = vunpack.c.h.b16 %v4553
    %v4827 = vunpack.c.l.b16 %v4554
    %v4828 = vunpack.c.h.b16 %v4554
    %v4829 = vunpack.c.l.b16 %v4555
    %v4830 = vunpack.c.h.b16 %v4555
    %v4831 = vunpack.c.l.b16 %v4556
    %v4832 = vunpack.c.h.b16 %v4556
    %v4833 = vunpack.c.l.b16 %v4557
    %v4834 = vunpack.c.h.b16 %v4557
    %v4835 = vunpack.c.l.b16 %v4558
    %v4836 = vunpack.c.h.b16 %v4558
    %v4837 = vunpack.c.l.b16 %v4559
    %v4838 = vunpack.c.h.b16 %v4559
    %v4839 = vunpack.c.l.b16 %v4560
    %v4840 = vunpack.c.h.b16 %v4560
    %v4841 = vunpack.c.l.b16 %v4561
    %v4842 = vunpack.c.h.b16 %v4561
    %v4843 = vunpack.c.l.b16 %v4562
    %v4844 = vunpack.c.h.b16 %v4562
    %v4845 = vunpack.c.l.b16 %v4563
    %v4846 = vunpack.c.h.b16 %v4563
    %v4847 = vpack.c.b16 %v4785, %v4783
    %v4848 = vpack.c.b16 %v4786, %v4784
    %v4849 = vpack.c.b16 %v4789, %v4787
    %v4850 = vpack.c.b16 %v4790, %v4788
    %v4851 = vpack.c.b16 %v4793, %v4791
    %v4852 = vpack.c.b16 %v4794, %v4792
    %v4853 = vpack.c.b16 %v4797, %v4795
    %v4854 = vpack.c.b16 %v4798, %v4796
    %v4855 = vpack.c.b16 %v4801, %v4799
    %v4856 = vpack.c.b16 %v4802, %v4800
    %v4857 = vpack.c.b16 %v4805, %v4803
    %v4858 = vpack.c.b16 %v4806, %v4804
    %v4859 = vpack.c.b16 %v4809, %v4807
    %v4860 = vpack.c.b16 %v4810, %v4808
    %v4861 = vpack.c.b16 %v4813, %v4811
    %v4862 = vpack.c.b16 %v4814, %v4812
    %v4863 = vpack.c.b16 %v4817, %v4815
    %v4864 = vpack.c.b16 %v4818, %v4816
    %v4865 = vpack.c.b16 %v4821, %v4819
    %v4866 = vpack.c.b16 %v4822, %v4820
    %v4867 = vpack.c.b16 %v4825, %v4823
    %v4868 = vpack.c.b16 %v4826, %v4824
    %v4869 = vpack.c.b16 %v4829, %v4827
    %v4870 = vpack.c.b16 %v4830, %v4828
    %v4871 = vpack.c.b16 %v4833, %v4831
    %v4872 = vpack.c.b16 %v4834, %v4832
    %v4873 = vpack.c.b16 %v4837, %v4835
    %v4874 = vpack.c.b16 %v4838, %v4836
    %v4875 = vpack.c.b16 %v4841, %v4839
    %v4876 = vpack.c.b16 %v4842, %v4840
    %v4877 = vpack.c.b16 %v4845, %v4843
    %v4878 = vpack.c.b16 %v4846, %v4844
    %4911 = vmatprep.subr.bf16.mxu0 %v4848
    %4912 = vmatpush1.bf16.msra.mxu0 %v4847
    %4913 = vmatprep.subr.bf16.mxu0 %v4850
    %4914 = vmatpush1.bf16.msra.mxu0 %v4849
    %4915 = vmatprep.subr.bf16.mxu0 %v4852
    %4916 = vmatpush1.bf16.msra.mxu0 %v4851
    %4917 = vmatprep.subr.bf16.mxu0 %v4854
    %4918 = vmatpush1.bf16.msra.mxu0 %v4853
    %4919 = vmatprep.subr.bf16.mxu0 %v4856
    %4920 = vmatpush1.bf16.msra.mxu0 %v4855
    %4921 = vmatprep.subr.bf16.mxu0 %v4858
    %4922 = vmatpush1.bf16.msra.mxu0 %v4857
    %4923 = vmatprep.subr.bf16.mxu0 %v4860
    %4924 = vmatpush1.bf16.msra.mxu0 %v4859
    %4925 = vmatprep.subr.bf16.mxu0 %v4862
    %4926 = vmatpush1.bf16.msra.mxu0 %v4861
    %4927 = vmatprep.subr.bf16.mxu0 %v4864
    %4928 = vmatpush1.bf16.msra.mxu0 %v4863
    %4929 = vmatprep.subr.bf16.mxu0 %v4866
    %4930 = vmatpush1.bf16.msra.mxu0 %v4865
    %4931 = vmatprep.subr.bf16.mxu0 %v4868
    %4932 = vmatpush1.bf16.msra.mxu0 %v4867
    %4933 = vmatprep.subr.bf16.mxu0 %v4870
    %4934 = vmatpush1.bf16.msra.mxu0 %v4869
    %4935 = vmatprep.subr.bf16.mxu0 %v4872
    %4936 = vmatpush1.bf16.msra.mxu0 %v4871
    %4937 = vmatprep.subr.bf16.mxu0 %v4874
    %4938 = vmatpush1.bf16.msra.mxu0 %v4873
    %4939 = vmatprep.subr.bf16.mxu0 %v4876
    %4940 = vmatpush1.bf16.msra.mxu0 %v4875
    %4941 = vmatprep.subr.bf16.mxu0 %v4878
    %4942 = vmatpush1.bf16.msra.mxu0 %v4877
    %4943 = vmatprep.mubr.bf16.mxu0 %v4736
    %4944 = vmatmul.mubr.bf16.gmra.mrb[0].mxu0 %v4735
    %v4945 = vpop.f32.mrb[0].mxu0
    %v4946 = vadd.f32 0.0, %v4945
    %v4947 = vpop.f32.mrb[0].mxu0
    %v4948 = vadd.f32 0.0, %v4947
    %v4949 = vpop.f32.mrb[0].mxu0
    %v4950 = vadd.f32 0.0, %v4949
    %v4951 = vpop.f32.mrb[0].mxu0
    %v4952 = vadd.f32 0.0, %v4951
    %4953 = vmatprep.mubr.bf16.mxu0 %v4738
    %4954 = vmatmul.mubr.bf16.gmra.mrb[0].mxu0 %v4737
    %v4955 = vpop.f32.mrb[0].mxu0
    %v4956 = vadd.f32 0.0, %v4955
    %v4957 = vpop.f32.mrb[0].mxu0
    %v4958 = vadd.f32 0.0, %v4957
    %v4959 = vpop.f32.mrb[0].mxu0
    %v4960 = vadd.f32 0.0, %v4959
    %v4961 = vpop.f32.mrb[0].mxu0
    %v4962 = vadd.f32 0.0, %v4961
    %4963 = vmatprep.mubr.bf16.mxu0 %v4740
    %4964 = vmatmul.mubr.bf16.gmra.mrb[0].mxu0 %v4739
    %v4965 = vpop.f32.mrb[0].mxu0
    %v4966 = vadd.f32 0.0, %v4965
    %v4967 = vpop.f32.mrb[0].mxu0
    %v4968 = vadd.f32 0.0, %v4967
    %v4969 = vpop.f32.mrb[0].mxu0
    %v4970 = vadd.f32 0.0, %v4969
    %v4971 = vpop.f32.mrb[0].mxu0
    %v4972 = vadd.f32 0.0, %v4971
    %4973 = vmatprep.mubr.bf16.mxu0 %v4742
    %4974 = vmatmul.mubr.bf16.gmra.mrb[0].mxu0 %v4741
    %v4975 = vpop.f32.mrb[0].mxu0
    %v4976 = vadd.f32 0.0, %v4975
    %v4977 = vpop.f32.mrb[0].mxu0
    %v4978 = vadd.f32 0.0, %v4977
    %v4979 = vpop.f32.mrb[0].mxu0
    %v4980 = vadd.f32 0.0, %v4979
    %v4981 = vpop.f32.mrb[0].mxu0
    %v4982 = vadd.f32 0.0, %v4981
    %4983 = vmatprep.mubr.bf16.mxu0 %v4744
    %4984 = vmatmul.mubr.bf16.gmra.mrb[0].mxu0 %v4743
    %v4985 = vpop.f32.mrb[0].mxu0
    %v4986 = vadd.f32 0.0, %v4985
    %v4987 = vpop.f32.mrb[0].mxu0
    %v4988 = vadd.f32 0.0, %v4987
    %v4989 = vpop.f32.mrb[0].mxu0
    %v4990 = vadd.f32 0.0, %v4989
    %v4991 = vpop.f32.mrb[0].mxu0
    %v4992 = vadd.f32 0.0, %v4991
    %4993 = vmatprep.mubr.bf16.mxu0 %v4746
    %4994 = vmatmul.mubr.bf16.gmra.mrb[0].mxu0 %v4745
    %v4995 = vpop.f32.mrb[0].mxu0
    %v4996 = vadd.f32 0.0, %v4995
    %v4997 = vpop.f32.mrb[0].mxu0
    %v4998 = vadd.f32 0.0, %v4997
    %v4999 = vpop.f32.mrb[0].mxu0
    %v5000 = vadd.f32 0.0, %v4999
    %v5001 = vpop.f32.mrb[0].mxu0
    %v5002 = vadd.f32 0.0, %v5001
    %5003 = vmatprep.mubr.bf16.mxu0 %v4748
    %5004 = vmatmul.mubr.bf16.gmra.mrb[0].mxu0 %v4747
    %v5005 = vpop.f32.mrb[0].mxu0
    %v5006 = vadd.f32 0.0, %v5005
    %v5007 = vpop.f32.mrb[0].mxu0
    %v5008 = vadd.f32 0.0, %v5007
    %v5009 = vpop.f32.mrb[0].mxu0
    %v5010 = vadd.f32 0.0, %v5009
    %v5011 = vpop.f32.mrb[0].mxu0
    %v5012 = vadd.f32 0.0, %v5011
    %5013 = vmatprep.mubr.bf16.mxu0 %v4750
    %5014 = vmatmul.mubr.bf16.gmra.mrb[0].mxu0 %v4749
    %v5015 = vpop.f32.mrb[0].mxu0
    %v5016 = vadd.f32 0.0, %v5015
    %v5017 = vpop.f32.mrb[0].mxu0
    %v5018 = vadd.f32 0.0, %v5017
    %v5019 = vpop.f32.mrb[0].mxu0
    %v5020 = vadd.f32 0.0, %v5019
    %v5021 = vpop.f32.mrb[0].mxu0
    %v5022 = vadd.f32 0.0, %v5021
    %5023 = vdwg.mxu0
    %v5024 = vlaneseq
    %v5025 = vand.u32 %v5024, 127
    %v5026 = vstv 0
    %v5027 = vadd.s32 %v5026, %v5025
    %vm5028 = vcmp.lt.s32.totalorder %v5027, 8
    %v5029 = vsel %vm5028, 1, 0
    %v5030 = vcvt.s32.f32 %v5029
    %v5031 = vld [vmem:[#allocation3] sm:$0x3]
    %5032 = vmatprep.subr.mxu0 %v4948
    %5033 = vmatpush1.msra.mxu0 %v4946
    %5034 = vmatprep.subr.mxu0 %v4952
    %5035 = vmatpush1.msra.mxu0 %v4950
    %5036 = vmatprep.subr.mxu0 %v4958
    %5037 = vmatpush1.msra.mxu0 %v4956
    %5038 = vmatprep.subr.mxu0 %v4962
    %5039 = vmatpush1.msra.mxu0 %v4960
    %5040 = vmatprep.subr.mxu0 %v4968
    %5041 = vmatpush1.msra.mxu0 %v4966
    %5042 = vmatprep.subr.mxu0 %v4972
    %5043 = vmatpush1.msra.mxu0 %v4970
    %5044 = vmatprep.subr.mxu0 %v4978
    %5045 = vmatpush1.msra.mxu0 %v4976
    %5046 = vmatprep.subr.mxu0 %v4982
    %5047 = vmatpush1.msra.mxu0 %v4980
    %5048 = vmatprep.subr.mxu0 %v4988
    %5049 = vmatpush1.msra.mxu0 %v4986
    %5050 = vmatprep.subr.mxu0 %v4992
    %5051 = vmatpush1.msra.mxu0 %v4990
    %5052 = vmatprep.subr.mxu0 %v4998
    %5053 = vmatpush1.msra.mxu0 %v4996
    %5054 = vmatprep.subr.mxu0 %v5002
    %5055 = vmatpush1.msra.mxu0 %v5000
    %5056 = vmatprep.subr.mxu0 %v5008
    %5057 = vmatpush1.msra.mxu0 %v5006
    %5058 = vmatprep.subr.mxu0 %v5012
    %5059 = vmatpush1.msra.mxu0 %v5010
    %5060 = vmatprep.subr.mxu0 %v5018
    %5061 = vmatpush1.msra.mxu0 %v5016
    %5062 = vmatprep.subr.mxu0 %v5022
    %5063 = vmatpush1.msra.mxu0 %v5020
    %5064 = vmatprep.subr.mxu0 0.0
    %5065 = vmatpush1.msra.mxu0 0.0
    %5066 = vmatprep.subr.mxu0 0.0
    %5067 = vmatpush1.msra.mxu0 0.0
    %5068 = vmatprep.subr.mxu0 0.0
    %5069 = vmatpush1.msra.mxu0 0.0
    %5070 = vmatprep.subr.mxu0 0.0
    %5071 = vmatpush1.msra.mxu0 0.0
    %5072 = vmatprep.subr.mxu0 0.0
    %5073 = vmatpush1.msra.mxu0 0.0
    %5074 = vmatprep.subr.mxu0 0.0
    %5075 = vmatpush1.msra.mxu0 0.0
    %5076 = vmatprep.subr.mxu0 0.0
    %5077 = vmatpush1.msra.mxu0 0.0
    %5078 = vmatprep.subr.mxu0 0.0
    %5079 = vmatpush1.msra.mxu0 0.0
    %5080 = vmatprep.subr.mxu0 0.0
    %5081 = vmatpush1.msra.mxu0 0.0
    %5082 = vmatprep.subr.mxu0 0.0
    %5083 = vmatpush1.msra.mxu0 0.0
    %5084 = vmatprep.subr.mxu0 0.0
    %5085 = vmatpush1.msra.mxu0 0.0
    %5086 = vmatprep.subr.mxu0 0.0
    %5087 = vmatpush1.msra.mxu0 0.0
    %5088 = vmatprep.subr.mxu0 0.0
    %5089 = vmatpush1.msra.mxu0 0.0
    %5090 = vmatprep.subr.mxu0 0.0
    %5091 = vmatpush1.msra.mxu0 0.0
    %5092 = vmatprep.subr.mxu0 0.0
    %5093 = vmatpush1.msra.mxu0 0.0
    %5094 = vmatprep.subr.mxu0 0.0
    %5095 = vmatpush1.msra.mxu0 0.0
    %5096 = vmatprep.mubr.f32.mxu0 0.0
    %5097 = vmatmul.mubr.f32.gmra.mrb[0].mxu0 %v5030
    %v5098 = vpop.f32.mrb[0].mxu0
    %v5099 = vadd.f32 0.0, %v5098
    %v5100 = vpop.f32.mrb[0].mxu0
    %v5101 = vadd.f32 0.0, %v5100
    %5102 = vdwg.mxu0
    %v5105 = vcombine.low %v5099, %v5101
    %v5107 = vunpack.c.l.s4 1966171168
    %v5108 = vunpack.c.0.s8 %v5107
    %v5109 = vlaneseq
    %v5110 = vshrl.u32 %v5109, 7
    %v5111 = vsub.s32 %v5108, %v5110
    %v5112 = vrot.slane %v5105, %v5111
    %v5114 = vunpack.c.l.s4 1966171168
    %v5115 = vunpack.c.0.s8 %v5114
    %v5116 = vlaneseq
    %v5117 = vshrl.u32 %v5116, 7
    %v5118 = vsub.s32 %v5115, %v5117
    %v5119 = vrot.slane %v5112, %v5118
    %v5121 = vadd.f32 %v5031, %v5119
    %5122 = vst.msk [vmem:[#allocation3] sm:$0x3] %vm4418, %v5121
    %v5123 = vld [vmem:[#allocation4] sm:$0x3]
    %v5124 = vmul.f32 %v4946, %v4946
    %v5125 = vmul.f32 %v4948, %v4948
    %v5126 = vmul.f32 %v4950, %v4950
    %v5127 = vmul.f32 %v4952, %v4952
    %v5128 = vmul.f32 %v4956, %v4956
    %v5129 = vmul.f32 %v4958, %v4958
    %v5130 = vmul.f32 %v4960, %v4960
    %v5131 = vmul.f32 %v4962, %v4962
    %v5132 = vmul.f32 %v4966, %v4966
    %v5133 = vmul.f32 %v4968, %v4968
    %v5134 = vmul.f32 %v4970, %v4970
    %v5135 = vmul.f32 %v4972, %v4972
    %v5136 = vmul.f32 %v4976, %v4976
    %v5137 = vmul.f32 %v4978, %v4978
    %v5138 = vmul.f32 %v4980, %v4980
    %v5139 = vmul.f32 %v4982, %v4982
    %v5140 = vmul.f32 %v4986, %v4986
    %v5141 = vmul.f32 %v4988, %v4988
    %v5142 = vmul.f32 %v4990, %v4990
    %v5143 = vmul.f32 %v4992, %v4992
    %v5144 = vmul.f32 %v4996, %v4996
    %v5145 = vmul.f32 %v4998, %v4998
    %v5146 = vmul.f32 %v5000, %v5000
    %v5147 = vmul.f32 %v5002, %v5002
    %v5148 = vmul.f32 %v5006, %v5006
    %v5149 = vmul.f32 %v5008, %v5008
    %v5150 = vmul.f32 %v5010, %v5010
    %v5151 = vmul.f32 %v5012, %v5012
    %v5152 = vmul.f32 %v5016, %v5016
    %v5153 = vmul.f32 %v5018, %v5018
    %v5154 = vmul.f32 %v5020, %v5020
    %v5155 = vmul.f32 %v5022, %v5022
    %5156 = vmatprep.subr.mxu0 %v5125
    %5157 = vmatpush1.msra.mxu0 %v5124
    %5158 = vmatprep.subr.mxu0 %v5127
    %5159 = vmatpush1.msra.mxu0 %v5126
    %5160 = vmatprep.subr.mxu0 %v5129
    %5161 = vmatpush1.msra.mxu0 %v5128
    %5162 = vmatprep.subr.mxu0 %v5131
    %5163 = vmatpush1.msra.mxu0 %v5130
    %5164 = vmatprep.subr.mxu0 %v5133
    %5165 = vmatpush1.msra.mxu0 %v5132
    %5166 = vmatprep.subr.mxu0 %v5135
    %5167 = vmatpush1.msra.mxu0 %v5134
    %5168 = vmatprep.subr.mxu0 %v5137
    %5169 = vmatpush1.msra.mxu0 %v5136
    %5170 = vmatprep.subr.mxu0 %v5139
    %5171 = vmatpush1.msra.mxu0 %v5138
    %5172 = vmatprep.subr.mxu0 %v5141
    %5173 = vmatpush1.msra.mxu0 %v5140
    %5174 = vmatprep.subr.mxu0 %v5143
    %5175 = vmatpush1.msra.mxu0 %v5142
    %5176 = vmatprep.subr.mxu0 %v5145
    %5177 = vmatpush1.msra.mxu0 %v5144
    %5178 = vmatprep.subr.mxu0 %v5147
    %5179 = vmatpush1.msra.mxu0 %v5146
    %5180 = vmatprep.subr.mxu0 %v5149
    %5181 = vmatpush1.msra.mxu0 %v5148
    %5182 = vmatprep.subr.mxu0 %v5151
    %5183 = vmatpush1.msra.mxu0 %v5150
    %5184 = vmatprep.subr.mxu0 %v5153
    %5185 = vmatpush1.msra.mxu0 %v5152
    %5186 = vmatprep.subr.mxu0 %v5155
    %5187 = vmatpush1.msra.mxu0 %v5154
    %5188 = vmatprep.subr.mxu0 0.0
    %5189 = vmatpush1.msra.mxu0 0.0
    %5190 = vmatprep.subr.mxu0 0.0
    %5191 = vmatpush1.msra.mxu0 0.0
    %5192 = vmatprep.subr.mxu0 0.0
    %5193 = vmatpush1.msra.mxu0 0.0
    %5194 = vmatprep.subr.mxu0 0.0
    %5195 = vmatpush1.msra.mxu0 0.0
    %5196 = vmatprep.subr.mxu0 0.0
    %5197 = vmatpush1.msra.mxu0 0.0
    %5198 = vmatprep.subr.mxu0 0.0
    %5199 = vmatpush1.msra.mxu0 0.0
    %5200 = vmatprep.subr.mxu0 0.0
    %5201 = vmatpush1.msra.mxu0 0.0
    %5202 = vmatprep.subr.mxu0 0.0
    %5203 = vmatpush1.msra.mxu0 0.0
    %5204 = vmatprep.subr.mxu0 0.0
    %5205 = vmatpush1.msra.mxu0 0.0
    %5206 = vmatprep.subr.mxu0 0.0
    %5207 = vmatpush1.msra.mxu0 0.0
    %5208 = vmatprep.subr.mxu0 0.0
    %5209 = vmatpush1.msra.mxu0 0.0
    %5210 = vmatprep.subr.mxu0 0.0
    %5211 = vmatpush1.msra.mxu0 0.0
    %5212 = vmatprep.subr.mxu0 0.0
    %5213 = vmatpush1.msra.mxu0 0.0
    %5214 = vmatprep.subr.mxu0 0.0
    %5215 = vmatpush1.msra.mxu0 0.0
    %5216 = vmatprep.subr.mxu0 0.0
    %5217 = vmatpush1.msra.mxu0 0.0
    %5218 = vmatprep.subr.mxu0 0.0
    %5219 = vmatpush1.msra.mxu0 0.0
    %5220 = vmatprep.mubr.f32.mxu0 0.0
    %5221 = vmatmul.mubr.f32.gmra.mrb[0].mxu0 %v5030
    %v5222 = vpop.f32.mrb[0].mxu0
    %v5223 = vadd.f32 0.0, %v5222
    %v5224 = vpop.f32.mrb[0].mxu0
    %v5225 = vadd.f32 0.0, %v5224
    %5226 = vdwg.mxu0
    %v5229 = vcombine.low %v5223, %v5225
    %v5231 = vunpack.c.l.s4 1966171168
    %v5232 = vunpack.c.0.s8 %v5231
    %v5233 = vlaneseq
    %v5234 = vshrl.u32 %v5233, 7
    %v5235 = vsub.s32 %v5232, %v5234
    %v5236 = vrot.slane %v5229, %v5235
    %v5238 = vunpack.c.l.s4 1966171168
    %v5239 = vunpack.c.0.s8 %v5238
    %v5240 = vlaneseq
    %v5241 = vshrl.u32 %v5240, 7
    %v5242 = vsub.s32 %v5239, %v5241
    %v5243 = vrot.slane %v5236, %v5242
    %v5245 = vadd.f32 %v5123, %v5243
    %5246 = vst.msk [vmem:[#allocation4] sm:$0x3] %vm4418, %v5245
    %v5247 = vpack.c.bf16 %v4950, %v4946
    %v5248 = vpack.c.bf16 %v4952, %v4948
    %v5249 = vpack.c.bf16 %v4960, %v4956
    %v5250 = vpack.c.bf16 %v4962, %v4958
    %v5251 = vpack.c.bf16 %v4970, %v4966
    %v5252 = vpack.c.bf16 %v4972, %v4968
    %v5253 = vpack.c.bf16 %v4980, %v4976
    %v5254 = vpack.c.bf16 %v4982, %v4978
    %v5255 = vpack.c.bf16 %v4990, %v4986
    %v5256 = vpack.c.bf16 %v4992, %v4988
    %v5257 = vpack.c.bf16 %v5000, %v4996
    %v5258 = vpack.c.bf16 %v5002, %v4998
    %v5259 = vpack.c.bf16 %v5010, %v5006
    %v5260 = vpack.c.bf16 %v5012, %v5008
    %v5261 = vpack.c.bf16 %v5020, %v5016
    %v5262 = vpack.c.bf16 %v5022, %v5018
    %5263 = vst [vmem:[%s4568] sm:$0xff] %v5247
    %5264 = vst [vmem:[%s4568 + $0x8] sm:$0xff] %v5248
    %5265 = vst [vmem:[%s4568 + $0x10] sm:$0xff] %v5249
    %5266 = vst [vmem:[%s4568 + $0x18] sm:$0xff] %v5250
    %5267 = vst [vmem:[%s4568 + $0x20] sm:$0xff] %v5251
    %5268 = vst [vmem:[%s4568 + $0x28] sm:$0xff] %v5252
    %5269 = vst [vmem:[%s4568 + $0x30] sm:$0xff] %v5253
    %5270 = vst [vmem:[%s4568 + $0x38] sm:$0xff] %v5254
    %5271 = vst [vmem:[%s4568 + $0x40] sm:$0xff] %v5255
    %5272 = vst [vmem:[%s4568 + $0x48] sm:$0xff] %v5256
    %5273 = vst [vmem:[%s4568 + $0x50] sm:$0xff] %v5257
    %5274 = vst [vmem:[%s4568 + $0x58] sm:$0xff] %v5258
    %5275 = vst [vmem:[%s4568 + $0x60] sm:$0xff] %v5259
    %5276 = vst [vmem:[%s4568 + $0x68] sm:$0xff] %v5260
    %5277 = vst [vmem:[%s4568 + $0x70] sm:$0xff] %v5261
    %5278 = vst [vmem:[%s4568 + $0x78] sm:$0xff] %v5262
    %v5279 = vld [vmem:[#allocation3] sm:$0x3]
    %v5280 = vmul.f32 %v5279, 0.125
    %v5281 = vld [vmem:[#allocation4] sm:$0x3]
    %v5282 = vmul.f32 %v5281, 0.125
    %v5283 = vmul.f32 %v5280, %v5280
    %v5284 = vsub.f32 %v5282, %v5283
    %v5285 = vmax.f32 %v5284, 0.0
    %v5286 = vld [vmem:[%s5] sm:$0x3]
    %v5287 = vadd.f32 %v5285, 1e-05
    %v5288 = vrsqrt.pop %v5287
    %v5289 = vmul.f32 %v5286, %v5288
    %v5290 = vld [vmem:[%s6] sm:$0x3]
    %v5291 = vmul.f32 %v5280, %v5289
    %v5292 = vsub.f32 %v5290, %v5291
    %v5293 = vld [vmem:[%s7] sm:$0xff]
    %v5294 = vld [vmem:[%s7 + $0x8] sm:$0xff]
    %v5295 = vld [vmem:[%s7 + $0x10] sm:$0xff]
    %v5296 = vld [vmem:[%s7 + $0x18] sm:$0xff]
    %v5297 = vld [vmem:[%s7 + $0x20] sm:$0xff]
    %v5298 = vld [vmem:[%s7 + $0x28] sm:$0xff]
    %v5299 = vld [vmem:[%s7 + $0x30] sm:$0xff]
    %v5300 = vld [vmem:[%s7 + $0x38] sm:$0xff]
    %v5301 = vld [vmem:[%s7 + $0x40] sm:$0xff]
    %v5302 = vld [vmem:[%s7 + $0x48] sm:$0xff]
    %v5303 = vld [vmem:[%s7 + $0x50] sm:$0xff]
    %v5304 = vld [vmem:[%s7 + $0x58] sm:$0xff]
    %v5305 = vld [vmem:[%s7 + $0x60] sm:$0xff]
    %v5306 = vld [vmem:[%s7 + $0x68] sm:$0xff]
    %v5307 = vld [vmem:[%s7 + $0x70] sm:$0xff]
    %v5308 = vld [vmem:[%s7 + $0x78] sm:$0xff]
    %v5309 = vld [vmem:[%s7 + $0x80] sm:$0xff]
    %v5310 = vld [vmem:[%s7 + $0x88] sm:$0xff]
    %v5311 = vld [vmem:[%s7 + $0x90] sm:$0xff]
    %v5312 = vld [vmem:[%s7 + $0x98] sm:$0xff]
    %v5313 = vld [vmem:[%s7 + $0xa0] sm:$0xff]
    %v5314 = vld [vmem:[%s7 + $0xa8] sm:$0xff]
    %v5315 = vld [vmem:[%s7 + $0xb0] sm:$0xff]
    %v5316 = vld [vmem:[%s7 + $0xb8] sm:$0xff]
    %v5317 = vld [vmem:[%s7 + $0xc0] sm:$0xff]
    %v5318 = vld [vmem:[%s7 + $0xc8] sm:$0xff]
    %v5319 = vld [vmem:[%s7 + $0xd0] sm:$0xff]
    %v5320 = vld [vmem:[%s7 + $0xd8] sm:$0xff]
    %v5321 = vld [vmem:[%s7 + $0xe0] sm:$0xff]
    %v5322 = vld [vmem:[%s7 + $0xe8] sm:$0xff]
    %v5323 = vld [vmem:[%s7 + $0xf0] sm:$0xff]
    %v5324 = vld [vmem:[%s7 + $0xf8] sm:$0xff]
    %5325 = vst.msk [vmem:[#allocation3] sm:$0x3] %vm4418, 0.0
    %5326 = vst.msk [vmem:[#allocation4] sm:$0x3] %vm4418, 0.0
    %v5327 = vld [vmem:[%s4568] sm:$0xff]
    %v5328 = vld [vmem:[%s4568 + $0x8] sm:$0xff]
    %v5329 = vld [vmem:[%s4568 + $0x10] sm:$0xff]
    %v5330 = vld [vmem:[%s4568 + $0x18] sm:$0xff]
    %v5331 = vld [vmem:[%s4568 + $0x20] sm:$0xff]
    %v5332 = vld [vmem:[%s4568 + $0x28] sm:$0xff]
    %v5333 = vld [vmem:[%s4568 + $0x30] sm:$0xff]
    %v5334 = vld [vmem:[%s4568 + $0x38] sm:$0xff]
    %v5335 = vld [vmem:[%s4568 + $0x40] sm:$0xff]
    %v5336 = vld [vmem:[%s4568 + $0x48] sm:$0xff]
    %v5337 = vld [vmem:[%s4568 + $0x50] sm:$0xff]
    %v5338 = vld [vmem:[%s4568 + $0x58] sm:$0xff]
    %v5339 = vld [vmem:[%s4568 + $0x60] sm:$0xff]
    %v5340 = vld [vmem:[%s4568 + $0x68] sm:$0xff]
    %v5341 = vld [vmem:[%s4568 + $0x70] sm:$0xff]
    %v5342 = vld [vmem:[%s4568 + $0x78] sm:$0xff]
    %v5343 = vunpack.c.l.bf16 %v5327
    %v5344 = vunpack.c.l.bf16 %v5328
    %v5345 = vunpack.c.h.bf16 %v5327
    %v5346 = vunpack.c.h.bf16 %v5328
    %v5347 = vunpack.c.l.bf16 %v5329
    %v5348 = vunpack.c.l.bf16 %v5330
    %v5349 = vunpack.c.h.bf16 %v5329
    %v5350 = vunpack.c.h.bf16 %v5330
    %v5351 = vunpack.c.l.bf16 %v5331
    %v5352 = vunpack.c.l.bf16 %v5332
    %v5353 = vunpack.c.h.bf16 %v5331
    %v5354 = vunpack.c.h.bf16 %v5332
    %v5355 = vunpack.c.l.bf16 %v5333
    %v5356 = vunpack.c.l.bf16 %v5334
    %v5357 = vunpack.c.h.bf16 %v5333
    %v5358 = vunpack.c.h.bf16 %v5334
    %v5359 = vunpack.c.l.bf16 %v5335
    %v5360 = vunpack.c.l.bf16 %v5336
    %v5361 = vunpack.c.h.bf16 %v5335
    %v5362 = vunpack.c.h.bf16 %v5336
    %v5363 = vunpack.c.l.bf16 %v5337
    %v5364 = vunpack.c.l.bf16 %v5338
    %v5365 = vunpack.c.h.bf16 %v5337
    %v5366 = vunpack.c.h.bf16 %v5338
    %v5367 = vunpack.c.l.bf16 %v5339
    %v5368 = vunpack.c.l.bf16 %v5340
    %v5369 = vunpack.c.h.bf16 %v5339
    %v5370 = vunpack.c.h.bf16 %v5340
    %v5371 = vunpack.c.l.bf16 %v5341
    %v5372 = vunpack.c.l.bf16 %v5342
    %v5373 = vunpack.c.h.bf16 %v5341
    %v5374 = vunpack.c.h.bf16 %v5342
    %v5376 = vlaneseq
    %v5377 = vshrl.u32 %v5376, 7
    %v5378 = vsub.s32 0, %v5377
    %v5379 = vrot.slane %v5289, %v5378
    %v5380 = vlaneseq
    %v5381 = vshrl.u32 %v5380, 7
    %v5382 = vsub.s32 1, %v5381
    %v5383 = vrot.slane %v5289, %v5382
    %v5386 = vmul.f32 %v5343, %v5379
    %v5387 = vmul.f32 %v5344, %v5383
    %v5388 = vmul.f32 %v5345, %v5379
    %v5389 = vmul.f32 %v5346, %v5383
    %v5390 = vmul.f32 %v5347, %v5379
    %v5391 = vmul.f32 %v5348, %v5383
    %v5392 = vmul.f32 %v5349, %v5379
    %v5393 = vmul.f32 %v5350, %v5383
    %v5394 = vmul.f32 %v5351, %v5379
    %v5395 = vmul.f32 %v5352, %v5383
    %v5396 = vmul.f32 %v5353, %v5379
    %v5397 = vmul.f32 %v5354, %v5383
    %v5398 = vmul.f32 %v5355, %v5379
    %v5399 = vmul.f32 %v5356, %v5383
    %v5400 = vmul.f32 %v5357, %v5379
    %v5401 = vmul.f32 %v5358, %v5383
    %v5402 = vmul.f32 %v5359, %v5379
    %v5403 = vmul.f32 %v5360, %v5383
    %v5404 = vmul.f32 %v5361, %v5379
    %v5405 = vmul.f32 %v5362, %v5383
    %v5406 = vmul.f32 %v5363, %v5379
    %v5407 = vmul.f32 %v5364, %v5383
    %v5408 = vmul.f32 %v5365, %v5379
    %v5409 = vmul.f32 %v5366, %v5383
    %v5410 = vmul.f32 %v5367, %v5379
    %v5411 = vmul.f32 %v5368, %v5383
    %v5412 = vmul.f32 %v5369, %v5379
    %v5413 = vmul.f32 %v5370, %v5383
    %v5414 = vmul.f32 %v5371, %v5379
    %v5415 = vmul.f32 %v5372, %v5383
    %v5416 = vmul.f32 %v5373, %v5379
    %v5417 = vmul.f32 %v5374, %v5383
    %v5419 = vlaneseq
    %v5420 = vshrl.u32 %v5419, 7
    %v5421 = vsub.s32 0, %v5420
    %v5422 = vrot.slane %v5292, %v5421
    %v5423 = vlaneseq
    %v5424 = vshrl.u32 %v5423, 7
    %v5425 = vsub.s32 1, %v5424
    %v5426 = vrot.slane %v5292, %v5425
    %v5429 = vadd.f32 %v5386, %v5422
    %v5430 = vadd.f32 %v5387, %v5426
    %v5431 = vadd.f32 %v5388, %v5422
    %v5432 = vadd.f32 %v5389, %v5426
    %v5433 = vadd.f32 %v5390, %v5422
    %v5434 = vadd.f32 %v5391, %v5426
    %v5435 = vadd.f32 %v5392, %v5422
    %v5436 = vadd.f32 %v5393, %v5426
    %v5437 = vadd.f32 %v5394, %v5422
    %v5438 = vadd.f32 %v5395, %v5426
    %v5439 = vadd.f32 %v5396, %v5422
    %v5440 = vadd.f32 %v5397, %v5426
    %v5441 = vadd.f32 %v5398, %v5422
    %v5442 = vadd.f32 %v5399, %v5426
    %v5443 = vadd.f32 %v5400, %v5422
    %v5444 = vadd.f32 %v5401, %v5426
    %v5445 = vadd.f32 %v5402, %v5422
    %v5446 = vadd.f32 %v5403, %v5426
    %v5447 = vadd.f32 %v5404, %v5422
    %v5448 = vadd.f32 %v5405, %v5426
    %v5449 = vadd.f32 %v5406, %v5422
    %v5450 = vadd.f32 %v5407, %v5426
    %v5451 = vadd.f32 %v5408, %v5422
    %v5452 = vadd.f32 %v5409, %v5426
    %v5453 = vadd.f32 %v5410, %v5422
    %v5454 = vadd.f32 %v5411, %v5426
    %v5455 = vadd.f32 %v5412, %v5422
    %v5456 = vadd.f32 %v5413, %v5426
    %v5457 = vadd.f32 %v5414, %v5422
    %v5458 = vadd.f32 %v5415, %v5426
    %v5459 = vadd.f32 %v5416, %v5422
    %v5460 = vadd.f32 %v5417, %v5426
    %v5461 = vmax.f32 %v5429, 0.0
    %v5462 = vmax.f32 %v5430, 0.0
    %v5463 = vmax.f32 %v5431, 0.0
    %v5464 = vmax.f32 %v5432, 0.0
    %v5465 = vmax.f32 %v5433, 0.0
    %v5466 = vmax.f32 %v5434, 0.0
    %v5467 = vmax.f32 %v5435, 0.0
    %v5468 = vmax.f32 %v5436, 0.0
    %v5469 = vmax.f32 %v5437, 0.0
    %v5470 = vmax.f32 %v5438, 0.0
    %v5471 = vmax.f32 %v5439, 0.0
    %v5472 = vmax.f32 %v5440, 0.0
    %v5473 = vmax.f32 %v5441, 0.0
    %v5474 = vmax.f32 %v5442, 0.0
    %v5475 = vmax.f32 %v5443, 0.0
    %v5476 = vmax.f32 %v5444, 0.0
    %v5477 = vmax.f32 %v5445, 0.0
    %v5478 = vmax.f32 %v5446, 0.0
    %v5479 = vmax.f32 %v5447, 0.0
    %v5480 = vmax.f32 %v5448, 0.0
    %v5481 = vmax.f32 %v5449, 0.0
    %v5482 = vmax.f32 %v5450, 0.0
    %v5483 = vmax.f32 %v5451, 0.0
    %v5484 = vmax.f32 %v5452, 0.0
    %v5485 = vmax.f32 %v5453, 0.0
    %v5486 = vmax.f32 %v5454, 0.0
    %v5487 = vmax.f32 %v5455, 0.0
    %v5488 = vmax.f32 %v5456, 0.0
    %v5489 = vmax.f32 %v5457, 0.0
    %v5490 = vmax.f32 %v5458, 0.0
    %v5491 = vmax.f32 %v5459, 0.0
    %v5492 = vmax.f32 %v5460, 0.0
    %v5493 = vpack.c.bf16 %v5463, %v5461
    %v5494 = vpack.c.bf16 %v5464, %v5462
    %v5495 = vpack.c.bf16 %v5467, %v5465
    %v5496 = vpack.c.bf16 %v5468, %v5466
    %v5497 = vpack.c.bf16 %v5471, %v5469
    %v5498 = vpack.c.bf16 %v5472, %v5470
    %v5499 = vpack.c.bf16 %v5475, %v5473
    %v5500 = vpack.c.bf16 %v5476, %v5474
    %v5501 = vpack.c.bf16 %v5479, %v5477
    %v5502 = vpack.c.bf16 %v5480, %v5478
    %v5503 = vpack.c.bf16 %v5483, %v5481
    %v5504 = vpack.c.bf16 %v5484, %v5482
    %v5505 = vpack.c.bf16 %v5487, %v5485
    %v5506 = vpack.c.bf16 %v5488, %v5486
    %v5507 = vpack.c.bf16 %v5491, %v5489
    %v5508 = vpack.c.bf16 %v5492, %v5490
    %v5541 = vunpack.c.l.b16 %v5293
    %v5542 = vunpack.c.h.b16 %v5293
    %v5543 = vunpack.c.l.b16 %v5294
    %v5544 = vunpack.c.h.b16 %v5294
    %v5545 = vunpack.c.l.b16 %v5295
    %v5546 = vunpack.c.h.b16 %v5295
    %v5547 = vunpack.c.l.b16 %v5296
    %v5548 = vunpack.c.h.b16 %v5296
    %v5549 = vunpack.c.l.b16 %v5297
    %v5550 = vunpack.c.h.b16 %v5297
    %v5551 = vunpack.c.l.b16 %v5298
    %v5552 = vunpack.c.h.b16 %v5298
    %v5553 = vunpack.c.l.b16 %v5299
    %v5554 = vunpack.c.h.b16 %v5299
    %v5555 = vunpack.c.l.b16 %v5300
    %v5556 = vunpack.c.h.b16 %v5300
    %v5557 = vunpack.c.l.b16 %v5301
    %v5558 = vunpack.c.h.b16 %v5301
    %v5559 = vunpack.c.l.b16 %v5302
    %v5560 = vunpack.c.h.b16 %v5302
    %v5561 = vunpack.c.l.b16 %v5303
    %v5562 = vunpack.c.h.b16 %v5303
    %v5563 = vunpack.c.l.b16 %v5304
    %v5564 = vunpack.c.h.b16 %v5304
    %v5565 = vunpack.c.l.b16 %v5305
    %v5566 = vunpack.c.h.b16 %v5305
    %v5567 = vunpack.c.l.b16 %v5306
    %v5568 = vunpack.c.h.b16 %v5306
    %v5569 = vunpack.c.l.b16 %v5307
    %v5570 = vunpack.c.h.b16 %v5307
    %v5571 = vunpack.c.l.b16 %v5308
    %v5572 = vunpack.c.h.b16 %v5308
    %v5573 = vunpack.c.l.b16 %v5309
    %v5574 = vunpack.c.h.b16 %v5309
    %v5575 = vunpack.c.l.b16 %v5310
    %v5576 = vunpack.c.h.b16 %v5310
    %v5577 = vunpack.c.l.b16 %v5311
    %v5578 = vunpack.c.h.b16 %v5311
    %v5579 = vunpack.c.l.b16 %v5312
    %v5580 = vunpack.c.h.b16 %v5312
    %v5581 = vunpack.c.l.b16 %v5313
    %v5582 = vunpack.c.h.b16 %v5313
    %v5583 = vunpack.c.l.b16 %v5314
    %v5584 = vunpack.c.h.b16 %v5314
    %v5585 = vunpack.c.l.b16 %v5315
    %v5586 = vunpack.c.h.b16 %v5315
    %v5587 = vunpack.c.l.b16 %v5316
    %v5588 = vunpack.c.h.b16 %v5316
    %v5589 = vunpack.c.l.b16 %v5317
    %v5590 = vunpack.c.h.b16 %v5317
    %v5591 = vunpack.c.l.b16 %v5318
    %v5592 = vunpack.c.h.b16 %v5318
    %v5593 = vunpack.c.l.b16 %v5319
    %v5594 = vunpack.c.h.b16 %v5319
    %v5595 = vunpack.c.l.b16 %v5320
    %v5596 = vunpack.c.h.b16 %v5320
    %v5597 = vunpack.c.l.b16 %v5321
    %v5598 = vunpack.c.h.b16 %v5321
    %v5599 = vunpack.c.l.b16 %v5322
    %v5600 = vunpack.c.h.b16 %v5322
    %v5601 = vunpack.c.l.b16 %v5323
    %v5602 = vunpack.c.h.b16 %v5323
    %v5603 = vunpack.c.l.b16 %v5324
    %v5604 = vunpack.c.h.b16 %v5324
    %v5605 = vpack.c.b16 %v5543, %v5541
    %v5606 = vpack.c.b16 %v5544, %v5542
    %v5607 = vpack.c.b16 %v5547, %v5545
    %v5608 = vpack.c.b16 %v5548, %v5546
    %v5609 = vpack.c.b16 %v5551, %v5549
    %v5610 = vpack.c.b16 %v5552, %v5550
    %v5611 = vpack.c.b16 %v5555, %v5553
    %v5612 = vpack.c.b16 %v5556, %v5554
    %v5613 = vpack.c.b16 %v5559, %v5557
    %v5614 = vpack.c.b16 %v5560, %v5558
    %v5615 = vpack.c.b16 %v5563, %v5561
    %v5616 = vpack.c.b16 %v5564, %v5562
    %v5617 = vpack.c.b16 %v5567, %v5565
    %v5618 = vpack.c.b16 %v5568, %v5566
    %v5619 = vpack.c.b16 %v5571, %v5569
    %v5620 = vpack.c.b16 %v5572, %v5570
    %v5621 = vpack.c.b16 %v5575, %v5573
    %v5622 = vpack.c.b16 %v5576, %v5574
    %v5623 = vpack.c.b16 %v5579, %v5577
    %v5624 = vpack.c.b16 %v5580, %v5578
    %v5625 = vpack.c.b16 %v5583, %v5581
    %v5626 = vpack.c.b16 %v5584, %v5582
    %v5627 = vpack.c.b16 %v5587, %v5585
    %v5628 = vpack.c.b16 %v5588, %v5586
    %v5629 = vpack.c.b16 %v5591, %v5589
    %v5630 = vpack.c.b16 %v5592, %v5590
    %v5631 = vpack.c.b16 %v5595, %v5593
    %v5632 = vpack.c.b16 %v5596, %v5594
    %v5633 = vpack.c.b16 %v5599, %v5597
    %v5634 = vpack.c.b16 %v5600, %v5598
    %v5635 = vpack.c.b16 %v5603, %v5601
    %v5636 = vpack.c.b16 %v5604, %v5602
    %5669 = vmatprep.subr.bf16.mxu0 %v5606
    %5670 = vmatpush1.bf16.msra.mxu0 %v5605
    %5671 = vmatprep.subr.bf16.mxu0 %v5608
    %5672 = vmatpush1.bf16.msra.mxu0 %v5607
    %5673 = vmatprep.subr.bf16.mxu0 %v5610
    %5674 = vmatpush1.bf16.msra.mxu0 %v5609
    %5675 = vmatprep.subr.bf16.mxu0 %v5612
    %5676 = vmatpush1.bf16.msra.mxu0 %v5611
    %5677 = vmatprep.subr.bf16.mxu0 %v5614
    %5678 = vmatpush1.bf16.msra.mxu0 %v5613
    %5679 = vmatprep.subr.bf16.mxu0 %v5616
    %5680 = vmatpush1.bf16.msra.mxu0 %v5615
    %5681 = vmatprep.subr.bf16.mxu0 %v5618
    %5682 = vmatpush1.bf16.msra.mxu0 %v5617
    %5683 = vmatprep.subr.bf16.mxu0 %v5620
    %5684 = vmatpush1.bf16.msra.mxu0 %v5619
    %5685 = vmatprep.subr.bf16.mxu0 %v5622
    %5686 = vmatpush1.bf16.msra.mxu0 %v5621
    %5687 = vmatprep.subr.bf16.mxu0 %v5624
    %5688 = vmatpush1.bf16.msra.mxu0 %v5623
    %5689 = vmatprep.subr.bf16.mxu0 %v5626
    %5690 = vmatpush1.bf16.msra.mxu0 %v5625
    %5691 = vmatprep.subr.bf16.mxu0 %v5628
    %5692 = vmatpush1.bf16.msra.mxu0 %v5627
    %5693 = vmatprep.subr.bf16.mxu0 %v5630
    %5694 = vmatpush1.bf16.msra.mxu0 %v5629
    %5695 = vmatprep.subr.bf16.mxu0 %v5632
    %5696 = vmatpush1.bf16.msra.mxu0 %v5631
    %5697 = vmatprep.subr.bf16.mxu0 %v5634
    %5698 = vmatpush1.bf16.msra.mxu0 %v5633
    %5699 = vmatprep.subr.bf16.mxu0 %v5636
    %5700 = vmatpush1.bf16.msra.mxu0 %v5635
    %5701 = vmatprep.mubr.bf16.mxu0 %v5494
    %5702 = vmatmul.mubr.bf16.gmra.mrb[0].mxu0 %v5493
    %v5703 = vpop.f32.mrb[0].mxu0
    %v5704 = vadd.f32 0.0, %v5703
    %v5705 = vpop.f32.mrb[0].mxu0
    %v5706 = vadd.f32 0.0, %v5705
    %v5707 = vpop.f32.mrb[0].mxu0
    %v5708 = vadd.f32 0.0, %v5707
    %v5709 = vpop.f32.mrb[0].mxu0
    %v5710 = vadd.f32 0.0, %v5709
    %5711 = vmatprep.mubr.bf16.mxu0 %v5496
    %5712 = vmatmul.mubr.bf16.gmra.mrb[0].mxu0 %v5495
    %v5713 = vpop.f32.mrb[0].mxu0
    %v5714 = vadd.f32 0.0, %v5713
    %v5715 = vpop.f32.mrb[0].mxu0
    %v5716 = vadd.f32 0.0, %v5715
    %v5717 = vpop.f32.mrb[0].mxu0
    %v5718 = vadd.f32 0.0, %v5717
    %v5719 = vpop.f32.mrb[0].mxu0
    %v5720 = vadd.f32 0.0, %v5719
    %5721 = vmatprep.mubr.bf16.mxu0 %v5498
    %5722 = vmatmul.mubr.bf16.gmra.mrb[0].mxu0 %v5497
    %v5723 = vpop.f32.mrb[0].mxu0
    %v5724 = vadd.f32 0.0, %v5723
    %v5725 = vpop.f32.mrb[0].mxu0
    %v5726 = vadd.f32 0.0, %v5725
    %v5727 = vpop.f32.mrb[0].mxu0
    %v5728 = vadd.f32 0.0, %v5727
    %v5729 = vpop.f32.mrb[0].mxu0
    %v5730 = vadd.f32 0.0, %v5729
    %5731 = vmatprep.mubr.bf16.mxu0 %v5500
    %5732 = vmatmul.mubr.bf16.gmra.mrb[0].mxu0 %v5499
    %v5733 = vpop.f32.mrb[0].mxu0
    %v5734 = vadd.f32 0.0, %v5733
    %v5735 = vpop.f32.mrb[0].mxu0
    %v5736 = vadd.f32 0.0, %v5735
    %v5737 = vpop.f32.mrb[0].mxu0
    %v5738 = vadd.f32 0.0, %v5737
    %v5739 = vpop.f32.mrb[0].mxu0
    %v5740 = vadd.f32 0.0, %v5739
    %5741 = vmatprep.mubr.bf16.mxu0 %v5502
    %5742 = vmatmul.mubr.bf16.gmra.mrb[0].mxu0 %v5501
    %v5743 = vpop.f32.mrb[0].mxu0
    %v5744 = vadd.f32 0.0, %v5743
    %v5745 = vpop.f32.mrb[0].mxu0
    %v5746 = vadd.f32 0.0, %v5745
    %v5747 = vpop.f32.mrb[0].mxu0
    %v5748 = vadd.f32 0.0, %v5747
    %v5749 = vpop.f32.mrb[0].mxu0
    %v5750 = vadd.f32 0.0, %v5749
    %5751 = vmatprep.mubr.bf16.mxu0 %v5504
    %5752 = vmatmul.mubr.bf16.gmra.mrb[0].mxu0 %v5503
    %v5753 = vpop.f32.mrb[0].mxu0
    %v5754 = vadd.f32 0.0, %v5753
    %v5755 = vpop.f32.mrb[0].mxu0
    %v5756 = vadd.f32 0.0, %v5755
    %v5757 = vpop.f32.mrb[0].mxu0
    %v5758 = vadd.f32 0.0, %v5757
    %v5759 = vpop.f32.mrb[0].mxu0
    %v5760 = vadd.f32 0.0, %v5759
    %5761 = vmatprep.mubr.bf16.mxu0 %v5506
    %5762 = vmatmul.mubr.bf16.gmra.mrb[0].mxu0 %v5505
    %v5763 = vpop.f32.mrb[0].mxu0
    %v5764 = vadd.f32 0.0, %v5763
    %v5765 = vpop.f32.mrb[0].mxu0
    %v5766 = vadd.f32 0.0, %v5765
    %v5767 = vpop.f32.mrb[0].mxu0
    %v5768 = vadd.f32 0.0, %v5767
    %v5769 = vpop.f32.mrb[0].mxu0
    %v5770 = vadd.f32 0.0, %v5769
    %5771 = vmatprep.mubr.bf16.mxu0 %v5508
    %5772 = vmatmul.mubr.bf16.gmra.mrb[0].mxu0 %v5507
    %v5773 = vpop.f32.mrb[0].mxu0
    %v5774 = vadd.f32 0.0, %v5773
    %v5775 = vpop.f32.mrb[0].mxu0
    %v5776 = vadd.f32 0.0, %v5775
    %v5777 = vpop.f32.mrb[0].mxu0
    %v5778 = vadd.f32 0.0, %v5777
    %v5779 = vpop.f32.mrb[0].mxu0
    %v5780 = vadd.f32 0.0, %v5779
    %5781 = vdwg.mxu0
    %v5782 = vld [vmem:[#allocation3] sm:$0x3]
    %5783 = vmatprep.subr.mxu0 %v5706
    %5784 = vmatpush1.msra.mxu0 %v5704
    %5785 = vmatprep.subr.mxu0 %v5710
    %5786 = vmatpush1.msra.mxu0 %v5708
    %5787 = vmatprep.subr.mxu0 %v5716
    %5788 = vmatpush1.msra.mxu0 %v5714
    %5789 = vmatprep.subr.mxu0 %v5720
    %5790 = vmatpush1.msra.mxu0 %v5718
    %5791 = vmatprep.subr.mxu0 %v5726
    %5792 = vmatpush1.msra.mxu0 %v5724
    %5793 = vmatprep.subr.mxu0 %v5730
    %5794 = vmatpush1.msra.mxu0 %v5728
    %5795 = vmatprep.subr.mxu0 %v5736
    %5796 = vmatpush1.msra.mxu0 %v5734
    %5797 = vmatprep.subr.mxu0 %v5740
    %5798 = vmatpush1.msra.mxu0 %v5738
    %5799 = vmatprep.subr.mxu0 %v5746
    %5800 = vmatpush1.msra.mxu0 %v5744
    %5801 = vmatprep.subr.mxu0 %v5750
    %5802 = vmatpush1.msra.mxu0 %v5748
    %5803 = vmatprep.subr.mxu0 %v5756
    %5804 = vmatpush1.msra.mxu0 %v5754
    %5805 = vmatprep.subr.mxu0 %v5760
    %5806 = vmatpush1.msra.mxu0 %v5758
    %5807 = vmatprep.subr.mxu0 %v5766
    %5808 = vmatpush1.msra.mxu0 %v5764
    %5809 = vmatprep.subr.mxu0 %v5770
    %5810 = vmatpush1.msra.mxu0 %v5768
    %5811 = vmatprep.subr.mxu0 %v5776
    %5812 = vmatpush1.msra.mxu0 %v5774
    %5813 = vmatprep.subr.mxu0 %v5780
    %5814 = vmatpush1.msra.mxu0 %v5778
    %5815 = vmatprep.subr.mxu0 0.0
    %5816 = vmatpush1.msra.mxu0 0.0
    %5817 = vmatprep.subr.mxu0 0.0
    %5818 = vmatpush1.msra.mxu0 0.0
    %5819 = vmatprep.subr.mxu0 0.0
    %5820 = vmatpush1.msra.mxu0 0.0
    %5821 = vmatprep.subr.mxu0 0.0
    %5822 = vmatpush1.msra.mxu0 0.0
    %5823 = vmatprep.subr.mxu0 0.0
    %5824 = vmatpush1.msra.mxu0 0.0
    %5825 = vmatprep.subr.mxu0 0.0
    %5826 = vmatpush1.msra.mxu0 0.0
    %5827 = vmatprep.subr.mxu0 0.0
    %5828 = vmatpush1.msra.mxu0 0.0
    %5829 = vmatprep.subr.mxu0 0.0
    %5830 = vmatpush1.msra.mxu0 0.0
    %5831 = vmatprep.subr.mxu0 0.0
    %5832 = vmatpush1.msra.mxu0 0.0
    %5833 = vmatprep.subr.mxu0 0.0
    %5834 = vmatpush1.msra.mxu0 0.0
    %5835 = vmatprep.subr.mxu0 0.0
    %5836 = vmatpush1.msra.mxu0 0.0
    %5837 = vmatprep.subr.mxu0 0.0
    %5838 = vmatpush1.msra.mxu0 0.0
    %5839 = vmatprep.subr.mxu0 0.0
    %5840 = vmatpush1.msra.mxu0 0.0
    %5841 = vmatprep.subr.mxu0 0.0
    %5842 = vmatpush1.msra.mxu0 0.0
    %5843 = vmatprep.subr.mxu0 0.0
    %5844 = vmatpush1.msra.mxu0 0.0
    %5845 = vmatprep.subr.mxu0 0.0
    %5846 = vmatpush1.msra.mxu0 0.0
    %5847 = vmatprep.mubr.f32.mxu0 0.0
    %5848 = vmatmul.mubr.f32.gmra.mrb[0].mxu0 %v5030
    %v5849 = vpop.f32.mrb[0].mxu0
    %v5850 = vadd.f32 0.0, %v5849
    %v5851 = vpop.f32.mrb[0].mxu0
    %v5852 = vadd.f32 0.0, %v5851
    %5853 = vdwg.mxu0
    %v5856 = vcombine.low %v5850, %v5852
    %v5858 = vunpack.c.l.s4 1966171168
    %v5859 = vunpack.c.0.s8 %v5858
    %v5860 = vlaneseq
    %v5861 = vshrl.u32 %v5860, 7
    %v5862 = vsub.s32 %v5859, %v5861
    %v5863 = vrot.slane %v5856, %v5862
    %v5865 = vunpack.c.l.s4 1966171168
    %v5866 = vunpack.c.0.s8 %v5865
    %v5867 = vlaneseq
    %v5868 = vshrl.u32 %v5867, 7
    %v5869 = vsub.s32 %v5866, %v5868
    %v5870 = vrot.slane %v5863, %v5869
    %v5872 = vadd.f32 %v5782, %v5870
    %5873 = vst.msk [vmem:[#allocation3] sm:$0x3] %vm4418, %v5872
    %v5874 = vld [vmem:[#allocation4] sm:$0x3]
    %v5875 = vmul.f32 %v5704, %v5704
    %v5876 = vmul.f32 %v5706, %v5706
    %v5877 = vmul.f32 %v5708, %v5708
    %v5878 = vmul.f32 %v5710, %v5710
    %v5879 = vmul.f32 %v5714, %v5714
    %v5880 = vmul.f32 %v5716, %v5716
    %v5881 = vmul.f32 %v5718, %v5718
    %v5882 = vmul.f32 %v5720, %v5720
    %v5883 = vmul.f32 %v5724, %v5724
    %v5884 = vmul.f32 %v5726, %v5726
    %v5885 = vmul.f32 %v5728, %v5728
    %v5886 = vmul.f32 %v5730, %v5730
    %v5887 = vmul.f32 %v5734, %v5734
    %v5888 = vmul.f32 %v5736, %v5736
    %v5889 = vmul.f32 %v5738, %v5738
    %v5890 = vmul.f32 %v5740, %v5740
    %v5891 = vmul.f32 %v5744, %v5744
    %v5892 = vmul.f32 %v5746, %v5746
    %v5893 = vmul.f32 %v5748, %v5748
    %v5894 = vmul.f32 %v5750, %v5750
    %v5895 = vmul.f32 %v5754, %v5754
    %v5896 = vmul.f32 %v5756, %v5756
    %v5897 = vmul.f32 %v5758, %v5758
    %v5898 = vmul.f32 %v5760, %v5760
    %v5899 = vmul.f32 %v5764, %v5764
    %v5900 = vmul.f32 %v5766, %v5766
    %v5901 = vmul.f32 %v5768, %v5768
    %v5902 = vmul.f32 %v5770, %v5770
    %v5903 = vmul.f32 %v5774, %v5774
    %v5904 = vmul.f32 %v5776, %v5776
    %v5905 = vmul.f32 %v5778, %v5778
    %v5906 = vmul.f32 %v5780, %v5780
    %5907 = vmatprep.subr.mxu0 %v5876
    %5908 = vmatpush1.msra.mxu0 %v5875
    %5909 = vmatprep.subr.mxu0 %v5878
    %5910 = vmatpush1.msra.mxu0 %v5877
    %5911 = vmatprep.subr.mxu0 %v5880
    %5912 = vmatpush1.msra.mxu0 %v5879
    %5913 = vmatprep.subr.mxu0 %v5882
    %5914 = vmatpush1.msra.mxu0 %v5881
    %5915 = vmatprep.subr.mxu0 %v5884
    %5916 = vmatpush1.msra.mxu0 %v5883
    %5917 = vmatprep.subr.mxu0 %v5886
    %5918 = vmatpush1.msra.mxu0 %v5885
    %5919 = vmatprep.subr.mxu0 %v5888
    %5920 = vmatpush1.msra.mxu0 %v5887
    %5921 = vmatprep.subr.mxu0 %v5890
    %5922 = vmatpush1.msra.mxu0 %v5889
    %5923 = vmatprep.subr.mxu0 %v5892
    %5924 = vmatpush1.msra.mxu0 %v5891
    %5925 = vmatprep.subr.mxu0 %v5894
    %5926 = vmatpush1.msra.mxu0 %v5893
    %5927 = vmatprep.subr.mxu0 %v5896
    %5928 = vmatpush1.msra.mxu0 %v5895
    %5929 = vmatprep.subr.mxu0 %v5898
    %5930 = vmatpush1.msra.mxu0 %v5897
    %5931 = vmatprep.subr.mxu0 %v5900
    %5932 = vmatpush1.msra.mxu0 %v5899
    %5933 = vmatprep.subr.mxu0 %v5902
    %5934 = vmatpush1.msra.mxu0 %v5901
    %5935 = vmatprep.subr.mxu0 %v5904
    %5936 = vmatpush1.msra.mxu0 %v5903
    %5937 = vmatprep.subr.mxu0 %v5906
    %5938 = vmatpush1.msra.mxu0 %v5905
    %5939 = vmatprep.subr.mxu0 0.0
    %5940 = vmatpush1.msra.mxu0 0.0
    %5941 = vmatprep.subr.mxu0 0.0
    %5942 = vmatpush1.msra.mxu0 0.0
    %5943 = vmatprep.subr.mxu0 0.0
    %5944 = vmatpush1.msra.mxu0 0.0
    %5945 = vmatprep.subr.mxu0 0.0
    %5946 = vmatpush1.msra.mxu0 0.0
    %5947 = vmatprep.subr.mxu0 0.0
    %5948 = vmatpush1.msra.mxu0 0.0
    %5949 = vmatprep.subr.mxu0 0.0
    %5950 = vmatpush1.msra.mxu0 0.0
    %5951 = vmatprep.subr.mxu0 0.0
    %5952 = vmatpush1.msra.mxu0 0.0
    %5953 = vmatprep.subr.mxu0 0.0
    %5954 = vmatpush1.msra.mxu0 0.0
    %5955 = vmatprep.subr.mxu0 0.0
    %5956 = vmatpush1.msra.mxu0 0.0
    %5957 = vmatprep.subr.mxu0 0.0
    %5958 = vmatpush1.msra.mxu0 0.0
    %5959 = vmatprep.subr.mxu0 0.0
    %5960 = vmatpush1.msra.mxu0 0.0
    %5961 = vmatprep.subr.mxu0 0.0
    %5962 = vmatpush1.msra.mxu0 0.0
    %5963 = vmatprep.subr.mxu0 0.0
    %5964 = vmatpush1.msra.mxu0 0.0
    %5965 = vmatprep.subr.mxu0 0.0
    %5966 = vmatpush1.msra.mxu0 0.0
    %5967 = vmatprep.subr.mxu0 0.0
    %5968 = vmatpush1.msra.mxu0 0.0
    %5969 = vmatprep.subr.mxu0 0.0
    %5970 = vmatpush1.msra.mxu0 0.0
    %5971 = vmatprep.mubr.f32.mxu0 0.0
    %5972 = vmatmul.mubr.f32.gmra.mrb[0].mxu0 %v5030
    %v5973 = vpop.f32.mrb[0].mxu0
    %v5974 = vadd.f32 0.0, %v5973
    %v5975 = vpop.f32.mrb[0].mxu0
    %v5976 = vadd.f32 0.0, %v5975
    %5977 = vdwg.mxu0
    %v5980 = vcombine.low %v5974, %v5976
    %v5982 = vunpack.c.l.s4 1966171168
    %v5983 = vunpack.c.0.s8 %v5982
    %v5984 = vlaneseq
    %v5985 = vshrl.u32 %v5984, 7
    %v5986 = vsub.s32 %v5983, %v5985
    %v5987 = vrot.slane %v5980, %v5986
    %v5989 = vunpack.c.l.s4 1966171168
    %v5990 = vunpack.c.0.s8 %v5989
    %v5991 = vlaneseq
    %v5992 = vshrl.u32 %v5991, 7
    %v5993 = vsub.s32 %v5990, %v5992
    %v5994 = vrot.slane %v5987, %v5993
    %v5996 = vadd.f32 %v5874, %v5994
    %5997 = vst.msk [vmem:[#allocation4] sm:$0x3] %vm4418, %v5996
    %v5998 = vpack.c.bf16 %v5708, %v5704
    %v5999 = vpack.c.bf16 %v5710, %v5706
    %v6000 = vpack.c.bf16 %v5718, %v5714
    %v6001 = vpack.c.bf16 %v5720, %v5716
    %v6002 = vpack.c.bf16 %v5728, %v5724
    %v6003 = vpack.c.bf16 %v5730, %v5726
    %v6004 = vpack.c.bf16 %v5738, %v5734
    %v6005 = vpack.c.bf16 %v5740, %v5736
    %v6006 = vpack.c.bf16 %v5748, %v5744
    %v6007 = vpack.c.bf16 %v5750, %v5746
    %v6008 = vpack.c.bf16 %v5758, %v5754
    %v6009 = vpack.c.bf16 %v5760, %v5756
    %v6010 = vpack.c.bf16 %v5768, %v5764
    %v6011 = vpack.c.bf16 %v5770, %v5766
    %v6012 = vpack.c.bf16 %v5778, %v5774
    %v6013 = vpack.c.bf16 %v5780, %v5776
    %6014 = vst [vmem:[%s4568] sm:$0xff] %v5998
    %6015 = vst [vmem:[%s4568 + $0x8] sm:$0xff] %v5999
    %6016 = vst [vmem:[%s4568 + $0x10] sm:$0xff] %v6000
    %6017 = vst [vmem:[%s4568 + $0x18] sm:$0xff] %v6001
    %6018 = vst [vmem:[%s4568 + $0x20] sm:$0xff] %v6002
    %6019 = vst [vmem:[%s4568 + $0x28] sm:$0xff] %v6003
    %6020 = vst [vmem:[%s4568 + $0x30] sm:$0xff] %v6004
    %6021 = vst [vmem:[%s4568 + $0x38] sm:$0xff] %v6005
    %6022 = vst [vmem:[%s4568 + $0x40] sm:$0xff] %v6006
    %6023 = vst [vmem:[%s4568 + $0x48] sm:$0xff] %v6007
    %6024 = vst [vmem:[%s4568 + $0x50] sm:$0xff] %v6008
    %6025 = vst [vmem:[%s4568 + $0x58] sm:$0xff] %v6009
    %6026 = vst [vmem:[%s4568 + $0x60] sm:$0xff] %v6010
    %6027 = vst [vmem:[%s4568 + $0x68] sm:$0xff] %v6011
    %6028 = vst [vmem:[%s4568 + $0x70] sm:$0xff] %v6012
    %6029 = vst [vmem:[%s4568 + $0x78] sm:$0xff] %v6013
    %v6030 = vld [vmem:[#allocation3] sm:$0x3]
    %v6031 = vmul.f32 %v6030, 0.125
    %v6032 = vld [vmem:[#allocation4] sm:$0x3]
    %v6033 = vmul.f32 %v6032, 0.125
    %v6034 = vmul.f32 %v6031, %v6031
    %v6035 = vsub.f32 %v6033, %v6034
    %v6036 = vmax.f32 %v6035, 0.0
    %v6037 = vld [vmem:[%s8] sm:$0x3]
    %v6038 = vadd.f32 %v6036, 1e-05
    %v6039 = vrsqrt.pop %v6038
    %v6040 = vmul.f32 %v6037, %v6039
    %v6041 = vld [vmem:[%s9] sm:$0x3]
    %v6042 = vmul.f32 %v6031, %v6040
    %v6043 = vsub.f32 %v6041, %v6042
    %v6044 = vld [vmem:[%s10] sm:$0xff]
    %v6045 = vld [vmem:[%s10 + $0x8] sm:$0xff]
    %v6046 = vld [vmem:[%s10 + $0x10] sm:$0xff]
    %v6047 = vld [vmem:[%s10 + $0x18] sm:$0xff]
    %v6048 = vld [vmem:[%s10 + $0x20] sm:$0xff]
    %v6049 = vld [vmem:[%s10 + $0x28] sm:$0xff]
    %v6050 = vld [vmem:[%s10 + $0x30] sm:$0xff]
    %v6051 = vld [vmem:[%s10 + $0x38] sm:$0xff]
    %v6052 = vld [vmem:[%s10 + $0x40] sm:$0xff]
    %v6053 = vld [vmem:[%s10 + $0x48] sm:$0xff]
    %v6054 = vld [vmem:[%s10 + $0x50] sm:$0xff]
    %v6055 = vld [vmem:[%s10 + $0x58] sm:$0xff]
    %v6056 = vld [vmem:[%s10 + $0x60] sm:$0xff]
    %v6057 = vld [vmem:[%s10 + $0x68] sm:$0xff]
    %v6058 = vld [vmem:[%s10 + $0x70] sm:$0xff]
    %v6059 = vld [vmem:[%s10 + $0x78] sm:$0xff]
    %v6060 = vld [vmem:[%s10 + $0x80] sm:$0xff]
    %v6061 = vld [vmem:[%s10 + $0x88] sm:$0xff]
    %v6062 = vld [vmem:[%s10 + $0x90] sm:$0xff]
    %v6063 = vld [vmem:[%s10 + $0x98] sm:$0xff]
    %v6064 = vld [vmem:[%s10 + $0xa0] sm:$0xff]
    %v6065 = vld [vmem:[%s10 + $0xa8] sm:$0xff]
    %v6066 = vld [vmem:[%s10 + $0xb0] sm:$0xff]
    %v6067 = vld [vmem:[%s10 + $0xb8] sm:$0xff]
    %v6068 = vld [vmem:[%s10 + $0xc0] sm:$0xff]
    %v6069 = vld [vmem:[%s10 + $0xc8] sm:$0xff]
    %v6070 = vld [vmem:[%s10 + $0xd0] sm:$0xff]
    %v6071 = vld [vmem:[%s10 + $0xd8] sm:$0xff]
    %v6072 = vld [vmem:[%s10 + $0xe0] sm:$0xff]
    %v6073 = vld [vmem:[%s10 + $0xe8] sm:$0xff]
    %v6074 = vld [vmem:[%s10 + $0xf0] sm:$0xff]
    %v6075 = vld [vmem:[%s10 + $0xf8] sm:$0xff]
    %6076 = vst.msk [vmem:[#allocation3] sm:$0x3] %vm4418, 0.0
    %6077 = vst.msk [vmem:[#allocation4] sm:$0x3] %vm4418, 0.0
    %v6078 = vld [vmem:[%s4568] sm:$0xff]
    %v6079 = vld [vmem:[%s4568 + $0x8] sm:$0xff]
    %v6080 = vld [vmem:[%s4568 + $0x10] sm:$0xff]
    %v6081 = vld [vmem:[%s4568 + $0x18] sm:$0xff]
    %v6082 = vld [vmem:[%s4568 + $0x20] sm:$0xff]
    %v6083 = vld [vmem:[%s4568 + $0x28] sm:$0xff]
    %v6084 = vld [vmem:[%s4568 + $0x30] sm:$0xff]
    %v6085 = vld [vmem:[%s4568 + $0x38] sm:$0xff]
    %v6086 = vld [vmem:[%s4568 + $0x40] sm:$0xff]
    %v6087 = vld [vmem:[%s4568 + $0x48] sm:$0xff]
    %v6088 = vld [vmem:[%s4568 + $0x50] sm:$0xff]
    %v6089 = vld [vmem:[%s4568 + $0x58] sm:$0xff]
    %v6090 = vld [vmem:[%s4568 + $0x60] sm:$0xff]
    %v6091 = vld [vmem:[%s4568 + $0x68] sm:$0xff]
    %v6092 = vld [vmem:[%s4568 + $0x70] sm:$0xff]
    %v6093 = vld [vmem:[%s4568 + $0x78] sm:$0xff]
    %v6094 = vunpack.c.l.bf16 %v6078
    %v6095 = vunpack.c.l.bf16 %v6079
    %v6096 = vunpack.c.h.bf16 %v6078
    %v6097 = vunpack.c.h.bf16 %v6079
    %v6098 = vunpack.c.l.bf16 %v6080
    %v6099 = vunpack.c.l.bf16 %v6081
    %v6100 = vunpack.c.h.bf16 %v6080
    %v6101 = vunpack.c.h.bf16 %v6081
    %v6102 = vunpack.c.l.bf16 %v6082
    %v6103 = vunpack.c.l.bf16 %v6083
    %v6104 = vunpack.c.h.bf16 %v6082
    %v6105 = vunpack.c.h.bf16 %v6083
    %v6106 = vunpack.c.l.bf16 %v6084
    %v6107 = vunpack.c.l.bf16 %v6085
    %v6108 = vunpack.c.h.bf16 %v6084
    %v6109 = vunpack.c.h.bf16 %v6085
    %v6110 = vunpack.c.l.bf16 %v6086
    %v6111 = vunpack.c.l.bf16 %v6087
    %v6112 = vunpack.c.h.bf16 %v6086
    %v6113 = vunpack.c.h.bf16 %v6087
    %v6114 = vunpack.c.l.bf16 %v6088
    %v6115 = vunpack.c.l.bf16 %v6089
    %v6116 = vunpack.c.h.bf16 %v6088
    %v6117 = vunpack.c.h.bf16 %v6089
    %v6118 = vunpack.c.l.bf16 %v6090
    %v6119 = vunpack.c.l.bf16 %v6091
    %v6120 = vunpack.c.h.bf16 %v6090
    %v6121 = vunpack.c.h.bf16 %v6091
    %v6122 = vunpack.c.l.bf16 %v6092
    %v6123 = vunpack.c.l.bf16 %v6093
    %v6124 = vunpack.c.h.bf16 %v6092
    %v6125 = vunpack.c.h.bf16 %v6093
    %v6127 = vlaneseq
    %v6128 = vshrl.u32 %v6127, 7
    %v6129 = vsub.s32 0, %v6128
    %v6130 = vrot.slane %v6040, %v6129
    %v6131 = vlaneseq
    %v6132 = vshrl.u32 %v6131, 7
    %v6133 = vsub.s32 1, %v6132
    %v6134 = vrot.slane %v6040, %v6133
    %v6137 = vmul.f32 %v6094, %v6130
    %v6138 = vmul.f32 %v6095, %v6134
    %v6139 = vmul.f32 %v6096, %v6130
    %v6140 = vmul.f32 %v6097, %v6134
    %v6141 = vmul.f32 %v6098, %v6130
    %v6142 = vmul.f32 %v6099, %v6134
    %v6143 = vmul.f32 %v6100, %v6130
    %v6144 = vmul.f32 %v6101, %v6134
    %v6145 = vmul.f32 %v6102, %v6130
    %v6146 = vmul.f32 %v6103, %v6134
    %v6147 = vmul.f32 %v6104, %v6130
    %v6148 = vmul.f32 %v6105, %v6134
    %v6149 = vmul.f32 %v6106, %v6130
    %v6150 = vmul.f32 %v6107, %v6134
    %v6151 = vmul.f32 %v6108, %v6130
    %v6152 = vmul.f32 %v6109, %v6134
    %v6153 = vmul.f32 %v6110, %v6130
    %v6154 = vmul.f32 %v6111, %v6134
    %v6155 = vmul.f32 %v6112, %v6130
    %v6156 = vmul.f32 %v6113, %v6134
    %v6157 = vmul.f32 %v6114, %v6130
    %v6158 = vmul.f32 %v6115, %v6134
    %v6159 = vmul.f32 %v6116, %v6130
    %v6160 = vmul.f32 %v6117, %v6134
    %v6161 = vmul.f32 %v6118, %v6130
    %v6162 = vmul.f32 %v6119, %v6134
    %v6163 = vmul.f32 %v6120, %v6130
    %v6164 = vmul.f32 %v6121, %v6134
    %v6165 = vmul.f32 %v6122, %v6130
    %v6166 = vmul.f32 %v6123, %v6134
    %v6167 = vmul.f32 %v6124, %v6130
    %v6168 = vmul.f32 %v6125, %v6134
    %v6170 = vlaneseq
    %v6171 = vshrl.u32 %v6170, 7
    %v6172 = vsub.s32 0, %v6171
    %v6173 = vrot.slane %v6043, %v6172
    %v6174 = vlaneseq
    %v6175 = vshrl.u32 %v6174, 7
    %v6176 = vsub.s32 1, %v6175
    %v6177 = vrot.slane %v6043, %v6176
    %v6180 = vadd.f32 %v6137, %v6173
    %v6181 = vadd.f32 %v6138, %v6177
    %v6182 = vadd.f32 %v6139, %v6173
    %v6183 = vadd.f32 %v6140, %v6177
    %v6184 = vadd.f32 %v6141, %v6173
    %v6185 = vadd.f32 %v6142, %v6177
    %v6186 = vadd.f32 %v6143, %v6173
    %v6187 = vadd.f32 %v6144, %v6177
    %v6188 = vadd.f32 %v6145, %v6173
    %v6189 = vadd.f32 %v6146, %v6177
    %v6190 = vadd.f32 %v6147, %v6173
    %v6191 = vadd.f32 %v6148, %v6177
    %v6192 = vadd.f32 %v6149, %v6173
    %v6193 = vadd.f32 %v6150, %v6177
    %v6194 = vadd.f32 %v6151, %v6173
    %v6195 = vadd.f32 %v6152, %v6177
    %v6196 = vadd.f32 %v6153, %v6173
    %v6197 = vadd.f32 %v6154, %v6177
    %v6198 = vadd.f32 %v6155, %v6173
    %v6199 = vadd.f32 %v6156, %v6177
    %v6200 = vadd.f32 %v6157, %v6173
    %v6201 = vadd.f32 %v6158, %v6177
    %v6202 = vadd.f32 %v6159, %v6173
    %v6203 = vadd.f32 %v6160, %v6177
    %v6204 = vadd.f32 %v6161, %v6173
    %v6205 = vadd.f32 %v6162, %v6177
    %v6206 = vadd.f32 %v6163, %v6173
    %v6207 = vadd.f32 %v6164, %v6177
    %v6208 = vadd.f32 %v6165, %v6173
    %v6209 = vadd.f32 %v6166, %v6177
    %v6210 = vadd.f32 %v6167, %v6173
    %v6211 = vadd.f32 %v6168, %v6177
    %v6212 = vmax.f32 %v6180, 0.0
    %v6213 = vmax.f32 %v6181, 0.0
    %v6214 = vmax.f32 %v6182, 0.0
    %v6215 = vmax.f32 %v6183, 0.0
    %v6216 = vmax.f32 %v6184, 0.0
    %v6217 = vmax.f32 %v6185, 0.0
    %v6218 = vmax.f32 %v6186, 0.0
    %v6219 = vmax.f32 %v6187, 0.0
    %v6220 = vmax.f32 %v6188, 0.0
    %v6221 = vmax.f32 %v6189, 0.0
    %v6222 = vmax.f32 %v6190, 0.0
    %v6223 = vmax.f32 %v6191, 0.0
    %v6224 = vmax.f32 %v6192, 0.0
    %v6225 = vmax.f32 %v6193, 0.0
    %v6226 = vmax.f32 %v6194, 0.0
    %v6227 = vmax.f32 %v6195, 0.0
    %v6228 = vmax.f32 %v6196, 0.0
    %v6229 = vmax.f32 %v6197, 0.0
    %v6230 = vmax.f32 %v6198, 0.0
    %v6231 = vmax.f32 %v6199, 0.0
    %v6232 = vmax.f32 %v6200, 0.0
    %v6233 = vmax.f32 %v6201, 0.0
    %v6234 = vmax.f32 %v6202, 0.0
    %v6235 = vmax.f32 %v6203, 0.0
    %v6236 = vmax.f32 %v6204, 0.0
    %v6237 = vmax.f32 %v6205, 0.0
    %v6238 = vmax.f32 %v6206, 0.0
    %v6239 = vmax.f32 %v6207, 0.0
    %v6240 = vmax.f32 %v6208, 0.0
    %v6241 = vmax.f32 %v6209, 0.0
    %v6242 = vmax.f32 %v6210, 0.0
    %v6243 = vmax.f32 %v6211, 0.0
    %v6244 = vpack.c.bf16 %v6214, %v6212
    %v6245 = vpack.c.bf16 %v6215, %v6213
    %v6246 = vpack.c.bf16 %v6218, %v6216
    %v6247 = vpack.c.bf16 %v6219, %v6217
    %v6248 = vpack.c.bf16 %v6222, %v6220
    %v6249 = vpack.c.bf16 %v6223, %v6221
    %v6250 = vpack.c.bf16 %v6226, %v6224
    %v6251 = vpack.c.bf16 %v6227, %v6225
    %v6252 = vpack.c.bf16 %v6230, %v6228
    %v6253 = vpack.c.bf16 %v6231, %v6229
    %v6254 = vpack.c.bf16 %v6234, %v6232
    %v6255 = vpack.c.bf16 %v6235, %v6233
    %v6256 = vpack.c.bf16 %v6238, %v6236
    %v6257 = vpack.c.bf16 %v6239, %v6237
    %v6258 = vpack.c.bf16 %v6242, %v6240
    %v6259 = vpack.c.bf16 %v6243, %v6241
    %v6292 = vunpack.c.l.b16 %v6044
    %v6293 = vunpack.c.h.b16 %v6044
    %v6294 = vunpack.c.l.b16 %v6045
    %v6295 = vunpack.c.h.b16 %v6045
    %v6296 = vunpack.c.l.b16 %v6046
    %v6297 = vunpack.c.h.b16 %v6046
    %v6298 = vunpack.c.l.b16 %v6047
    %v6299 = vunpack.c.h.b16 %v6047
    %v6300 = vunpack.c.l.b16 %v6048
    %v6301 = vunpack.c.h.b16 %v6048
    %v6302 = vunpack.c.l.b16 %v6049
    %v6303 = vunpack.c.h.b16 %v6049
    %v6304 = vunpack.c.l.b16 %v6050
    %v6305 = vunpack.c.h.b16 %v6050
    %v6306 = vunpack.c.l.b16 %v6051
    %v6307 = vunpack.c.h.b16 %v6051
    %v6308 = vunpack.c.l.b16 %v6052
    %v6309 = vunpack.c.h.b16 %v6052
    %v6310 = vunpack.c.l.b16 %v6053
    %v6311 = vunpack.c.h.b16 %v6053
    %v6312 = vunpack.c.l.b16 %v6054
    %v6313 = vunpack.c.h.b16 %v6054
    %v6314 = vunpack.c.l.b16 %v6055
    %v6315 = vunpack.c.h.b16 %v6055
    %v6316 = vunpack.c.l.b16 %v6056
    %v6317 = vunpack.c.h.b16 %v6056
    %v6318 = vunpack.c.l.b16 %v6057
    %v6319 = vunpack.c.h.b16 %v6057
    %v6320 = vunpack.c.l.b16 %v6058
    %v6321 = vunpack.c.h.b16 %v6058
    %v6322 = vunpack.c.l.b16 %v6059
    %v6323 = vunpack.c.h.b16 %v6059
    %v6324 = vunpack.c.l.b16 %v6060
    %v6325 = vunpack.c.h.b16 %v6060
    %v6326 = vunpack.c.l.b16 %v6061
    %v6327 = vunpack.c.h.b16 %v6061
    %v6328 = vunpack.c.l.b16 %v6062
    %v6329 = vunpack.c.h.b16 %v6062
    %v6330 = vunpack.c.l.b16 %v6063
    %v6331 = vunpack.c.h.b16 %v6063
    %v6332 = vunpack.c.l.b16 %v6064
    %v6333 = vunpack.c.h.b16 %v6064
    %v6334 = vunpack.c.l.b16 %v6065
    %v6335 = vunpack.c.h.b16 %v6065
    %v6336 = vunpack.c.l.b16 %v6066
    %v6337 = vunpack.c.h.b16 %v6066
    %v6338 = vunpack.c.l.b16 %v6067
    %v6339 = vunpack.c.h.b16 %v6067
    %v6340 = vunpack.c.l.b16 %v6068
    %v6341 = vunpack.c.h.b16 %v6068
    %v6342 = vunpack.c.l.b16 %v6069
    %v6343 = vunpack.c.h.b16 %v6069
    %v6344 = vunpack.c.l.b16 %v6070
    %v6345 = vunpack.c.h.b16 %v6070
    %v6346 = vunpack.c.l.b16 %v6071
    %v6347 = vunpack.c.h.b16 %v6071
    %v6348 = vunpack.c.l.b16 %v6072
    %v6349 = vunpack.c.h.b16 %v6072
    %v6350 = vunpack.c.l.b16 %v6073
    %v6351 = vunpack.c.h.b16 %v6073
    %v6352 = vunpack.c.l.b16 %v6074
    %v6353 = vunpack.c.h.b16 %v6074
    %v6354 = vunpack.c.l.b16 %v6075
    %v6355 = vunpack.c.h.b16 %v6075
    %v6356 = vpack.c.b16 %v6294, %v6292
    %v6357 = vpack.c.b16 %v6295, %v6293
    %v6358 = vpack.c.b16 %v6298, %v6296
    %v6359 = vpack.c.b16 %v6299, %v6297
    %v6360 = vpack.c.b16 %v6302, %v6300
    %v6361 = vpack.c.b16 %v6303, %v6301
    %v6362 = vpack.c.b16 %v6306, %v6304
    %v6363 = vpack.c.b16 %v6307, %v6305
    %v6364 = vpack.c.b16 %v6310, %v6308
    %v6365 = vpack.c.b16 %v6311, %v6309
    %v6366 = vpack.c.b16 %v6314, %v6312
    %v6367 = vpack.c.b16 %v6315, %v6313
    %v6368 = vpack.c.b16 %v6318, %v6316
    %v6369 = vpack.c.b16 %v6319, %v6317
    %v6370 = vpack.c.b16 %v6322, %v6320
    %v6371 = vpack.c.b16 %v6323, %v6321
    %v6372 = vpack.c.b16 %v6326, %v6324
    %v6373 = vpack.c.b16 %v6327, %v6325
    %v6374 = vpack.c.b16 %v6330, %v6328
    %v6375 = vpack.c.b16 %v6331, %v6329
    %v6376 = vpack.c.b16 %v6334, %v6332
    %v6377 = vpack.c.b16 %v6335, %v6333
    %v6378 = vpack.c.b16 %v6338, %v6336
    %v6379 = vpack.c.b16 %v6339, %v6337
    %v6380 = vpack.c.b16 %v6342, %v6340
    %v6381 = vpack.c.b16 %v6343, %v6341
    %v6382 = vpack.c.b16 %v6346, %v6344
    %v6383 = vpack.c.b16 %v6347, %v6345
    %v6384 = vpack.c.b16 %v6350, %v6348
    %v6385 = vpack.c.b16 %v6351, %v6349
    %v6386 = vpack.c.b16 %v6354, %v6352
    %v6387 = vpack.c.b16 %v6355, %v6353
    %6420 = vmatprep.subr.bf16.mxu0 %v6357
    %6421 = vmatpush1.bf16.msra.mxu0 %v6356
    %6422 = vmatprep.subr.bf16.mxu0 %v6359
    %6423 = vmatpush1.bf16.msra.mxu0 %v6358
    %6424 = vmatprep.subr.bf16.mxu0 %v6361
    %6425 = vmatpush1.bf16.msra.mxu0 %v6360
    %6426 = vmatprep.subr.bf16.mxu0 %v6363
    %6427 = vmatpush1.bf16.msra.mxu0 %v6362
    %6428 = vmatprep.subr.bf16.mxu0 %v6365
    %6429 = vmatpush1.bf16.msra.mxu0 %v6364
    %6430 = vmatprep.subr.bf16.mxu0 %v6367
    %6431 = vmatpush1.bf16.msra.mxu0 %v6366
    %6432 = vmatprep.subr.bf16.mxu0 %v6369
    %6433 = vmatpush1.bf16.msra.mxu0 %v6368
    %6434 = vmatprep.subr.bf16.mxu0 %v6371
    %6435 = vmatpush1.bf16.msra.mxu0 %v6370
    %6436 = vmatprep.subr.bf16.mxu0 %v6373
    %6437 = vmatpush1.bf16.msra.mxu0 %v6372
    %6438 = vmatprep.subr.bf16.mxu0 %v6375
    %6439 = vmatpush1.bf16.msra.mxu0 %v6374
    %6440 = vmatprep.subr.bf16.mxu0 %v6377
    %6441 = vmatpush1.bf16.msra.mxu0 %v6376
    %6442 = vmatprep.subr.bf16.mxu0 %v6379
    %6443 = vmatpush1.bf16.msra.mxu0 %v6378
    %6444 = vmatprep.subr.bf16.mxu0 %v6381
    %6445 = vmatpush1.bf16.msra.mxu0 %v6380
    %6446 = vmatprep.subr.bf16.mxu0 %v6383
    %6447 = vmatpush1.bf16.msra.mxu0 %v6382
    %6448 = vmatprep.subr.bf16.mxu0 %v6385
    %6449 = vmatpush1.bf16.msra.mxu0 %v6384
    %6450 = vmatprep.subr.bf16.mxu0 %v6387
    %6451 = vmatpush1.bf16.msra.mxu0 %v6386
    %6452 = vmatprep.mubr.bf16.mxu0 %v6245
    %6453 = vmatmul.mubr.bf16.gmra.mrb[0].mxu0 %v6244
    %v6454 = vpop.f32.mrb[0].mxu0
    %v6455 = vadd.f32 0.0, %v6454
    %v6456 = vpop.f32.mrb[0].mxu0
    %v6457 = vadd.f32 0.0, %v6456
    %v6458 = vpop.f32.mrb[0].mxu0
    %v6459 = vadd.f32 0.0, %v6458
    %v6460 = vpop.f32.mrb[0].mxu0
    %v6461 = vadd.f32 0.0, %v6460
    %6462 = vmatprep.mubr.bf16.mxu0 %v6247
    %6463 = vmatmul.mubr.bf16.gmra.mrb[0].mxu0 %v6246
    %v6464 = vpop.f32.mrb[0].mxu0
    %v6465 = vadd.f32 0.0, %v6464
    %v6466 = vpop.f32.mrb[0].mxu0
    %v6467 = vadd.f32 0.0, %v6466
    %v6468 = vpop.f32.mrb[0].mxu0
    %v6469 = vadd.f32 0.0, %v6468
    %v6470 = vpop.f32.mrb[0].mxu0
    %v6471 = vadd.f32 0.0, %v6470
    %6472 = vmatprep.mubr.bf16.mxu0 %v6249
    %6473 = vmatmul.mubr.bf16.gmra.mrb[0].mxu0 %v6248
    %v6474 = vpop.f32.mrb[0].mxu0
    %v6475 = vadd.f32 0.0, %v6474
    %v6476 = vpop.f32.mrb[0].mxu0
    %v6477 = vadd.f32 0.0, %v6476
    %v6478 = vpop.f32.mrb[0].mxu0
    %v6479 = vadd.f32 0.0, %v6478
    %v6480 = vpop.f32.mrb[0].mxu0
    %v6481 = vadd.f32 0.0, %v6480
    %6482 = vmatprep.mubr.bf16.mxu0 %v6251
    %6483 = vmatmul.mubr.bf16.gmra.mrb[0].mxu0 %v6250
    %v6484 = vpop.f32.mrb[0].mxu0
    %v6485 = vadd.f32 0.0, %v6484
    %v6486 = vpop.f32.mrb[0].mxu0
    %v6487 = vadd.f32 0.0, %v6486
    %v6488 = vpop.f32.mrb[0].mxu0
    %v6489 = vadd.f32 0.0, %v6488
    %v6490 = vpop.f32.mrb[0].mxu0
    %v6491 = vadd.f32 0.0, %v6490
    %6492 = vmatprep.mubr.bf16.mxu0 %v6253
    %6493 = vmatmul.mubr.bf16.gmra.mrb[0].mxu0 %v6252
    %v6494 = vpop.f32.mrb[0].mxu0
    %v6495 = vadd.f32 0.0, %v6494
    %v6496 = vpop.f32.mrb[0].mxu0
    %v6497 = vadd.f32 0.0, %v6496
    %v6498 = vpop.f32.mrb[0].mxu0
    %v6499 = vadd.f32 0.0, %v6498
    %v6500 = vpop.f32.mrb[0].mxu0
    %v6501 = vadd.f32 0.0, %v6500
    %6502 = vmatprep.mubr.bf16.mxu0 %v6255
    %6503 = vmatmul.mubr.bf16.gmra.mrb[0].mxu0 %v6254
    %v6504 = vpop.f32.mrb[0].mxu0
    %v6505 = vadd.f32 0.0, %v6504
    %v6506 = vpop.f32.mrb[0].mxu0
    %v6507 = vadd.f32 0.0, %v6506
    %v6508 = vpop.f32.mrb[0].mxu0
    %v6509 = vadd.f32 0.0, %v6508
    %v6510 = vpop.f32.mrb[0].mxu0
    %v6511 = vadd.f32 0.0, %v6510
    %6512 = vmatprep.mubr.bf16.mxu0 %v6257
    %6513 = vmatmul.mubr.bf16.gmra.mrb[0].mxu0 %v6256
    %v6514 = vpop.f32.mrb[0].mxu0
    %v6515 = vadd.f32 0.0, %v6514
    %v6516 = vpop.f32.mrb[0].mxu0
    %v6517 = vadd.f32 0.0, %v6516
    %v6518 = vpop.f32.mrb[0].mxu0
    %v6519 = vadd.f32 0.0, %v6518
    %v6520 = vpop.f32.mrb[0].mxu0
    %v6521 = vadd.f32 0.0, %v6520
    %6522 = vmatprep.mubr.bf16.mxu0 %v6259
    %6523 = vmatmul.mubr.bf16.gmra.mrb[0].mxu0 %v6258
    %v6524 = vpop.f32.mrb[0].mxu0
    %v6525 = vadd.f32 0.0, %v6524
    %v6526 = vpop.f32.mrb[0].mxu0
    %v6527 = vadd.f32 0.0, %v6526
    %v6528 = vpop.f32.mrb[0].mxu0
    %v6529 = vadd.f32 0.0, %v6528
    %v6530 = vpop.f32.mrb[0].mxu0
    %v6531 = vadd.f32 0.0, %v6530
    %6532 = vdwg.mxu0
    %v6533 = vld [vmem:[#allocation3] sm:$0x3]
    %6534 = vmatprep.subr.mxu0 %v6457
    %6535 = vmatpush1.msra.mxu0 %v6455
    %6536 = vmatprep.subr.mxu0 %v6461
    %6537 = vmatpush1.msra.mxu0 %v6459
    %6538 = vmatprep.subr.mxu0 %v6467
    %6539 = vmatpush1.msra.mxu0 %v6465
    %6540 = vmatprep.subr.mxu0 %v6471
    %6541 = vmatpush1.msra.mxu0 %v6469
    %6542 = vmatprep.subr.mxu0 %v6477
    %6543 = vmatpush1.msra.mxu0 %v6475
    %6544 = vmatprep.subr.mxu0 %v6481
    %6545 = vmatpush1.msra.mxu0 %v6479
    %6546 = vmatprep.subr.mxu0 %v6487
    %6547 = vmatpush1.msra.mxu0 %v6485
    %6548 = vmatprep.subr.mxu0 %v6491
    %6549 = vmatpush1.msra.mxu0 %v6489
    %6550 = vmatprep.subr.mxu0 %v6497
    %6551 = vmatpush1.msra.mxu0 %v6495
    %6552 = vmatprep.subr.mxu0 %v6501
    %6553 = vmatpush1.msra.mxu0 %v6499
    %6554 = vmatprep.subr.mxu0 %v6507
    %6555 = vmatpush1.msra.mxu0 %v6505
    %6556 = vmatprep.subr.mxu0 %v6511
    %6557 = vmatpush1.msra.mxu0 %v6509
    %6558 = vmatprep.subr.mxu0 %v6517
    %6559 = vmatpush1.msra.mxu0 %v6515
    %6560 = vmatprep.subr.mxu0 %v6521
    %6561 = vmatpush1.msra.mxu0 %v6519
    %6562 = vmatprep.subr.mxu0 %v6527
    %6563 = vmatpush1.msra.mxu0 %v6525
    %6564 = vmatprep.subr.mxu0 %v6531
    %6565 = vmatpush1.msra.mxu0 %v6529
    %6566 = vmatprep.subr.mxu0 0.0
    %6567 = vmatpush1.msra.mxu0 0.0
    %6568 = vmatprep.subr.mxu0 0.0
    %6569 = vmatpush1.msra.mxu0 0.0
    %6570 = vmatprep.subr.mxu0 0.0
    %6571 = vmatpush1.msra.mxu0 0.0
    %6572 = vmatprep.subr.mxu0 0.0
    %6573 = vmatpush1.msra.mxu0 0.0
    %6574 = vmatprep.subr.mxu0 0.0
    %6575 = vmatpush1.msra.mxu0 0.0
    %6576 = vmatprep.subr.mxu0 0.0
    %6577 = vmatpush1.msra.mxu0 0.0
    %6578 = vmatprep.subr.mxu0 0.0
    %6579 = vmatpush1.msra.mxu0 0.0
    %6580 = vmatprep.subr.mxu0 0.0
    %6581 = vmatpush1.msra.mxu0 0.0
    %6582 = vmatprep.subr.mxu0 0.0
    %6583 = vmatpush1.msra.mxu0 0.0
    %6584 = vmatprep.subr.mxu0 0.0
    %6585 = vmatpush1.msra.mxu0 0.0
    %6586 = vmatprep.subr.mxu0 0.0
    %6587 = vmatpush1.msra.mxu0 0.0
    %6588 = vmatprep.subr.mxu0 0.0
    %6589 = vmatpush1.msra.mxu0 0.0
    %6590 = vmatprep.subr.mxu0 0.0
    %6591 = vmatpush1.msra.mxu0 0.0
    %6592 = vmatprep.subr.mxu0 0.0
    %6593 = vmatpush1.msra.mxu0 0.0
    %6594 = vmatprep.subr.mxu0 0.0
    %6595 = vmatpush1.msra.mxu0 0.0
    %6596 = vmatprep.subr.mxu0 0.0
    %6597 = vmatpush1.msra.mxu0 0.0
    %6598 = vmatprep.mubr.f32.mxu0 0.0
    %6599 = vmatmul.mubr.f32.gmra.mrb[0].mxu0 %v5030
    %v6600 = vpop.f32.mrb[0].mxu0
    %v6601 = vadd.f32 0.0, %v6600
    %v6602 = vpop.f32.mrb[0].mxu0
    %v6603 = vadd.f32 0.0, %v6602
    %6604 = vdwg.mxu0
    %v6607 = vcombine.low %v6601, %v6603
    %v6609 = vunpack.c.l.s4 1966171168
    %v6610 = vunpack.c.0.s8 %v6609
    %v6611 = vlaneseq
    %v6612 = vshrl.u32 %v6611, 7
    %v6613 = vsub.s32 %v6610, %v6612
    %v6614 = vrot.slane %v6607, %v6613
    %v6616 = vunpack.c.l.s4 1966171168
    %v6617 = vunpack.c.0.s8 %v6616
    %v6618 = vlaneseq
    %v6619 = vshrl.u32 %v6618, 7
    %v6620 = vsub.s32 %v6617, %v6619
    %v6621 = vrot.slane %v6614, %v6620
    %v6623 = vadd.f32 %v6533, %v6621
    %6624 = vst.msk [vmem:[#allocation3] sm:$0x3] %vm4418, %v6623
    %v6625 = vld [vmem:[#allocation4] sm:$0x3]
    %v6626 = vmul.f32 %v6455, %v6455
    %v6627 = vmul.f32 %v6457, %v6457
    %v6628 = vmul.f32 %v6459, %v6459
    %v6629 = vmul.f32 %v6461, %v6461
    %v6630 = vmul.f32 %v6465, %v6465
    %v6631 = vmul.f32 %v6467, %v6467
    %v6632 = vmul.f32 %v6469, %v6469
    %v6633 = vmul.f32 %v6471, %v6471
    %v6634 = vmul.f32 %v6475, %v6475
    %v6635 = vmul.f32 %v6477, %v6477
    %v6636 = vmul.f32 %v6479, %v6479
    %v6637 = vmul.f32 %v6481, %v6481
    %v6638 = vmul.f32 %v6485, %v6485
    %v6639 = vmul.f32 %v6487, %v6487
    %v6640 = vmul.f32 %v6489, %v6489
    %v6641 = vmul.f32 %v6491, %v6491
    %v6642 = vmul.f32 %v6495, %v6495
    %v6643 = vmul.f32 %v6497, %v6497
    %v6644 = vmul.f32 %v6499, %v6499
    %v6645 = vmul.f32 %v6501, %v6501
    %v6646 = vmul.f32 %v6505, %v6505
    %v6647 = vmul.f32 %v6507, %v6507
    %v6648 = vmul.f32 %v6509, %v6509
    %v6649 = vmul.f32 %v6511, %v6511
    %v6650 = vmul.f32 %v6515, %v6515
    %v6651 = vmul.f32 %v6517, %v6517
    %v6652 = vmul.f32 %v6519, %v6519
    %v6653 = vmul.f32 %v6521, %v6521
    %v6654 = vmul.f32 %v6525, %v6525
    %v6655 = vmul.f32 %v6527, %v6527
    %v6656 = vmul.f32 %v6529, %v6529
    %v6657 = vmul.f32 %v6531, %v6531
    %6658 = vmatprep.subr.mxu0 %v6627
    %6659 = vmatpush1.msra.mxu0 %v6626
    %6660 = vmatprep.subr.mxu0 %v6629
    %6661 = vmatpush1.msra.mxu0 %v6628
    %6662 = vmatprep.subr.mxu0 %v6631
    %6663 = vmatpush1.msra.mxu0 %v6630
    %6664 = vmatprep.subr.mxu0 %v6633
    %6665 = vmatpush1.msra.mxu0 %v6632
    %6666 = vmatprep.subr.mxu0 %v6635
    %6667 = vmatpush1.msra.mxu0 %v6634
    %6668 = vmatprep.subr.mxu0 %v6637
    %6669 = vmatpush1.msra.mxu0 %v6636
    %6670 = vmatprep.subr.mxu0 %v6639
    %6671 = vmatpush1.msra.mxu0 %v6638
    %6672 = vmatprep.subr.mxu0 %v6641
    %6673 = vmatpush1.msra.mxu0 %v6640
    %6674 = vmatprep.subr.mxu0 %v6643
    %6675 = vmatpush1.msra.mxu0 %v6642
    %6676 = vmatprep.subr.mxu0 %v6645
    %6677 = vmatpush1.msra.mxu0 %v6644
    %6678 = vmatprep.subr.mxu0 %v6647
    %6679 = vmatpush1.msra.mxu0 %v6646
    %6680 = vmatprep.subr.mxu0 %v6649
    %6681 = vmatpush1.msra.mxu0 %v6648
    %6682 = vmatprep.subr.mxu0 %v6651
    %6683 = vmatpush1.msra.mxu0 %v6650
    %6684 = vmatprep.subr.mxu0 %v6653
    %6685 = vmatpush1.msra.mxu0 %v6652
    %6686 = vmatprep.subr.mxu0 %v6655
    %6687 = vmatpush1.msra.mxu0 %v6654
    %6688 = vmatprep.subr.mxu0 %v6657
    %6689 = vmatpush1.msra.mxu0 %v6656
    %6690 = vmatprep.subr.mxu0 0.0
    %6691 = vmatpush1.msra.mxu0 0.0
    %6692 = vmatprep.subr.mxu0 0.0
    %6693 = vmatpush1.msra.mxu0 0.0
    %6694 = vmatprep.subr.mxu0 0.0
    %6695 = vmatpush1.msra.mxu0 0.0
    %6696 = vmatprep.subr.mxu0 0.0
    %6697 = vmatpush1.msra.mxu0 0.0
    %6698 = vmatprep.subr.mxu0 0.0
    %6699 = vmatpush1.msra.mxu0 0.0
    %6700 = vmatprep.subr.mxu0 0.0
    %6701 = vmatpush1.msra.mxu0 0.0
    %6702 = vmatprep.subr.mxu0 0.0
    %6703 = vmatpush1.msra.mxu0 0.0
    %6704 = vmatprep.subr.mxu0 0.0
    %6705 = vmatpush1.msra.mxu0 0.0
    %6706 = vmatprep.subr.mxu0 0.0
    %6707 = vmatpush1.msra.mxu0 0.0
    %6708 = vmatprep.subr.mxu0 0.0
    %6709 = vmatpush1.msra.mxu0 0.0
    %6710 = vmatprep.subr.mxu0 0.0
    %6711 = vmatpush1.msra.mxu0 0.0
    %6712 = vmatprep.subr.mxu0 0.0
    %6713 = vmatpush1.msra.mxu0 0.0
    %6714 = vmatprep.subr.mxu0 0.0
    %6715 = vmatpush1.msra.mxu0 0.0
    %6716 = vmatprep.subr.mxu0 0.0
    %6717 = vmatpush1.msra.mxu0 0.0
    %6718 = vmatprep.subr.mxu0 0.0
    %6719 = vmatpush1.msra.mxu0 0.0
    %6720 = vmatprep.subr.mxu0 0.0
    %6721 = vmatpush1.msra.mxu0 0.0
    %6722 = vmatprep.mubr.f32.mxu0 0.0
    %6723 = vmatmul.mubr.f32.gmra.mrb[0].mxu0 %v5030
    %v6724 = vpop.f32.mrb[0].mxu0
    %v6725 = vadd.f32 0.0, %v6724
    %v6726 = vpop.f32.mrb[0].mxu0
    %v6727 = vadd.f32 0.0, %v6726
    %6728 = vdwg.mxu0
    %v6731 = vcombine.low %v6725, %v6727
    %v6733 = vunpack.c.l.s4 1966171168
    %v6734 = vunpack.c.0.s8 %v6733
    %v6735 = vlaneseq
    %v6736 = vshrl.u32 %v6735, 7
    %v6737 = vsub.s32 %v6734, %v6736
    %v6738 = vrot.slane %v6731, %v6737
    %v6740 = vunpack.c.l.s4 1966171168
    %v6741 = vunpack.c.0.s8 %v6740
    %v6742 = vlaneseq
    %v6743 = vshrl.u32 %v6742, 7
    %v6744 = vsub.s32 %v6741, %v6743
    %v6745 = vrot.slane %v6738, %v6744
    %v6747 = vadd.f32 %v6625, %v6745
    %6748 = vst.msk [vmem:[#allocation4] sm:$0x3] %vm4418, %v6747
    %v6749 = vpack.c.bf16 %v6459, %v6455
    %v6750 = vpack.c.bf16 %v6461, %v6457
    %v6751 = vpack.c.bf16 %v6469, %v6465
    %v6752 = vpack.c.bf16 %v6471, %v6467
    %v6753 = vpack.c.bf16 %v6479, %v6475
    %v6754 = vpack.c.bf16 %v6481, %v6477
    %v6755 = vpack.c.bf16 %v6489, %v6485
    %v6756 = vpack.c.bf16 %v6491, %v6487
    %v6757 = vpack.c.bf16 %v6499, %v6495
    %v6758 = vpack.c.bf16 %v6501, %v6497
    %v6759 = vpack.c.bf16 %v6509, %v6505
    %v6760 = vpack.c.bf16 %v6511, %v6507
    %v6761 = vpack.c.bf16 %v6519, %v6515
    %v6762 = vpack.c.bf16 %v6521, %v6517
    %v6763 = vpack.c.bf16 %v6529, %v6525
    %v6764 = vpack.c.bf16 %v6531, %v6527
    %6765 = vst [vmem:[%s4568] sm:$0xff] %v6749
    %6766 = vst [vmem:[%s4568 + $0x8] sm:$0xff] %v6750
    %6767 = vst [vmem:[%s4568 + $0x10] sm:$0xff] %v6751
    %6768 = vst [vmem:[%s4568 + $0x18] sm:$0xff] %v6752
    %6769 = vst [vmem:[%s4568 + $0x20] sm:$0xff] %v6753
    %6770 = vst [vmem:[%s4568 + $0x28] sm:$0xff] %v6754
    %6771 = vst [vmem:[%s4568 + $0x30] sm:$0xff] %v6755
    %6772 = vst [vmem:[%s4568 + $0x38] sm:$0xff] %v6756
    %6773 = vst [vmem:[%s4568 + $0x40] sm:$0xff] %v6757
    %6774 = vst [vmem:[%s4568 + $0x48] sm:$0xff] %v6758
    %6775 = vst [vmem:[%s4568 + $0x50] sm:$0xff] %v6759
    %6776 = vst [vmem:[%s4568 + $0x58] sm:$0xff] %v6760
    %6777 = vst [vmem:[%s4568 + $0x60] sm:$0xff] %v6761
    %6778 = vst [vmem:[%s4568 + $0x68] sm:$0xff] %v6762
    %6779 = vst [vmem:[%s4568 + $0x70] sm:$0xff] %v6763
    %6780 = vst [vmem:[%s4568 + $0x78] sm:$0xff] %v6764
    %v6781 = vld [vmem:[#allocation3] sm:$0x3]
    %v6782 = vmul.f32 %v6781, 0.125
    %v6783 = vld [vmem:[#allocation4] sm:$0x3]
    %v6784 = vmul.f32 %v6783, 0.125
    %v6785 = vmul.f32 %v6782, %v6782
    %v6786 = vsub.f32 %v6784, %v6785
    %v6787 = vmax.f32 %v6786, 0.0
    %v6788 = vld [vmem:[%s11] sm:$0x3]
    %v6789 = vadd.f32 %v6787, 1e-05
    %v6790 = vrsqrt.pop %v6789
    %v6791 = vmul.f32 %v6788, %v6790
    %v6792 = vld [vmem:[%s12] sm:$0x3]
    %v6793 = vmul.f32 %v6782, %v6791
    %v6794 = vsub.f32 %v6792, %v6793
    %v6795 = vld [vmem:[%s13] sm:$0xff]
    %v6796 = vld [vmem:[%s13 + $0x8] sm:$0xff]
    %v6797 = vld [vmem:[%s13 + $0x10] sm:$0xff]
    %v6798 = vld [vmem:[%s13 + $0x18] sm:$0xff]
    %v6799 = vld [vmem:[%s13 + $0x20] sm:$0xff]
    %v6800 = vld [vmem:[%s13 + $0x28] sm:$0xff]
    %v6801 = vld [vmem:[%s13 + $0x30] sm:$0xff]
    %v6802 = vld [vmem:[%s13 + $0x38] sm:$0xff]
    %v6803 = vld [vmem:[%s13 + $0x40] sm:$0xff]
    %v6804 = vld [vmem:[%s13 + $0x48] sm:$0xff]
    %v6805 = vld [vmem:[%s13 + $0x50] sm:$0xff]
    %v6806 = vld [vmem:[%s13 + $0x58] sm:$0xff]
    %v6807 = vld [vmem:[%s13 + $0x60] sm:$0xff]
    %v6808 = vld [vmem:[%s13 + $0x68] sm:$0xff]
    %v6809 = vld [vmem:[%s13 + $0x70] sm:$0xff]
    %v6810 = vld [vmem:[%s13 + $0x78] sm:$0xff]
    %v6811 = vld [vmem:[%s13 + $0x80] sm:$0xff]
    %v6812 = vld [vmem:[%s13 + $0x88] sm:$0xff]
    %v6813 = vld [vmem:[%s13 + $0x90] sm:$0xff]
    %v6814 = vld [vmem:[%s13 + $0x98] sm:$0xff]
    %v6815 = vld [vmem:[%s13 + $0xa0] sm:$0xff]
    %v6816 = vld [vmem:[%s13 + $0xa8] sm:$0xff]
    %v6817 = vld [vmem:[%s13 + $0xb0] sm:$0xff]
    %v6818 = vld [vmem:[%s13 + $0xb8] sm:$0xff]
    %v6819 = vld [vmem:[%s13 + $0xc0] sm:$0xff]
    %v6820 = vld [vmem:[%s13 + $0xc8] sm:$0xff]
    %v6821 = vld [vmem:[%s13 + $0xd0] sm:$0xff]
    %v6822 = vld [vmem:[%s13 + $0xd8] sm:$0xff]
    %v6823 = vld [vmem:[%s13 + $0xe0] sm:$0xff]
    %v6824 = vld [vmem:[%s13 + $0xe8] sm:$0xff]
    %v6825 = vld [vmem:[%s13 + $0xf0] sm:$0xff]
    %v6826 = vld [vmem:[%s13 + $0xf8] sm:$0xff]
    %6827 = vst.msk [vmem:[#allocation3] sm:$0x3] %vm4418, 0.0
    %6828 = vst.msk [vmem:[#allocation4] sm:$0x3] %vm4418, 0.0
    %v6829 = vld [vmem:[%s4568] sm:$0xff]
    %v6830 = vld [vmem:[%s4568 + $0x8] sm:$0xff]
    %v6831 = vld [vmem:[%s4568 + $0x10] sm:$0xff]
    %v6832 = vld [vmem:[%s4568 + $0x18] sm:$0xff]
    %v6833 = vld [vmem:[%s4568 + $0x20] sm:$0xff]
    %v6834 = vld [vmem:[%s4568 + $0x28] sm:$0xff]
    %v6835 = vld [vmem:[%s4568 + $0x30] sm:$0xff]
    %v6836 = vld [vmem:[%s4568 + $0x38] sm:$0xff]
    %v6837 = vld [vmem:[%s4568 + $0x40] sm:$0xff]
    %v6838 = vld [vmem:[%s4568 + $0x48] sm:$0xff]
    %v6839 = vld [vmem:[%s4568 + $0x50] sm:$0xff]
    %v6840 = vld [vmem:[%s4568 + $0x58] sm:$0xff]
    %v6841 = vld [vmem:[%s4568 + $0x60] sm:$0xff]
    %v6842 = vld [vmem:[%s4568 + $0x68] sm:$0xff]
    %v6843 = vld [vmem:[%s4568 + $0x70] sm:$0xff]
    %v6844 = vld [vmem:[%s4568 + $0x78] sm:$0xff]
    %v6845 = vunpack.c.l.bf16 %v6829
    %v6846 = vunpack.c.l.bf16 %v6830
    %v6847 = vunpack.c.h.bf16 %v6829
    %v6848 = vunpack.c.h.bf16 %v6830
    %v6849 = vunpack.c.l.bf16 %v6831
    %v6850 = vunpack.c.l.bf16 %v6832
    %v6851 = vunpack.c.h.bf16 %v6831
    %v6852 = vunpack.c.h.bf16 %v6832
    %v6853 = vunpack.c.l.bf16 %v6833
    %v6854 = vunpack.c.l.bf16 %v6834
    %v6855 = vunpack.c.h.bf16 %v6833
    %v6856 = vunpack.c.h.bf16 %v6834
    %v6857 = vunpack.c.l.bf16 %v6835
    %v6858 = vunpack.c.l.bf16 %v6836
    %v6859 = vunpack.c.h.bf16 %v6835
    %v6860 = vunpack.c.h.bf16 %v6836
    %v6861 = vunpack.c.l.bf16 %v6837
    %v6862 = vunpack.c.l.bf16 %v6838
    %v6863 = vunpack.c.h.bf16 %v6837
    %v6864 = vunpack.c.h.bf16 %v6838
    %v6865 = vunpack.c.l.bf16 %v6839
    %v6866 = vunpack.c.l.bf16 %v6840
    %v6867 = vunpack.c.h.bf16 %v6839
    %v6868 = vunpack.c.h.bf16 %v6840
    %v6869 = vunpack.c.l.bf16 %v6841
    %v6870 = vunpack.c.l.bf16 %v6842
    %v6871 = vunpack.c.h.bf16 %v6841
    %v6872 = vunpack.c.h.bf16 %v6842
    %v6873 = vunpack.c.l.bf16 %v6843
    %v6874 = vunpack.c.l.bf16 %v6844
    %v6875 = vunpack.c.h.bf16 %v6843
    %v6876 = vunpack.c.h.bf16 %v6844
    %v6878 = vlaneseq
    %v6879 = vshrl.u32 %v6878, 7
    %v6880 = vsub.s32 0, %v6879
    %v6881 = vrot.slane %v6791, %v6880
    %v6882 = vlaneseq
    %v6883 = vshrl.u32 %v6882, 7
    %v6884 = vsub.s32 1, %v6883
    %v6885 = vrot.slane %v6791, %v6884
    %v6888 = vmul.f32 %v6845, %v6881
    %v6889 = vmul.f32 %v6846, %v6885
    %v6890 = vmul.f32 %v6847, %v6881
    %v6891 = vmul.f32 %v6848, %v6885
    %v6892 = vmul.f32 %v6849, %v6881
    %v6893 = vmul.f32 %v6850, %v6885
    %v6894 = vmul.f32 %v6851, %v6881
    %v6895 = vmul.f32 %v6852, %v6885
    %v6896 = vmul.f32 %v6853, %v6881
    %v6897 = vmul.f32 %v6854, %v6885
    %v6898 = vmul.f32 %v6855, %v6881
    %v6899 = vmul.f32 %v6856, %v6885
    %v6900 = vmul.f32 %v6857, %v6881
    %v6901 = vmul.f32 %v6858, %v6885
    %v6902 = vmul.f32 %v6859, %v6881
    %v6903 = vmul.f32 %v6860, %v6885
    %v6904 = vmul.f32 %v6861, %v6881
    %v6905 = vmul.f32 %v6862, %v6885
    %v6906 = vmul.f32 %v6863, %v6881
    %v6907 = vmul.f32 %v6864, %v6885
    %v6908 = vmul.f32 %v6865, %v6881
    %v6909 = vmul.f32 %v6866, %v6885
    %v6910 = vmul.f32 %v6867, %v6881
    %v6911 = vmul.f32 %v6868, %v6885
    %v6912 = vmul.f32 %v6869, %v6881
    %v6913 = vmul.f32 %v6870, %v6885
    %v6914 = vmul.f32 %v6871, %v6881
    %v6915 = vmul.f32 %v6872, %v6885
    %v6916 = vmul.f32 %v6873, %v6881
    %v6917 = vmul.f32 %v6874, %v6885
    %v6918 = vmul.f32 %v6875, %v6881
    %v6919 = vmul.f32 %v6876, %v6885
    %v6921 = vlaneseq
    %v6922 = vshrl.u32 %v6921, 7
    %v6923 = vsub.s32 0, %v6922
    %v6924 = vrot.slane %v6794, %v6923
    %v6925 = vlaneseq
    %v6926 = vshrl.u32 %v6925, 7
    %v6927 = vsub.s32 1, %v6926
    %v6928 = vrot.slane %v6794, %v6927
    %v6931 = vadd.f32 %v6888, %v6924
    %v6932 = vadd.f32 %v6889, %v6928
    %v6933 = vadd.f32 %v6890, %v6924
    %v6934 = vadd.f32 %v6891, %v6928
    %v6935 = vadd.f32 %v6892, %v6924
    %v6936 = vadd.f32 %v6893, %v6928
    %v6937 = vadd.f32 %v6894, %v6924
    %v6938 = vadd.f32 %v6895, %v6928
    %v6939 = vadd.f32 %v6896, %v6924
    %v6940 = vadd.f32 %v6897, %v6928
    %v6941 = vadd.f32 %v6898, %v6924
    %v6942 = vadd.f32 %v6899, %v6928
    %v6943 = vadd.f32 %v6900, %v6924
    %v6944 = vadd.f32 %v6901, %v6928
    %v6945 = vadd.f32 %v6902, %v6924
    %v6946 = vadd.f32 %v6903, %v6928
    %v6947 = vadd.f32 %v6904, %v6924
    %v6948 = vadd.f32 %v6905, %v6928
    %v6949 = vadd.f32 %v6906, %v6924
    %v6950 = vadd.f32 %v6907, %v6928
    %v6951 = vadd.f32 %v6908, %v6924
    %v6952 = vadd.f32 %v6909, %v6928
    %v6953 = vadd.f32 %v6910, %v6924
    %v6954 = vadd.f32 %v6911, %v6928
    %v6955 = vadd.f32 %v6912, %v6924
    %v6956 = vadd.f32 %v6913, %v6928
    %v6957 = vadd.f32 %v6914, %v6924
    %v6958 = vadd.f32 %v6915, %v6928
    %v6959 = vadd.f32 %v6916, %v6924
    %v6960 = vadd.f32 %v6917, %v6928
    %v6961 = vadd.f32 %v6918, %v6924
    %v6962 = vadd.f32 %v6919, %v6928
    %v6963 = vmax.f32 %v6931, 0.0
    %v6964 = vmax.f32 %v6932, 0.0
    %v6965 = vmax.f32 %v6933, 0.0
    %v6966 = vmax.f32 %v6934, 0.0
    %v6967 = vmax.f32 %v6935, 0.0
    %v6968 = vmax.f32 %v6936, 0.0
    %v6969 = vmax.f32 %v6937, 0.0
    %v6970 = vmax.f32 %v6938, 0.0
    %v6971 = vmax.f32 %v6939, 0.0
    %v6972 = vmax.f32 %v6940, 0.0
    %v6973 = vmax.f32 %v6941, 0.0
    %v6974 = vmax.f32 %v6942, 0.0
    %v6975 = vmax.f32 %v6943, 0.0
    %v6976 = vmax.f32 %v6944, 0.0
    %v6977 = vmax.f32 %v6945, 0.0
    %v6978 = vmax.f32 %v6946, 0.0
    %v6979 = vmax.f32 %v6947, 0.0
    %v6980 = vmax.f32 %v6948, 0.0
    %v6981 = vmax.f32 %v6949, 0.0
    %v6982 = vmax.f32 %v6950, 0.0
    %v6983 = vmax.f32 %v6951, 0.0
    %v6984 = vmax.f32 %v6952, 0.0
    %v6985 = vmax.f32 %v6953, 0.0
    %v6986 = vmax.f32 %v6954, 0.0
    %v6987 = vmax.f32 %v6955, 0.0
    %v6988 = vmax.f32 %v6956, 0.0
    %v6989 = vmax.f32 %v6957, 0.0
    %v6990 = vmax.f32 %v6958, 0.0
    %v6991 = vmax.f32 %v6959, 0.0
    %v6992 = vmax.f32 %v6960, 0.0
    %v6993 = vmax.f32 %v6961, 0.0
    %v6994 = vmax.f32 %v6962, 0.0
    %v6995 = vpack.c.bf16 %v6965, %v6963
    %v6996 = vpack.c.bf16 %v6966, %v6964
    %v6997 = vpack.c.bf16 %v6969, %v6967
    %v6998 = vpack.c.bf16 %v6970, %v6968
    %v6999 = vpack.c.bf16 %v6973, %v6971
    %v7000 = vpack.c.bf16 %v6974, %v6972
    %v7001 = vpack.c.bf16 %v6977, %v6975
    %v7002 = vpack.c.bf16 %v6978, %v6976
    %v7003 = vpack.c.bf16 %v6981, %v6979
    %v7004 = vpack.c.bf16 %v6982, %v6980
    %v7005 = vpack.c.bf16 %v6985, %v6983
    %v7006 = vpack.c.bf16 %v6986, %v6984
    %v7007 = vpack.c.bf16 %v6989, %v6987
    %v7008 = vpack.c.bf16 %v6990, %v6988
    %v7009 = vpack.c.bf16 %v6993, %v6991
    %v7010 = vpack.c.bf16 %v6994, %v6992
    %v7043 = vunpack.c.l.b16 %v6795
    %v7044 = vunpack.c.h.b16 %v6795
    %v7045 = vunpack.c.l.b16 %v6796
    %v7046 = vunpack.c.h.b16 %v6796
    %v7047 = vunpack.c.l.b16 %v6797
    %v7048 = vunpack.c.h.b16 %v6797
    %v7049 = vunpack.c.l.b16 %v6798
    %v7050 = vunpack.c.h.b16 %v6798
    %v7051 = vunpack.c.l.b16 %v6799
    %v7052 = vunpack.c.h.b16 %v6799
    %v7053 = vunpack.c.l.b16 %v6800
    %v7054 = vunpack.c.h.b16 %v6800
    %v7055 = vunpack.c.l.b16 %v6801
    %v7056 = vunpack.c.h.b16 %v6801
    %v7057 = vunpack.c.l.b16 %v6802
    %v7058 = vunpack.c.h.b16 %v6802
    %v7059 = vunpack.c.l.b16 %v6803
    %v7060 = vunpack.c.h.b16 %v6803
    %v7061 = vunpack.c.l.b16 %v6804
    %v7062 = vunpack.c.h.b16 %v6804
    %v7063 = vunpack.c.l.b16 %v6805
    %v7064 = vunpack.c.h.b16 %v6805
    %v7065 = vunpack.c.l.b16 %v6806
    %v7066 = vunpack.c.h.b16 %v6806
    %v7067 = vunpack.c.l.b16 %v6807
    %v7068 = vunpack.c.h.b16 %v6807
    %v7069 = vunpack.c.l.b16 %v6808
    %v7070 = vunpack.c.h.b16 %v6808
    %v7071 = vunpack.c.l.b16 %v6809
    %v7072 = vunpack.c.h.b16 %v6809
    %v7073 = vunpack.c.l.b16 %v6810
    %v7074 = vunpack.c.h.b16 %v6810
    %v7075 = vunpack.c.l.b16 %v6811
    %v7076 = vunpack.c.h.b16 %v6811
    %v7077 = vunpack.c.l.b16 %v6812
    %v7078 = vunpack.c.h.b16 %v6812
    %v7079 = vunpack.c.l.b16 %v6813
    %v7080 = vunpack.c.h.b16 %v6813
    %v7081 = vunpack.c.l.b16 %v6814
    %v7082 = vunpack.c.h.b16 %v6814
    %v7083 = vunpack.c.l.b16 %v6815
    %v7084 = vunpack.c.h.b16 %v6815
    %v7085 = vunpack.c.l.b16 %v6816
    %v7086 = vunpack.c.h.b16 %v6816
    %v7087 = vunpack.c.l.b16 %v6817
    %v7088 = vunpack.c.h.b16 %v6817
    %v7089 = vunpack.c.l.b16 %v6818
    %v7090 = vunpack.c.h.b16 %v6818
    %v7091 = vunpack.c.l.b16 %v6819
    %v7092 = vunpack.c.h.b16 %v6819
    %v7093 = vunpack.c.l.b16 %v6820
    %v7094 = vunpack.c.h.b16 %v6820
    %v7095 = vunpack.c.l.b16 %v6821
    %v7096 = vunpack.c.h.b16 %v6821
    %v7097 = vunpack.c.l.b16 %v6822
    %v7098 = vunpack.c.h.b16 %v6822
    %v7099 = vunpack.c.l.b16 %v6823
    %v7100 = vunpack.c.h.b16 %v6823
    %v7101 = vunpack.c.l.b16 %v6824
    %v7102 = vunpack.c.h.b16 %v6824
    %v7103 = vunpack.c.l.b16 %v6825
    %v7104 = vunpack.c.h.b16 %v6825
    %v7105 = vunpack.c.l.b16 %v6826
    %v7106 = vunpack.c.h.b16 %v6826
    %v7107 = vpack.c.b16 %v7045, %v7043
    %v7108 = vpack.c.b16 %v7046, %v7044
    %v7109 = vpack.c.b16 %v7049, %v7047
    %v7110 = vpack.c.b16 %v7050, %v7048
    %v7111 = vpack.c.b16 %v7053, %v7051
    %v7112 = vpack.c.b16 %v7054, %v7052
    %v7113 = vpack.c.b16 %v7057, %v7055
    %v7114 = vpack.c.b16 %v7058, %v7056
    %v7115 = vpack.c.b16 %v7061, %v7059
    %v7116 = vpack.c.b16 %v7062, %v7060
    %v7117 = vpack.c.b16 %v7065, %v7063
    %v7118 = vpack.c.b16 %v7066, %v7064
    %v7119 = vpack.c.b16 %v7069, %v7067
    %v7120 = vpack.c.b16 %v7070, %v7068
    %v7121 = vpack.c.b16 %v7073, %v7071
    %v7122 = vpack.c.b16 %v7074, %v7072
    %v7123 = vpack.c.b16 %v7077, %v7075
    %v7124 = vpack.c.b16 %v7078, %v7076
    %v7125 = vpack.c.b16 %v7081, %v7079
    %v7126 = vpack.c.b16 %v7082, %v7080
    %v7127 = vpack.c.b16 %v7085, %v7083
    %v7128 = vpack.c.b16 %v7086, %v7084
    %v7129 = vpack.c.b16 %v7089, %v7087
    %v7130 = vpack.c.b16 %v7090, %v7088
    %v7131 = vpack.c.b16 %v7093, %v7091
    %v7132 = vpack.c.b16 %v7094, %v7092
    %v7133 = vpack.c.b16 %v7097, %v7095
    %v7134 = vpack.c.b16 %v7098, %v7096
    %v7135 = vpack.c.b16 %v7101, %v7099
    %v7136 = vpack.c.b16 %v7102, %v7100
    %v7137 = vpack.c.b16 %v7105, %v7103
    %v7138 = vpack.c.b16 %v7106, %v7104
    %7171 = vmatprep.subr.bf16.mxu0 %v7108
    %7172 = vmatpush1.bf16.msra.mxu0 %v7107
    %7173 = vmatprep.subr.bf16.mxu0 %v7110
    %7174 = vmatpush1.bf16.msra.mxu0 %v7109
    %7175 = vmatprep.subr.bf16.mxu0 %v7112
    %7176 = vmatpush1.bf16.msra.mxu0 %v7111
    %7177 = vmatprep.subr.bf16.mxu0 %v7114
    %7178 = vmatpush1.bf16.msra.mxu0 %v7113
    %7179 = vmatprep.subr.bf16.mxu0 %v7116
    %7180 = vmatpush1.bf16.msra.mxu0 %v7115
    %7181 = vmatprep.subr.bf16.mxu0 %v7118
    %7182 = vmatpush1.bf16.msra.mxu0 %v7117
    %7183 = vmatprep.subr.bf16.mxu0 %v7120
    %7184 = vmatpush1.bf16.msra.mxu0 %v7119
    %7185 = vmatprep.subr.bf16.mxu0 %v7122
    %7186 = vmatpush1.bf16.msra.mxu0 %v7121
    %7187 = vmatprep.subr.bf16.mxu0 %v7124
    %7188 = vmatpush1.bf16.msra.mxu0 %v7123
    %7189 = vmatprep.subr.bf16.mxu0 %v7126
    %7190 = vmatpush1.bf16.msra.mxu0 %v7125
    %7191 = vmatprep.subr.bf16.mxu0 %v7128
    %7192 = vmatpush1.bf16.msra.mxu0 %v7127
    %7193 = vmatprep.subr.bf16.mxu0 %v7130
    %7194 = vmatpush1.bf16.msra.mxu0 %v7129
    %7195 = vmatprep.subr.bf16.mxu0 %v7132
    %7196 = vmatpush1.bf16.msra.mxu0 %v7131
    %7197 = vmatprep.subr.bf16.mxu0 %v7134
    %7198 = vmatpush1.bf16.msra.mxu0 %v7133
    %7199 = vmatprep.subr.bf16.mxu0 %v7136
    %7200 = vmatpush1.bf16.msra.mxu0 %v7135
    %7201 = vmatprep.subr.bf16.mxu0 %v7138
    %7202 = vmatpush1.bf16.msra.mxu0 %v7137
    %7203 = vmatprep.mubr.bf16.mxu0 %v6996
    %7204 = vmatmul.mubr.bf16.gmra.mrb[0].mxu0 %v6995
    %v7205 = vpop.f32.mrb[0].mxu0
    %v7206 = vadd.f32 0.0, %v7205
    %v7207 = vpop.f32.mrb[0].mxu0
    %v7208 = vadd.f32 0.0, %v7207
    %v7209 = vpop.f32.mrb[0].mxu0
    %v7210 = vadd.f32 0.0, %v7209
    %v7211 = vpop.f32.mrb[0].mxu0
    %v7212 = vadd.f32 0.0, %v7211
    %7213 = vmatprep.mubr.bf16.mxu0 %v6998
    %7214 = vmatmul.mubr.bf16.gmra.mrb[0].mxu0 %v6997
    %v7215 = vpop.f32.mrb[0].mxu0
    %v7216 = vadd.f32 0.0, %v7215
    %v7217 = vpop.f32.mrb[0].mxu0
    %v7218 = vadd.f32 0.0, %v7217
    %v7219 = vpop.f32.mrb[0].mxu0
    %v7220 = vadd.f32 0.0, %v7219
    %v7221 = vpop.f32.mrb[0].mxu0
    %v7222 = vadd.f32 0.0, %v7221
    %7223 = vmatprep.mubr.bf16.mxu0 %v7000
    %7224 = vmatmul.mubr.bf16.gmra.mrb[0].mxu0 %v6999
    %v7225 = vpop.f32.mrb[0].mxu0
    %v7226 = vadd.f32 0.0, %v7225
    %v7227 = vpop.f32.mrb[0].mxu0
    %v7228 = vadd.f32 0.0, %v7227
    %v7229 = vpop.f32.mrb[0].mxu0
    %v7230 = vadd.f32 0.0, %v7229
    %v7231 = vpop.f32.mrb[0].mxu0
    %v7232 = vadd.f32 0.0, %v7231
    %7233 = vmatprep.mubr.bf16.mxu0 %v7002
    %7234 = vmatmul.mubr.bf16.gmra.mrb[0].mxu0 %v7001
    %v7235 = vpop.f32.mrb[0].mxu0
    %v7236 = vadd.f32 0.0, %v7235
    %v7237 = vpop.f32.mrb[0].mxu0
    %v7238 = vadd.f32 0.0, %v7237
    %v7239 = vpop.f32.mrb[0].mxu0
    %v7240 = vadd.f32 0.0, %v7239
    %v7241 = vpop.f32.mrb[0].mxu0
    %v7242 = vadd.f32 0.0, %v7241
    %7243 = vmatprep.mubr.bf16.mxu0 %v7004
    %7244 = vmatmul.mubr.bf16.gmra.mrb[0].mxu0 %v7003
    %v7245 = vpop.f32.mrb[0].mxu0
    %v7246 = vadd.f32 0.0, %v7245
    %v7247 = vpop.f32.mrb[0].mxu0
    %v7248 = vadd.f32 0.0, %v7247
    %v7249 = vpop.f32.mrb[0].mxu0
    %v7250 = vadd.f32 0.0, %v7249
    %v7251 = vpop.f32.mrb[0].mxu0
    %v7252 = vadd.f32 0.0, %v7251
    %7253 = vmatprep.mubr.bf16.mxu0 %v7006
    %7254 = vmatmul.mubr.bf16.gmra.mrb[0].mxu0 %v7005
    %v7255 = vpop.f32.mrb[0].mxu0
    %v7256 = vadd.f32 0.0, %v7255
    %v7257 = vpop.f32.mrb[0].mxu0
    %v7258 = vadd.f32 0.0, %v7257
    %v7259 = vpop.f32.mrb[0].mxu0
    %v7260 = vadd.f32 0.0, %v7259
    %v7261 = vpop.f32.mrb[0].mxu0
    %v7262 = vadd.f32 0.0, %v7261
    %7263 = vmatprep.mubr.bf16.mxu0 %v7008
    %7264 = vmatmul.mubr.bf16.gmra.mrb[0].mxu0 %v7007
    %v7265 = vpop.f32.mrb[0].mxu0
    %v7266 = vadd.f32 0.0, %v7265
    %v7267 = vpop.f32.mrb[0].mxu0
    %v7268 = vadd.f32 0.0, %v7267
    %v7269 = vpop.f32.mrb[0].mxu0
    %v7270 = vadd.f32 0.0, %v7269
    %v7271 = vpop.f32.mrb[0].mxu0
    %v7272 = vadd.f32 0.0, %v7271
    %7273 = vmatprep.mubr.bf16.mxu0 %v7010
    %7274 = vmatmul.mubr.bf16.gmra.mrb[0].mxu0 %v7009
    %v7275 = vpop.f32.mrb[0].mxu0
    %v7276 = vadd.f32 0.0, %v7275
    %v7277 = vpop.f32.mrb[0].mxu0
    %v7278 = vadd.f32 0.0, %v7277
    %v7279 = vpop.f32.mrb[0].mxu0
    %v7280 = vadd.f32 0.0, %v7279
    %v7281 = vpop.f32.mrb[0].mxu0
    %v7282 = vadd.f32 0.0, %v7281
    %7283 = vdwg.mxu0
    %v7284 = vld [vmem:[#allocation3] sm:$0x3]
    %7285 = vmatprep.subr.mxu0 %v7208
    %7286 = vmatpush1.msra.mxu0 %v7206
    %7287 = vmatprep.subr.mxu0 %v7212
    %7288 = vmatpush1.msra.mxu0 %v7210
    %7289 = vmatprep.subr.mxu0 %v7218
    %7290 = vmatpush1.msra.mxu0 %v7216
    %7291 = vmatprep.subr.mxu0 %v7222
    %7292 = vmatpush1.msra.mxu0 %v7220
    %7293 = vmatprep.subr.mxu0 %v7228
    %7294 = vmatpush1.msra.mxu0 %v7226
    %7295 = vmatprep.subr.mxu0 %v7232
    %7296 = vmatpush1.msra.mxu0 %v7230
    %7297 = vmatprep.subr.mxu0 %v7238
    %7298 = vmatpush1.msra.mxu0 %v7236
    %7299 = vmatprep.subr.mxu0 %v7242
    %7300 = vmatpush1.msra.mxu0 %v7240
    %7301 = vmatprep.subr.mxu0 %v7248
    %7302 = vmatpush1.msra.mxu0 %v7246
    %7303 = vmatprep.subr.mxu0 %v7252
    %7304 = vmatpush1.msra.mxu0 %v7250
    %7305 = vmatprep.subr.mxu0 %v7258
    %7306 = vmatpush1.msra.mxu0 %v7256
    %7307 = vmatprep.subr.mxu0 %v7262
    %7308 = vmatpush1.msra.mxu0 %v7260
    %7309 = vmatprep.subr.mxu0 %v7268
    %7310 = vmatpush1.msra.mxu0 %v7266
    %7311 = vmatprep.subr.mxu0 %v7272
    %7312 = vmatpush1.msra.mxu0 %v7270
    %7313 = vmatprep.subr.mxu0 %v7278
    %7314 = vmatpush1.msra.mxu0 %v7276
    %7315 = vmatprep.subr.mxu0 %v7282
    %7316 = vmatpush1.msra.mxu0 %v7280
    %7317 = vmatprep.subr.mxu0 0.0
    %7318 = vmatpush1.msra.mxu0 0.0
    %7319 = vmatprep.subr.mxu0 0.0
    %7320 = vmatpush1.msra.mxu0 0.0
    %7321 = vmatprep.subr.mxu0 0.0
    %7322 = vmatpush1.msra.mxu0 0.0
    %7323 = vmatprep.subr.mxu0 0.0
    %7324 = vmatpush1.msra.mxu0 0.0
    %7325 = vmatprep.subr.mxu0 0.0
    %7326 = vmatpush1.msra.mxu0 0.0
    %7327 = vmatprep.subr.mxu0 0.0
    %7328 = vmatpush1.msra.mxu0 0.0
    %7329 = vmatprep.subr.mxu0 0.0
    %7330 = vmatpush1.msra.mxu0 0.0
    %7331 = vmatprep.subr.mxu0 0.0
    %7332 = vmatpush1.msra.mxu0 0.0
    %7333 = vmatprep.subr.mxu0 0.0
    %7334 = vmatpush1.msra.mxu0 0.0
    %7335 = vmatprep.subr.mxu0 0.0
    %7336 = vmatpush1.msra.mxu0 0.0
    %7337 = vmatprep.subr.mxu0 0.0
    %7338 = vmatpush1.msra.mxu0 0.0
    %7339 = vmatprep.subr.mxu0 0.0
    %7340 = vmatpush1.msra.mxu0 0.0
    %7341 = vmatprep.subr.mxu0 0.0
    %7342 = vmatpush1.msra.mxu0 0.0
    %7343 = vmatprep.subr.mxu0 0.0
    %7344 = vmatpush1.msra.mxu0 0.0
    %7345 = vmatprep.subr.mxu0 0.0
    %7346 = vmatpush1.msra.mxu0 0.0
    %7347 = vmatprep.subr.mxu0 0.0
    %7348 = vmatpush1.msra.mxu0 0.0
    %7349 = vmatprep.mubr.f32.mxu0 0.0
    %7350 = vmatmul.mubr.f32.gmra.mrb[0].mxu0 %v5030
    %v7351 = vpop.f32.mrb[0].mxu0
    %v7352 = vadd.f32 0.0, %v7351
    %v7353 = vpop.f32.mrb[0].mxu0
    %v7354 = vadd.f32 0.0, %v7353
    %7355 = vdwg.mxu0
    %v7358 = vcombine.low %v7352, %v7354
    %v7360 = vunpack.c.l.s4 1966171168
    %v7361 = vunpack.c.0.s8 %v7360
    %v7362 = vlaneseq
    %v7363 = vshrl.u32 %v7362, 7
    %v7364 = vsub.s32 %v7361, %v7363
    %v7365 = vrot.slane %v7358, %v7364
    %v7367 = vunpack.c.l.s4 1966171168
    %v7368 = vunpack.c.0.s8 %v7367
    %v7369 = vlaneseq
    %v7370 = vshrl.u32 %v7369, 7
    %v7371 = vsub.s32 %v7368, %v7370
    %v7372 = vrot.slane %v7365, %v7371
    %v7374 = vadd.f32 %v7284, %v7372
    %7375 = vst.msk [vmem:[#allocation3] sm:$0x3] %vm4418, %v7374
    %v7376 = vld [vmem:[#allocation4] sm:$0x3]
    %v7377 = vmul.f32 %v7206, %v7206
    %v7378 = vmul.f32 %v7208, %v7208
    %v7379 = vmul.f32 %v7210, %v7210
    %v7380 = vmul.f32 %v7212, %v7212
    %v7381 = vmul.f32 %v7216, %v7216
    %v7382 = vmul.f32 %v7218, %v7218
    %v7383 = vmul.f32 %v7220, %v7220
    %v7384 = vmul.f32 %v7222, %v7222
    %v7385 = vmul.f32 %v7226, %v7226
    %v7386 = vmul.f32 %v7228, %v7228
    %v7387 = vmul.f32 %v7230, %v7230
    %v7388 = vmul.f32 %v7232, %v7232
    %v7389 = vmul.f32 %v7236, %v7236
    %v7390 = vmul.f32 %v7238, %v7238
    %v7391 = vmul.f32 %v7240, %v7240
    %v7392 = vmul.f32 %v7242, %v7242
    %v7393 = vmul.f32 %v7246, %v7246
    %v7394 = vmul.f32 %v7248, %v7248
    %v7395 = vmul.f32 %v7250, %v7250
    %v7396 = vmul.f32 %v7252, %v7252
    %v7397 = vmul.f32 %v7256, %v7256
    %v7398 = vmul.f32 %v7258, %v7258
    %v7399 = vmul.f32 %v7260, %v7260
    %v7400 = vmul.f32 %v7262, %v7262
    %v7401 = vmul.f32 %v7266, %v7266
    %v7402 = vmul.f32 %v7268, %v7268
    %v7403 = vmul.f32 %v7270, %v7270
    %v7404 = vmul.f32 %v7272, %v7272
    %v7405 = vmul.f32 %v7276, %v7276
    %v7406 = vmul.f32 %v7278, %v7278
    %v7407 = vmul.f32 %v7280, %v7280
    %v7408 = vmul.f32 %v7282, %v7282
    %7409 = vmatprep.subr.mxu0 %v7378
    %7410 = vmatpush1.msra.mxu0 %v7377
    %7411 = vmatprep.subr.mxu0 %v7380
    %7412 = vmatpush1.msra.mxu0 %v7379
    %7413 = vmatprep.subr.mxu0 %v7382
    %7414 = vmatpush1.msra.mxu0 %v7381
    %7415 = vmatprep.subr.mxu0 %v7384
    %7416 = vmatpush1.msra.mxu0 %v7383
    %7417 = vmatprep.subr.mxu0 %v7386
    %7418 = vmatpush1.msra.mxu0 %v7385
    %7419 = vmatprep.subr.mxu0 %v7388
    %7420 = vmatpush1.msra.mxu0 %v7387
    %7421 = vmatprep.subr.mxu0 %v7390
    %7422 = vmatpush1.msra.mxu0 %v7389
    %7423 = vmatprep.subr.mxu0 %v7392
    %7424 = vmatpush1.msra.mxu0 %v7391
    %7425 = vmatprep.subr.mxu0 %v7394
    %7426 = vmatpush1.msra.mxu0 %v7393
    %7427 = vmatprep.subr.mxu0 %v7396
    %7428 = vmatpush1.msra.mxu0 %v7395
    %7429 = vmatprep.subr.mxu0 %v7398
    %7430 = vmatpush1.msra.mxu0 %v7397
    %7431 = vmatprep.subr.mxu0 %v7400
    %7432 = vmatpush1.msra.mxu0 %v7399
    %7433 = vmatprep.subr.mxu0 %v7402
    %7434 = vmatpush1.msra.mxu0 %v7401
    %7435 = vmatprep.subr.mxu0 %v7404
    %7436 = vmatpush1.msra.mxu0 %v7403
    %7437 = vmatprep.subr.mxu0 %v7406
    %7438 = vmatpush1.msra.mxu0 %v7405
    %7439 = vmatprep.subr.mxu0 %v7408
    %7440 = vmatpush1.msra.mxu0 %v7407
    %7441 = vmatprep.subr.mxu0 0.0
    %7442 = vmatpush1.msra.mxu0 0.0
    %7443 = vmatprep.subr.mxu0 0.0
    %7444 = vmatpush1.msra.mxu0 0.0
    %7445 = vmatprep.subr.mxu0 0.0
    %7446 = vmatpush1.msra.mxu0 0.0
    %7447 = vmatprep.subr.mxu0 0.0
    %7448 = vmatpush1.msra.mxu0 0.0
    %7449 = vmatprep.subr.mxu0 0.0
    %7450 = vmatpush1.msra.mxu0 0.0
    %7451 = vmatprep.subr.mxu0 0.0
    %7452 = vmatpush1.msra.mxu0 0.0
    %7453 = vmatprep.subr.mxu0 0.0
    %7454 = vmatpush1.msra.mxu0 0.0
    %7455 = vmatprep.subr.mxu0 0.0
    %7456 = vmatpush1.msra.mxu0 0.0
    %7457 = vmatprep.subr.mxu0 0.0
    %7458 = vmatpush1.msra.mxu0 0.0
    %7459 = vmatprep.subr.mxu0 0.0
    %7460 = vmatpush1.msra.mxu0 0.0
    %7461 = vmatprep.subr.mxu0 0.0
    %7462 = vmatpush1.msra.mxu0 0.0
    %7463 = vmatprep.subr.mxu0 0.0
    %7464 = vmatpush1.msra.mxu0 0.0
    %7465 = vmatprep.subr.mxu0 0.0
    %7466 = vmatpush1.msra.mxu0 0.0
    %7467 = vmatprep.subr.mxu0 0.0
    %7468 = vmatpush1.msra.mxu0 0.0
    %7469 = vmatprep.subr.mxu0 0.0
    %7470 = vmatpush1.msra.mxu0 0.0
    %7471 = vmatprep.subr.mxu0 0.0
    %7472 = vmatpush1.msra.mxu0 0.0
    %7473 = vmatprep.mubr.f32.mxu0 0.0
    %7474 = vmatmul.mubr.f32.gmra.mrb[0].mxu0 %v5030
    %v7475 = vpop.f32.mrb[0].mxu0
    %v7476 = vadd.f32 0.0, %v7475
    %v7477 = vpop.f32.mrb[0].mxu0
    %v7478 = vadd.f32 0.0, %v7477
    %7479 = vdwg.mxu0
    %v7482 = vcombine.low %v7476, %v7478
    %v7484 = vunpack.c.l.s4 1966171168
    %v7485 = vunpack.c.0.s8 %v7484
    %v7486 = vlaneseq
    %v7487 = vshrl.u32 %v7486, 7
    %v7488 = vsub.s32 %v7485, %v7487
    %v7489 = vrot.slane %v7482, %v7488
    %v7491 = vunpack.c.l.s4 1966171168
    %v7492 = vunpack.c.0.s8 %v7491
    %v7493 = vlaneseq
    %v7494 = vshrl.u32 %v7493, 7
    %v7495 = vsub.s32 %v7492, %v7494
    %v7496 = vrot.slane %v7489, %v7495
    %v7498 = vadd.f32 %v7376, %v7496
    %7499 = vst.msk [vmem:[#allocation4] sm:$0x3] %vm4418, %v7498
    %v7500 = vpack.c.bf16 %v7210, %v7206
    %v7501 = vpack.c.bf16 %v7212, %v7208
    %v7502 = vpack.c.bf16 %v7220, %v7216
    %v7503 = vpack.c.bf16 %v7222, %v7218
    %v7504 = vpack.c.bf16 %v7230, %v7226
    %v7505 = vpack.c.bf16 %v7232, %v7228
    %v7506 = vpack.c.bf16 %v7240, %v7236
    %v7507 = vpack.c.bf16 %v7242, %v7238
    %v7508 = vpack.c.bf16 %v7250, %v7246
    %v7509 = vpack.c.bf16 %v7252, %v7248
    %v7510 = vpack.c.bf16 %v7260, %v7256
    %v7511 = vpack.c.bf16 %v7262, %v7258
    %v7512 = vpack.c.bf16 %v7270, %v7266
    %v7513 = vpack.c.bf16 %v7272, %v7268
    %v7514 = vpack.c.bf16 %v7280, %v7276
    %v7515 = vpack.c.bf16 %v7282, %v7278
    %7516 = vst [vmem:[%s4568] sm:$0xff] %v7500
    %7517 = vst [vmem:[%s4568 + $0x8] sm:$0xff] %v7501
    %7518 = vst [vmem:[%s4568 + $0x10] sm:$0xff] %v7502
    %7519 = vst [vmem:[%s4568 + $0x18] sm:$0xff] %v7503
    %7520 = vst [vmem:[%s4568 + $0x20] sm:$0xff] %v7504
    %7521 = vst [vmem:[%s4568 + $0x28] sm:$0xff] %v7505
    %7522 = vst [vmem:[%s4568 + $0x30] sm:$0xff] %v7506
    %7523 = vst [vmem:[%s4568 + $0x38] sm:$0xff] %v7507
    %7524 = vst [vmem:[%s4568 + $0x40] sm:$0xff] %v7508
    %7525 = vst [vmem:[%s4568 + $0x48] sm:$0xff] %v7509
    %7526 = vst [vmem:[%s4568 + $0x50] sm:$0xff] %v7510
    %7527 = vst [vmem:[%s4568 + $0x58] sm:$0xff] %v7511
    %7528 = vst [vmem:[%s4568 + $0x60] sm:$0xff] %v7512
    %7529 = vst [vmem:[%s4568 + $0x68] sm:$0xff] %v7513
    %7530 = vst [vmem:[%s4568 + $0x70] sm:$0xff] %v7514
    %7531 = vst [vmem:[%s4568 + $0x78] sm:$0xff] %v7515
    %v7532 = vld [vmem:[#allocation3] sm:$0x3]
    %v7533 = vmul.f32 %v7532, 0.125
    %v7534 = vld [vmem:[#allocation4] sm:$0x3]
    %v7535 = vmul.f32 %v7534, 0.125
    %v7536 = vmul.f32 %v7533, %v7533
    %v7537 = vsub.f32 %v7535, %v7536
    %v7538 = vmax.f32 %v7537, 0.0
    %v7539 = vld [vmem:[%s14] sm:$0x3]
    %v7540 = vadd.f32 %v7538, 1e-05
    %v7541 = vrsqrt.pop %v7540
    %v7542 = vmul.f32 %v7539, %v7541
    %v7543 = vld [vmem:[%s15] sm:$0x3]
    %v7544 = vmul.f32 %v7533, %v7542
    %v7545 = vsub.f32 %v7543, %v7544
    %v7546 = vld [vmem:[%s16] sm:$0xff]
    %v7547 = vld [vmem:[%s16 + $0x8] sm:$0xff]
    %v7548 = vld [vmem:[%s16 + $0x10] sm:$0xff]
    %v7549 = vld [vmem:[%s16 + $0x18] sm:$0xff]
    %v7550 = vld [vmem:[%s16 + $0x20] sm:$0xff]
    %v7551 = vld [vmem:[%s16 + $0x28] sm:$0xff]
    %v7552 = vld [vmem:[%s16 + $0x30] sm:$0xff]
    %v7553 = vld [vmem:[%s16 + $0x38] sm:$0xff]
    %v7554 = vld [vmem:[%s16 + $0x40] sm:$0xff]
    %v7555 = vld [vmem:[%s16 + $0x48] sm:$0xff]
    %v7556 = vld [vmem:[%s16 + $0x50] sm:$0xff]
    %v7557 = vld [vmem:[%s16 + $0x58] sm:$0xff]
    %v7558 = vld [vmem:[%s16 + $0x60] sm:$0xff]
    %v7559 = vld [vmem:[%s16 + $0x68] sm:$0xff]
    %v7560 = vld [vmem:[%s16 + $0x70] sm:$0xff]
    %v7561 = vld [vmem:[%s16 + $0x78] sm:$0xff]
    %v7562 = vld [vmem:[%s16 + $0x80] sm:$0xff]
    %v7563 = vld [vmem:[%s16 + $0x88] sm:$0xff]
    %v7564 = vld [vmem:[%s16 + $0x90] sm:$0xff]
    %v7565 = vld [vmem:[%s16 + $0x98] sm:$0xff]
    %v7566 = vld [vmem:[%s16 + $0xa0] sm:$0xff]
    %v7567 = vld [vmem:[%s16 + $0xa8] sm:$0xff]
    %v7568 = vld [vmem:[%s16 + $0xb0] sm:$0xff]
    %v7569 = vld [vmem:[%s16 + $0xb8] sm:$0xff]
    %v7570 = vld [vmem:[%s16 + $0xc0] sm:$0xff]
    %v7571 = vld [vmem:[%s16 + $0xc8] sm:$0xff]
    %v7572 = vld [vmem:[%s16 + $0xd0] sm:$0xff]
    %v7573 = vld [vmem:[%s16 + $0xd8] sm:$0xff]
    %v7574 = vld [vmem:[%s16 + $0xe0] sm:$0xff]
    %v7575 = vld [vmem:[%s16 + $0xe8] sm:$0xff]
    %v7576 = vld [vmem:[%s16 + $0xf0] sm:$0xff]
    %v7577 = vld [vmem:[%s16 + $0xf8] sm:$0xff]
    %7578 = vst.msk [vmem:[#allocation3] sm:$0x3] %vm4418, 0.0
    %7579 = vst.msk [vmem:[#allocation4] sm:$0x3] %vm4418, 0.0
    %v7580 = vld [vmem:[%s4568] sm:$0xff]
    %v7581 = vld [vmem:[%s4568 + $0x8] sm:$0xff]
    %v7582 = vld [vmem:[%s4568 + $0x10] sm:$0xff]
    %v7583 = vld [vmem:[%s4568 + $0x18] sm:$0xff]
    %v7584 = vld [vmem:[%s4568 + $0x20] sm:$0xff]
    %v7585 = vld [vmem:[%s4568 + $0x28] sm:$0xff]
    %v7586 = vld [vmem:[%s4568 + $0x30] sm:$0xff]
    %v7587 = vld [vmem:[%s4568 + $0x38] sm:$0xff]
    %v7588 = vld [vmem:[%s4568 + $0x40] sm:$0xff]
    %v7589 = vld [vmem:[%s4568 + $0x48] sm:$0xff]
    %v7590 = vld [vmem:[%s4568 + $0x50] sm:$0xff]
    %v7591 = vld [vmem:[%s4568 + $0x58] sm:$0xff]
    %v7592 = vld [vmem:[%s4568 + $0x60] sm:$0xff]
    %v7593 = vld [vmem:[%s4568 + $0x68] sm:$0xff]
    %v7594 = vld [vmem:[%s4568 + $0x70] sm:$0xff]
    %v7595 = vld [vmem:[%s4568 + $0x78] sm:$0xff]
    %v7596 = vunpack.c.l.bf16 %v7580
    %v7597 = vunpack.c.l.bf16 %v7581
    %v7598 = vunpack.c.h.bf16 %v7580
    %v7599 = vunpack.c.h.bf16 %v7581
    %v7600 = vunpack.c.l.bf16 %v7582
    %v7601 = vunpack.c.l.bf16 %v7583
    %v7602 = vunpack.c.h.bf16 %v7582
    %v7603 = vunpack.c.h.bf16 %v7583
    %v7604 = vunpack.c.l.bf16 %v7584
    %v7605 = vunpack.c.l.bf16 %v7585
    %v7606 = vunpack.c.h.bf16 %v7584
    %v7607 = vunpack.c.h.bf16 %v7585
    %v7608 = vunpack.c.l.bf16 %v7586
    %v7609 = vunpack.c.l.bf16 %v7587
    %v7610 = vunpack.c.h.bf16 %v7586
    %v7611 = vunpack.c.h.bf16 %v7587
    %v7612 = vunpack.c.l.bf16 %v7588
    %v7613 = vunpack.c.l.bf16 %v7589
    %v7614 = vunpack.c.h.bf16 %v7588
    %v7615 = vunpack.c.h.bf16 %v7589
    %v7616 = vunpack.c.l.bf16 %v7590
    %v7617 = vunpack.c.l.bf16 %v7591
    %v7618 = vunpack.c.h.bf16 %v7590
    %v7619 = vunpack.c.h.bf16 %v7591
    %v7620 = vunpack.c.l.bf16 %v7592
    %v7621 = vunpack.c.l.bf16 %v7593
    %v7622 = vunpack.c.h.bf16 %v7592
    %v7623 = vunpack.c.h.bf16 %v7593
    %v7624 = vunpack.c.l.bf16 %v7594
    %v7625 = vunpack.c.l.bf16 %v7595
    %v7626 = vunpack.c.h.bf16 %v7594
    %v7627 = vunpack.c.h.bf16 %v7595
    %v7629 = vlaneseq
    %v7630 = vshrl.u32 %v7629, 7
    %v7631 = vsub.s32 0, %v7630
    %v7632 = vrot.slane %v7542, %v7631
    %v7633 = vlaneseq
    %v7634 = vshrl.u32 %v7633, 7
    %v7635 = vsub.s32 1, %v7634
    %v7636 = vrot.slane %v7542, %v7635
    %v7639 = vmul.f32 %v7596, %v7632
    %v7640 = vmul.f32 %v7597, %v7636
    %v7641 = vmul.f32 %v7598, %v7632
    %v7642 = vmul.f32 %v7599, %v7636
    %v7643 = vmul.f32 %v7600, %v7632
    %v7644 = vmul.f32 %v7601, %v7636
    %v7645 = vmul.f32 %v7602, %v7632
    %v7646 = vmul.f32 %v7603, %v7636
    %v7647 = vmul.f32 %v7604, %v7632
    %v7648 = vmul.f32 %v7605, %v7636
    %v7649 = vmul.f32 %v7606, %v7632
    %v7650 = vmul.f32 %v7607, %v7636
    %v7651 = vmul.f32 %v7608, %v7632
    %v7652 = vmul.f32 %v7609, %v7636
    %v7653 = vmul.f32 %v7610, %v7632
    %v7654 = vmul.f32 %v7611, %v7636
    %v7655 = vmul.f32 %v7612, %v7632
    %v7656 = vmul.f32 %v7613, %v7636
    %v7657 = vmul.f32 %v7614, %v7632
    %v7658 = vmul.f32 %v7615, %v7636
    %v7659 = vmul.f32 %v7616, %v7632
    %v7660 = vmul.f32 %v7617, %v7636
    %v7661 = vmul.f32 %v7618, %v7632
    %v7662 = vmul.f32 %v7619, %v7636
    %v7663 = vmul.f32 %v7620, %v7632
    %v7664 = vmul.f32 %v7621, %v7636
    %v7665 = vmul.f32 %v7622, %v7632
    %v7666 = vmul.f32 %v7623, %v7636
    %v7667 = vmul.f32 %v7624, %v7632
    %v7668 = vmul.f32 %v7625, %v7636
    %v7669 = vmul.f32 %v7626, %v7632
    %v7670 = vmul.f32 %v7627, %v7636
    %v7672 = vlaneseq
    %v7673 = vshrl.u32 %v7672, 7
    %v7674 = vsub.s32 0, %v7673
    %v7675 = vrot.slane %v7545, %v7674
    %v7676 = vlaneseq
    %v7677 = vshrl.u32 %v7676, 7
    %v7678 = vsub.s32 1, %v7677
    %v7679 = vrot.slane %v7545, %v7678
    %v7682 = vadd.f32 %v7639, %v7675
    %v7683 = vadd.f32 %v7640, %v7679
    %v7684 = vadd.f32 %v7641, %v7675
    %v7685 = vadd.f32 %v7642, %v7679
    %v7686 = vadd.f32 %v7643, %v7675
    %v7687 = vadd.f32 %v7644, %v7679
    %v7688 = vadd.f32 %v7645, %v7675
    %v7689 = vadd.f32 %v7646, %v7679
    %v7690 = vadd.f32 %v7647, %v7675
    %v7691 = vadd.f32 %v7648, %v7679
    %v7692 = vadd.f32 %v7649, %v7675
    %v7693 = vadd.f32 %v7650, %v7679
    %v7694 = vadd.f32 %v7651, %v7675
    %v7695 = vadd.f32 %v7652, %v7679
    %v7696 = vadd.f32 %v7653, %v7675
    %v7697 = vadd.f32 %v7654, %v7679
    %v7698 = vadd.f32 %v7655, %v7675
    %v7699 = vadd.f32 %v7656, %v7679
    %v7700 = vadd.f32 %v7657, %v7675
    %v7701 = vadd.f32 %v7658, %v7679
    %v7702 = vadd.f32 %v7659, %v7675
    %v7703 = vadd.f32 %v7660, %v7679
    %v7704 = vadd.f32 %v7661, %v7675
    %v7705 = vadd.f32 %v7662, %v7679
    %v7706 = vadd.f32 %v7663, %v7675
    %v7707 = vadd.f32 %v7664, %v7679
    %v7708 = vadd.f32 %v7665, %v7675
    %v7709 = vadd.f32 %v7666, %v7679
    %v7710 = vadd.f32 %v7667, %v7675
    %v7711 = vadd.f32 %v7668, %v7679
    %v7712 = vadd.f32 %v7669, %v7675
    %v7713 = vadd.f32 %v7670, %v7679
    %v7714 = vmax.f32 %v7682, 0.0
    %v7715 = vmax.f32 %v7683, 0.0
    %v7716 = vmax.f32 %v7684, 0.0
    %v7717 = vmax.f32 %v7685, 0.0
    %v7718 = vmax.f32 %v7686, 0.0
    %v7719 = vmax.f32 %v7687, 0.0
    %v7720 = vmax.f32 %v7688, 0.0
    %v7721 = vmax.f32 %v7689, 0.0
    %v7722 = vmax.f32 %v7690, 0.0
    %v7723 = vmax.f32 %v7691, 0.0
    %v7724 = vmax.f32 %v7692, 0.0
    %v7725 = vmax.f32 %v7693, 0.0
    %v7726 = vmax.f32 %v7694, 0.0
    %v7727 = vmax.f32 %v7695, 0.0
    %v7728 = vmax.f32 %v7696, 0.0
    %v7729 = vmax.f32 %v7697, 0.0
    %v7730 = vmax.f32 %v7698, 0.0
    %v7731 = vmax.f32 %v7699, 0.0
    %v7732 = vmax.f32 %v7700, 0.0
    %v7733 = vmax.f32 %v7701, 0.0
    %v7734 = vmax.f32 %v7702, 0.0
    %v7735 = vmax.f32 %v7703, 0.0
    %v7736 = vmax.f32 %v7704, 0.0
    %v7737 = vmax.f32 %v7705, 0.0
    %v7738 = vmax.f32 %v7706, 0.0
    %v7739 = vmax.f32 %v7707, 0.0
    %v7740 = vmax.f32 %v7708, 0.0
    %v7741 = vmax.f32 %v7709, 0.0
    %v7742 = vmax.f32 %v7710, 0.0
    %v7743 = vmax.f32 %v7711, 0.0
    %v7744 = vmax.f32 %v7712, 0.0
    %v7745 = vmax.f32 %v7713, 0.0
    %v7746 = vpack.c.bf16 %v7716, %v7714
    %v7747 = vpack.c.bf16 %v7717, %v7715
    %v7748 = vpack.c.bf16 %v7720, %v7718
    %v7749 = vpack.c.bf16 %v7721, %v7719
    %v7750 = vpack.c.bf16 %v7724, %v7722
    %v7751 = vpack.c.bf16 %v7725, %v7723
    %v7752 = vpack.c.bf16 %v7728, %v7726
    %v7753 = vpack.c.bf16 %v7729, %v7727
    %v7754 = vpack.c.bf16 %v7732, %v7730
    %v7755 = vpack.c.bf16 %v7733, %v7731
    %v7756 = vpack.c.bf16 %v7736, %v7734
    %v7757 = vpack.c.bf16 %v7737, %v7735
    %v7758 = vpack.c.bf16 %v7740, %v7738
    %v7759 = vpack.c.bf16 %v7741, %v7739
    %v7760 = vpack.c.bf16 %v7744, %v7742
    %v7761 = vpack.c.bf16 %v7745, %v7743
    %v7794 = vunpack.c.l.b16 %v7546
    %v7795 = vunpack.c.h.b16 %v7546
    %v7796 = vunpack.c.l.b16 %v7547
    %v7797 = vunpack.c.h.b16 %v7547
    %v7798 = vunpack.c.l.b16 %v7548
    %v7799 = vunpack.c.h.b16 %v7548
    %v7800 = vunpack.c.l.b16 %v7549
    %v7801 = vunpack.c.h.b16 %v7549
    %v7802 = vunpack.c.l.b16 %v7550
    %v7803 = vunpack.c.h.b16 %v7550
    %v7804 = vunpack.c.l.b16 %v7551
    %v7805 = vunpack.c.h.b16 %v7551
    %v7806 = vunpack.c.l.b16 %v7552
    %v7807 = vunpack.c.h.b16 %v7552
    %v7808 = vunpack.c.l.b16 %v7553
    %v7809 = vunpack.c.h.b16 %v7553
    %v7810 = vunpack.c.l.b16 %v7554
    %v7811 = vunpack.c.h.b16 %v7554
    %v7812 = vunpack.c.l.b16 %v7555
    %v7813 = vunpack.c.h.b16 %v7555
    %v7814 = vunpack.c.l.b16 %v7556
    %v7815 = vunpack.c.h.b16 %v7556
    %v7816 = vunpack.c.l.b16 %v7557
    %v7817 = vunpack.c.h.b16 %v7557
    %v7818 = vunpack.c.l.b16 %v7558
    %v7819 = vunpack.c.h.b16 %v7558
    %v7820 = vunpack.c.l.b16 %v7559
    %v7821 = vunpack.c.h.b16 %v7559
    %v7822 = vunpack.c.l.b16 %v7560
    %v7823 = vunpack.c.h.b16 %v7560
    %v7824 = vunpack.c.l.b16 %v7561
    %v7825 = vunpack.c.h.b16 %v7561
    %v7826 = vunpack.c.l.b16 %v7562
    %v7827 = vunpack.c.h.b16 %v7562
    %v7828 = vunpack.c.l.b16 %v7563
    %v7829 = vunpack.c.h.b16 %v7563
    %v7830 = vunpack.c.l.b16 %v7564
    %v7831 = vunpack.c.h.b16 %v7564
    %v7832 = vunpack.c.l.b16 %v7565
    %v7833 = vunpack.c.h.b16 %v7565
    %v7834 = vunpack.c.l.b16 %v7566
    %v7835 = vunpack.c.h.b16 %v7566
    %v7836 = vunpack.c.l.b16 %v7567
    %v7837 = vunpack.c.h.b16 %v7567
    %v7838 = vunpack.c.l.b16 %v7568
    %v7839 = vunpack.c.h.b16 %v7568
    %v7840 = vunpack.c.l.b16 %v7569
    %v7841 = vunpack.c.h.b16 %v7569
    %v7842 = vunpack.c.l.b16 %v7570
    %v7843 = vunpack.c.h.b16 %v7570
    %v7844 = vunpack.c.l.b16 %v7571
    %v7845 = vunpack.c.h.b16 %v7571
    %v7846 = vunpack.c.l.b16 %v7572
    %v7847 = vunpack.c.h.b16 %v7572
    %v7848 = vunpack.c.l.b16 %v7573
    %v7849 = vunpack.c.h.b16 %v7573
    %v7850 = vunpack.c.l.b16 %v7574
    %v7851 = vunpack.c.h.b16 %v7574
    %v7852 = vunpack.c.l.b16 %v7575
    %v7853 = vunpack.c.h.b16 %v7575
    %v7854 = vunpack.c.l.b16 %v7576
    %v7855 = vunpack.c.h.b16 %v7576
    %v7856 = vunpack.c.l.b16 %v7577
    %v7857 = vunpack.c.h.b16 %v7577
    %v7858 = vpack.c.b16 %v7796, %v7794
    %v7859 = vpack.c.b16 %v7797, %v7795
    %v7860 = vpack.c.b16 %v7800, %v7798
    %v7861 = vpack.c.b16 %v7801, %v7799
    %v7862 = vpack.c.b16 %v7804, %v7802
    %v7863 = vpack.c.b16 %v7805, %v7803
    %v7864 = vpack.c.b16 %v7808, %v7806
    %v7865 = vpack.c.b16 %v7809, %v7807
    %v7866 = vpack.c.b16 %v7812, %v7810
    %v7867 = vpack.c.b16 %v7813, %v7811
    %v7868 = vpack.c.b16 %v7816, %v7814
    %v7869 = vpack.c.b16 %v7817, %v7815
    %v7870 = vpack.c.b16 %v7820, %v7818
    %v7871 = vpack.c.b16 %v7821, %v7819
    %v7872 = vpack.c.b16 %v7824, %v7822
    %v7873 = vpack.c.b16 %v7825, %v7823
    %v7874 = vpack.c.b16 %v7828, %v7826
    %v7875 = vpack.c.b16 %v7829, %v7827
    %v7876 = vpack.c.b16 %v7832, %v7830
    %v7877 = vpack.c.b16 %v7833, %v7831
    %v7878 = vpack.c.b16 %v7836, %v7834
    %v7879 = vpack.c.b16 %v7837, %v7835
    %v7880 = vpack.c.b16 %v7840, %v7838
    %v7881 = vpack.c.b16 %v7841, %v7839
    %v7882 = vpack.c.b16 %v7844, %v7842
    %v7883 = vpack.c.b16 %v7845, %v7843
    %v7884 = vpack.c.b16 %v7848, %v7846
    %v7885 = vpack.c.b16 %v7849, %v7847
    %v7886 = vpack.c.b16 %v7852, %v7850
    %v7887 = vpack.c.b16 %v7853, %v7851
    %v7888 = vpack.c.b16 %v7856, %v7854
    %v7889 = vpack.c.b16 %v7857, %v7855
    %7922 = vmatprep.subr.bf16.mxu0 %v7859
    %7923 = vmatpush1.bf16.msra.mxu0 %v7858
    %7924 = vmatprep.subr.bf16.mxu0 %v7861
    %7925 = vmatpush1.bf16.msra.mxu0 %v7860
    %7926 = vmatprep.subr.bf16.mxu0 %v7863
    %7927 = vmatpush1.bf16.msra.mxu0 %v7862
    %7928 = vmatprep.subr.bf16.mxu0 %v7865
    %7929 = vmatpush1.bf16.msra.mxu0 %v7864
    %7930 = vmatprep.subr.bf16.mxu0 %v7867
    %7931 = vmatpush1.bf16.msra.mxu0 %v7866
    %7932 = vmatprep.subr.bf16.mxu0 %v7869
    %7933 = vmatpush1.bf16.msra.mxu0 %v7868
    %7934 = vmatprep.subr.bf16.mxu0 %v7871
    %7935 = vmatpush1.bf16.msra.mxu0 %v7870
    %7936 = vmatprep.subr.bf16.mxu0 %v7873
    %7937 = vmatpush1.bf16.msra.mxu0 %v7872
    %7938 = vmatprep.subr.bf16.mxu0 %v7875
    %7939 = vmatpush1.bf16.msra.mxu0 %v7874
    %7940 = vmatprep.subr.bf16.mxu0 %v7877
    %7941 = vmatpush1.bf16.msra.mxu0 %v7876
    %7942 = vmatprep.subr.bf16.mxu0 %v7879
    %7943 = vmatpush1.bf16.msra.mxu0 %v7878
    %7944 = vmatprep.subr.bf16.mxu0 %v7881
    %7945 = vmatpush1.bf16.msra.mxu0 %v7880
    %7946 = vmatprep.subr.bf16.mxu0 %v7883
    %7947 = vmatpush1.bf16.msra.mxu0 %v7882
    %7948 = vmatprep.subr.bf16.mxu0 %v7885
    %7949 = vmatpush1.bf16.msra.mxu0 %v7884
    %7950 = vmatprep.subr.bf16.mxu0 %v7887
    %7951 = vmatpush1.bf16.msra.mxu0 %v7886
    %7952 = vmatprep.subr.bf16.mxu0 %v7889
    %7953 = vmatpush1.bf16.msra.mxu0 %v7888
    %7954 = vmatprep.mubr.bf16.mxu0 %v7747
    %7955 = vmatmul.mubr.bf16.gmra.mrb[0].mxu0 %v7746
    %v7956 = vpop.f32.mrb[0].mxu0
    %v7957 = vadd.f32 0.0, %v7956
    %v7958 = vpop.f32.mrb[0].mxu0
    %v7959 = vadd.f32 0.0, %v7958
    %v7960 = vpop.f32.mrb[0].mxu0
    %v7961 = vadd.f32 0.0, %v7960
    %v7962 = vpop.f32.mrb[0].mxu0
    %v7963 = vadd.f32 0.0, %v7962
    %7964 = vmatprep.mubr.bf16.mxu0 %v7749
    %7965 = vmatmul.mubr.bf16.gmra.mrb[0].mxu0 %v7748
    %v7966 = vpop.f32.mrb[0].mxu0
    %v7967 = vadd.f32 0.0, %v7966
    %v7968 = vpop.f32.mrb[0].mxu0
    %v7969 = vadd.f32 0.0, %v7968
    %v7970 = vpop.f32.mrb[0].mxu0
    %v7971 = vadd.f32 0.0, %v7970
    %v7972 = vpop.f32.mrb[0].mxu0
    %v7973 = vadd.f32 0.0, %v7972
    %7974 = vmatprep.mubr.bf16.mxu0 %v7751
    %7975 = vmatmul.mubr.bf16.gmra.mrb[0].mxu0 %v7750
    %v7976 = vpop.f32.mrb[0].mxu0
    %v7977 = vadd.f32 0.0, %v7976
    %v7978 = vpop.f32.mrb[0].mxu0
    %v7979 = vadd.f32 0.0, %v7978
    %v7980 = vpop.f32.mrb[0].mxu0
    %v7981 = vadd.f32 0.0, %v7980
    %v7982 = vpop.f32.mrb[0].mxu0
    %v7983 = vadd.f32 0.0, %v7982
    %7984 = vmatprep.mubr.bf16.mxu0 %v7753
    %7985 = vmatmul.mubr.bf16.gmra.mrb[0].mxu0 %v7752
    %v7986 = vpop.f32.mrb[0].mxu0
    %v7987 = vadd.f32 0.0, %v7986
    %v7988 = vpop.f32.mrb[0].mxu0
    %v7989 = vadd.f32 0.0, %v7988
    %v7990 = vpop.f32.mrb[0].mxu0
    %v7991 = vadd.f32 0.0, %v7990
    %v7992 = vpop.f32.mrb[0].mxu0
    %v7993 = vadd.f32 0.0, %v7992
    %7994 = vmatprep.mubr.bf16.mxu0 %v7755
    %7995 = vmatmul.mubr.bf16.gmra.mrb[0].mxu0 %v7754
    %v7996 = vpop.f32.mrb[0].mxu0
    %v7997 = vadd.f32 0.0, %v7996
    %v7998 = vpop.f32.mrb[0].mxu0
    %v7999 = vadd.f32 0.0, %v7998
    %v8000 = vpop.f32.mrb[0].mxu0
    %v8001 = vadd.f32 0.0, %v8000
    %v8002 = vpop.f32.mrb[0].mxu0
    %v8003 = vadd.f32 0.0, %v8002
    %8004 = vmatprep.mubr.bf16.mxu0 %v7757
    %8005 = vmatmul.mubr.bf16.gmra.mrb[0].mxu0 %v7756
    %v8006 = vpop.f32.mrb[0].mxu0
    %v8007 = vadd.f32 0.0, %v8006
    %v8008 = vpop.f32.mrb[0].mxu0
    %v8009 = vadd.f32 0.0, %v8008
    %v8010 = vpop.f32.mrb[0].mxu0
    %v8011 = vadd.f32 0.0, %v8010
    %v8012 = vpop.f32.mrb[0].mxu0
    %v8013 = vadd.f32 0.0, %v8012
    %8014 = vmatprep.mubr.bf16.mxu0 %v7759
    %8015 = vmatmul.mubr.bf16.gmra.mrb[0].mxu0 %v7758
    %v8016 = vpop.f32.mrb[0].mxu0
    %v8017 = vadd.f32 0.0, %v8016
    %v8018 = vpop.f32.mrb[0].mxu0
    %v8019 = vadd.f32 0.0, %v8018
    %v8020 = vpop.f32.mrb[0].mxu0
    %v8021 = vadd.f32 0.0, %v8020
    %v8022 = vpop.f32.mrb[0].mxu0
    %v8023 = vadd.f32 0.0, %v8022
    %8024 = vmatprep.mubr.bf16.mxu0 %v7761
    %8025 = vmatmul.mubr.bf16.gmra.mrb[0].mxu0 %v7760
    %v8026 = vpop.f32.mrb[0].mxu0
    %v8027 = vadd.f32 0.0, %v8026
    %v8028 = vpop.f32.mrb[0].mxu0
    %v8029 = vadd.f32 0.0, %v8028
    %v8030 = vpop.f32.mrb[0].mxu0
    %v8031 = vadd.f32 0.0, %v8030
    %v8032 = vpop.f32.mrb[0].mxu0
    %v8033 = vadd.f32 0.0, %v8032
    %8034 = vdwg.mxu0
    %v8035 = vld [vmem:[#allocation3] sm:$0x3]
    %8036 = vmatprep.subr.mxu0 %v7959
    %8037 = vmatpush1.msra.mxu0 %v7957
    %8038 = vmatprep.subr.mxu0 %v7963
    %8039 = vmatpush1.msra.mxu0 %v7961
    %8040 = vmatprep.subr.mxu0 %v7969
    %8041 = vmatpush1.msra.mxu0 %v7967
    %8042 = vmatprep.subr.mxu0 %v7973
    %8043 = vmatpush1.msra.mxu0 %v7971
    %8044 = vmatprep.subr.mxu0 %v7979
    %8045 = vmatpush1.msra.mxu0 %v7977
    %8046 = vmatprep.subr.mxu0 %v7983
    %8047 = vmatpush1.msra.mxu0 %v7981
    %8048 = vmatprep.subr.mxu0 %v7989
    %8049 = vmatpush1.msra.mxu0 %v7987
    %8050 = vmatprep.subr.mxu0 %v7993
    %8051 = vmatpush1.msra.mxu0 %v7991
    %8052 = vmatprep.subr.mxu0 %v7999
    %8053 = vmatpush1.msra.mxu0 %v7997
    %8054 = vmatprep.subr.mxu0 %v8003
    %8055 = vmatpush1.msra.mxu0 %v8001
    %8056 = vmatprep.subr.mxu0 %v8009
    %8057 = vmatpush1.msra.mxu0 %v8007
    %8058 = vmatprep.subr.mxu0 %v8013
    %8059 = vmatpush1.msra.mxu0 %v8011
    %8060 = vmatprep.subr.mxu0 %v8019
    %8061 = vmatpush1.msra.mxu0 %v8017
    %8062 = vmatprep.subr.mxu0 %v8023
    %8063 = vmatpush1.msra.mxu0 %v8021
    %8064 = vmatprep.subr.mxu0 %v8029
    %8065 = vmatpush1.msra.mxu0 %v8027
    %8066 = vmatprep.subr.mxu0 %v8033
    %8067 = vmatpush1.msra.mxu0 %v8031
    %8068 = vmatprep.subr.mxu0 0.0
    %8069 = vmatpush1.msra.mxu0 0.0
    %8070 = vmatprep.subr.mxu0 0.0
    %8071 = vmatpush1.msra.mxu0 0.0
    %8072 = vmatprep.subr.mxu0 0.0
    %8073 = vmatpush1.msra.mxu0 0.0
    %8074 = vmatprep.subr.mxu0 0.0
    %8075 = vmatpush1.msra.mxu0 0.0
    %8076 = vmatprep.subr.mxu0 0.0
    %8077 = vmatpush1.msra.mxu0 0.0
    %8078 = vmatprep.subr.mxu0 0.0
    %8079 = vmatpush1.msra.mxu0 0.0
    %8080 = vmatprep.subr.mxu0 0.0
    %8081 = vmatpush1.msra.mxu0 0.0
    %8082 = vmatprep.subr.mxu0 0.0
    %8083 = vmatpush1.msra.mxu0 0.0
    %8084 = vmatprep.subr.mxu0 0.0
    %8085 = vmatpush1.msra.mxu0 0.0
    %8086 = vmatprep.subr.mxu0 0.0
    %8087 = vmatpush1.msra.mxu0 0.0
    %8088 = vmatprep.subr.mxu0 0.0
    %8089 = vmatpush1.msra.mxu0 0.0
    %8090 = vmatprep.subr.mxu0 0.0
    %8091 = vmatpush1.msra.mxu0 0.0
    %8092 = vmatprep.subr.mxu0 0.0
    %8093 = vmatpush1.msra.mxu0 0.0
    %8094 = vmatprep.subr.mxu0 0.0
    %8095 = vmatpush1.msra.mxu0 0.0
    %8096 = vmatprep.subr.mxu0 0.0
    %8097 = vmatpush1.msra.mxu0 0.0
    %8098 = vmatprep.subr.mxu0 0.0
    %8099 = vmatpush1.msra.mxu0 0.0
    %8100 = vmatprep.mubr.f32.mxu0 0.0
    %8101 = vmatmul.mubr.f32.gmra.mrb[0].mxu0 %v5030
    %v8102 = vpop.f32.mrb[0].mxu0
    %v8103 = vadd.f32 0.0, %v8102
    %v8104 = vpop.f32.mrb[0].mxu0
    %v8105 = vadd.f32 0.0, %v8104
    %8106 = vdwg.mxu0
    %v8109 = vcombine.low %v8103, %v8105
    %v8111 = vunpack.c.l.s4 1966171168
    %v8112 = vunpack.c.0.s8 %v8111
    %v8113 = vlaneseq
    %v8114 = vshrl.u32 %v8113, 7
    %v8115 = vsub.s32 %v8112, %v8114
    %v8116 = vrot.slane %v8109, %v8115
    %v8118 = vunpack.c.l.s4 1966171168
    %v8119 = vunpack.c.0.s8 %v8118
    %v8120 = vlaneseq
    %v8121 = vshrl.u32 %v8120, 7
    %v8122 = vsub.s32 %v8119, %v8121
    %v8123 = vrot.slane %v8116, %v8122
    %v8125 = vadd.f32 %v8035, %v8123
    %8126 = vst.msk [vmem:[#allocation3] sm:$0x3] %vm4418, %v8125
    %v8127 = vld [vmem:[#allocation4] sm:$0x3]
    %v8128 = vmul.f32 %v7957, %v7957
    %v8129 = vmul.f32 %v7959, %v7959
    %v8130 = vmul.f32 %v7961, %v7961
    %v8131 = vmul.f32 %v7963, %v7963
    %v8132 = vmul.f32 %v7967, %v7967
    %v8133 = vmul.f32 %v7969, %v7969
    %v8134 = vmul.f32 %v7971, %v7971
    %v8135 = vmul.f32 %v7973, %v7973
    %v8136 = vmul.f32 %v7977, %v7977
    %v8137 = vmul.f32 %v7979, %v7979
    %v8138 = vmul.f32 %v7981, %v7981
    %v8139 = vmul.f32 %v7983, %v7983
    %v8140 = vmul.f32 %v7987, %v7987
    %v8141 = vmul.f32 %v7989, %v7989
    %v8142 = vmul.f32 %v7991, %v7991
    %v8143 = vmul.f32 %v7993, %v7993
    %v8144 = vmul.f32 %v7997, %v7997
    %v8145 = vmul.f32 %v7999, %v7999
    %v8146 = vmul.f32 %v8001, %v8001
    %v8147 = vmul.f32 %v8003, %v8003
    %v8148 = vmul.f32 %v8007, %v8007
    %v8149 = vmul.f32 %v8009, %v8009
    %v8150 = vmul.f32 %v8011, %v8011
    %v8151 = vmul.f32 %v8013, %v8013
    %v8152 = vmul.f32 %v8017, %v8017
    %v8153 = vmul.f32 %v8019, %v8019
    %v8154 = vmul.f32 %v8021, %v8021
    %v8155 = vmul.f32 %v8023, %v8023
    %v8156 = vmul.f32 %v8027, %v8027
    %v8157 = vmul.f32 %v8029, %v8029
    %v8158 = vmul.f32 %v8031, %v8031
    %v8159 = vmul.f32 %v8033, %v8033
    %8160 = vmatprep.subr.mxu0 %v8129
    %8161 = vmatpush1.msra.mxu0 %v8128
    %8162 = vmatprep.subr.mxu0 %v8131
    %8163 = vmatpush1.msra.mxu0 %v8130
    %8164 = vmatprep.subr.mxu0 %v8133
    %8165 = vmatpush1.msra.mxu0 %v8132
    %8166 = vmatprep.subr.mxu0 %v8135
    %8167 = vmatpush1.msra.mxu0 %v8134
    %8168 = vmatprep.subr.mxu0 %v8137
    %8169 = vmatpush1.msra.mxu0 %v8136
    %8170 = vmatprep.subr.mxu0 %v8139
    %8171 = vmatpush1.msra.mxu0 %v8138
    %8172 = vmatprep.subr.mxu0 %v8141
    %8173 = vmatpush1.msra.mxu0 %v8140
    %8174 = vmatprep.subr.mxu0 %v8143
    %8175 = vmatpush1.msra.mxu0 %v8142
    %8176 = vmatprep.subr.mxu0 %v8145
    %8177 = vmatpush1.msra.mxu0 %v8144
    %8178 = vmatprep.subr.mxu0 %v8147
    %8179 = vmatpush1.msra.mxu0 %v8146
    %8180 = vmatprep.subr.mxu0 %v8149
    %8181 = vmatpush1.msra.mxu0 %v8148
    %8182 = vmatprep.subr.mxu0 %v8151
    %8183 = vmatpush1.msra.mxu0 %v8150
    %8184 = vmatprep.subr.mxu0 %v8153
    %8185 = vmatpush1.msra.mxu0 %v8152
    %8186 = vmatprep.subr.mxu0 %v8155
    %8187 = vmatpush1.msra.mxu0 %v8154
    %8188 = vmatprep.subr.mxu0 %v8157
    %8189 = vmatpush1.msra.mxu0 %v8156
    %8190 = vmatprep.subr.mxu0 %v8159
    %8191 = vmatpush1.msra.mxu0 %v8158
    %8192 = vmatprep.subr.mxu0 0.0
    %8193 = vmatpush1.msra.mxu0 0.0
    %8194 = vmatprep.subr.mxu0 0.0
    %8195 = vmatpush1.msra.mxu0 0.0
    %8196 = vmatprep.subr.mxu0 0.0
    %8197 = vmatpush1.msra.mxu0 0.0
    %8198 = vmatprep.subr.mxu0 0.0
    %8199 = vmatpush1.msra.mxu0 0.0
    %8200 = vmatprep.subr.mxu0 0.0
    %8201 = vmatpush1.msra.mxu0 0.0
    %8202 = vmatprep.subr.mxu0 0.0
    %8203 = vmatpush1.msra.mxu0 0.0
    %8204 = vmatprep.subr.mxu0 0.0
    %8205 = vmatpush1.msra.mxu0 0.0
    %8206 = vmatprep.subr.mxu0 0.0
    %8207 = vmatpush1.msra.mxu0 0.0
    %8208 = vmatprep.subr.mxu0 0.0
    %8209 = vmatpush1.msra.mxu0 0.0
    %8210 = vmatprep.subr.mxu0 0.0
    %8211 = vmatpush1.msra.mxu0 0.0
    %8212 = vmatprep.subr.mxu0 0.0
    %8213 = vmatpush1.msra.mxu0 0.0
    %8214 = vmatprep.subr.mxu0 0.0
    %8215 = vmatpush1.msra.mxu0 0.0
    %8216 = vmatprep.subr.mxu0 0.0
    %8217 = vmatpush1.msra.mxu0 0.0
    %8218 = vmatprep.subr.mxu0 0.0
    %8219 = vmatpush1.msra.mxu0 0.0
    %8220 = vmatprep.subr.mxu0 0.0
    %8221 = vmatpush1.msra.mxu0 0.0
    %8222 = vmatprep.subr.mxu0 0.0
    %8223 = vmatpush1.msra.mxu0 0.0
    %8224 = vmatprep.mubr.f32.mxu0 0.0
    %8225 = vmatmul.mubr.f32.gmra.mrb[0].mxu0 %v5030
    %v8226 = vpop.f32.mrb[0].mxu0
    %v8227 = vadd.f32 0.0, %v8226
    %v8228 = vpop.f32.mrb[0].mxu0
    %v8229 = vadd.f32 0.0, %v8228
    %8230 = vdwg.mxu0
    %v8233 = vcombine.low %v8227, %v8229
    %v8235 = vunpack.c.l.s4 1966171168
    %v8236 = vunpack.c.0.s8 %v8235
    %v8237 = vlaneseq
    %v8238 = vshrl.u32 %v8237, 7
    %v8239 = vsub.s32 %v8236, %v8238
    %v8240 = vrot.slane %v8233, %v8239
    %v8242 = vunpack.c.l.s4 1966171168
    %v8243 = vunpack.c.0.s8 %v8242
    %v8244 = vlaneseq
    %v8245 = vshrl.u32 %v8244, 7
    %v8246 = vsub.s32 %v8243, %v8245
    %v8247 = vrot.slane %v8240, %v8246
    %v8249 = vadd.f32 %v8127, %v8247
    %8250 = vst.msk [vmem:[#allocation4] sm:$0x3] %vm4418, %v8249
    %v8251 = vpack.c.bf16 %v7961, %v7957
    %v8252 = vpack.c.bf16 %v7963, %v7959
    %v8253 = vpack.c.bf16 %v7971, %v7967
    %v8254 = vpack.c.bf16 %v7973, %v7969
    %v8255 = vpack.c.bf16 %v7981, %v7977
    %v8256 = vpack.c.bf16 %v7983, %v7979
    %v8257 = vpack.c.bf16 %v7991, %v7987
    %v8258 = vpack.c.bf16 %v7993, %v7989
    %v8259 = vpack.c.bf16 %v8001, %v7997
    %v8260 = vpack.c.bf16 %v8003, %v7999
    %v8261 = vpack.c.bf16 %v8011, %v8007
    %v8262 = vpack.c.bf16 %v8013, %v8009
    %v8263 = vpack.c.bf16 %v8021, %v8017
    %v8264 = vpack.c.bf16 %v8023, %v8019
    %v8265 = vpack.c.bf16 %v8031, %v8027
    %v8266 = vpack.c.bf16 %v8033, %v8029
    %8267 = vst [vmem:[%s4568] sm:$0xff] %v8251
    %8268 = vst [vmem:[%s4568 + $0x8] sm:$0xff] %v8252
    %8269 = vst [vmem:[%s4568 + $0x10] sm:$0xff] %v8253
    %8270 = vst [vmem:[%s4568 + $0x18] sm:$0xff] %v8254
    %8271 = vst [vmem:[%s4568 + $0x20] sm:$0xff] %v8255
    %8272 = vst [vmem:[%s4568 + $0x28] sm:$0xff] %v8256
    %8273 = vst [vmem:[%s4568 + $0x30] sm:$0xff] %v8257
    %8274 = vst [vmem:[%s4568 + $0x38] sm:$0xff] %v8258
    %8275 = vst [vmem:[%s4568 + $0x40] sm:$0xff] %v8259
    %8276 = vst [vmem:[%s4568 + $0x48] sm:$0xff] %v8260
    %8277 = vst [vmem:[%s4568 + $0x50] sm:$0xff] %v8261
    %8278 = vst [vmem:[%s4568 + $0x58] sm:$0xff] %v8262
    %8279 = vst [vmem:[%s4568 + $0x60] sm:$0xff] %v8263
    %8280 = vst [vmem:[%s4568 + $0x68] sm:$0xff] %v8264
    %8281 = vst [vmem:[%s4568 + $0x70] sm:$0xff] %v8265
    %8282 = vst [vmem:[%s4568 + $0x78] sm:$0xff] %v8266
    %v8283 = vld [vmem:[#allocation3] sm:$0x3]
    %v8284 = vmul.f32 %v8283, 0.125
    %v8285 = vld [vmem:[#allocation4] sm:$0x3]
    %v8286 = vmul.f32 %v8285, 0.125
    %v8287 = vmul.f32 %v8284, %v8284
    %v8288 = vsub.f32 %v8286, %v8287
    %v8289 = vmax.f32 %v8288, 0.0
    %v8290 = vld [vmem:[%s17] sm:$0x3]
    %v8291 = vadd.f32 %v8289, 1e-05
    %v8292 = vrsqrt.pop %v8291
    %v8293 = vmul.f32 %v8290, %v8292
    %v8294 = vld [vmem:[%s18] sm:$0x3]
    %v8295 = vmul.f32 %v8284, %v8293
    %v8296 = vsub.f32 %v8294, %v8295
    %v8297 = vld [vmem:[%s19] sm:$0xf]
    %v8298 = vld [vmem:[%s19 + $0x4] sm:$0xf]
    %v8299 = vld [vmem:[%s19 + $0x8] sm:$0xf]
    %v8300 = vld [vmem:[%s19 + $0xc] sm:$0xf]
    %v8301 = vld [vmem:[%s19 + $0x10] sm:$0xf]
    %v8302 = vld [vmem:[%s19 + $0x14] sm:$0xf]
    %v8303 = vld [vmem:[%s19 + $0x18] sm:$0xf]
    %v8304 = vld [vmem:[%s19 + $0x1c] sm:$0xf]
    %v8305 = vld [vmem:[%s19 + $0x20] sm:$0xf]
    %v8306 = vld [vmem:[%s19 + $0x24] sm:$0xf]
    %v8307 = vld [vmem:[%s19 + $0x28] sm:$0xf]
    %v8308 = vld [vmem:[%s19 + $0x2c] sm:$0xf]
    %v8309 = vld [vmem:[%s19 + $0x30] sm:$0xf]
    %v8310 = vld [vmem:[%s19 + $0x34] sm:$0xf]
    %v8311 = vld [vmem:[%s19 + $0x38] sm:$0xf]
    %v8312 = vld [vmem:[%s19 + $0x3c] sm:$0xf]
    %v8313 = vld [vmem:[%s19 + $0x40] sm:$0xf]
    %v8314 = vld [vmem:[%s19 + $0x44] sm:$0xf]
    %v8315 = vld [vmem:[%s19 + $0x48] sm:$0xf]
    %v8316 = vld [vmem:[%s19 + $0x4c] sm:$0xf]
    %v8317 = vld [vmem:[%s19 + $0x50] sm:$0xf]
    %v8318 = vld [vmem:[%s19 + $0x54] sm:$0xf]
    %v8319 = vld [vmem:[%s19 + $0x58] sm:$0xf]
    %v8320 = vld [vmem:[%s19 + $0x5c] sm:$0xf]
    %v8321 = vld [vmem:[%s19 + $0x60] sm:$0xf]
    %v8322 = vld [vmem:[%s19 + $0x64] sm:$0xf]
    %v8323 = vld [vmem:[%s19 + $0x68] sm:$0xf]
    %v8324 = vld [vmem:[%s19 + $0x6c] sm:$0xf]
    %v8325 = vld [vmem:[%s19 + $0x70] sm:$0xf]
    %v8326 = vld [vmem:[%s19 + $0x74] sm:$0xf]
    %v8327 = vld [vmem:[%s19 + $0x78] sm:$0xf]
    %v8328 = vld [vmem:[%s19 + $0x7c] sm:$0xf]
    %v8329 = vld [vmem:[%s20] sm:$0x1]
    %v8330 = vld [vmem:[%s4568] sm:$0xff]
    %v8331 = vld [vmem:[%s4568 + $0x8] sm:$0xff]
    %v8332 = vld [vmem:[%s4568 + $0x10] sm:$0xff]
    %v8333 = vld [vmem:[%s4568 + $0x18] sm:$0xff]
    %v8334 = vld [vmem:[%s4568 + $0x20] sm:$0xff]
    %v8335 = vld [vmem:[%s4568 + $0x28] sm:$0xff]
    %v8336 = vld [vmem:[%s4568 + $0x30] sm:$0xff]
    %v8337 = vld [vmem:[%s4568 + $0x38] sm:$0xff]
    %v8338 = vld [vmem:[%s4568 + $0x40] sm:$0xff]
    %v8339 = vld [vmem:[%s4568 + $0x48] sm:$0xff]
    %v8340 = vld [vmem:[%s4568 + $0x50] sm:$0xff]
    %v8341 = vld [vmem:[%s4568 + $0x58] sm:$0xff]
    %v8342 = vld [vmem:[%s4568 + $0x60] sm:$0xff]
    %v8343 = vld [vmem:[%s4568 + $0x68] sm:$0xff]
    %v8344 = vld [vmem:[%s4568 + $0x70] sm:$0xff]
    %v8345 = vld [vmem:[%s4568 + $0x78] sm:$0xff]
    %v8346 = vunpack.c.l.bf16 %v8330
    %v8347 = vunpack.c.l.bf16 %v8331
    %v8348 = vunpack.c.h.bf16 %v8330
    %v8349 = vunpack.c.h.bf16 %v8331
    %v8350 = vunpack.c.l.bf16 %v8332
    %v8351 = vunpack.c.l.bf16 %v8333
    %v8352 = vunpack.c.h.bf16 %v8332
    %v8353 = vunpack.c.h.bf16 %v8333
    %v8354 = vunpack.c.l.bf16 %v8334
    %v8355 = vunpack.c.l.bf16 %v8335
    %v8356 = vunpack.c.h.bf16 %v8334
    %v8357 = vunpack.c.h.bf16 %v8335
    %v8358 = vunpack.c.l.bf16 %v8336
    %v8359 = vunpack.c.l.bf16 %v8337
    %v8360 = vunpack.c.h.bf16 %v8336
    %v8361 = vunpack.c.h.bf16 %v8337
    %v8362 = vunpack.c.l.bf16 %v8338
    %v8363 = vunpack.c.l.bf16 %v8339
    %v8364 = vunpack.c.h.bf16 %v8338
    %v8365 = vunpack.c.h.bf16 %v8339
    %v8366 = vunpack.c.l.bf16 %v8340
    %v8367 = vunpack.c.l.bf16 %v8341
    %v8368 = vunpack.c.h.bf16 %v8340
    %v8369 = vunpack.c.h.bf16 %v8341
    %v8370 = vunpack.c.l.bf16 %v8342
    %v8371 = vunpack.c.l.bf16 %v8343
    %v8372 = vunpack.c.h.bf16 %v8342
    %v8373 = vunpack.c.h.bf16 %v8343
    %v8374 = vunpack.c.l.bf16 %v8344
    %v8375 = vunpack.c.l.bf16 %v8345
    %v8376 = vunpack.c.h.bf16 %v8344
    %v8377 = vunpack.c.h.bf16 %v8345
    %v8379 = vlaneseq
    %v8380 = vshrl.u32 %v8379, 7
    %v8381 = vsub.s32 0, %v8380
    %v8382 = vrot.slane %v8293, %v8381
    %v8383 = vlaneseq
    %v8384 = vshrl.u32 %v8383, 7
    %v8385 = vsub.s32 1, %v8384
    %v8386 = vrot.slane %v8293, %v8385
    %v8389 = vmul.f32 %v8346, %v8382
    %v8390 = vmul.f32 %v8347, %v8386
    %v8391 = vmul.f32 %v8348, %v8382
    %v8392 = vmul.f32 %v8349, %v8386
    %v8393 = vmul.f32 %v8350, %v8382
    %v8394 = vmul.f32 %v8351, %v8386
    %v8395 = vmul.f32 %v8352, %v8382
    %v8396 = vmul.f32 %v8353, %v8386
    %v8397 = vmul.f32 %v8354, %v8382
    %v8398 = vmul.f32 %v8355, %v8386
    %v8399 = vmul.f32 %v8356, %v8382
    %v8400 = vmul.f32 %v8357, %v8386
    %v8401 = vmul.f32 %v8358, %v8382
    %v8402 = vmul.f32 %v8359, %v8386
    %v8403 = vmul.f32 %v8360, %v8382
    %v8404 = vmul.f32 %v8361, %v8386
    %v8405 = vmul.f32 %v8362, %v8382
    %v8406 = vmul.f32 %v8363, %v8386
    %v8407 = vmul.f32 %v8364, %v8382
    %v8408 = vmul.f32 %v8365, %v8386
    %v8409 = vmul.f32 %v8366, %v8382
    %v8410 = vmul.f32 %v8367, %v8386
    %v8411 = vmul.f32 %v8368, %v8382
    %v8412 = vmul.f32 %v8369, %v8386
    %v8413 = vmul.f32 %v8370, %v8382
    %v8414 = vmul.f32 %v8371, %v8386
    %v8415 = vmul.f32 %v8372, %v8382
    %v8416 = vmul.f32 %v8373, %v8386
    %v8417 = vmul.f32 %v8374, %v8382
    %v8418 = vmul.f32 %v8375, %v8386
    %v8419 = vmul.f32 %v8376, %v8382
    %v8420 = vmul.f32 %v8377, %v8386
    %v8422 = vlaneseq
    %v8423 = vshrl.u32 %v8422, 7
    %v8424 = vsub.s32 0, %v8423
    %v8425 = vrot.slane %v8296, %v8424
    %v8426 = vlaneseq
    %v8427 = vshrl.u32 %v8426, 7
    %v8428 = vsub.s32 1, %v8427
    %v8429 = vrot.slane %v8296, %v8428
    %v8432 = vadd.f32 %v8389, %v8425
    %v8433 = vadd.f32 %v8390, %v8429
    %v8434 = vadd.f32 %v8391, %v8425
    %v8435 = vadd.f32 %v8392, %v8429
    %v8436 = vadd.f32 %v8393, %v8425
    %v8437 = vadd.f32 %v8394, %v8429
    %v8438 = vadd.f32 %v8395, %v8425
    %v8439 = vadd.f32 %v8396, %v8429
    %v8440 = vadd.f32 %v8397, %v8425
    %v8441 = vadd.f32 %v8398, %v8429
    %v8442 = vadd.f32 %v8399, %v8425
    %v8443 = vadd.f32 %v8400, %v8429
    %v8444 = vadd.f32 %v8401, %v8425
    %v8445 = vadd.f32 %v8402, %v8429
    %v8446 = vadd.f32 %v8403, %v8425
    %v8447 = vadd.f32 %v8404, %v8429
    %v8448 = vadd.f32 %v8405, %v8425
    %v8449 = vadd.f32 %v8406, %v8429
    %v8450 = vadd.f32 %v8407, %v8425
    %v8451 = vadd.f32 %v8408, %v8429
    %v8452 = vadd.f32 %v8409, %v8425
    %v8453 = vadd.f32 %v8410, %v8429
    %v8454 = vadd.f32 %v8411, %v8425
    %v8455 = vadd.f32 %v8412, %v8429
    %v8456 = vadd.f32 %v8413, %v8425
    %v8457 = vadd.f32 %v8414, %v8429
    %v8458 = vadd.f32 %v8415, %v8425
    %v8459 = vadd.f32 %v8416, %v8429
    %v8460 = vadd.f32 %v8417, %v8425
    %v8461 = vadd.f32 %v8418, %v8429
    %v8462 = vadd.f32 %v8419, %v8425
    %v8463 = vadd.f32 %v8420, %v8429
    %v8464 = vmax.f32 %v8432, 0.0
    %v8465 = vmax.f32 %v8433, 0.0
    %v8466 = vmax.f32 %v8434, 0.0
    %v8467 = vmax.f32 %v8435, 0.0
    %v8468 = vmax.f32 %v8436, 0.0
    %v8469 = vmax.f32 %v8437, 0.0
    %v8470 = vmax.f32 %v8438, 0.0
    %v8471 = vmax.f32 %v8439, 0.0
    %v8472 = vmax.f32 %v8440, 0.0
    %v8473 = vmax.f32 %v8441, 0.0
    %v8474 = vmax.f32 %v8442, 0.0
    %v8475 = vmax.f32 %v8443, 0.0
    %v8476 = vmax.f32 %v8444, 0.0
    %v8477 = vmax.f32 %v8445, 0.0
    %v8478 = vmax.f32 %v8446, 0.0
    %v8479 = vmax.f32 %v8447, 0.0
    %v8480 = vmax.f32 %v8448, 0.0
    %v8481 = vmax.f32 %v8449, 0.0
    %v8482 = vmax.f32 %v8450, 0.0
    %v8483 = vmax.f32 %v8451, 0.0
    %v8484 = vmax.f32 %v8452, 0.0
    %v8485 = vmax.f32 %v8453, 0.0
    %v8486 = vmax.f32 %v8454, 0.0
    %v8487 = vmax.f32 %v8455, 0.0
    %v8488 = vmax.f32 %v8456, 0.0
    %v8489 = vmax.f32 %v8457, 0.0
    %v8490 = vmax.f32 %v8458, 0.0
    %v8491 = vmax.f32 %v8459, 0.0
    %v8492 = vmax.f32 %v8460, 0.0
    %v8493 = vmax.f32 %v8461, 0.0
    %v8494 = vmax.f32 %v8462, 0.0
    %v8495 = vmax.f32 %v8463, 0.0
    %v8496 = vpack.c.bf16 %v8466, %v8464
    %v8497 = vpack.c.bf16 %v8467, %v8465
    %v8498 = vpack.c.bf16 %v8470, %v8468
    %v8499 = vpack.c.bf16 %v8471, %v8469
    %v8500 = vpack.c.bf16 %v8474, %v8472
    %v8501 = vpack.c.bf16 %v8475, %v8473
    %v8502 = vpack.c.bf16 %v8478, %v8476
    %v8503 = vpack.c.bf16 %v8479, %v8477
    %v8504 = vpack.c.bf16 %v8482, %v8480
    %v8505 = vpack.c.bf16 %v8483, %v8481
    %v8506 = vpack.c.bf16 %v8486, %v8484
    %v8507 = vpack.c.bf16 %v8487, %v8485
    %v8508 = vpack.c.bf16 %v8490, %v8488
    %v8509 = vpack.c.bf16 %v8491, %v8489
    %v8510 = vpack.c.bf16 %v8494, %v8492
    %v8511 = vpack.c.bf16 %v8495, %v8493
    %v8513 = vlaneseq
    %v8514 = vshrl.u32 %v8513, 7
    %v8515 = vsub.s32 0, %v8514
    %v8516 = vrot.slane %v8329, %v8515
    %v8550 = vunpack.c.l.b16 %v8297
    %v8551 = vunpack.c.l.b16 %v8298
    %v8552 = vunpack.c.l.b16 %v8299
    %v8553 = vunpack.c.l.b16 %v8300
    %v8554 = vunpack.c.l.b16 %v8301
    %v8555 = vunpack.c.l.b16 %v8302
    %v8556 = vunpack.c.l.b16 %v8303
    %v8557 = vunpack.c.l.b16 %v8304
    %v8558 = vunpack.c.l.b16 %v8305
    %v8559 = vunpack.c.l.b16 %v8306
    %v8560 = vunpack.c.l.b16 %v8307
    %v8561 = vunpack.c.l.b16 %v8308
    %v8562 = vunpack.c.l.b16 %v8309
    %v8563 = vunpack.c.l.b16 %v8310
    %v8564 = vunpack.c.l.b16 %v8311
    %v8565 = vunpack.c.l.b16 %v8312
    %v8566 = vunpack.c.l.b16 %v8313
    %v8567 = vunpack.c.l.b16 %v8314
    %v8568 = vunpack.c.l.b16 %v8315
    %v8569 = vunpack.c.l.b16 %v8316
    %v8570 = vunpack.c.l.b16 %v8317
    %v8571 = vunpack.c.l.b16 %v8318
    %v8572 = vunpack.c.l.b16 %v8319
    %v8573 = vunpack.c.l.b16 %v8320
    %v8574 = vunpack.c.l.b16 %v8321
    %v8575 = vunpack.c.l.b16 %v8322
    %v8576 = vunpack.c.l.b16 %v8323
    %v8577 = vunpack.c.l.b16 %v8324
    %v8578 = vunpack.c.l.b16 %v8325
    %v8579 = vunpack.c.l.b16 %v8326
    %v8580 = vunpack.c.l.b16 %v8327
    %v8581 = vunpack.c.l.b16 %v8328
    %v8582 = vpack.c.b16 %v8551, %v8550
    %v8583 = vpack.c.b16 %v8553, %v8552
    %v8584 = vpack.c.b16 %v8555, %v8554
    %v8585 = vpack.c.b16 %v8557, %v8556
    %v8586 = vpack.c.b16 %v8559, %v8558
    %v8587 = vpack.c.b16 %v8561, %v8560
    %v8588 = vpack.c.b16 %v8563, %v8562
    %v8589 = vpack.c.b16 %v8565, %v8564
    %v8590 = vpack.c.b16 %v8567, %v8566
    %v8591 = vpack.c.b16 %v8569, %v8568
    %v8592 = vpack.c.b16 %v8571, %v8570
    %v8593 = vpack.c.b16 %v8573, %v8572
    %v8594 = vpack.c.b16 %v8575, %v8574
    %v8595 = vpack.c.b16 %v8577, %v8576
    %v8596 = vpack.c.b16 %v8579, %v8578
    %v8597 = vpack.c.b16 %v8581, %v8580
    %8614 = vmatprep.subr.bf16.mxu0 0
    %8615 = vmatpush1.bf16.msra.mxu0 %v8582
    %8616 = vmatprep.subr.bf16.mxu0 0
    %8617 = vmatpush1.bf16.msra.mxu0 %v8583
    %8618 = vmatprep.subr.bf16.mxu0 0
    %8619 = vmatpush1.bf16.msra.mxu0 %v8584
    %8620 = vmatprep.subr.bf16.mxu0 0
    %8621 = vmatpush1.bf16.msra.mxu0 %v8585
    %8622 = vmatprep.subr.bf16.mxu0 0
    %8623 = vmatpush1.bf16.msra.mxu0 %v8586
    %8624 = vmatprep.subr.bf16.mxu0 0
    %8625 = vmatpush1.bf16.msra.mxu0 %v8587
    %8626 = vmatprep.subr.bf16.mxu0 0
    %8627 = vmatpush1.bf16.msra.mxu0 %v8588
    %8628 = vmatprep.subr.bf16.mxu0 0
    %8629 = vmatpush1.bf16.msra.mxu0 %v8589
    %8630 = vmatprep.subr.bf16.mxu0 0
    %8631 = vmatpush1.bf16.msra.mxu0 %v8590
    %8632 = vmatprep.subr.bf16.mxu0 0
    %8633 = vmatpush1.bf16.msra.mxu0 %v8591
    %8634 = vmatprep.subr.bf16.mxu0 0
    %8635 = vmatpush1.bf16.msra.mxu0 %v8592
    %8636 = vmatprep.subr.bf16.mxu0 0
    %8637 = vmatpush1.bf16.msra.mxu0 %v8593
    %8638 = vmatprep.subr.bf16.mxu0 0
    %8639 = vmatpush1.bf16.msra.mxu0 %v8594
    %8640 = vmatprep.subr.bf16.mxu0 0
    %8641 = vmatpush1.bf16.msra.mxu0 %v8595
    %8642 = vmatprep.subr.bf16.mxu0 0
    %8643 = vmatpush1.bf16.msra.mxu0 %v8596
    %8644 = vmatprep.subr.bf16.mxu0 0
    %8645 = vmatpush1.bf16.msra.mxu0 %v8597
    %8646 = vmatprep.mubr.bf16.mxu0 %v8497
    %8647 = vmatmul.mubr.bf16.gmra.mrb[0].mxu0 %v8496
    %v8648 = vpop.f32.mrb[0].mxu0
    %v8649 = vadd.f32 %v8516, %v8648
    %v8650 = vpop.f32.mrb[0].mxu0
    %v8651 = vpop.f32.mrb[0].mxu0
    %v8652 = vadd.f32 %v8516, %v8651
    %v8653 = vpop.f32.mrb[0].mxu0
    %8654 = vmatprep.mubr.bf16.mxu0 %v8499
    %8655 = vmatmul.mubr.bf16.gmra.mrb[0].mxu0 %v8498
    %v8656 = vpop.f32.mrb[0].mxu0
    %v8657 = vadd.f32 %v8516, %v8656
    %v8658 = vpop.f32.mrb[0].mxu0
    %v8659 = vpop.f32.mrb[0].mxu0
    %v8660 = vadd.f32 %v8516, %v8659
    %v8661 = vpop.f32.mrb[0].mxu0
    %8662 = vmatprep.mubr.bf16.mxu0 %v8501
    %8663 = vmatmul.mubr.bf16.gmra.mrb[0].mxu0 %v8500
    %v8664 = vpop.f32.mrb[0].mxu0
    %v8665 = vadd.f32 %v8516, %v8664
    %v8666 = vpop.f32.mrb[0].mxu0
    %v8667 = vpop.f32.mrb[0].mxu0
    %v8668 = vadd.f32 %v8516, %v8667
    %v8669 = vpop.f32.mrb[0].mxu0
    %8670 = vmatprep.mubr.bf16.mxu0 %v8503
    %8671 = vmatmul.mubr.bf16.gmra.mrb[0].mxu0 %v8502
    %v8672 = vpop.f32.mrb[0].mxu0
    %v8673 = vadd.f32 %v8516, %v8672
    %v8674 = vpop.f32.mrb[0].mxu0
    %v8675 = vpop.f32.mrb[0].mxu0
    %v8676 = vadd.f32 %v8516, %v8675
    %v8677 = vpop.f32.mrb[0].mxu0
    %8678 = vmatprep.mubr.bf16.mxu0 %v8505
    %8679 = vmatmul.mubr.bf16.gmra.mrb[0].mxu0 %v8504
    %v8680 = vpop.f32.mrb[0].mxu0
    %v8681 = vadd.f32 %v8516, %v8680
    %v8682 = vpop.f32.mrb[0].mxu0
    %v8683 = vpop.f32.mrb[0].mxu0
    %v8684 = vadd.f32 %v8516, %v8683
    %v8685 = vpop.f32.mrb[0].mxu0
    %8686 = vmatprep.mubr.bf16.mxu0 %v8507
    %8687 = vmatmul.mubr.bf16.gmra.mrb[0].mxu0 %v8506
    %v8688 = vpop.f32.mrb[0].mxu0
    %v8689 = vadd.f32 %v8516, %v8688
    %v8690 = vpop.f32.mrb[0].mxu0
    %v8691 = vpop.f32.mrb[0].mxu0
    %v8692 = vadd.f32 %v8516, %v8691
    %v8693 = vpop.f32.mrb[0].mxu0
    %8694 = vmatprep.mubr.bf16.mxu0 %v8509
    %8695 = vmatmul.mubr.bf16.gmra.mrb[0].mxu0 %v8508
    %v8696 = vpop.f32.mrb[0].mxu0
    %v8697 = vadd.f32 %v8516, %v8696
    %v8698 = vpop.f32.mrb[0].mxu0
    %v8699 = vpop.f32.mrb[0].mxu0
    %v8700 = vadd.f32 %v8516, %v8699
    %v8701 = vpop.f32.mrb[0].mxu0
    %8702 = vmatprep.mubr.bf16.mxu0 %v8511
    %8703 = vmatmul.mubr.bf16.gmra.mrb[0].mxu0 %v8510
    %v8704 = vpop.f32.mrb[0].mxu0
    %v8705 = vadd.f32 %v8516, %v8704
    %v8706 = vpop.f32.mrb[0].mxu0
    %v8707 = vpop.f32.mrb[0].mxu0
    %v8708 = vadd.f32 %v8516, %v8707
    %v8709 = vpop.f32.mrb[0].mxu0
    %8710 = vdwg.mxu0
    %8711 = vmax.xlane.f32.xlu0 %v8649
    %v8712 = vpop.xlane.xlu0 %8711
    %8713 = vmax.xlane.f32.xlu0 %v8652
    %v8714 = vpop.xlane.xlu0 %8713
    %8715 = vmax.xlane.f32.xlu0 %v8657
    %v8716 = vpop.xlane.xlu0 %8715
    %8717 = vmax.xlane.f32.xlu0 %v8660
    %v8718 = vpop.xlane.xlu0 %8717
    %8719 = vmax.xlane.f32.xlu0 %v8665
    %v8720 = vpop.xlane.xlu0 %8719
    %8721 = vmax.xlane.f32.xlu0 %v8668
    %v8722 = vpop.xlane.xlu0 %8721
    %8723 = vmax.xlane.f32.xlu0 %v8673
    %v8724 = vpop.xlane.xlu0 %8723
    %8725 = vmax.xlane.f32.xlu0 %v8676
    %v8726 = vpop.xlane.xlu0 %8725
    %8727 = vmax.xlane.f32.xlu0 %v8681
    %v8728 = vpop.xlane.xlu0 %8727
    %8729 = vmax.xlane.f32.xlu0 %v8684
    %v8730 = vpop.xlane.xlu0 %8729
    %8731 = vmax.xlane.f32.xlu0 %v8689
    %v8732 = vpop.xlane.xlu0 %8731
    %8733 = vmax.xlane.f32.xlu0 %v8692
    %v8734 = vpop.xlane.xlu0 %8733
    %8735 = vmax.xlane.f32.xlu0 %v8697
    %v8736 = vpop.xlane.xlu0 %8735
    %8737 = vmax.xlane.f32.xlu0 %v8700
    %v8738 = vpop.xlane.xlu0 %8737
    %8739 = vmax.xlane.f32.xlu0 %v8705
    %v8740 = vpop.xlane.xlu0 %8739
    %8741 = vmax.xlane.f32.xlu0 %v8708
    %v8742 = vpop.xlane.xlu0 %8741
    %v8743 = vsub.f32 %v8649, %v8712
    %v8744 = vsub.f32 %v8652, %v8714
    %v8745 = vsub.f32 %v8657, %v8716
    %v8746 = vsub.f32 %v8660, %v8718
    %v8747 = vsub.f32 %v8665, %v8720
    %v8748 = vsub.f32 %v8668, %v8722
    %v8749 = vsub.f32 %v8673, %v8724
    %v8750 = vsub.f32 %v8676, %v8726
    %v8751 = vsub.f32 %v8681, %v8728
    %v8752 = vsub.f32 %v8684, %v8730
    %v8753 = vsub.f32 %v8689, %v8732
    %v8754 = vsub.f32 %v8692, %v8734
    %v8755 = vsub.f32 %v8697, %v8736
    %v8756 = vsub.f32 %v8700, %v8738
    %v8757 = vsub.f32 %v8705, %v8740
    %v8758 = vsub.f32 %v8708, %v8742
    %v8759 = vmul.f32 %v8743, 1.442695
    %v8760 = vpow.pop %v8759
    %v8761 = vmul.f32 %v8744, 1.442695
    %v8762 = vpow.pop %v8761
    %v8763 = vmul.f32 %v8745, 1.442695
    %v8764 = vpow.pop %v8763
    %v8765 = vmul.f32 %v8746, 1.442695
    %v8766 = vpow.pop %v8765
    %v8767 = vmul.f32 %v8747, 1.442695
    %v8768 = vpow.pop %v8767
    %v8769 = vmul.f32 %v8748, 1.442695
    %v8770 = vpow.pop %v8769
    %v8771 = vmul.f32 %v8749, 1.442695
    %v8772 = vpow.pop %v8771
    %v8773 = vmul.f32 %v8750, 1.442695
    %v8774 = vpow.pop %v8773
    %v8775 = vmul.f32 %v8751, 1.442695
    %v8776 = vpow.pop %v8775
    %v8777 = vmul.f32 %v8752, 1.442695
    %v8778 = vpow.pop %v8777
    %v8779 = vmul.f32 %v8753, 1.442695
    %v8780 = vpow.pop %v8779
    %v8781 = vmul.f32 %v8754, 1.442695
    %v8782 = vpow.pop %v8781
    %v8783 = vmul.f32 %v8755, 1.442695
    %v8784 = vpow.pop %v8783
    %v8785 = vmul.f32 %v8756, 1.442695
    %v8786 = vpow.pop %v8785
    %v8787 = vmul.f32 %v8757, 1.442695
    %v8788 = vpow.pop %v8787
    %v8789 = vmul.f32 %v8758, 1.442695
    %v8790 = vpow.pop %v8789
    %8791 = vadd.xlane.f32.xlu0 %v8760
    %v8792 = vpop.xlane.xlu0 %8791
    %8793 = vadd.xlane.f32.xlu0 %v8762
    %v8794 = vpop.xlane.xlu0 %8793
    %8795 = vadd.xlane.f32.xlu0 %v8764
    %v8796 = vpop.xlane.xlu0 %8795
    %8797 = vadd.xlane.f32.xlu0 %v8766
    %v8798 = vpop.xlane.xlu0 %8797
    %8799 = vadd.xlane.f32.xlu0 %v8768
    %v8800 = vpop.xlane.xlu0 %8799
    %8801 = vadd.xlane.f32.xlu0 %v8770
    %v8802 = vpop.xlane.xlu0 %8801
    %8803 = vadd.xlane.f32.xlu0 %v8772
    %v8804 = vpop.xlane.xlu0 %8803
    %8805 = vadd.xlane.f32.xlu0 %v8774
    %v8806 = vpop.xlane.xlu0 %8805
    %8807 = vadd.xlane.f32.xlu0 %v8776
    %v8808 = vpop.xlane.xlu0 %8807
    %8809 = vadd.xlane.f32.xlu0 %v8778
    %v8810 = vpop.xlane.xlu0 %8809
    %8811 = vadd.xlane.f32.xlu0 %v8780
    %v8812 = vpop.xlane.xlu0 %8811
    %8813 = vadd.xlane.f32.xlu0 %v8782
    %v8814 = vpop.xlane.xlu0 %8813
    %8815 = vadd.xlane.f32.xlu0 %v8784
    %v8816 = vpop.xlane.xlu0 %8815
    %8817 = vadd.xlane.f32.xlu0 %v8786
    %v8818 = vpop.xlane.xlu0 %8817
    %8819 = vadd.xlane.f32.xlu0 %v8788
    %v8820 = vpop.xlane.xlu0 %8819
    %8821 = vadd.xlane.f32.xlu0 %v8790
    %v8822 = vpop.xlane.xlu0 %8821
    %v8823 = vrcp.pop %v8792
    %v8824 = vrcp.pop %v8794
    %v8825 = vrcp.pop %v8796
    %v8826 = vrcp.pop %v8798
    %v8827 = vrcp.pop %v8800
    %v8828 = vrcp.pop %v8802
    %v8829 = vrcp.pop %v8804
    %v8830 = vrcp.pop %v8806
    %v8831 = vrcp.pop %v8808
    %v8832 = vrcp.pop %v8810
    %v8833 = vrcp.pop %v8812
    %v8834 = vrcp.pop %v8814
    %v8835 = vrcp.pop %v8816
    %v8836 = vrcp.pop %v8818
    %v8837 = vrcp.pop %v8820
    %v8838 = vrcp.pop %v8822
    %v8839 = vmul.f32 %v8760, %v8823
    %v8840 = vmul.f32 %v8762, %v8824
    %v8841 = vmul.f32 %v8764, %v8825
    %v8842 = vmul.f32 %v8766, %v8826
    %v8843 = vmul.f32 %v8768, %v8827
    %v8844 = vmul.f32 %v8770, %v8828
    %v8845 = vmul.f32 %v8772, %v8829
    %v8846 = vmul.f32 %v8774, %v8830
    %v8847 = vmul.f32 %v8776, %v8831
    %v8848 = vmul.f32 %v8778, %v8832
    %v8849 = vmul.f32 %v8780, %v8833
    %v8850 = vmul.f32 %v8782, %v8834
    %v8851 = vmul.f32 %v8784, %v8835
    %v8852 = vmul.f32 %v8786, %v8836
    %v8853 = vmul.f32 %v8788, %v8837
    %v8854 = vmul.f32 %v8790, %v8838
    %8855 = vst [vmem:[%s21] sm:$0xff] %v8839
    %8856 = vst [vmem:[%s21 + $0x8] sm:$0xff] %v8840
    %8857 = vst [vmem:[%s21 + $0x10] sm:$0xff] %v8841
    %8858 = vst [vmem:[%s21 + $0x18] sm:$0xff] %v8842
    %8859 = vst [vmem:[%s21 + $0x20] sm:$0xff] %v8843
    %8860 = vst [vmem:[%s21 + $0x28] sm:$0xff] %v8844
    %8861 = vst [vmem:[%s21 + $0x30] sm:$0xff] %v8845
    %8862 = vst [vmem:[%s21 + $0x38] sm:$0xff] %v8846
    %8863 = vst [vmem:[%s21 + $0x40] sm:$0xff] %v8847
    %8864 = vst [vmem:[%s21 + $0x48] sm:$0xff] %v8848
    %8865 = vst [vmem:[%s21 + $0x50] sm:$0xff] %v8849
    %8866 = vst [vmem:[%s21 + $0x58] sm:$0xff] %v8850
    %8867 = vst [vmem:[%s21 + $0x60] sm:$0xff] %v8851
    %8868 = vst [vmem:[%s21 + $0x68] sm:$0xff] %v8852
    %8869 = vst [vmem:[%s21 + $0x70] sm:$0xff] %v8853
    %8870 = vst [vmem:[%s21 + $0x78] sm:$0xff] %v8854
  $region93: #{fcnn_forward.1} parent=0 // pred_fallthru
    _
  // Predicated region
  $region94: #{fcnn_forward.1} parent=0 // pred_check
    _
  $region95: #{fcnn_forward.1} parent=0 // pred_check_branch
    %8872 = sbr.rel (0) target = $region97
  $region96: #{fcnn_forward.1} parent=0 // pred_region
    _
  $region97: #{fcnn_forward.1} parent=0 // pred_fallthru
    _
  // Predicated region
  $region98: #{fcnn_forward.1} parent=0 // pred_check
    _
  $region99: #{fcnn_forward.1} parent=0 // pred_check_branch
    %8874 = sbr.rel (0) target = $region101
  $region100: #{fcnn_forward.1} parent=0 // pred_region
    _
  $region101: #{fcnn_forward.1} parent=0 // pred_fallthru
    _

</llo_original>
